<compile_context>
chip_gen: v6e
topology: v6e:2x2x1
jax: 0.10.0
libtpu: 0.0.40
codegen_flags: <defaults>
</compile_context>

<pallas_src>
import functools

import jax
import jax.numpy as jnp
import numpy as np
from jax import lax
from jax.experimental import pallas as pl
from jax.experimental.pallas import tpu as pltpu

EPS = 1e-5  # nn.LayerNorm default eps
F32 = jnp.float32
BF16 = jnp.bfloat16


def _round_up(x, m):
    return (x + m - 1) // m * m


# ---------------------------------------------------------------------------
# in-kernel helpers
# ---------------------------------------------------------------------------
def _layernorm(x, g, b, c_real, c_pad):
    """LayerNorm over the last axis ignoring zero-padded lanes >= c_real.

    Invariant: padded lanes of x are exactly zero (zero-padded weights/biases
    keep it that way through every layer), so mean = sum / c_real.  The lane
    mask on the variance is skipped at trace time when c_real == c_pad
    (production channel counts are 128-aligned).  Padded lanes come out exactly
    zero again (g = b = 0 there)."""
    inv_n = 1.0 / float(c_real)
    mu = jnp.sum(x, axis=-1, keepdims=True) * inv_n
    if c_real == c_pad:
        d = x - mu
    else:
        lane = lax.broadcasted_iota(jnp.int32, x.shape, x.ndim - 1)
        d = jnp.where(lane < c_real, x - mu, 0.0)
    var = jnp.sum(d * d, axis=-1, keepdims=True) * inv_n
    return d * lax.rsqrt(var + EPS) * g + b


# ---------------------------------------------------------------------------
# fused kernel: patch-embed + ln_pre -> N residual attention blocks -> ln_post @ proj
# ---------------------------------------------------------------------------
def fused_vit_kernel(
    patches_ref, wpatch_ref, pos_ref, gpre_ref, bpre_ref,
    ln1g_ref, ln1b_ref, wqkv_ref, bqkv_ref, wo_ref, bo_ref,
    ln2g_ref, ln2b_ref, wfc_ref, bfc_ref, wpr_ref, bpr_ref,
    gpost_ref, bpost_ref, proj_ref,
    out_ref, h_ref,
    *, num_heads, c_real, c_pad, d_real, bt, seq):
  layer = pl.program_id(1)
  m = bt * seq
  C, D, H = c_real, d_real, num_heads

  # ---- layer-0 prologue: patch embedding + (cls|pos) + ln_pre, kept resident ----
  @pl.when(layer == 0)
  def _():
    # row 0 of each sample's patches is an all-zero dummy patch; the cls
    # embedding is folded into row 0 of pos, so no concatenate is needed.
    pf = patches_ref[...].reshape(m, patches_ref.shape[-1])          # (Bt*S, Pp)
    emb = jnp.dot(pf, wpatch_ref[...], preferred_element_type=F32)   # (Bt*S, Cp)
    x0 = (emb.reshape(bt, seq, c_pad) + pos_ref[...]).reshape(m, c_pad)
    h_ref[...] = _layernorm(x0, gpre_ref[...], bpre_ref[...], c_real, c_pad)

  x = h_ref[...]                                                     # (Bt*S, Cp) f32
  scale = float(D) ** -0.5

  # ---- multi-head self attention on ln_1(x) ----
  # One fused QKV matmul (no H-way broadcast, no per-head weight padding).
  xn = _layernorm(x, ln1g_ref[...], ln1b_ref[...], c_real, c_pad).astype(BF16)
  qkv = jnp.dot(xn, wqkv_ref[...], preferred_element_type=F32) + bqkv_ref[...]  # (Bt*S, 3C)

  wo = wo_ref[...]                                                   # (C, Cp) bf16
  attn = jnp.zeros((m, c_pad), F32)
  for hd in range(H):
    # static lane slices of the fused qkv result (head hd occupies D lanes).
    qh = (qkv[:, hd * D:(hd + 1) * D] * scale).astype(BF16).reshape(bt, seq, D)
    kh = qkv[:, C + hd * D: C + (hd + 1) * D].astype(BF16).reshape(bt, seq, D)
    vh = qkv[:, 2 * C + hd * D: 2 * C + (hd + 1) * D].astype(BF16).reshape(bt, seq, D)
    s = jnp.einsum("bqd,bkd->bqk", qh, kh, preferred_element_type=F32)  # (Bt,S,S)
    s = s - jnp.max(s, axis=-1, keepdims=True)
    p = jnp.exp(s)
    denom = jnp.sum(p, axis=-1, keepdims=True)
    o = jnp.einsum("bqk,bkd->bqd", p.astype(BF16), vh, preferred_element_type=F32)
    # approx reciprocal (EUP) — documented numeric deviation vs exact divide.
    o = (o * pl.reciprocal(denom, approx=True)).astype(BF16).reshape(m, D)
    # head-concat folded into the output projection, accumulated per head
    # (no (H, S, Cp) f32 intermediate, no cross-head reduction).
    attn = attn + jnp.dot(o, wo[hd * D:(hd + 1) * D, :],
                          preferred_element_type=F32)

  h1 = x + attn + bo_ref[...]

  # ---- MLP: c_fc -> QuickGELU -> c_proj ----
  hn = _layernorm(h1, ln2g_ref[...], ln2b_ref[...], c_real, c_pad).astype(BF16)
  f = jnp.dot(hn, wfc_ref[...], preferred_element_type=F32) + bfc_ref[...]
  f = f * jax.nn.sigmoid(1.702 * f)                                  # QuickGELU
  h2 = h1 + jnp.dot(f.astype(BF16), wpr_ref[...],
                    preferred_element_type=F32) + bpr_ref[...]
  h_ref[...] = h2

  # ---- last-layer epilogue: ln_post + output projection ----
  @pl.when(layer == pl.num_programs(1) - 1)
  def _():
    hp = _layernorm(h2, gpost_ref[...], bpost_ref[...], c_real, c_pad).astype(BF16)
    out = jnp.dot(hp, proj_ref[...], preferred_element_type=F32)     # (Bt*S, Op)
    out_ref[...] = out.reshape(bt, seq, out_ref.shape[-1])


# ---------------------------------------------------------------------------
# host-side glue: im2col, weight padding / packing, pallas_call wrapper
# ---------------------------------------------------------------------------
def _extract_patches(x, patch_size, max_patch_len):
    B, Cin, Himg, W = x.shape
    p = patch_size
    hp = Himg // p
    wp = min(W // p, max_patch_len)              # width crop h[:, :, :, :max_patch_len]
    xc = x[:, :, :hp * p, :wp * p]
    patches = xc.reshape(B, Cin, hp, p, wp, p).transpose(0, 2, 4, 1, 3, 5)
    return patches.reshape(B, hp * wp, Cin * p * p), hp * wp


def pack_params(params, num_heads):
    """Pad channel dims to multiples of 128 lanes, fuse q/k/v into one (Cp, 3C)
    weight (heads packed at natural width D — no per-head padding), stack
    per-layer weights on a leading layer axis, cast matmul weights to bf16
    (biases / LayerNorm params stay f32)."""
    del num_heads  # head layout is the natural packed layout; nothing to split
    P, C = params["wpatch"].shape
    Cp = _round_up(C, 128)
    Pp = _round_up(P, 128)
    Fp = _round_up(4 * C, 128)
    Op = _round_up(params["proj"].shape[1], 128)

    def padw(w, shape):
        return jnp.pad(w, [(0, t - s) for s, t in zip(w.shape, shape)])

    wpatch = padw(params["wpatch"], (Pp, Cp)).astype(BF16)
    # fold the cls embedding into row 0 of the positional embedding
    pos = params["pos"].at[0].add(params["cls"][0])
    pos = padw(pos, (pos.shape[0], Cp))
    proj = padw(params["proj"], (Cp, Op)).astype(BF16)

    def pad_ln(g, b):
        return padw(g, (1, Cp)), padw(b, (1, Cp))

    gpre, bpre = pad_ln(*params["ln_pre"])
    gpost, bpost = pad_ln(*params["ln_post"])

    keys = ["ln1g", "ln1b", "wqkv", "bqkv", "wo", "bo",
            "ln2g", "ln2b", "wfc", "bfc", "wpr", "bpr"]
    stacked = {k: [] for k in keys}
    for blk in params["blocks"]:
        g1, b1 = pad_ln(blk["ln1g"], blk["ln1b"])
        g2, b2 = pad_ln(blk["ln2g"], blk["ln2b"])
        stacked["ln1g"].append(g1); stacked["ln1b"].append(b1)
        stacked["ln2g"].append(g2); stacked["ln2b"].append(b2)
        # fused qkv weight: (C, 3C), columns [q | k | v], heads at natural width
        stacked["wqkv"].append(padw(blk["wqkv"], (Cp, 3 * C)).astype(BF16))
        stacked["bqkv"].append(blk["bqkv"])                          # (1, 3C) f32
        # out projection: rows head-packed (C = H*D), cols padded to Cp
        stacked["wo"].append(padw(blk["wo"], (C, Cp)).astype(BF16))
        stacked["bo"].append(padw(blk["bo"], (1, Cp)))
        stacked["wfc"].append(padw(blk["wfc"], (Cp, Fp)).astype(BF16))
        stacked["bfc"].append(padw(blk["bfc"], (1, Fp)))
        stacked["wpr"].append(padw(blk["wpr"], (Fp, Cp)).astype(BF16))
        stacked["bpr"].append(padw(blk["bpr"], (1, Cp)))

    packed = {k: jnp.stack(v) for k, v in stacked.items()}
    packed.update(wpatch=wpatch, pos=pos, proj=proj,
                  gpre=gpre, bpre=bpre, gpost=gpost, bpost=bpost)
    return packed


def text_vit_forward(x, packed, *, patch_size, max_patch_len, num_heads, hidden,
                     out_dim, batch_tile=None,
                     vmem_limit_bytes=48 * 1024 * 1024):
    patches, L = _extract_patches(x, patch_size, max_patch_len)
    B, _, P = patches.shape
    S = L + 1
    H = num_heads
    NL = packed["wqkv"].shape[0]
    Pp = packed["wpatch"].shape[0]
    Cp = packed["wpatch"].shape[1]
    C3 = packed["wqkv"].shape[-1]
    Fp = packed["wfc"].shape[-1]
    Op = packed["proj"].shape[-1]

    # batch tile: amortize per-layer weight streaming over Bt samples and give
    # the MXU an M-dim of Bt*S rows (review: target Bt*S >= 256).
    Bt = batch_tile if batch_tile is not None else min(B, max(1, -(-256 // S)))
    Bpad = -(-B // Bt) * Bt

    # prepend the all-zero "cls" patch row (its embedding lives in pos row 0),
    # pad the patch feature dim to a lane-dense Pp and the batch to Bt-multiple.
    patches = jnp.concatenate(
        [jnp.zeros((B, 1, P), patches.dtype), patches], axis=1)
    patches = jnp.pad(
        patches, ((0, Bpad - B), (0, 0), (0, Pp - P))).astype(BF16)
    pos = packed["pos"][:S]

    def const(shape):
        return pl.BlockSpec(shape, lambda b, l: (0,) * len(shape))

    def per_layer(shape):
        return pl.BlockSpec((None,) + shape, lambda b, l: (l,) + (0,) * len(shape))

    in_specs = [
        pl.BlockSpec((Bt, S, Pp), lambda b, l: (b, 0, 0)),   # patches (zero cls row)
        const((Pp, Cp)),                          # patch projection
        const((S, Cp)),                           # pos (+cls folded into row 0)
        const((1, Cp)), const((1, Cp)),           # ln_pre
        per_layer((1, Cp)), per_layer((1, Cp)),   # ln_1
        per_layer((Cp, C3)), per_layer((1, C3)),  # fused qkv weight / bias
        per_layer((hidden, Cp)), per_layer((1, Cp)),   # out proj (head-packed rows)
        per_layer((1, Cp)), per_layer((1, Cp)),   # ln_2
        per_layer((Cp, Fp)), per_layer((1, Fp)),  # c_fc
        per_layer((Fp, Cp)), per_layer((1, Cp)),  # c_proj
        const((1, Cp)), const((1, Cp)),           # ln_post
        const((Cp, Op)),                          # proj
    ]

    kernel = functools.partial(
        fused_vit_kernel, num_heads=H, c_real=hidden, c_pad=Cp,
        d_real=hidden // H, bt=Bt, seq=S)

    out = pl.pallas_call(
        kernel,
        out_shape=jax.ShapeDtypeStruct((Bpad, S, Op), F32),
        grid=(Bpad // Bt, NL),
        in_specs=in_specs,
        out_specs=pl.BlockSpec((Bt, S, Op), lambda b, l: (b, 0, 0)),
        scratch_shapes=[pltpu.VMEM((Bt * S, Cp), F32)],   # resident residual stream
        compiler_params=pltpu.CompilerParams(
            dimension_semantics=("parallel", "arbitrary"),
            # 48 MiB is safe on every generation (v7x physical = 64 MiB);
            # raise to ~100 MiB on v6e for deeper weight prefetch.
            vmem_limit_bytes=vmem_limit_bytes),
    )(patches, packed["wpatch"], pos, packed["gpre"], packed["bpre"],
      packed["ln1g"], packed["ln1b"], packed["wqkv"], packed["bqkv"],
      packed["wo"], packed["bo"], packed["ln2g"], packed["ln2b"],
      packed["wfc"], packed["bfc"], packed["wpr"], packed["bpr"],
      packed["gpost"], packed["bpost"], packed["proj"])
    return out[:B, :, :out_dim]


# ---------------------------------------------------------------------------
# parameters (deterministic synthetic init, math-form x @ W weights)
# ---------------------------------------------------------------------------
def init_params(key, img_height, patch_size, hidden, num_layers, num_heads,
                out_dim, max_patch_len):
    scale = hidden ** -0.5
    keys = jax.random.split(key, 6 + num_layers)
    conv_w = 0.02 * jax.random.normal(keys[0], (hidden, 3, patch_size, patch_size), F32)
    wpatch = conv_w.reshape(hidden, 3 * patch_size * patch_size).T
    cls = (scale * jax.random.normal(keys[1], (hidden,), F32)).reshape(1, hidden)
    max_patches = img_height // patch_size * max_patch_len
    pos = scale * jax.random.normal(keys[2], (max_patches + 1, hidden), F32)
    proj = scale * jax.random.normal(keys[3], (hidden, out_dim), F32)

    def ln_params(k):
        k1, k2 = jax.random.split(k)
        return (1.0 + 0.1 * jax.random.normal(k1, (1, hidden), F32),
                0.1 * jax.random.normal(k2, (1, hidden), F32))

    ln_pre, ln_post = ln_params(keys[4]), ln_params(keys[5])

    blocks = []
    for l in range(num_layers):
        bk = jax.random.split(keys[6 + l], 10)
        wqkv = 0.02 * jax.random.normal(bk[0], (3 * hidden, hidden), F32)
        bqkv = 0.02 * jax.random.normal(bk[1], (3 * hidden,), F32)
        wo = 0.02 * jax.random.normal(bk[2], (hidden, hidden), F32)
        bo = 0.02 * jax.random.normal(bk[3], (hidden,), F32)
        wfc = 0.02 * jax.random.normal(bk[4], (4 * hidden, hidden), F32)
        bfc = 0.02 * jax.random.normal(bk[5], (4 * hidden,), F32)
        wpr = 0.02 * jax.random.normal(bk[6], (hidden, 4 * hidden), F32)
        bpr = 0.02 * jax.random.normal(bk[7], (hidden,), F32)
        ln1, ln2 = ln_params(bk[8]), ln_params(bk[9])
        blocks.append(dict(
            ln1g=ln1[0], ln1b=ln1[1],
            wqkv=wqkv.T, bqkv=bqkv.reshape(1, -1),      # stored in x @ W form
            wo=wo.T, bo=bo.reshape(1, -1),
            ln2g=ln2[0], ln2b=ln2[1],
            wfc=wfc.T, bfc=bfc.reshape(1, -1),
            wpr=wpr.T, bpr=bpr.reshape(1, -1),
        ))
    return dict(wpatch=wpatch, cls=cls, pos=pos, proj=proj,
                ln_pre=ln_pre, ln_post=ln_post, blocks=blocks)


# ---------------------------------------------------------------------------
# pure-JAX reference (unpadded; matmuls mirror the kernel's bf16-in/f32-acc math)
# ---------------------------------------------------------------------------
def _layernorm_ref(x, g, b):
    mu = jnp.mean(x, axis=-1, keepdims=True)
    var = jnp.mean(jnp.square(x - mu), axis=-1, keepdims=True)
    return (x - mu) * lax.rsqrt(var + EPS) * g + b


def _bdot(a, b):
    return jnp.dot(a.astype(BF16), b.astype(BF16), preferred_element_type=F32)


def reference_forward(x, params, patch_size, max_patch_len, num_heads):
    patches, L = _extract_patches(x, patch_size, max_patch_len)
    B = patches.shape[0]
    C = params["wpatch"].shape[1]
    S = L + 1
    D = C // num_heads
    emb = _bdot(patches, params["wpatch"])
    h = jnp.concatenate([jnp.broadcast_to(params["cls"], (B, 1, C)), emb], axis=1)
    h = h + params["pos"][:S]
    h = _layernorm_ref(h, *params["ln_pre"])
    for blk in params["blocks"]:
        xn = _layernorm_ref(h, blk["ln1g"], blk["ln1b"])
        qkv = _bdot(xn, blk["wqkv"]) + blk["bqkv"]
        q, k, v = qkv[..., :C], qkv[..., C:2 * C], qkv[..., 2 * C:]
        q = q.reshape(B, S, num_heads, D) * (float(D) ** -0.5)
        k = k.reshape(B, S, num_heads, D)
        v = v.reshape(B, S, num_heads, D)
        s = jnp.einsum("bshd,bthd->bhst", q.astype(BF16), k.astype(BF16),
                       preferred_element_type=F32)
        s = s - jnp.max(s, axis=-1, keepdims=True)
        p = jnp.exp(s)
        o = jnp.einsum("bhst,bthd->bhsd", p.astype(BF16), v.astype(BF16),
                       preferred_element_type=F32)
        o = o / jnp.sum(p, axis=-1, keepdims=True)
        o = o.transpose(0, 2, 1, 3).reshape(B, S, C)
        h = h + _bdot(o, blk["wo"]) + blk["bo"]
        hn = _layernorm_ref(h, blk["ln2g"], blk["ln2b"])
        f = _bdot(hn, blk["wfc"]) + blk["bfc"]
        f = f * jax.nn.sigmoid(1.702 * f)
        h = h + _bdot(f, blk["wpr"]) + blk["bpr"]
    h = _layernorm_ref(h, *params["ln_post"])
    return _bdot(h, params["proj"])


if __name__ == "__main__":
    # img_height=16, patch=8 -> 2 patch rows; W=64 -> 8 patch cols; L=16, S=17
    img_height, patch_size = 16, 8
    hidden, num_layers, num_heads, out_dim = 32, 2, 4, 16
    max_patch_len = 8
    B, W = 2, 64

    key = jax.random.PRNGKey(0)
    kx, kp = jax.random.split(key)
    x = jax.random.normal(kx, (B, 3, img_height, W), F32)
    params = init_params(kp, img_height, patch_size, hidden, num_layers,
                         num_heads, out_dim, max_patch_len)
    packed = pack_params(params, num_heads)

    out = text_vit_forward(x, packed, patch_size=patch_size,
                           max_patch_len=max_patch_len, num_heads=num_heads,
                           hidden=hidden, out_dim=out_dim)
    out = jax.block_until_ready(out)

    ref = reference_forward(x, params, patch_size, max_patch_len, num_heads)
    L = (img_height // patch_size) * (W // patch_size)
    assert out.shape == (B, L + 1, out_dim)
    np.testing.assert_allclose(np.asarray(out), np.asarray(ref), rtol=2e-2, atol=2e-2)
    print("KERNEL_OK")
</pallas_src>

<mosaic_0001>
module attributes {stable_mosaic.version = 11 : i64} {
  func.func @fused_vit_kernel(%arg0: i32, %arg1: i32, %arg2: memref<2x17x256xbf16, #tpu.memory_space<vmem>>, %arg3: memref<256x128xbf16, #tpu.memory_space<vmem>>, %arg4: memref<17x128xf32, #tpu.memory_space<vmem>>, %arg5: memref<1x128xf32, #tpu.memory_space<vmem>>, %arg6: memref<1x128xf32, #tpu.memory_space<vmem>>, %arg7: memref<1x1x128xf32, #tpu.memory_space<vmem>>, %arg8: memref<1x1x128xf32, #tpu.memory_space<vmem>>, %arg9: memref<1x128x96xbf16, #tpu.memory_space<vmem>>, %arg10: memref<1x1x96xf32, #tpu.memory_space<vmem>>, %arg11: memref<1x32x128xbf16, #tpu.memory_space<vmem>>, %arg12: memref<1x1x128xf32, #tpu.memory_space<vmem>>, %arg13: memref<1x1x128xf32, #tpu.memory_space<vmem>>, %arg14: memref<1x1x128xf32, #tpu.memory_space<vmem>>, %arg15: memref<1x128x128xbf16, #tpu.memory_space<vmem>>, %arg16: memref<1x1x128xf32, #tpu.memory_space<vmem>>, %arg17: memref<1x128x128xbf16, #tpu.memory_space<vmem>>, %arg18: memref<1x1x128xf32, #tpu.memory_space<vmem>>, %arg19: memref<1x128xf32, #tpu.memory_space<vmem>>, %arg20: memref<1x128xf32, #tpu.memory_space<vmem>>, %arg21: memref<128x128xbf16, #tpu.memory_space<vmem>>, %arg22: memref<2x17x128xf32, #tpu.memory_space<vmem>>, %arg23: memref<34x128xf32, #tpu.memory_space<vmem>>) attributes {dimension_semantics = [#tpu.dimension_semantics<parallel>, #tpu.dimension_semantics<arbitrary>], iteration_bounds = array<i64: 1, 2>, scalar_prefetch = 0 : i64, scratch_operands = 1 : i64, tpu.core_type = #tpu.core_type<tc>, window_params = [{transform_indices = @transform_0, window_bounds = array<i64: 2, 17, 256>}, {pipeline_mode = #tpu.pipeline_mode<synchronous>, transform_indices = @transform_1, window_bounds = array<i64: 256, 128>}, {pipeline_mode = #tpu.pipeline_mode<synchronous>, transform_indices = @transform_2, window_bounds = array<i64: 17, 128>}, {pipeline_mode = #tpu.pipeline_mode<synchronous>, transform_indices = @transform_3, window_bounds = array<i64: 1, 128>}, {pipeline_mode = #tpu.pipeline_mode<synchronous>, transform_indices = @transform_4, window_bounds = array<i64: 1, 128>}, {transform_indices = @transform_5, window_bounds = array<i64: 1, 1, 128>}, {transform_indices = @transform_6, window_bounds = array<i64: 1, 1, 128>}, {transform_indices = @transform_7, window_bounds = array<i64: 1, 128, 96>}, {transform_indices = @transform_8, window_bounds = array<i64: 1, 1, 96>}, {transform_indices = @transform_9, window_bounds = array<i64: 1, 32, 128>}, {transform_indices = @transform_10, window_bounds = array<i64: 1, 1, 128>}, {transform_indices = @transform_11, window_bounds = array<i64: 1, 1, 128>}, {transform_indices = @transform_12, window_bounds = array<i64: 1, 1, 128>}, {transform_indices = @transform_13, window_bounds = array<i64: 1, 128, 128>}, {transform_indices = @transform_14, window_bounds = array<i64: 1, 1, 128>}, {transform_indices = @transform_15, window_bounds = array<i64: 1, 128, 128>}, {transform_indices = @transform_16, window_bounds = array<i64: 1, 1, 128>}, {pipeline_mode = #tpu.pipeline_mode<synchronous>, transform_indices = @transform_17, window_bounds = array<i64: 1, 128>}, {pipeline_mode = #tpu.pipeline_mode<synchronous>, transform_indices = @transform_18, window_bounds = array<i64: 1, 128>}, {pipeline_mode = #tpu.pipeline_mode<synchronous>, transform_indices = @transform_19, window_bounds = array<i64: 128, 128>}, {transform_indices = @transform_20, window_bounds = array<i64: 2, 17, 128>}]} {
    %c0_i32 = arith.constant 0 : i32
    %0 = arith.cmpi eq, %arg1, %c0_i32 : i32
    %1 = arith.extui %0 : i1 to i32
    %c0_i32_0 = arith.constant 0 : i32
    %2 = arith.cmpi ne, %1, %c0_i32_0 : i32
    scf.if %2 {
      %c0_83 = arith.constant 0 : index
      %c0_84 = arith.constant 0 : index
      %c0_85 = arith.constant 0 : index
      %223 = vector.load %arg2[%c0_83, %c0_84, %c0_85] : memref<2x17x256xbf16, #tpu.memory_space<vmem>>, vector<2x17x256xbf16>
      %224 = vector.shape_cast %223 : vector<2x17x256xbf16> to vector<34x256xbf16>
      %c0_86 = arith.constant 0 : index
      %c0_87 = arith.constant 0 : index
      %225 = vector.load %arg3[%c0_86, %c0_87] : memref<256x128xbf16, #tpu.memory_space<vmem>>, vector<256x128xbf16>
      %cst_88 = arith.constant dense<0.000000e+00> : vector<34x128xf32>
      %226 = tpu.matmul %224, %225, %cst_88 {dimension_numbers = #tpu.dot_dimension_numbers<[1], [0], [0], [1], [0, 0, 1, 1], [], []>} : vector<34x256xbf16>, vector<256x128xbf16>, vector<34x128xf32> -> vector<34x128xf32>
      %227 = vector.shape_cast %226 : vector<34x128xf32> to vector<2x17x128xf32>
      %c0_89 = arith.constant 0 : index
      %c0_90 = arith.constant 0 : index
      %228 = vector.load %arg4[%c0_89, %c0_90] : memref<17x128xf32, #tpu.memory_space<vmem>>, vector<17x128xf32>
      %229 = vector.shape_cast %228 : vector<17x128xf32> to vector<1x17x128xf32>
      %230 = vector.broadcast %229 : vector<1x17x128xf32> to vector<2x17x128xf32>
      %231 = arith.addf %227, %230 : vector<2x17x128xf32>
      %232 = vector.shape_cast %231 : vector<2x17x128xf32> to vector<34x128xf32>
      %c0_91 = arith.constant 0 : index
      %c0_92 = arith.constant 0 : index
      %233 = vector.load %arg5[%c0_91, %c0_92] : memref<1x128xf32, #tpu.memory_space<vmem>>, vector<1x128xf32>
      %c0_93 = arith.constant 0 : index
      %c0_94 = arith.constant 0 : index
      %234 = vector.load %arg6[%c0_93, %c0_94] : memref<1x128xf32, #tpu.memory_space<vmem>>, vector<1x128xf32>
      %cst_95 = arith.constant dense<0.000000e+00> : vector<34xf32>
      %235 = vector.multi_reduction <add>, %232, %cst_95 [1] : vector<34x128xf32> to vector<34xf32>
      %236 = vector.shape_cast %235 : vector<34xf32> to vector<34x1xf32>
      %cst_96 = arith.constant 3.125000e-02 : f32
      %237 = vector.broadcast %cst_96 : f32 to vector<34x1xf32>
      %238 = arith.mulf %236, %237 : vector<34x1xf32>
      %239 = tpu.iota {dimensions = array<i32: 1>} : vector<34x128xi32>
      %c32_i32_97 = arith.constant 32 : i32
      %240 = vector.broadcast %c32_i32_97 : i32 to vector<34x128xi32>
      %241 = arith.cmpi slt, %239, %240 : vector<34x128xi32>
      %242 = vector.broadcast %238 : vector<34x1xf32> to vector<34x128xf32>
      %243 = arith.subf %232, %242 : vector<34x128xf32>
      %cst_98 = arith.constant 0.000000e+00 : f32
      %244 = vector.broadcast %cst_98 : f32 to vector<34x128xf32>
      %245 = arith.select %241, %243, %244 : vector<34x128xi1>, vector<34x128xf32>
      %246 = arith.mulf %245, %245 : vector<34x128xf32>
      %cst_99 = arith.constant dense<0.000000e+00> : vector<34xf32>
      %247 = vector.multi_reduction <add>, %246, %cst_99 [1] : vector<34x128xf32> to vector<34xf32>
      %248 = vector.shape_cast %247 : vector<34xf32> to vector<34x1xf32>
      %cst_100 = arith.constant 3.125000e-02 : f32
      %249 = vector.broadcast %cst_100 : f32 to vector<34x1xf32>
      %250 = arith.mulf %248, %249 : vector<34x1xf32>
      %cst_101 = arith.constant 9.99999974E-6 : f32
      %251 = vector.broadcast %cst_101 : f32 to vector<34x1xf32>
      %252 = arith.addf %250, %251 : vector<34x1xf32>
      %253 = math.rsqrt %252 : vector<34x1xf32>
      %254 = vector.broadcast %253 : vector<34x1xf32> to vector<34x128xf32>
      %255 = arith.mulf %245, %254 : vector<34x128xf32>
      %256 = vector.broadcast %233 : vector<1x128xf32> to vector<34x128xf32>
      %257 = arith.mulf %255, %256 : vector<34x128xf32>
      %258 = vector.broadcast %234 : vector<1x128xf32> to vector<34x128xf32>
      %259 = arith.addf %257, %258 : vector<34x128xf32>
      %c0_102 = arith.constant 0 : index
      %c0_103 = arith.constant 0 : index
      %260 = vector.load %arg23[%c0_102, %c0_103] : memref<34x128xf32, #tpu.memory_space<vmem>>, vector<34x128xf32>
      tpu.vector_store %arg23[%c0_102, %c0_103], %259 {strides = array<i32>} : memref<34x128xf32, #tpu.memory_space<vmem>>, vector<34x128xf32>,
    } else {
    }
    %c0 = arith.constant 0 : index
    %c0_1 = arith.constant 0 : index
    %3 = vector.load %arg23[%c0, %c0_1] : memref<34x128xf32, #tpu.memory_space<vmem>>, vector<34x128xf32>
    %c0_2 = arith.constant 0 : index
    %c0_3 = arith.constant 0 : index
    %c0_4 = arith.constant 0 : index
    %4 = vector.load %arg7[%c0_2, %c0_3, %c0_4] : memref<1x1x128xf32, #tpu.memory_space<vmem>>, vector<1x1x128xf32>
    %5 = vector.shape_cast %4 : vector<1x1x128xf32> to vector<1x128xf32>
    %c0_5 = arith.constant 0 : index
    %c0_6 = arith.constant 0 : index
    %c0_7 = arith.constant 0 : index
    %6 = vector.load %arg8[%c0_5, %c0_6, %c0_7] : memref<1x1x128xf32, #tpu.memory_space<vmem>>, vector<1x1x128xf32>
    %7 = vector.shape_cast %6 : vector<1x1x128xf32> to vector<1x128xf32>
    %cst = arith.constant dense<0.000000e+00> : vector<34xf32>
    %8 = vector.multi_reduction <add>, %3, %cst [1] : vector<34x128xf32> to vector<34xf32>
    %9 = vector.shape_cast %8 : vector<34xf32> to vector<34x1xf32>
    %cst_8 = arith.constant 3.125000e-02 : f32
    %10 = vector.broadcast %cst_8 : f32 to vector<34x1xf32>
    %11 = arith.mulf %9, %10 : vector<34x1xf32>
    %12 = tpu.iota {dimensions = array<i32: 1>} : vector<34x128xi32>
    %c32_i32 = arith.constant 32 : i32
    %13 = vector.broadcast %c32_i32 : i32 to vector<34x128xi32>
    %14 = arith.cmpi slt, %12, %13 : vector<34x128xi32>
    %15 = vector.broadcast %11 : vector<34x1xf32> to vector<34x128xf32>
    %16 = arith.subf %3, %15 : vector<34x128xf32>
    %cst_9 = arith.constant 0.000000e+00 : f32
    %17 = vector.broadcast %cst_9 : f32 to vector<34x128xf32>
    %18 = arith.select %14, %16, %17 : vector<34x128xi1>, vector<34x128xf32>
    %19 = arith.mulf %18, %18 : vector<34x128xf32>
    %cst_10 = arith.constant dense<0.000000e+00> : vector<34xf32>
    %20 = vector.multi_reduction <add>, %19, %cst_10 [1] : vector<34x128xf32> to vector<34xf32>
    %21 = vector.shape_cast %20 : vector<34xf32> to vector<34x1xf32>
    %cst_11 = arith.constant 3.125000e-02 : f32
    %22 = vector.broadcast %cst_11 : f32 to vector<34x1xf32>
    %23 = arith.mulf %21, %22 : vector<34x1xf32>
    %cst_12 = arith.constant 9.99999974E-6 : f32
    %24 = vector.broadcast %cst_12 : f32 to vector<34x1xf32>
    %25 = arith.addf %23, %24 : vector<34x1xf32>
    %26 = math.rsqrt %25 : vector<34x1xf32>
    %27 = vector.broadcast %26 : vector<34x1xf32> to vector<34x128xf32>
    %28 = arith.mulf %18, %27 : vector<34x128xf32>
    %29 = vector.broadcast %5 : vector<1x128xf32> to vector<34x128xf32>
    %30 = arith.mulf %28, %29 : vector<34x128xf32>
    %31 = vector.broadcast %7 : vector<1x128xf32> to vector<34x128xf32>
    %32 = arith.addf %30, %31 : vector<34x128xf32>
    %33 = arith.truncf %32 : vector<34x128xf32> to vector<34x128xbf16>
    %c0_13 = arith.constant 0 : index
    %c0_14 = arith.constant 0 : index
    %c0_15 = arith.constant 0 : index
    %34 = vector.load %arg9[%c0_13, %c0_14, %c0_15] : memref<1x128x96xbf16, #tpu.memory_space<vmem>>, vector<1x128x96xbf16>
    %35 = vector.shape_cast %34 : vector<1x128x96xbf16> to vector<128x96xbf16>
    %cst_16 = arith.constant dense<0.000000e+00> : vector<34x96xf32>
    %36 = tpu.matmul %33, %35, %cst_16 {dimension_numbers = #tpu.dot_dimension_numbers<[1], [0], [0], [1], [0, 0, 1, 1], [], []>} : vector<34x128xbf16>, vector<128x96xbf16>, vector<34x96xf32> -> vector<34x96xf32>
    %c0_17 = arith.constant 0 : index
    %c0_18 = arith.constant 0 : index
    %c0_19 = arith.constant 0 : index
    %37 = vector.load %arg10[%c0_17, %c0_18, %c0_19] : memref<1x1x96xf32, #tpu.memory_space<vmem>>, vector<1x1x96xf32>
    %38 = vector.shape_cast %37 : vector<1x1x96xf32> to vector<1x96xf32>
    %39 = vector.broadcast %38 : vector<1x96xf32> to vector<34x96xf32>
    %40 = arith.addf %36, %39 : vector<34x96xf32>
    %c0_20 = arith.constant 0 : index
    %c0_21 = arith.constant 0 : index
    %c0_22 = arith.constant 0 : index
    %41 = vector.load %arg11[%c0_20, %c0_21, %c0_22] : memref<1x32x128xbf16, #tpu.memory_space<vmem>>, vector<1x32x128xbf16>
    %42 = vector.shape_cast %41 : vector<1x32x128xbf16> to vector<32x128xbf16>
    %cst_23 = arith.constant 0.000000e+00 : f32
    %43 = vector.broadcast %cst_23 : f32 to vector<34x128xf32>
    %44 = vector.extract_strided_slice %40 {offsets = [0, 0], sizes = [34, 8], strides = [1, 1]} : vector<34x96xf32> to vector<34x8xf32>
    %cst_24 = arith.constant 0.353553385 : f32
    %45 = vector.broadcast %cst_24 : f32 to vector<34x8xf32>
    %46 = arith.mulf %44, %45 : vector<34x8xf32>
    %47 = arith.truncf %46 : vector<34x8xf32> to vector<34x8xbf16>
    %48 = vector.shape_cast %47 : vector<34x8xbf16> to vector<2x17x8xbf16>
    %49 = vector.extract_strided_slice %40 {offsets = [0, 32], sizes = [34, 8], strides = [1, 1]} : vector<34x96xf32> to vector<34x8xf32>
    %50 = arith.truncf %49 : vector<34x8xf32> to vector<34x8xbf16>
    %51 = vector.shape_cast %50 : vector<34x8xbf16> to vector<2x17x8xbf16>
    %52 = vector.extract_strided_slice %40 {offsets = [0, 64], sizes = [34, 8], strides = [1, 1]} : vector<34x96xf32> to vector<34x8xf32>
    %53 = arith.truncf %52 : vector<34x8xf32> to vector<34x8xbf16>
    %54 = vector.shape_cast %53 : vector<34x8xbf16> to vector<2x17x8xbf16>
    "tpu.trace_start"() <{level = 10 : i32, message = "bqd,bkd->bqk"}> : () -> ()
    %cst_25 = arith.constant dense<0.000000e+00> : vector<2x17x17xf32>
    %55 = tpu.matmul %48, %51, %cst_25 {dimension_numbers = #tpu.dot_dimension_numbers<[2], [2], [1], [1], [0, 0, 0, 1, 1, 1], [0], [0]>} : vector<2x17x8xbf16>, vector<2x17x8xbf16>, vector<2x17x17xf32> -> vector<2x17x17xf32>
    "tpu.trace_stop"() : () -> ()
    %cst_26 = arith.constant dense<0xFF800000> : vector<2x17xf32>
    %56 = vector.multi_reduction <maximumf>, %55, %cst_26 [2] : vector<2x17x17xf32> to vector<2x17xf32>
    %57 = vector.shape_cast %56 : vector<2x17xf32> to vector<2x17x1xf32>
    %58 = vector.broadcast %57 : vector<2x17x1xf32> to vector<2x17x17xf32>
    %59 = arith.subf %55, %58 : vector<2x17x17xf32>
    %60 = math.exp %59 : vector<2x17x17xf32>
    %cst_27 = arith.constant dense<0.000000e+00> : vector<2x17xf32>
    %61 = vector.multi_reduction <add>, %60, %cst_27 [2] : vector<2x17x17xf32> to vector<2x17xf32>
    %62 = vector.shape_cast %61 : vector<2x17xf32> to vector<2x17x1xf32>
    %63 = arith.truncf %60 : vector<2x17x17xf32> to vector<2x17x17xbf16>
    "tpu.trace_start"() <{level = 10 : i32, message = "bqk,bkd->bqd"}> : () -> ()
    %cst_28 = arith.constant dense<0.000000e+00> : vector<2x17x8xf32>
    %64 = tpu.matmul %63, %54, %cst_28 {dimension_numbers = #tpu.dot_dimension_numbers<[2], [1], [1], [2], [0, 0, 0, 1, 1, 2], [0], [0]>} : vector<2x17x17xbf16>, vector<2x17x8xbf16>, vector<2x17x8xf32> -> vector<2x17x8xf32>
    "tpu.trace_stop"() : () -> ()
    %65 = tpu.reciprocal %62 {approx = true} : vector<2x17x1xf32> -> vector<2x17x1xf32>
    %66 = vector.broadcast %65 : vector<2x17x1xf32> to vector<2x17x8xf32>
    %67 = arith.mulf %64, %66 : vector<2x17x8xf32>
    %68 = arith.truncf %67 : vector<2x17x8xf32> to vector<2x17x8xbf16>
    %69 = vector.shape_cast %68 : vector<2x17x8xbf16> to vector<34x8xbf16>
    %70 = vector.extract_strided_slice %42 {offsets = [0, 0], sizes = [8, 128], strides = [1, 1]} : vector<32x128xbf16> to vector<8x128xbf16>
    %cst_29 = arith.constant dense<0.000000e+00> : vector<34x128xf32>
    %71 = tpu.matmul %69, %70, %cst_29 {dimension_numbers = #tpu.dot_dimension_numbers<[1], [0], [0], [1], [0, 0, 1, 1], [], []>} : vector<34x8xbf16>, vector<8x128xbf16>, vector<34x128xf32> -> vector<34x128xf32>
    %72 = arith.addf %43, %71 : vector<34x128xf32>
    %73 = vector.extract_strided_slice %40 {offsets = [0, 8], sizes = [34, 8], strides = [1, 1]} : vector<34x96xf32> to vector<34x8xf32>
    %cst_30 = arith.constant 0.353553385 : f32
    %74 = vector.broadcast %cst_30 : f32 to vector<34x8xf32>
    %75 = arith.mulf %73, %74 : vector<34x8xf32>
    %76 = arith.truncf %75 : vector<34x8xf32> to vector<34x8xbf16>
    %77 = vector.shape_cast %76 : vector<34x8xbf16> to vector<2x17x8xbf16>
    %78 = vector.extract_strided_slice %40 {offsets = [0, 40], sizes = [34, 8], strides = [1, 1]} : vector<34x96xf32> to vector<34x8xf32>
    %79 = arith.truncf %78 : vector<34x8xf32> to vector<34x8xbf16>
    %80 = vector.shape_cast %79 : vector<34x8xbf16> to vector<2x17x8xbf16>
    %81 = vector.extract_strided_slice %40 {offsets = [0, 72], sizes = [34, 8], strides = [1, 1]} : vector<34x96xf32> to vector<34x8xf32>
    %82 = arith.truncf %81 : vector<34x8xf32> to vector<34x8xbf16>
    %83 = vector.shape_cast %82 : vector<34x8xbf16> to vector<2x17x8xbf16>
    "tpu.trace_start"() <{level = 10 : i32, message = "bqd,bkd->bqk"}> : () -> ()
    %cst_31 = arith.constant dense<0.000000e+00> : vector<2x17x17xf32>
    %84 = tpu.matmul %77, %80, %cst_31 {dimension_numbers = #tpu.dot_dimension_numbers<[2], [2], [1], [1], [0, 0, 0, 1, 1, 1], [0], [0]>} : vector<2x17x8xbf16>, vector<2x17x8xbf16>, vector<2x17x17xf32> -> vector<2x17x17xf32>
    "tpu.trace_stop"() : () -> ()
    %cst_32 = arith.constant dense<0xFF800000> : vector<2x17xf32>
    %85 = vector.multi_reduction <maximumf>, %84, %cst_32 [2] : vector<2x17x17xf32> to vector<2x17xf32>
    %86 = vector.shape_cast %85 : vector<2x17xf32> to vector<2x17x1xf32>
    %87 = vector.broadcast %86 : vector<2x17x1xf32> to vector<2x17x17xf32>
    %88 = arith.subf %84, %87 : vector<2x17x17xf32>
    %89 = math.exp %88 : vector<2x17x17xf32>
    %cst_33 = arith.constant dense<0.000000e+00> : vector<2x17xf32>
    %90 = vector.multi_reduction <add>, %89, %cst_33 [2] : vector<2x17x17xf32> to vector<2x17xf32>
    %91 = vector.shape_cast %90 : vector<2x17xf32> to vector<2x17x1xf32>
    %92 = arith.truncf %89 : vector<2x17x17xf32> to vector<2x17x17xbf16>
    "tpu.trace_start"() <{level = 10 : i32, message = "bqk,bkd->bqd"}> : () -> ()
    %cst_34 = arith.constant dense<0.000000e+00> : vector<2x17x8xf32>
    %93 = tpu.matmul %92, %83, %cst_34 {dimension_numbers = #tpu.dot_dimension_numbers<[2], [1], [1], [2], [0, 0, 0, 1, 1, 2], [0], [0]>} : vector<2x17x17xbf16>, vector<2x17x8xbf16>, vector<2x17x8xf32> -> vector<2x17x8xf32>
    "tpu.trace_stop"() : () -> ()
    %94 = tpu.reciprocal %91 {approx = true} : vector<2x17x1xf32> -> vector<2x17x1xf32>
    %95 = vector.broadcast %94 : vector<2x17x1xf32> to vector<2x17x8xf32>
    %96 = arith.mulf %93, %95 : vector<2x17x8xf32>
    %97 = arith.truncf %96 : vector<2x17x8xf32> to vector<2x17x8xbf16>
    %98 = vector.shape_cast %97 : vector<2x17x8xbf16> to vector<34x8xbf16>
    %99 = vector.extract_strided_slice %42 {offsets = [8, 0], sizes = [8, 128], strides = [1, 1]} : vector<32x128xbf16> to vector<8x128xbf16>
    %cst_35 = arith.constant dense<0.000000e+00> : vector<34x128xf32>
    %100 = tpu.matmul %98, %99, %cst_35 {dimension_numbers = #tpu.dot_dimension_numbers<[1], [0], [0], [1], [0, 0, 1, 1], [], []>} : vector<34x8xbf16>, vector<8x128xbf16>, vector<34x128xf32> -> vector<34x128xf32>
    %101 = arith.addf %72, %100 : vector<34x128xf32>
    %102 = vector.extract_strided_slice %40 {offsets = [0, 16], sizes = [34, 8], strides = [1, 1]} : vector<34x96xf32> to vector<34x8xf32>
    %cst_36 = arith.constant 0.353553385 : f32
    %103 = vector.broadcast %cst_36 : f32 to vector<34x8xf32>
    %104 = arith.mulf %102, %103 : vector<34x8xf32>
    %105 = arith.truncf %104 : vector<34x8xf32> to vector<34x8xbf16>
    %106 = vector.shape_cast %105 : vector<34x8xbf16> to vector<2x17x8xbf16>
    %107 = vector.extract_strided_slice %40 {offsets = [0, 48], sizes = [34, 8], strides = [1, 1]} : vector<34x96xf32> to vector<34x8xf32>
    %108 = arith.truncf %107 : vector<34x8xf32> to vector<34x8xbf16>
    %109 = vector.shape_cast %108 : vector<34x8xbf16> to vector<2x17x8xbf16>
    %110 = vector.extract_strided_slice %40 {offsets = [0, 80], sizes = [34, 8], strides = [1, 1]} : vector<34x96xf32> to vector<34x8xf32>
    %111 = arith.truncf %110 : vector<34x8xf32> to vector<34x8xbf16>
    %112 = vector.shape_cast %111 : vector<34x8xbf16> to vector<2x17x8xbf16>
    "tpu.trace_start"() <{level = 10 : i32, message = "bqd,bkd->bqk"}> : () -> ()
    %cst_37 = arith.constant dense<0.000000e+00> : vector<2x17x17xf32>
    %113 = tpu.matmul %106, %109, %cst_37 {dimension_numbers = #tpu.dot_dimension_numbers<[2], [2], [1], [1], [0, 0, 0, 1, 1, 1], [0], [0]>} : vector<2x17x8xbf16>, vector<2x17x8xbf16>, vector<2x17x17xf32> -> vector<2x17x17xf32>
    "tpu.trace_stop"() : () -> ()
    %cst_38 = arith.constant dense<0xFF800000> : vector<2x17xf32>
    %114 = vector.multi_reduction <maximumf>, %113, %cst_38 [2] : vector<2x17x17xf32> to vector<2x17xf32>
    %115 = vector.shape_cast %114 : vector<2x17xf32> to vector<2x17x1xf32>
    %116 = vector.broadcast %115 : vector<2x17x1xf32> to vector<2x17x17xf32>
    %117 = arith.subf %113, %116 : vector<2x17x17xf32>
    %118 = math.exp %117 : vector<2x17x17xf32>
    %cst_39 = arith.constant dense<0.000000e+00> : vector<2x17xf32>
    %119 = vector.multi_reduction <add>, %118, %cst_39 [2] : vector<2x17x17xf32> to vector<2x17xf32>
    %120 = vector.shape_cast %119 : vector<2x17xf32> to vector<2x17x1xf32>
    %121 = arith.truncf %118 : vector<2x17x17xf32> to vector<2x17x17xbf16>
    "tpu.trace_start"() <{level = 10 : i32, message = "bqk,bkd->bqd"}> : () -> ()
    %cst_40 = arith.constant dense<0.000000e+00> : vector<2x17x8xf32>
    %122 = tpu.matmul %121, %112, %cst_40 {dimension_numbers = #tpu.dot_dimension_numbers<[2], [1], [1], [2], [0, 0, 0, 1, 1, 2], [0], [0]>} : vector<2x17x17xbf16>, vector<2x17x8xbf16>, vector<2x17x8xf32> -> vector<2x17x8xf32>
    "tpu.trace_stop"() : () -> ()
    %123 = tpu.reciprocal %120 {approx = true} : vector<2x17x1xf32> -> vector<2x17x1xf32>
    %124 = vector.broadcast %123 : vector<2x17x1xf32> to vector<2x17x8xf32>
    %125 = arith.mulf %122, %124 : vector<2x17x8xf32>
    %126 = arith.truncf %125 : vector<2x17x8xf32> to vector<2x17x8xbf16>
    %127 = vector.shape_cast %126 : vector<2x17x8xbf16> to vector<34x8xbf16>
    %128 = vector.extract_strided_slice %42 {offsets = [16, 0], sizes = [8, 128], strides = [1, 1]} : vector<32x128xbf16> to vector<8x128xbf16>
    %cst_41 = arith.constant dense<0.000000e+00> : vector<34x128xf32>
    %129 = tpu.matmul %127, %128, %cst_41 {dimension_numbers = #tpu.dot_dimension_numbers<[1], [0], [0], [1], [0, 0, 1, 1], [], []>} : vector<34x8xbf16>, vector<8x128xbf16>, vector<34x128xf32> -> vector<34x128xf32>
    %130 = arith.addf %101, %129 : vector<34x128xf32>
    %131 = vector.extract_strided_slice %40 {offsets = [0, 24], sizes = [34, 8], strides = [1, 1]} : vector<34x96xf32> to vector<34x8xf32>
    %cst_42 = arith.constant 0.353553385 : f32
    %132 = vector.broadcast %cst_42 : f32 to vector<34x8xf32>
    %133 = arith.mulf %131, %132 : vector<34x8xf32>
    %134 = arith.truncf %133 : vector<34x8xf32> to vector<34x8xbf16>
    %135 = vector.shape_cast %134 : vector<34x8xbf16> to vector<2x17x8xbf16>
    %136 = vector.extract_strided_slice %40 {offsets = [0, 56], sizes = [34, 8], strides = [1, 1]} : vector<34x96xf32> to vector<34x8xf32>
    %137 = arith.truncf %136 : vector<34x8xf32> to vector<34x8xbf16>
    %138 = vector.shape_cast %137 : vector<34x8xbf16> to vector<2x17x8xbf16>
    %139 = vector.extract_strided_slice %40 {offsets = [0, 88], sizes = [34, 8], strides = [1, 1]} : vector<34x96xf32> to vector<34x8xf32>
    %140 = arith.truncf %139 : vector<34x8xf32> to vector<34x8xbf16>
    %141 = vector.shape_cast %140 : vector<34x8xbf16> to vector<2x17x8xbf16>
    "tpu.trace_start"() <{level = 10 : i32, message = "bqd,bkd->bqk"}> : () -> ()
    %cst_43 = arith.constant dense<0.000000e+00> : vector<2x17x17xf32>
    %142 = tpu.matmul %135, %138, %cst_43 {dimension_numbers = #tpu.dot_dimension_numbers<[2], [2], [1], [1], [0, 0, 0, 1, 1, 1], [0], [0]>} : vector<2x17x8xbf16>, vector<2x17x8xbf16>, vector<2x17x17xf32> -> vector<2x17x17xf32>
    "tpu.trace_stop"() : () -> ()
    %cst_44 = arith.constant dense<0xFF800000> : vector<2x17xf32>
    %143 = vector.multi_reduction <maximumf>, %142, %cst_44 [2] : vector<2x17x17xf32> to vector<2x17xf32>
    %144 = vector.shape_cast %143 : vector<2x17xf32> to vector<2x17x1xf32>
    %145 = vector.broadcast %144 : vector<2x17x1xf32> to vector<2x17x17xf32>
    %146 = arith.subf %142, %145 : vector<2x17x17xf32>
    %147 = math.exp %146 : vector<2x17x17xf32>
    %cst_45 = arith.constant dense<0.000000e+00> : vector<2x17xf32>
    %148 = vector.multi_reduction <add>, %147, %cst_45 [2] : vector<2x17x17xf32> to vector<2x17xf32>
    %149 = vector.shape_cast %148 : vector<2x17xf32> to vector<2x17x1xf32>
    %150 = arith.truncf %147 : vector<2x17x17xf32> to vector<2x17x17xbf16>
    "tpu.trace_start"() <{level = 10 : i32, message = "bqk,bkd->bqd"}> : () -> ()
    %cst_46 = arith.constant dense<0.000000e+00> : vector<2x17x8xf32>
    %151 = tpu.matmul %150, %141, %cst_46 {dimension_numbers = #tpu.dot_dimension_numbers<[2], [1], [1], [2], [0, 0, 0, 1, 1, 2], [0], [0]>} : vector<2x17x17xbf16>, vector<2x17x8xbf16>, vector<2x17x8xf32> -> vector<2x17x8xf32>
    "tpu.trace_stop"() : () -> ()
    %152 = tpu.reciprocal %149 {approx = true} : vector<2x17x1xf32> -> vector<2x17x1xf32>
    %153 = vector.broadcast %152 : vector<2x17x1xf32> to vector<2x17x8xf32>
    %154 = arith.mulf %151, %153 : vector<2x17x8xf32>
    %155 = arith.truncf %154 : vector<2x17x8xf32> to vector<2x17x8xbf16>
    %156 = vector.shape_cast %155 : vector<2x17x8xbf16> to vector<34x8xbf16>
    %157 = vector.extract_strided_slice %42 {offsets = [24, 0], sizes = [8, 128], strides = [1, 1]} : vector<32x128xbf16> to vector<8x128xbf16>
    %cst_47 = arith.constant dense<0.000000e+00> : vector<34x128xf32>
    %158 = tpu.matmul %156, %157, %cst_47 {dimension_numbers = #tpu.dot_dimension_numbers<[1], [0], [0], [1], [0, 0, 1, 1], [], []>} : vector<34x8xbf16>, vector<8x128xbf16>, vector<34x128xf32> -> vector<34x128xf32>
    %159 = arith.addf %130, %158 : vector<34x128xf32>
    %160 = arith.addf %3, %159 : vector<34x128xf32>
    %c0_48 = arith.constant 0 : index
    %c0_49 = arith.constant 0 : index
    %c0_50 = arith.constant 0 : index
    %161 = vector.load %arg12[%c0_48, %c0_49, %c0_50] : memref<1x1x128xf32, #tpu.memory_space<vmem>>, vector<1x1x128xf32>
    %162 = vector.shape_cast %161 : vector<1x1x128xf32> to vector<1x128xf32>
    %163 = vector.broadcast %162 : vector<1x128xf32> to vector<34x128xf32>
    %164 = arith.addf %160, %163 : vector<34x128xf32>
    %c0_51 = arith.constant 0 : index
    %c0_52 = arith.constant 0 : index
    %c0_53 = arith.constant 0 : index
    %165 = vector.load %arg13[%c0_51, %c0_52, %c0_53] : memref<1x1x128xf32, #tpu.memory_space<vmem>>, vector<1x1x128xf32>
    %166 = vector.shape_cast %165 : vector<1x1x128xf32> to vector<1x128xf32>
    %c0_54 = arith.constant 0 : index
    %c0_55 = arith.constant 0 : index
    %c0_56 = arith.constant 0 : index
    %167 = vector.load %arg14[%c0_54, %c0_55, %c0_56] : memref<1x1x128xf32, #tpu.memory_space<vmem>>, vector<1x1x128xf32>
    %168 = vector.shape_cast %167 : vector<1x1x128xf32> to vector<1x128xf32>
    %cst_57 = arith.constant dense<0.000000e+00> : vector<34xf32>
    %169 = vector.multi_reduction <add>, %164, %cst_57 [1] : vector<34x128xf32> to vector<34xf32>
    %170 = vector.shape_cast %169 : vector<34xf32> to vector<34x1xf32>
    %cst_58 = arith.constant 3.125000e-02 : f32
    %171 = vector.broadcast %cst_58 : f32 to vector<34x1xf32>
    %172 = arith.mulf %170, %171 : vector<34x1xf32>
    %173 = tpu.iota {dimensions = array<i32: 1>} : vector<34x128xi32>
    %c32_i32_59 = arith.constant 32 : i32
    %174 = vector.broadcast %c32_i32_59 : i32 to vector<34x128xi32>
    %175 = arith.cmpi slt, %173, %174 : vector<34x128xi32>
    %176 = vector.broadcast %172 : vector<34x1xf32> to vector<34x128xf32>
    %177 = arith.subf %164, %176 : vector<34x128xf32>
    %cst_60 = arith.constant 0.000000e+00 : f32
    %178 = vector.broadcast %cst_60 : f32 to vector<34x128xf32>
    %179 = arith.select %175, %177, %178 : vector<34x128xi1>, vector<34x128xf32>
    %180 = arith.mulf %179, %179 : vector<34x128xf32>
    %cst_61 = arith.constant dense<0.000000e+00> : vector<34xf32>
    %181 = vector.multi_reduction <add>, %180, %cst_61 [1] : vector<34x128xf32> to vector<34xf32>
    %182 = vector.shape_cast %181 : vector<34xf32> to vector<34x1xf32>
    %cst_62 = arith.constant 3.125000e-02 : f32
    %183 = vector.broadcast %cst_62 : f32 to vector<34x1xf32>
    %184 = arith.mulf %182, %183 : vector<34x1xf32>
    %cst_63 = arith.constant 9.99999974E-6 : f32
    %185 = vector.broadcast %cst_63 : f32 to vector<34x1xf32>
    %186 = arith.addf %184, %185 : vector<34x1xf32>
    %187 = math.rsqrt %186 : vector<34x1xf32>
    %188 = vector.broadcast %187 : vector<34x1xf32> to vector<34x128xf32>
    %189 = arith.mulf %179, %188 : vector<34x128xf32>
    %190 = vector.broadcast %166 : vector<1x128xf32> to vector<34x128xf32>
    %191 = arith.mulf %189, %190 : vector<34x128xf32>
    %192 = vector.broadcast %168 : vector<1x128xf32> to vector<34x128xf32>
    %193 = arith.addf %191, %192 : vector<34x128xf32>
    %194 = arith.truncf %193 : vector<34x128xf32> to vector<34x128xbf16>
    %c0_64 = arith.constant 0 : index
    %c0_65 = arith.constant 0 : index
    %c0_66 = arith.constant 0 : index
    %195 = vector.load %arg15[%c0_64, %c0_65, %c0_66] : memref<1x128x128xbf16, #tpu.memory_space<vmem>>, vector<1x128x128xbf16>
    %196 = vector.shape_cast %195 : vector<1x128x128xbf16> to vector<128x128xbf16>
    %cst_67 = arith.constant dense<0.000000e+00> : vector<34x128xf32>
    %197 = tpu.matmul %194, %196, %cst_67 {dimension_numbers = #tpu.dot_dimension_numbers<[1], [0], [0], [1], [0, 0, 1, 1], [], []>} : vector<34x128xbf16>, vector<128x128xbf16>, vector<34x128xf32> -> vector<34x128xf32>
    %c0_68 = arith.constant 0 : index
    %c0_69 = arith.constant 0 : index
    %c0_70 = arith.constant 0 : index
    %198 = vector.load %arg16[%c0_68, %c0_69, %c0_70] : memref<1x1x128xf32, #tpu.memory_space<vmem>>, vector<1x1x128xf32>
    %199 = vector.shape_cast %198 : vector<1x1x128xf32> to vector<1x128xf32>
    %200 = vector.broadcast %199 : vector<1x128xf32> to vector<34x128xf32>
    %201 = arith.addf %197, %200 : vector<34x128xf32>
    %cst_71 = arith.constant 1.702000e+00 : f32
    %202 = vector.broadcast %cst_71 : f32 to vector<34x128xf32>
    %203 = arith.mulf %202, %201 : vector<34x128xf32>
    %204 = arith.negf %203 : vector<34x128xf32>
    %205 = math.exp %204 : vector<34x128xf32>
    %cst_72 = arith.constant 1.000000e+00 : f32
    %206 = vector.broadcast %cst_72 : f32 to vector<34x128xf32>
    %207 = arith.addf %206, %205 : vector<34x128xf32>
    %208 = arith.divf %206, %207 : vector<34x128xf32>
    %209 = arith.mulf %201, %208 : vector<34x128xf32>
    %210 = arith.truncf %209 : vector<34x128xf32> to vector<34x128xbf16>
    %c0_73 = arith.constant 0 : index
    %c0_74 = arith.constant 0 : index
    %c0_75 = arith.constant 0 : index
    %211 = vector.load %arg17[%c0_73, %c0_74, %c0_75] : memref<1x128x128xbf16, #tpu.memory_space<vmem>>, vector<1x128x128xbf16>
    %212 = vector.shape_cast %211 : vector<1x128x128xbf16> to vector<128x128xbf16>
    %cst_76 = arith.constant dense<0.000000e+00> : vector<34x128xf32>
    %213 = tpu.matmul %210, %212, %cst_76 {dimension_numbers = #tpu.dot_dimension_numbers<[1], [0], [0], [1], [0, 0, 1, 1], [], []>} : vector<34x128xbf16>, vector<128x128xbf16>, vector<34x128xf32> -> vector<34x128xf32>
    %214 = arith.addf %164, %213 : vector<34x128xf32>
    %c0_77 = arith.constant 0 : index
    %c0_78 = arith.constant 0 : index
    %c0_79 = arith.constant 0 : index
    %215 = vector.load %arg18[%c0_77, %c0_78, %c0_79] : memref<1x1x128xf32, #tpu.memory_space<vmem>>, vector<1x1x128xf32>
    %216 = vector.shape_cast %215 : vector<1x1x128xf32> to vector<1x128xf32>
    %217 = vector.broadcast %216 : vector<1x128xf32> to vector<34x128xf32>
    %218 = arith.addf %214, %217 : vector<34x128xf32>
    %c0_80 = arith.constant 0 : index
    %c0_81 = arith.constant 0 : index
    %219 = vector.load %arg23[%c0_80, %c0_81] : memref<34x128xf32, #tpu.memory_space<vmem>>, vector<34x128xf32>
    tpu.vector_store %arg23[%c0_80, %c0_81], %218 {strides = array<i32>} : memref<34x128xf32, #tpu.memory_space<vmem>>, vector<34x128xf32>,
    %c1_i32 = arith.constant 1 : i32
    %220 = arith.cmpi eq, %arg1, %c1_i32 : i32
    %221 = arith.extui %220 : i1 to i32
    %c0_i32_82 = arith.constant 0 : i32
    %222 = arith.cmpi ne, %221, %c0_i32_82 : i32
    scf.if %222 {
      %c0_83 = arith.constant 0 : index
      %c0_84 = arith.constant 0 : index
      %223 = vector.load %arg19[%c0_83, %c0_84] : memref<1x128xf32, #tpu.memory_space<vmem>>, vector<1x128xf32>
      %c0_85 = arith.constant 0 : index
      %c0_86 = arith.constant 0 : index
      %224 = vector.load %arg20[%c0_85, %c0_86] : memref<1x128xf32, #tpu.memory_space<vmem>>, vector<1x128xf32>
      %cst_87 = arith.constant dense<0.000000e+00> : vector<34xf32>
      %225 = vector.multi_reduction <add>, %218, %cst_87 [1] : vector<34x128xf32> to vector<34xf32>
      %226 = vector.shape_cast %225 : vector<34xf32> to vector<34x1xf32>
      %cst_88 = arith.constant 3.125000e-02 : f32
      %227 = vector.broadcast %cst_88 : f32 to vector<34x1xf32>
      %228 = arith.mulf %226, %227 : vector<34x1xf32>
      %229 = tpu.iota {dimensions = array<i32: 1>} : vector<34x128xi32>
      %c32_i32_89 = arith.constant 32 : i32
      %230 = vector.broadcast %c32_i32_89 : i32 to vector<34x128xi32>
      %231 = arith.cmpi slt, %229, %230 : vector<34x128xi32>
      %232 = vector.broadcast %228 : vector<34x1xf32> to vector<34x128xf32>
      %233 = arith.subf %218, %232 : vector<34x128xf32>
      %cst_90 = arith.constant 0.000000e+00 : f32
      %234 = vector.broadcast %cst_90 : f32 to vector<34x128xf32>
      %235 = arith.select %231, %233, %234 : vector<34x128xi1>, vector<34x128xf32>
      %236 = arith.mulf %235, %235 : vector<34x128xf32>
      %cst_91 = arith.constant dense<0.000000e+00> : vector<34xf32>
      %237 = vector.multi_reduction <add>, %236, %cst_91 [1] : vector<34x128xf32> to vector<34xf32>
      %238 = vector.shape_cast %237 : vector<34xf32> to vector<34x1xf32>
      %cst_92 = arith.constant 3.125000e-02 : f32
      %239 = vector.broadcast %cst_92 : f32 to vector<34x1xf32>
      %240 = arith.mulf %238, %239 : vector<34x1xf32>
      %cst_93 = arith.constant 9.99999974E-6 : f32
      %241 = vector.broadcast %cst_93 : f32 to vector<34x1xf32>
      %242 = arith.addf %240, %241 : vector<34x1xf32>
      %243 = math.rsqrt %242 : vector<34x1xf32>
      %244 = vector.broadcast %243 : vector<34x1xf32> to vector<34x128xf32>
      %245 = arith.mulf %235, %244 : vector<34x128xf32>
      %246 = vector.broadcast %223 : vector<1x128xf32> to vector<34x128xf32>
      %247 = arith.mulf %245, %246 : vector<34x128xf32>
      %248 = vector.broadcast %224 : vector<1x128xf32> to vector<34x128xf32>
      %249 = arith.addf %247, %248 : vector<34x128xf32>
      %250 = arith.truncf %249 : vector<34x128xf32> to vector<34x128xbf16>
      %c0_94 = arith.constant 0 : index
      %c0_95 = arith.constant 0 : index
      %251 = vector.load %arg21[%c0_94, %c0_95] : memref<128x128xbf16, #tpu.memory_space<vmem>>, vector<128x128xbf16>
      %cst_96 = arith.constant dense<0.000000e+00> : vector<34x128xf32>
      %252 = tpu.matmul %250, %251, %cst_96 {dimension_numbers = #tpu.dot_dimension_numbers<[1], [0], [0], [1], [0, 0, 1, 1], [], []>} : vector<34x128xbf16>, vector<128x128xbf16>, vector<34x128xf32> -> vector<34x128xf32>
      %253 = vector.shape_cast %252 : vector<34x128xf32> to vector<2x17x128xf32>
      %c0_97 = arith.constant 0 : index
      %c0_98 = arith.constant 0 : index
      %c0_99 = arith.constant 0 : index
      %254 = vector.load %arg22[%c0_97, %c0_98, %c0_99] : memref<2x17x128xf32, #tpu.memory_space<vmem>>, vector<2x17x128xf32>
      tpu.vector_store %arg22[%c0_97, %c0_98, %c0_99], %253 {strides = array<i32>} : memref<2x17x128xf32, #tpu.memory_space<vmem>>, vector<2x17x128xf32>,
    } else {
    }
    return
  }
  func.func @transform_0(%arg0: i32, %arg1: i32) -> (i32, i32, i32) {
    %c0_i32 = arith.constant 0 : i32
    %c0_i32_0 = arith.constant 0 : i32
    %c0_i32_1 = arith.constant 0 : i32
    return %arg0, %c0_i32, %c0_i32_0 : i32, i32, i32
  }
  func.func @transform_1(%arg0: i32, %arg1: i32) -> (i32, i32) {
    %c0_i32 = arith.constant 0 : i32
    %c0_i32_0 = arith.constant 0 : i32
    %c0_i32_1 = arith.constant 0 : i32
    return %c0_i32, %c0_i32_0 : i32, i32
  }
  func.func @transform_2(%arg0: i32, %arg1: i32) -> (i32, i32) {
    %c0_i32 = arith.constant 0 : i32
    %c0_i32_0 = arith.constant 0 : i32
    %c0_i32_1 = arith.constant 0 : i32
    return %c0_i32, %c0_i32_0 : i32, i32
  }
  func.func @transform_3(%arg0: i32, %arg1: i32) -> (i32, i32) {
    %c0_i32 = arith.constant 0 : i32
    %c0_i32_0 = arith.constant 0 : i32
    %c0_i32_1 = arith.constant 0 : i32
    return %c0_i32, %c0_i32_0 : i32, i32
  }
  func.func @transform_4(%arg0: i32, %arg1: i32) -> (i32, i32) {
    %c0_i32 = arith.constant 0 : i32
    %c0_i32_0 = arith.constant 0 : i32
    %c0_i32_1 = arith.constant 0 : i32
    return %c0_i32, %c0_i32_0 : i32, i32
  }
  func.func @transform_5(%arg0: i32, %arg1: i32) -> (i32, i32, i32) {
    %c0_i32 = arith.constant 0 : i32
    %c0_i32_0 = arith.constant 0 : i32
    %c0_i32_1 = arith.constant 0 : i32
    return %arg1, %c0_i32, %c0_i32_0 : i32, i32, i32
  }
  func.func @transform_6(%arg0: i32, %arg1: i32) -> (i32, i32, i32) {
    %c0_i32 = arith.constant 0 : i32
    %c0_i32_0 = arith.constant 0 : i32
    %c0_i32_1 = arith.constant 0 : i32
    return %arg1, %c0_i32, %c0_i32_0 : i32, i32, i32
  }
  func.func @transform_7(%arg0: i32, %arg1: i32) -> (i32, i32, i32) {
    %c0_i32 = arith.constant 0 : i32
    %c0_i32_0 = arith.constant 0 : i32
    %c0_i32_1 = arith.constant 0 : i32
    return %arg1, %c0_i32, %c0_i32_0 : i32, i32, i32
  }
  func.func @transform_8(%arg0: i32, %arg1: i32) -> (i32, i32, i32) {
    %c0_i32 = arith.constant 0 : i32
    %c0_i32_0 = arith.constant 0 : i32
    %c0_i32_1 = arith.constant 0 : i32
    return %arg1, %c0_i32, %c0_i32_0 : i32, i32, i32
  }
  func.func @transform_9(%arg0: i32, %arg1: i32) -> (i32, i32, i32) {
    %c0_i32 = arith.constant 0 : i32
    %c0_i32_0 = arith.constant 0 : i32
    %c0_i32_1 = arith.constant 0 : i32
    return %arg1, %c0_i32, %c0_i32_0 : i32, i32, i32
  }
  func.func @transform_10(%arg0: i32, %arg1: i32) -> (i32, i32, i32) {
    %c0_i32 = arith.constant 0 : i32
    %c0_i32_0 = arith.constant 0 : i32
    %c0_i32_1 = arith.constant 0 : i32
    return %arg1, %c0_i32, %c0_i32_0 : i32, i32, i32
  }
  func.func @transform_11(%arg0: i32, %arg1: i32) -> (i32, i32, i32) {
    %c0_i32 = arith.constant 0 : i32
    %c0_i32_0 = arith.constant 0 : i32
    %c0_i32_1 = arith.constant 0 : i32
    return %arg1, %c0_i32, %c0_i32_0 : i32, i32, i32
  }
  func.func @transform_12(%arg0: i32, %arg1: i32) -> (i32, i32, i32) {
    %c0_i32 = arith.constant 0 : i32
    %c0_i32_0 = arith.constant 0 : i32
    %c0_i32_1 = arith.constant 0 : i32
    return %arg1, %c0_i32, %c0_i32_0 : i32, i32, i32
  }
  func.func @transform_13(%arg0: i32, %arg1: i32) -> (i32, i32, i32) {
    %c0_i32 = arith.constant 0 : i32
    %c0_i32_0 = arith.constant 0 : i32
    %c0_i32_1 = arith.constant 0 : i32
    return %arg1, %c0_i32, %c0_i32_0 : i32, i32, i32
  }
  func.func @transform_14(%arg0: i32, %arg1: i32) -> (i32, i32, i32) {
    %c0_i32 = arith.constant 0 : i32
    %c0_i32_0 = arith.constant 0 : i32
    %c0_i32_1 = arith.constant 0 : i32
    return %arg1, %c0_i32, %c0_i32_0 : i32, i32, i32
  }
  func.func @transform_15(%arg0: i32, %arg1: i32) -> (i32, i32, i32) {
    %c0_i32 = arith.constant 0 : i32
    %c0_i32_0 = arith.constant 0 : i32
    %c0_i32_1 = arith.constant 0 : i32
    return %arg1, %c0_i32, %c0_i32_0 : i32, i32, i32
  }
  func.func @transform_16(%arg0: i32, %arg1: i32) -> (i32, i32, i32) {
    %c0_i32 = arith.constant 0 : i32
    %c0_i32_0 = arith.constant 0 : i32
    %c0_i32_1 = arith.constant 0 : i32
    return %arg1, %c0_i32, %c0_i32_0 : i32, i32, i32
  }
  func.func @transform_17(%arg0: i32, %arg1: i32) -> (i32, i32) {
    %c0_i32 = arith.constant 0 : i32
    %c0_i32_0 = arith.constant 0 : i32
    %c0_i32_1 = arith.constant 0 : i32
    return %c0_i32, %c0_i32_0 : i32, i32
  }
  func.func @transform_18(%arg0: i32, %arg1: i32) -> (i32, i32) {
    %c0_i32 = arith.constant 0 : i32
    %c0_i32_0 = arith.constant 0 : i32
    %c0_i32_1 = arith.constant 0 : i32
    return %c0_i32, %c0_i32_0 : i32, i32
  }
  func.func @transform_19(%arg0: i32, %arg1: i32) -> (i32, i32) {
    %c0_i32 = arith.constant 0 : i32
    %c0_i32_0 = arith.constant 0 : i32
    %c0_i32_1 = arith.constant 0 : i32
    return %c0_i32, %c0_i32_0 : i32, i32
  }
  func.func @transform_20(%arg0: i32, %arg1: i32) -> (i32, i32, i32) {
    %c0_i32 = arith.constant 0 : i32
    %c0_i32_0 = arith.constant 0 : i32
    %c0_i32_1 = arith.constant 0 : i32
    return %arg0, %c0_i32, %c0_i32_0 : i32, i32, i32
  }
}

</mosaic_0001>

<llo_original>
// kernel: tpu_custom_call.1
$region0: #{tpu_custom_call.1}
  #allocation0 [shape = 'u32[]', space=smem, size = 0x4, offset = 0x4, fixed_abs, tag = 'smem constant byte address 0x4 - core index']
  #allocation1 [shape = 'u32[144,128]{1,0:T(1,128)}', space=vmem, size = 0x12000, scoped, tag = 'internal scratch']
  #allocation2 [shape = 'f32[34,128]{1,0:T(8,128)}', space=vmem, size = 0x5000, scoped, tag = 'scratch operand']
  %s0 = inlined_call_operand.vmem [shape: bf16[2,17,256], index: 0, kind: input, shape index: {}]
  %s1 = inlined_call_operand.vmem [shape: bf16[256,128], index: 1, kind: input, shape index: {}]
  %s2 = inlined_call_operand.hbm [shape: f32[17,128], index: 2, kind: input, shape index: {}]
  %s3 = inlined_call_operand.hbm [shape: f32[1,128], index: 3, kind: input, shape index: {}]
  %s4 = inlined_call_operand.hbm [shape: f32[1,128], index: 4, kind: input, shape index: {}]
  %s5 = inlined_call_operand.hbm [shape: f32[2,1,128], index: 5, kind: input, shape index: {}]
  %s6 = inlined_call_operand.hbm [shape: f32[2,1,128], index: 6, kind: input, shape index: {}]
  %s7 = inlined_call_operand.vmem [shape: bf16[2,128,96], index: 7, kind: input, shape index: {}]
  %s8 = inlined_call_operand.hbm [shape: f32[2,1,96], index: 8, kind: input, shape index: {}]
  %s9 = inlined_call_operand.hbm [shape: bf16[2,32,128], index: 9, kind: input, shape index: {}]
  %s10 = inlined_call_operand.vmem [shape: f32[2,1,128], index: 10, kind: input, shape index: {}]
  %s11 = inlined_call_operand.vmem [shape: f32[2,1,128], index: 11, kind: input, shape index: {}]
  %s12 = inlined_call_operand.vmem [shape: f32[2,1,128], index: 12, kind: input, shape index: {}]
  %s13 = inlined_call_operand.vmem [shape: bf16[2,128,128], index: 13, kind: input, shape index: {}]
  %s14 = inlined_call_operand.vmem [shape: f32[2,1,128], index: 14, kind: input, shape index: {}]
  %s15 = inlined_call_operand.hbm [shape: bf16[2,128,128], index: 15, kind: input, shape index: {}]
  %s16 = inlined_call_operand.vmem [shape: f32[2,1,128], index: 16, kind: input, shape index: {}]
  %s17 = inlined_call_operand.vmem [shape: f32[1,128], index: 17, kind: input, shape index: {}]
  %s18 = inlined_call_operand.vmem [shape: f32[1,128], index: 18, kind: input, shape index: {}]
  %s19 = inlined_call_operand.vmem [shape: bf16[128,128], index: 19, kind: input, shape index: {}]
  %s20 = inlined_call_operand.vmem [shape: f32[2,17,128], index: 20, kind: output, shape index: {}]
  %s21 = sld [smem:[#allocation0]]
  $region153: #{tpu_custom_call.1} parent=0
    _
  %s23 = ssub.s32 1, %s21
  %s24 = scalar_select 0, %s23, %s21
  $region1: #{tpu_custom_call.1} parent=0
    #allocation3 [shape = 'u8[12288]{0}', space=vmem, size = 0x3000, scoped, tag = 'input window, operand 2, single buffered']
    #allocation4 [shape = 's32[2]{0}', space=sflag, size = 0x8, scoped, tag = 'scoped memory for tpu_custom_call.1']
    #allocation5 [shape = 'u8[512]{0}', space=vmem, size = 0x400, scoped, tag = 'input window, operand 3, single buffered']
    #allocation6 [shape = 's32[1]{0}', space=sflag, size = 0x4, scoped, tag = 'scoped memory for tpu_custom_call.1']
    #allocation7 [shape = 'u8[512]{0}', space=vmem, size = 0x400, scoped, tag = 'input window, operand 4, single buffered']
    #allocation8 [shape = 'u8[1024]{0}', space=vmem, size = 0x400, scoped, tag = 'input window, operand 5']
    #allocation9 [shape = 's32[2]{0}', space=sflag, size = 0x8, scoped, tag = 'scoped memory for tpu_custom_call.1']
    #allocation10 [shape = 'u8[1024]{0}', space=vmem, size = 0x400, scoped, tag = 'input window, operand 6']
    #allocation11 [shape = 'u8[1024]{0}', space=vmem, size = 0x400, scoped, tag = 'input window, operand 8']
    #allocation12 [shape = 's32[2]{0}', space=sflag, size = 0x8, scoped, tag = 'scoped memory for tpu_custom_call.1']
    #allocation13 [shape = 'u8[16384]{0}', space=vmem, size = 0x4000, scoped, tag = 'input window, operand 9']
    #allocation14 [shape = 'u8[65536]{0}', space=vmem, size = 0x10000, scoped, tag = 'input window, operand 15']
    #allocation15 [shape = 's32[2]{0}', space=sflag, size = 0x8, scoped, tag = 'scoped memory for tpu_custom_call.1']
    %25 = vsyncpa [#allocation4], 0
    %26 = vsyncpa [#allocation6], 0
    %27 = vsyncpa [#allocation9], 0
    %s28 = scalar_lea.sflag [#allocation9], 1
    %29 = vsyncpa %s28, 0
    %30 = vsyncpa [#allocation12], 0
    %s31 = scalar_lea.sflag [#allocation12], 1
    %32 = vsyncpa %s31, 0
    %33 = vsyncpa [#allocation15], 0
    %s34 = scalar_lea.sflag [#allocation15], 1
    %35 = vsyncpa %s34, 0
    loop: start=0, step=1, limit=4
    $region2: #{tpu_custom_call.1} parent=1 // loop_pre_header
      _
    $region3: #{tpu_custom_call.1} parent=1 // loop_header
      %s37 = sphi 0, %s41
      %p38 = scmp.ge.s32.totalorder %s37, 4
      %s44 = sphi 0, %s56
      %s45 = sphi 0, %s52
      %s46 = sphi 0, %s44
      %s47 = sphi 0, %s45
      %s48 = sphi 0, %s46
      %s49 = sphi 0, %s47
      %s59 = sphi 0, %s61
      %s62 = sphi 0, %s59
      %s63 = sphi 0, %s62
      %s79 = sphi 0, %s63
      %s83 = sphi 0, %s83
      %s85 = sphi 0, %s83
      %s86 = sphi 0, %s85
      %s100 = sphi 0, %s86
      %s104 = sphi 0, %s104
      %s106 = sphi 0, %s104
      %s107 = sphi 0, %s106
      %s121 = sphi 0, %s107
      %s125 = sphi 0, %s125
      %s127 = sphi 0, %s125
      %s128 = sphi 0, %s127
      %s142 = sphi 0, %s128
      %s146 = sphi 0, %s146
      %s148 = sphi 0, %s146
      %s149 = sphi 0, %s148
      %s163 = sphi 0, %s149
      %s169 = sphi 0, %s171
      %s172 = sphi 0, %s169
      %s173 = sphi 0, %s172
      %s189 = sphi 0, %s173
      %s195 = sphi 0, %s197
      %s198 = sphi 0, %s195
      %s199 = sphi 0, %s198
      %s215 = sphi 0, %s199
      %s221 = sphi 0, %s223
      %s224 = sphi 0, %s221
      %s225 = sphi 0, %s224
      %s241 = sphi 0, %s225
      %s247 = sphi 0, %s249
      %s250 = sphi 0, %s247
      %s251 = sphi 0, %s250
      %s267 = sphi 0, %s251
      %s273 = sphi 0, %s275
      %s276 = sphi 0, %s273
      %s277 = sphi 0, %s276
      %s293 = sphi 0, %s277
      %s299 = sphi 0, %s301
      %s302 = sphi 0, %s299
      %s303 = sphi 0, %s302
      %s319 = sphi 0, %s303
      %s325 = sphi 0, %s327
      %s328 = sphi 0, %s325
      %s329 = sphi 0, %s328
      %s345 = sphi 0, %s329
      %s351 = sphi 0, %s353
      %s354 = sphi 0, %s351
      %s355 = sphi 0, %s354
      %s371 = sphi 0, %s355
      %s377 = sphi 0, %s379
      %s380 = sphi 0, %s377
      %s381 = sphi 0, %s380
      %s397 = sphi 0, %s381
      %s403 = sphi 0, %s405
      %s406 = sphi 0, %s403
      %s407 = sphi 0, %s406
      %s423 = sphi 0, %s407
      %s429 = sphi 0, %s431
      %s432 = sphi 0, %s429
      %s433 = sphi 0, %s432
      %s449 = sphi 0, %s433
      %s455 = sphi 0, %s457
      %s458 = sphi 0, %s455
      %s459 = sphi 0, %s458
      %s475 = sphi 0, %s459
      %s479 = sphi 0, %s479
      %s481 = sphi 0, %s479
      %s482 = sphi 0, %s481
      %s496 = sphi 0, %s482
      %s500 = sphi 0, %s500
      %s502 = sphi 0, %s500
      %s503 = sphi 0, %s502
      %s517 = sphi 0, %s503
      %s521 = sphi 0, %s521
      %s523 = sphi 0, %s521
      %s524 = sphi 0, %s523
      %s538 = sphi 0, %s524
      %s544 = sphi 0, %s546
      %s547 = sphi 0, %s544
      %s548 = sphi 0, %s547
      %s564 = sphi 0, %s548
    $region4: #{tpu_custom_call.1} parent=1 // loop_header_branch
      %40 = sbr.rel (%p38) target = $region8
    $region5: #{tpu_custom_call.1} parent=1 // loop_body
      %s42 = ssub.s32 %s37, 1
      %s43 = ssub.s32 %s37, 2
      %s50 = sadd.s32 1, %s45
      %p51 = scmp.ge.s32.totalorder %s50, 2
      %s52 = scalar_select %p51, 0, %s50
      %s53 = sadd.s32 1, %s44
      %s54 = scalar_select %p51, %s53, %s44
      %p55 = scmp.ge.s32.totalorder %s54, 1
      %s56 = scalar_select %p55, 0, %s54
      %s57 = ssub.s32 %s44, %s56
      %p58 = scmp.eq.s32.totalorder %s57, 0
      %s60 = sadd.s32 %s59, 1
      %s61 = scalar_select %p58, %s59, %s60
      %p64 = pneg %p58
      %p65 = scmp.eq.s32.totalorder %s37, 1
      %p66 = por %p64, %p65
      %p67 = scmp.ne.s32.totalorder %s59, %s62
      %p68 = scmp.eq.s32.totalorder %s37, 0
      %p69 = por %p67, %p68
      %p70 = scmp.ne.s32.totalorder %s59, %s62
      %p71 = scmp.eq.s32.totalorder %s42, 1
      %p72 = por %p70, %p71
      %p73 = scmp.ne.s32.totalorder %s62, %s63
      %p74 = scmp.eq.s32.totalorder %s42, 0
      %p75 = por %p73, %p74
      %p76 = scmp.ne.s32.totalorder %s62, %s63
      %p77 = scmp.eq.s32.totalorder %s43, 1
      %p78 = por %p76, %p77
      %p80 = scmp.ne.s32.totalorder %s63, %s79
      %p81 = scmp.eq.s32.totalorder %s43, 0
      %p82 = por %p80, %p81
      %s84 = sadd.s32 %s83, 1
      %p87 = scmp.eq.s32.totalorder %s37, 1
      %p88 = scmp.ne.s32.totalorder %s83, %s85
      %p89 = scmp.eq.s32.totalorder %s37, 0
      %p90 = por %p88, %p89
      %p91 = scmp.ne.s32.totalorder %s83, %s85
      %p92 = scmp.eq.s32.totalorder %s42, 1
      %p93 = por %p91, %p92
      %p94 = scmp.ne.s32.totalorder %s85, %s86
      %p95 = scmp.eq.s32.totalorder %s42, 0
      %p96 = por %p94, %p95
      %p97 = scmp.ne.s32.totalorder %s85, %s86
      %p98 = scmp.eq.s32.totalorder %s43, 1
      %p99 = por %p97, %p98
      %p101 = scmp.ne.s32.totalorder %s86, %s100
      %p102 = scmp.eq.s32.totalorder %s43, 0
      %p103 = por %p101, %p102
      %s105 = sadd.s32 %s104, 1
      %p108 = scmp.eq.s32.totalorder %s37, 1
      %p109 = scmp.ne.s32.totalorder %s104, %s106
      %p110 = scmp.eq.s32.totalorder %s37, 0
      %p111 = por %p109, %p110
      %p112 = scmp.ne.s32.totalorder %s104, %s106
      %p113 = scmp.eq.s32.totalorder %s42, 1
      %p114 = por %p112, %p113
      %p115 = scmp.ne.s32.totalorder %s106, %s107
      %p116 = scmp.eq.s32.totalorder %s42, 0
      %p117 = por %p115, %p116
      %p118 = scmp.ne.s32.totalorder %s106, %s107
      %p119 = scmp.eq.s32.totalorder %s43, 1
      %p120 = por %p118, %p119
      %p122 = scmp.ne.s32.totalorder %s107, %s121
      %p123 = scmp.eq.s32.totalorder %s43, 0
      %p124 = por %p122, %p123
      %s126 = sadd.s32 %s125, 1
      %p129 = scmp.eq.s32.totalorder %s37, 1
      %p130 = scmp.ne.s32.totalorder %s125, %s127
      %p131 = scmp.eq.s32.totalorder %s37, 0
      %p132 = por %p130, %p131
      %p133 = scmp.ne.s32.totalorder %s125, %s127
      %p134 = scmp.eq.s32.totalorder %s42, 1
      %p135 = por %p133, %p134
      %p136 = scmp.ne.s32.totalorder %s127, %s128
      %p137 = scmp.eq.s32.totalorder %s42, 0
      %p138 = por %p136, %p137
      %p139 = scmp.ne.s32.totalorder %s127, %s128
      %p140 = scmp.eq.s32.totalorder %s43, 1
      %p141 = por %p139, %p140
      %p143 = scmp.ne.s32.totalorder %s128, %s142
      %p144 = scmp.eq.s32.totalorder %s43, 0
      %p145 = por %p143, %p144
      %s147 = sadd.s32 %s146, 1
      %p150 = scmp.eq.s32.totalorder %s37, 1
      %p151 = scmp.ne.s32.totalorder %s146, %s148
      %p152 = scmp.eq.s32.totalorder %s37, 0
      %p153 = por %p151, %p152
      %p154 = scmp.ne.s32.totalorder %s146, %s148
      %p155 = scmp.eq.s32.totalorder %s42, 1
      %p156 = por %p154, %p155
      %p157 = scmp.ne.s32.totalorder %s148, %s149
      %p158 = scmp.eq.s32.totalorder %s42, 0
      %p159 = por %p157, %p158
      %p160 = scmp.ne.s32.totalorder %s148, %s149
      %p161 = scmp.eq.s32.totalorder %s43, 1
      %p162 = por %p160, %p161
      %p164 = scmp.ne.s32.totalorder %s149, %s163
      %p165 = scmp.eq.s32.totalorder %s43, 0
      %p166 = por %p164, %p165
      %s167 = ssub.s32 %s45, %s52
      %p168 = scmp.eq.s32.totalorder %s167, 0
      %s170 = sadd.s32 %s169, 1
      %s171 = scalar_select %p168, %s169, %s170
      %p174 = pneg %p168
      %p175 = scmp.eq.s32.totalorder %s37, 1
      %p176 = por %p174, %p175
      %p177 = scmp.ne.s32.totalorder %s169, %s172
      %p178 = scmp.eq.s32.totalorder %s37, 0
      %p179 = por %p177, %p178
      %p180 = scmp.ne.s32.totalorder %s169, %s172
      %p181 = scmp.eq.s32.totalorder %s42, 1
      %p182 = por %p180, %p181
      %p183 = scmp.ne.s32.totalorder %s172, %s173
      %p184 = scmp.eq.s32.totalorder %s42, 0
      %p185 = por %p183, %p184
      %p186 = scmp.ne.s32.totalorder %s172, %s173
      %p187 = scmp.eq.s32.totalorder %s43, 1
      %p188 = por %p186, %p187
      %p190 = scmp.ne.s32.totalorder %s173, %s189
      %p191 = scmp.eq.s32.totalorder %s43, 0
      %p192 = por %p190, %p191
      %s193 = ssub.s32 %s45, %s52
      %p194 = scmp.eq.s32.totalorder %s193, 0
      %s196 = sadd.s32 %s195, 1
      %s197 = scalar_select %p194, %s195, %s196
      %p200 = pneg %p194
      %p201 = scmp.eq.s32.totalorder %s37, 1
      %p202 = por %p200, %p201
      %p203 = scmp.ne.s32.totalorder %s195, %s198
      %p204 = scmp.eq.s32.totalorder %s37, 0
      %p205 = por %p203, %p204
      %p206 = scmp.ne.s32.totalorder %s195, %s198
      %p207 = scmp.eq.s32.totalorder %s42, 1
      %p208 = por %p206, %p207
      %p209 = scmp.ne.s32.totalorder %s198, %s199
      %p210 = scmp.eq.s32.totalorder %s42, 0
      %p211 = por %p209, %p210
      %p212 = scmp.ne.s32.totalorder %s198, %s199
      %p213 = scmp.eq.s32.totalorder %s43, 1
      %p214 = por %p212, %p213
      %p216 = scmp.ne.s32.totalorder %s199, %s215
      %p217 = scmp.eq.s32.totalorder %s43, 0
      %p218 = por %p216, %p217
      %s219 = ssub.s32 %s45, %s52
      %p220 = scmp.eq.s32.totalorder %s219, 0
      %s222 = sadd.s32 %s221, 1
      %s223 = scalar_select %p220, %s221, %s222
      %p226 = pneg %p220
      %p227 = scmp.eq.s32.totalorder %s37, 1
      %p228 = por %p226, %p227
      %p229 = scmp.ne.s32.totalorder %s221, %s224
      %p230 = scmp.eq.s32.totalorder %s37, 0
      %p231 = por %p229, %p230
      %p232 = scmp.ne.s32.totalorder %s221, %s224
      %p233 = scmp.eq.s32.totalorder %s42, 1
      %p234 = por %p232, %p233
      %p235 = scmp.ne.s32.totalorder %s224, %s225
      %p236 = scmp.eq.s32.totalorder %s42, 0
      %p237 = por %p235, %p236
      %p238 = scmp.ne.s32.totalorder %s224, %s225
      %p239 = scmp.eq.s32.totalorder %s43, 1
      %p240 = por %p238, %p239
      %p242 = scmp.ne.s32.totalorder %s225, %s241
      %p243 = scmp.eq.s32.totalorder %s43, 0
      %p244 = por %p242, %p243
      %s245 = ssub.s32 %s45, %s52
      %p246 = scmp.eq.s32.totalorder %s245, 0
      %s248 = sadd.s32 %s247, 1
      %s249 = scalar_select %p246, %s247, %s248
      %p252 = pneg %p246
      %p253 = scmp.eq.s32.totalorder %s37, 1
      %p254 = por %p252, %p253
      %p255 = scmp.ne.s32.totalorder %s247, %s250
      %p256 = scmp.eq.s32.totalorder %s37, 0
      %p257 = por %p255, %p256
      %p258 = scmp.ne.s32.totalorder %s247, %s250
      %p259 = scmp.eq.s32.totalorder %s42, 1
      %p260 = por %p258, %p259
      %p261 = scmp.ne.s32.totalorder %s250, %s251
      %p262 = scmp.eq.s32.totalorder %s42, 0
      %p263 = por %p261, %p262
      %p264 = scmp.ne.s32.totalorder %s250, %s251
      %p265 = scmp.eq.s32.totalorder %s43, 1
      %p266 = por %p264, %p265
      %p268 = scmp.ne.s32.totalorder %s251, %s267
      %p269 = scmp.eq.s32.totalorder %s43, 0
      %p270 = por %p268, %p269
      %s271 = ssub.s32 %s45, %s52
      %p272 = scmp.eq.s32.totalorder %s271, 0
      %s274 = sadd.s32 %s273, 1
      %s275 = scalar_select %p272, %s273, %s274
      %p278 = pneg %p272
      %p279 = scmp.eq.s32.totalorder %s37, 1
      %p280 = por %p278, %p279
      %p281 = scmp.ne.s32.totalorder %s273, %s276
      %p282 = scmp.eq.s32.totalorder %s37, 0
      %p283 = por %p281, %p282
      %p284 = scmp.ne.s32.totalorder %s273, %s276
      %p285 = scmp.eq.s32.totalorder %s42, 1
      %p286 = por %p284, %p285
      %p287 = scmp.ne.s32.totalorder %s276, %s277
      %p288 = scmp.eq.s32.totalorder %s42, 0
      %p289 = por %p287, %p288
      %p290 = scmp.ne.s32.totalorder %s276, %s277
      %p291 = scmp.eq.s32.totalorder %s43, 1
      %p292 = por %p290, %p291
      %p294 = scmp.ne.s32.totalorder %s277, %s293
      %p295 = scmp.eq.s32.totalorder %s43, 0
      %p296 = por %p294, %p295
      %s297 = ssub.s32 %s45, %s52
      %p298 = scmp.eq.s32.totalorder %s297, 0
      %s300 = sadd.s32 %s299, 1
      %s301 = scalar_select %p298, %s299, %s300
      %p304 = pneg %p298
      %p305 = scmp.eq.s32.totalorder %s37, 1
      %p306 = por %p304, %p305
      %p307 = scmp.ne.s32.totalorder %s299, %s302
      %p308 = scmp.eq.s32.totalorder %s37, 0
      %p309 = por %p307, %p308
      %p310 = scmp.ne.s32.totalorder %s299, %s302
      %p311 = scmp.eq.s32.totalorder %s42, 1
      %p312 = por %p310, %p311
      %p313 = scmp.ne.s32.totalorder %s302, %s303
      %p314 = scmp.eq.s32.totalorder %s42, 0
      %p315 = por %p313, %p314
      %p316 = scmp.ne.s32.totalorder %s302, %s303
      %p317 = scmp.eq.s32.totalorder %s43, 1
      %p318 = por %p316, %p317
      %p320 = scmp.ne.s32.totalorder %s303, %s319
      %p321 = scmp.eq.s32.totalorder %s43, 0
      %p322 = por %p320, %p321
      %s323 = ssub.s32 %s45, %s52
      %p324 = scmp.eq.s32.totalorder %s323, 0
      %s326 = sadd.s32 %s325, 1
      %s327 = scalar_select %p324, %s325, %s326
      %p330 = pneg %p324
      %p331 = scmp.eq.s32.totalorder %s37, 1
      %p332 = por %p330, %p331
      %p333 = scmp.ne.s32.totalorder %s325, %s328
      %p334 = scmp.eq.s32.totalorder %s37, 0
      %p335 = por %p333, %p334
      %p336 = scmp.ne.s32.totalorder %s325, %s328
      %p337 = scmp.eq.s32.totalorder %s42, 1
      %p338 = por %p336, %p337
      %p339 = scmp.ne.s32.totalorder %s328, %s329
      %p340 = scmp.eq.s32.totalorder %s42, 0
      %p341 = por %p339, %p340
      %p342 = scmp.ne.s32.totalorder %s328, %s329
      %p343 = scmp.eq.s32.totalorder %s43, 1
      %p344 = por %p342, %p343
      %p346 = scmp.ne.s32.totalorder %s329, %s345
      %p347 = scmp.eq.s32.totalorder %s43, 0
      %p348 = por %p346, %p347
      %s349 = ssub.s32 %s45, %s52
      %p350 = scmp.eq.s32.totalorder %s349, 0
      %s352 = sadd.s32 %s351, 1
      %s353 = scalar_select %p350, %s351, %s352
      %p356 = pneg %p350
      %p357 = scmp.eq.s32.totalorder %s37, 1
      %p358 = por %p356, %p357
      %p359 = scmp.ne.s32.totalorder %s351, %s354
      %p360 = scmp.eq.s32.totalorder %s37, 0
      %p361 = por %p359, %p360
      %p362 = scmp.ne.s32.totalorder %s351, %s354
      %p363 = scmp.eq.s32.totalorder %s42, 1
      %p364 = por %p362, %p363
      %p365 = scmp.ne.s32.totalorder %s354, %s355
      %p366 = scmp.eq.s32.totalorder %s42, 0
      %p367 = por %p365, %p366
      %p368 = scmp.ne.s32.totalorder %s354, %s355
      %p369 = scmp.eq.s32.totalorder %s43, 1
      %p370 = por %p368, %p369
      %p372 = scmp.ne.s32.totalorder %s355, %s371
      %p373 = scmp.eq.s32.totalorder %s43, 0
      %p374 = por %p372, %p373
      %s375 = ssub.s32 %s45, %s52
      %p376 = scmp.eq.s32.totalorder %s375, 0
      %s378 = sadd.s32 %s377, 1
      %s379 = scalar_select %p376, %s377, %s378
      %p382 = pneg %p376
      %p383 = scmp.eq.s32.totalorder %s37, 1
      %p384 = por %p382, %p383
      %p385 = scmp.ne.s32.totalorder %s377, %s380
      %p386 = scmp.eq.s32.totalorder %s37, 0
      %p387 = por %p385, %p386
      %p388 = scmp.ne.s32.totalorder %s377, %s380
      %p389 = scmp.eq.s32.totalorder %s42, 1
      %p390 = por %p388, %p389
      %p391 = scmp.ne.s32.totalorder %s380, %s381
      %p392 = scmp.eq.s32.totalorder %s42, 0
      %p393 = por %p391, %p392
      %p394 = scmp.ne.s32.totalorder %s380, %s381
      %p395 = scmp.eq.s32.totalorder %s43, 1
      %p396 = por %p394, %p395
      %p398 = scmp.ne.s32.totalorder %s381, %s397
      %p399 = scmp.eq.s32.totalorder %s43, 0
      %p400 = por %p398, %p399
      %s401 = ssub.s32 %s45, %s52
      %p402 = scmp.eq.s32.totalorder %s401, 0
      %s404 = sadd.s32 %s403, 1
      %s405 = scalar_select %p402, %s403, %s404
      %p408 = pneg %p402
      %p409 = scmp.eq.s32.totalorder %s37, 1
      %p410 = por %p408, %p409
      %p411 = scmp.ne.s32.totalorder %s403, %s406
      %p412 = scmp.eq.s32.totalorder %s37, 0
      %p413 = por %p411, %p412
      %p414 = scmp.ne.s32.totalorder %s403, %s406
      %p415 = scmp.eq.s32.totalorder %s42, 1
      %p416 = por %p414, %p415
      %p417 = scmp.ne.s32.totalorder %s406, %s407
      %p418 = scmp.eq.s32.totalorder %s42, 0
      %p419 = por %p417, %p418
      %p420 = scmp.ne.s32.totalorder %s406, %s407
      %p421 = scmp.eq.s32.totalorder %s43, 1
      %p422 = por %p420, %p421
      %p424 = scmp.ne.s32.totalorder %s407, %s423
      %p425 = scmp.eq.s32.totalorder %s43, 0
      %p426 = por %p424, %p425
      %s427 = ssub.s32 %s45, %s52
      %p428 = scmp.eq.s32.totalorder %s427, 0
      %s430 = sadd.s32 %s429, 1
      %s431 = scalar_select %p428, %s429, %s430
      %p434 = pneg %p428
      %p435 = scmp.eq.s32.totalorder %s37, 1
      %p436 = por %p434, %p435
      %p437 = scmp.ne.s32.totalorder %s429, %s432
      %p438 = scmp.eq.s32.totalorder %s37, 0
      %p439 = por %p437, %p438
      %p440 = scmp.ne.s32.totalorder %s429, %s432
      %p441 = scmp.eq.s32.totalorder %s42, 1
      %p442 = por %p440, %p441
      %p443 = scmp.ne.s32.totalorder %s432, %s433
      %p444 = scmp.eq.s32.totalorder %s42, 0
      %p445 = por %p443, %p444
      %p446 = scmp.ne.s32.totalorder %s432, %s433
      %p447 = scmp.eq.s32.totalorder %s43, 1
      %p448 = por %p446, %p447
      %p450 = scmp.ne.s32.totalorder %s433, %s449
      %p451 = scmp.eq.s32.totalorder %s43, 0
      %p452 = por %p450, %p451
      %s453 = ssub.s32 %s45, %s52
      %p454 = scmp.eq.s32.totalorder %s453, 0
      %s456 = sadd.s32 %s455, 1
      %s457 = scalar_select %p454, %s455, %s456
      %p460 = pneg %p454
      %p461 = scmp.eq.s32.totalorder %s37, 1
      %p462 = por %p460, %p461
      %p463 = scmp.ne.s32.totalorder %s455, %s458
      %p464 = scmp.eq.s32.totalorder %s37, 0
      %p465 = por %p463, %p464
      %p466 = scmp.ne.s32.totalorder %s455, %s458
      %p467 = scmp.eq.s32.totalorder %s42, 1
      %p468 = por %p466, %p467
      %p469 = scmp.ne.s32.totalorder %s458, %s459
      %p470 = scmp.eq.s32.totalorder %s42, 0
      %p471 = por %p469, %p470
      %p472 = scmp.ne.s32.totalorder %s458, %s459
      %p473 = scmp.eq.s32.totalorder %s43, 1
      %p474 = por %p472, %p473
      %p476 = scmp.ne.s32.totalorder %s459, %s475
      %p477 = scmp.eq.s32.totalorder %s43, 0
      %p478 = por %p476, %p477
      %s480 = sadd.s32 %s479, 1
      %p483 = scmp.eq.s32.totalorder %s37, 1
      %p484 = scmp.ne.s32.totalorder %s479, %s481
      %p485 = scmp.eq.s32.totalorder %s37, 0
      %p486 = por %p484, %p485
      %p487 = scmp.ne.s32.totalorder %s479, %s481
      %p488 = scmp.eq.s32.totalorder %s42, 1
      %p489 = por %p487, %p488
      %p490 = scmp.ne.s32.totalorder %s481, %s482
      %p491 = scmp.eq.s32.totalorder %s42, 0
      %p492 = por %p490, %p491
      %p493 = scmp.ne.s32.totalorder %s481, %s482
      %p494 = scmp.eq.s32.totalorder %s43, 1
      %p495 = por %p493, %p494
      %p497 = scmp.ne.s32.totalorder %s482, %s496
      %p498 = scmp.eq.s32.totalorder %s43, 0
      %p499 = por %p497, %p498
      %s501 = sadd.s32 %s500, 1
      %p504 = scmp.eq.s32.totalorder %s37, 1
      %p505 = scmp.ne.s32.totalorder %s500, %s502
      %p506 = scmp.eq.s32.totalorder %s37, 0
      %p507 = por %p505, %p506
      %p508 = scmp.ne.s32.totalorder %s500, %s502
      %p509 = scmp.eq.s32.totalorder %s42, 1
      %p510 = por %p508, %p509
      %p511 = scmp.ne.s32.totalorder %s502, %s503
      %p512 = scmp.eq.s32.totalorder %s42, 0
      %p513 = por %p511, %p512
      %p514 = scmp.ne.s32.totalorder %s502, %s503
      %p515 = scmp.eq.s32.totalorder %s43, 1
      %p516 = por %p514, %p515
      %p518 = scmp.ne.s32.totalorder %s503, %s517
      %p519 = scmp.eq.s32.totalorder %s43, 0
      %p520 = por %p518, %p519
      %s522 = sadd.s32 %s521, 1
      %p525 = scmp.eq.s32.totalorder %s37, 1
      %p526 = scmp.ne.s32.totalorder %s521, %s523
      %p527 = scmp.eq.s32.totalorder %s37, 0
      %p528 = por %p526, %p527
      %p529 = scmp.ne.s32.totalorder %s521, %s523
      %p530 = scmp.eq.s32.totalorder %s42, 1
      %p531 = por %p529, %p530
      %p532 = scmp.ne.s32.totalorder %s523, %s524
      %p533 = scmp.eq.s32.totalorder %s42, 0
      %p534 = por %p532, %p533
      %p535 = scmp.ne.s32.totalorder %s523, %s524
      %p536 = scmp.eq.s32.totalorder %s43, 1
      %p537 = por %p535, %p536
      %p539 = scmp.ne.s32.totalorder %s524, %s538
      %p540 = scmp.eq.s32.totalorder %s43, 0
      %p541 = por %p539, %p540
      %s542 = ssub.s32 %s44, %s56
      %p543 = scmp.eq.s32.totalorder %s542, 0
      %s545 = sadd.s32 %s544, 1
      %s546 = scalar_select %p543, %s544, %s545
      %p549 = pneg %p543
      %p550 = scmp.eq.s32.totalorder %s37, 1
      %p551 = por %p549, %p550
      %p552 = scmp.ne.s32.totalorder %s544, %s547
      %p553 = scmp.eq.s32.totalorder %s37, 0
      %p554 = por %p552, %p553
      %p555 = scmp.ne.s32.totalorder %s544, %s547
      %p556 = scmp.eq.s32.totalorder %s42, 1
      %p557 = por %p555, %p556
      %p558 = scmp.ne.s32.totalorder %s547, %s548
      %p559 = scmp.eq.s32.totalorder %s42, 0
      %p560 = por %p558, %p559
      %p561 = scmp.ne.s32.totalorder %s547, %s548
      %p562 = scmp.eq.s32.totalorder %s43, 1
      %p563 = por %p561, %p562
      %p565 = scmp.ne.s32.totalorder %s548, %s564
      %p566 = scmp.eq.s32.totalorder %s43, 0
      %p567 = por %p565, %p566
      %p568 = scmp.le.s32.totalorder 1, %s37
      %p569 = scmp.lt.s32.totalorder %s37, 3
      %p570 = pnand %p568, %p569
      %p571 = pneg %p570
      // Predicated region
      $region9: #{tpu_custom_call.1} parent=5 // pred_check
        _
      $region10: #{tpu_custom_call.1} parent=5 // pred_check_branch
        %573 = sbr.rel (%p570) target = $region12
      $region11: #{tpu_custom_call.1} parent=5 // pred_region
        %s574 = ssub.s32 %s37, 1
        // Predicated region
        $region13: #{tpu_custom_call.1} parent=11 // pred_check
          %p575 = pneg %p75
        $region14: #{tpu_custom_call.1} parent=11 // pred_check_branch
          %577 = sbr.rel (%p575) target = $region16
        $region15: #{tpu_custom_call.1} parent=11 // pred_region
          %s578 = smul.u32 2, %s46
          %p579 = scmp.lt.s32.totalorder %s578, 1
          %s580 = scalar_select %p579, %s578, 1
          %s581 = smul.addr %s580, 6
          %s582 = smul.addr %s581, 4
          %s583 = scalar_lea.vmem %s0, %s582
          %s584 = smul.u32 2, %s46
        $region16: #{tpu_custom_call.1} parent=11 // pred_fallthru
          _
        // Predicated region
        $region17: #{tpu_custom_call.1} parent=11 // pred_check
          %p585 = pneg %p96
        $region18: #{tpu_custom_call.1} parent=11 // pred_check_branch
          %587 = sbr.rel (%p585) target = $region20
        $region19: #{tpu_custom_call.1} parent=11 // pred_region
          _
        $region20: #{tpu_custom_call.1} parent=11 // pred_fallthru
          _
        // Predicated region
        $region21: #{tpu_custom_call.1} parent=11 // pred_check
          %p588 = pneg %p117
        $region22: #{tpu_custom_call.1} parent=11 // pred_check_branch
          %590 = sbr.rel (%p588) target = $region24
        $region23: #{tpu_custom_call.1} parent=11 // pred_region
          %s592 = ssub.s32 384, 384
          %593 = vsyncadd [#allocation4], %s592
          %s594 = sshll.u32 [#allocation3], 4
          %s595 = int_to_ptr.vmem [resolvable:$true] %s594
          %600 = dma.hbm_to_vmem [thread:$0]  %s2, 384, %s595, [#allocation4], 128, 128, 8
        $region24: #{tpu_custom_call.1} parent=11 // pred_fallthru
          _
        // Predicated region
        $region25: #{tpu_custom_call.1} parent=11 // pred_check
          %p601 = pneg %p138
        $region26: #{tpu_custom_call.1} parent=11 // pred_check_branch
          %603 = sbr.rel (%p601) target = $region28
        $region27: #{tpu_custom_call.1} parent=11 // pred_region
          %s605 = ssub.s32 16, 16
          %606 = vsyncadd [#allocation6], %s605
          %s608 = sshll.u32 [#allocation5], 4
          %s609 = int_to_ptr.vmem [resolvable:$true] %s608
          %611 = dma.hbm_to_vmem [thread:$0]  %s3, 16, %s609, [#allocation6]
        $region28: #{tpu_custom_call.1} parent=11 // pred_fallthru
          _
        // Predicated region
        $region29: #{tpu_custom_call.1} parent=11 // pred_check
          %p612 = pneg %p159
        $region30: #{tpu_custom_call.1} parent=11 // pred_check_branch
          %614 = sbr.rel (%p612) target = $region32
        $region31: #{tpu_custom_call.1} parent=11 // pred_region
          %s616 = ssub.s32 16, 16
          %617 = vsyncadd [#allocation6], %s616
          %s619 = sshll.u32 [#allocation7], 4
          %s620 = int_to_ptr.vmem [resolvable:$true] %s619
          %622 = dma.hbm_to_vmem [thread:$0]  %s4, 16, %s620, [#allocation6]
        $region32: #{tpu_custom_call.1} parent=11 // pred_fallthru
          _
        // Predicated region
        $region33: #{tpu_custom_call.1} parent=11 // pred_check
          %p623 = pneg %p492
        $region34: #{tpu_custom_call.1} parent=11 // pred_check_branch
          %625 = sbr.rel (%p623) target = $region36
        $region35: #{tpu_custom_call.1} parent=11 // pred_region
          _
        $region36: #{tpu_custom_call.1} parent=11 // pred_fallthru
          _
        // Predicated region
        $region37: #{tpu_custom_call.1} parent=11 // pred_check
          %p626 = pneg %p513
        $region38: #{tpu_custom_call.1} parent=11 // pred_check_branch
          %628 = sbr.rel (%p626) target = $region40
        $region39: #{tpu_custom_call.1} parent=11 // pred_region
          _
        $region40: #{tpu_custom_call.1} parent=11 // pred_fallthru
          _
        // Predicated region
        $region41: #{tpu_custom_call.1} parent=11 // pred_check
          %p629 = pneg %p534
        $region42: #{tpu_custom_call.1} parent=11 // pred_check_branch
          %631 = sbr.rel (%p629) target = $region44
        $region43: #{tpu_custom_call.1} parent=11 // pred_region
          _
        $region44: #{tpu_custom_call.1} parent=11 // pred_fallthru
          _
      $region12: #{tpu_custom_call.1} parent=5 // pred_fallthru
        _
      %p632 = scmp.lt.s32.totalorder %s37, 2
      // Predicated region
      $region45: #{tpu_custom_call.1} parent=5 // pred_check
        %p633 = pneg %p632
      $region46: #{tpu_custom_call.1} parent=5 // pred_check_branch
        %635 = sbr.rel (%p633) target = $region48
      $region47: #{tpu_custom_call.1} parent=5 // pred_region
        // Predicated region
        $region49: #{tpu_custom_call.1} parent=47 // pred_check
          %p636 = pneg %p179
        $region50: #{tpu_custom_call.1} parent=47 // pred_check_branch
          %638 = sbr.rel (%p636) target = $region52
        $region51: #{tpu_custom_call.1} parent=47 // pred_region
          %s639 = sand.u32 %s37, 1
          %s640 = scalar_lea.sflag [#allocation9], %s639
          %s641 = sand.u32 %s169, 1
          %s642 = scalar_lea.vmem [#allocation8], %s641
          %s644 = ssub.s32 16, 16
          %645 = vsyncadd %s640, %s644
          %s646 = smul.addr %s45, 16
          %s647 = scalar_lea.hbm %s5, %s646
          %s649 = sshll.u32 %s642, 4
          %s650 = int_to_ptr.vmem [resolvable:$true] %s649
          %652 = dma.hbm_to_vmem [thread:$0]  %s647, 16, %s650, %s640
        $region52: #{tpu_custom_call.1} parent=47 // pred_fallthru
          _
        // Predicated region
        $region53: #{tpu_custom_call.1} parent=47 // pred_check
          %p653 = pneg %p205
        $region54: #{tpu_custom_call.1} parent=47 // pred_check_branch
          %655 = sbr.rel (%p653) target = $region56
        $region55: #{tpu_custom_call.1} parent=47 // pred_region
          %s656 = sand.u32 %s37, 1
          %s657 = scalar_lea.sflag [#allocation9], %s656
          %s658 = sand.u32 %s195, 1
          %s659 = scalar_lea.vmem [#allocation10], %s658
          %s661 = ssub.s32 16, 16
          %662 = vsyncadd %s657, %s661
          %s663 = smul.addr %s45, 16
          %s664 = scalar_lea.hbm %s6, %s663
          %s666 = sshll.u32 %s659, 4
          %s667 = int_to_ptr.vmem [resolvable:$true] %s666
          %669 = dma.hbm_to_vmem [thread:$0]  %s664, 16, %s667, %s657
        $region56: #{tpu_custom_call.1} parent=47 // pred_fallthru
          _
        // Predicated region
        $region57: #{tpu_custom_call.1} parent=47 // pred_check
          %p670 = pneg %p231
        $region58: #{tpu_custom_call.1} parent=47 // pred_check_branch
          %672 = sbr.rel (%p670) target = $region60
        $region59: #{tpu_custom_call.1} parent=47 // pred_region
          %p673 = scmp.lt.s32.totalorder %s45, 1
          %s674 = scalar_select %p673, %s45, 1
          %s675 = smul.addr %s674, 16
          %s676 = smul.addr %s675, 4
          %s677 = scalar_lea.vmem %s7, %s676
        $region60: #{tpu_custom_call.1} parent=47 // pred_fallthru
          _
        // Predicated region
        $region61: #{tpu_custom_call.1} parent=47 // pred_check
          %p678 = pneg %p257
        $region62: #{tpu_custom_call.1} parent=47 // pred_check_branch
          %680 = sbr.rel (%p678) target = $region64
        $region63: #{tpu_custom_call.1} parent=47 // pred_region
          %s681 = sand.u32 %s37, 1
          %s682 = scalar_lea.sflag [#allocation12], %s681
          %s683 = sand.u32 %s247, 1
          %s684 = scalar_lea.vmem [#allocation11], %s683
          %s686 = ssub.s32 16, 16
          %687 = vsyncadd %s682, %s686
          %s688 = smul.addr %s45, 16
          %s689 = scalar_lea.hbm %s8, %s688
          %s691 = sshll.u32 %s684, 4
          %s692 = int_to_ptr.vmem [resolvable:$true] %s691
          %694 = dma.hbm_to_vmem [thread:$0]  %s689, 16, %s692, %s682
        $region64: #{tpu_custom_call.1} parent=47 // pred_fallthru
          _
        // Predicated region
        $region65: #{tpu_custom_call.1} parent=47 // pred_check
          %p695 = pneg %p283
        $region66: #{tpu_custom_call.1} parent=47 // pred_check_branch
          %697 = sbr.rel (%p695) target = $region68
        $region67: #{tpu_custom_call.1} parent=47 // pred_region
          %s698 = sand.u32 %s37, 1
          %s699 = scalar_lea.sflag [#allocation12], %s698
          %s700 = sand.u32 %s273, 1
          %s701 = smul.addr %s700, 16
          %s702 = scalar_lea.vmem [#allocation13], %s701
          %s704 = ssub.s32 256, 256
          %705 = vsyncadd %s699, %s704
          %s706 = smul.addr %s45, 4
          %s707 = smul.addr %s706, 64
          %s708 = scalar_lea.hbm %s9, %s707
          %s709 = sshll.u32 %s702, 4
          %s710 = int_to_ptr.vmem [resolvable:$true] %s709
          %715 = dma.hbm_to_vmem [thread:$0]  %s708, 256, %s710, %s699, 64, 64, 4
        $region68: #{tpu_custom_call.1} parent=47 // pred_fallthru
          _
        // Predicated region
        $region69: #{tpu_custom_call.1} parent=47 // pred_check
          %p716 = pneg %p309
        $region70: #{tpu_custom_call.1} parent=47 // pred_check_branch
          %718 = sbr.rel (%p716) target = $region72
        $region71: #{tpu_custom_call.1} parent=47 // pred_region
          %p719 = scmp.lt.s32.totalorder %s45, 1
          %s720 = scalar_select %p719, %s45, 1
          %s721 = scalar_lea.vmem %s10, %s720
        $region72: #{tpu_custom_call.1} parent=47 // pred_fallthru
          _
        // Predicated region
        $region73: #{tpu_custom_call.1} parent=47 // pred_check
          %p722 = pneg %p335
        $region74: #{tpu_custom_call.1} parent=47 // pred_check_branch
          %724 = sbr.rel (%p722) target = $region76
        $region75: #{tpu_custom_call.1} parent=47 // pred_region
          %p725 = scmp.lt.s32.totalorder %s45, 1
          %s726 = scalar_select %p725, %s45, 1
          %s727 = scalar_lea.vmem %s11, %s726
        $region76: #{tpu_custom_call.1} parent=47 // pred_fallthru
          _
        // Predicated region
        $region77: #{tpu_custom_call.1} parent=47 // pred_check
          %p728 = pneg %p361
        $region78: #{tpu_custom_call.1} parent=47 // pred_check_branch
          %730 = sbr.rel (%p728) target = $region80
        $region79: #{tpu_custom_call.1} parent=47 // pred_region
          %p731 = scmp.lt.s32.totalorder %s45, 1
          %s732 = scalar_select %p731, %s45, 1
          %s733 = scalar_lea.vmem %s12, %s732
        $region80: #{tpu_custom_call.1} parent=47 // pred_fallthru
          _
        // Predicated region
        $region81: #{tpu_custom_call.1} parent=47 // pred_check
          %p734 = pneg %p387
        $region82: #{tpu_custom_call.1} parent=47 // pred_check_branch
          %736 = sbr.rel (%p734) target = $region84
        $region83: #{tpu_custom_call.1} parent=47 // pred_region
          %p737 = scmp.lt.s32.totalorder %s45, 1
          %s738 = scalar_select %p737, %s45, 1
          %s739 = smul.addr %s738, 16
          %s740 = smul.addr %s739, 4
          %s741 = scalar_lea.vmem %s13, %s740
        $region84: #{tpu_custom_call.1} parent=47 // pred_fallthru
          _
        // Predicated region
        $region85: #{tpu_custom_call.1} parent=47 // pred_check
          %p742 = pneg %p413
        $region86: #{tpu_custom_call.1} parent=47 // pred_check_branch
          %744 = sbr.rel (%p742) target = $region88
        $region87: #{tpu_custom_call.1} parent=47 // pred_region
          %p745 = scmp.lt.s32.totalorder %s45, 1
          %s746 = scalar_select %p745, %s45, 1
          %s747 = scalar_lea.vmem %s14, %s746
        $region88: #{tpu_custom_call.1} parent=47 // pred_fallthru
          _
        // Predicated region
        $region89: #{tpu_custom_call.1} parent=47 // pred_check
          %p748 = pneg %p439
        $region90: #{tpu_custom_call.1} parent=47 // pred_check_branch
          %750 = sbr.rel (%p748) target = $region92
        $region91: #{tpu_custom_call.1} parent=47 // pred_region
          %s751 = sand.u32 %s429, 1
          %s752 = scalar_lea.sflag [#allocation15], %s751
          %s753 = sand.u32 %s429, 1
          %s754 = smul.addr %s753, 64
          %s755 = scalar_lea.vmem [#allocation14], %s754
          %s757 = ssub.s32 1024, 1024
          %758 = vsyncadd %s752, %s757
          %s759 = smul.addr %s45, 16
          %s760 = smul.addr %s759, 64
          %s761 = scalar_lea.hbm %s15, %s760
          %s762 = sshll.u32 %s755, 4
          %s763 = int_to_ptr.vmem [resolvable:$true] %s762
          %768 = dma.hbm_to_vmem [thread:$0]  %s761, 1024, %s763, %s752, 64, 64, 4
        $region92: #{tpu_custom_call.1} parent=47 // pred_fallthru
          _
        // Predicated region
        $region93: #{tpu_custom_call.1} parent=47 // pred_check
          %p769 = pneg %p465
        $region94: #{tpu_custom_call.1} parent=47 // pred_check_branch
          %771 = sbr.rel (%p769) target = $region96
        $region95: #{tpu_custom_call.1} parent=47 // pred_region
          %p772 = scmp.lt.s32.totalorder %s45, 1
          %s773 = scalar_select %p772, %s45, 1
          %s774 = scalar_lea.vmem %s16, %s773
        $region96: #{tpu_custom_call.1} parent=47 // pred_fallthru
          _
      $region48: #{tpu_custom_call.1} parent=5 // pred_fallthru
        _
      %p775 = scmp.le.s32.totalorder 1, %s37
      %p776 = scmp.lt.s32.totalorder %s37, 3
      %p777 = pnand %p775, %p776
      %p778 = pneg %p777
      // Predicated region
      $region97: #{tpu_custom_call.1} parent=5 // pred_check
        _
      $region98: #{tpu_custom_call.1} parent=5 // pred_check_branch
        %780 = sbr.rel (%p777) target = $region100
      $region99: #{tpu_custom_call.1} parent=5 // pred_region
        %s781 = ssub.s32 %s37, 1
        // Predicated region
        $region101: #{tpu_custom_call.1} parent=99 // pred_check
          %p782 = pneg %p117
        $region102: #{tpu_custom_call.1} parent=99 // pred_check_branch
          %784 = sbr.rel (%p782) target = $region104
        $region103: #{tpu_custom_call.1} parent=99 // pred_region
          %785 = dma.done [#allocation4], 384
        $region104: #{tpu_custom_call.1} parent=99 // pred_fallthru
          _
        // Predicated region
        $region105: #{tpu_custom_call.1} parent=99 // pred_check
          %p786 = pneg %p138
        $region106: #{tpu_custom_call.1} parent=99 // pred_check_branch
          %788 = sbr.rel (%p786) target = $region108
        $region107: #{tpu_custom_call.1} parent=99 // pred_region
          %789 = dma.done [#allocation6], 16
        $region108: #{tpu_custom_call.1} parent=99 // pred_fallthru
          _
        // Predicated region
        $region109: #{tpu_custom_call.1} parent=99 // pred_check
          %p790 = pneg %p159
        $region110: #{tpu_custom_call.1} parent=99 // pred_check_branch
          %792 = sbr.rel (%p790) target = $region112
        $region111: #{tpu_custom_call.1} parent=99 // pred_region
          %793 = dma.done [#allocation6], 16
        $region112: #{tpu_custom_call.1} parent=99 // pred_fallthru
          _
        %s794 = sand.u32 %s42, 1
        %s795 = scalar_lea.sflag [#allocation9], %s794
        %s796 = sand.u32 %s172, 1
        %s797 = scalar_lea.vmem [#allocation8], %s796
        // Predicated region
        $region113: #{tpu_custom_call.1} parent=99 // pred_check
          %p798 = pneg %p185
        $region114: #{tpu_custom_call.1} parent=99 // pred_check_branch
          %800 = sbr.rel (%p798) target = $region116
        $region115: #{tpu_custom_call.1} parent=99 // pred_region
          %801 = dma.done %s795, 16
        $region116: #{tpu_custom_call.1} parent=99 // pred_fallthru
          _
        %s802 = sand.u32 %s42, 1
        %s803 = scalar_lea.sflag [#allocation9], %s802
        %s804 = sand.u32 %s198, 1
        %s805 = scalar_lea.vmem [#allocation10], %s804
        // Predicated region
        $region117: #{tpu_custom_call.1} parent=99 // pred_check
          %p806 = pneg %p211
        $region118: #{tpu_custom_call.1} parent=99 // pred_check_branch
          %808 = sbr.rel (%p806) target = $region120
        $region119: #{tpu_custom_call.1} parent=99 // pred_region
          %809 = dma.done %s803, 16
        $region120: #{tpu_custom_call.1} parent=99 // pred_fallthru
          _
        %s810 = sand.u32 %s42, 1
        %s811 = scalar_lea.sflag [#allocation12], %s810
        %s812 = sand.u32 %s250, 1
        %s813 = scalar_lea.vmem [#allocation11], %s812
        // Predicated region
        $region121: #{tpu_custom_call.1} parent=99 // pred_check
          %p814 = pneg %p263
        $region122: #{tpu_custom_call.1} parent=99 // pred_check_branch
          %816 = sbr.rel (%p814) target = $region124
        $region123: #{tpu_custom_call.1} parent=99 // pred_region
          %817 = dma.done %s811, 16
        $region124: #{tpu_custom_call.1} parent=99 // pred_fallthru
          _
        %s818 = sand.u32 %s42, 1
        %s819 = scalar_lea.sflag [#allocation12], %s818
        %s820 = sand.u32 %s276, 1
        %s821 = smul.addr %s820, 16
        %s822 = scalar_lea.vmem [#allocation13], %s821
        // Predicated region
        $region125: #{tpu_custom_call.1} parent=99 // pred_check
          %p823 = pneg %p289
        $region126: #{tpu_custom_call.1} parent=99 // pred_check_branch
          %825 = sbr.rel (%p823) target = $region128
        $region127: #{tpu_custom_call.1} parent=99 // pred_region
          %826 = dma.done %s819, 256
        $region128: #{tpu_custom_call.1} parent=99 // pred_fallthru
          _
        %s827 = sand.u32 %s432, 1
        %s828 = scalar_lea.sflag [#allocation15], %s827
        %s829 = sand.u32 %s432, 1
        %s830 = smul.addr %s829, 64
        %s831 = scalar_lea.vmem [#allocation14], %s830
        // Predicated region
        $region129: #{tpu_custom_call.1} parent=99 // pred_check
          %p832 = pneg %p445
        $region130: #{tpu_custom_call.1} parent=99 // pred_check_branch
          %834 = sbr.rel (%p832) target = $region132
        $region131: #{tpu_custom_call.1} parent=99 // pred_region
          %835 = dma.done %s828, 1024
        $region132: #{tpu_custom_call.1} parent=99 // pred_fallthru
          _
        %s836 = smul.u32 2, %s46
        %p837 = scmp.lt.s32.totalorder %s836, 1
        %s838 = scalar_select %p837, %s836, 1
        %s839 = smul.addr %s838, 6
        %s840 = smul.addr %s839, 4
        %s841 = scalar_lea.vmem %s0, %s840
        %p842 = pneg %p75
        %p843 = pneg %p72
        %p844 = pneg %p96
        %p845 = pneg %p93
        %p846 = pneg %p117
        %p847 = pneg %p114
        %p848 = pneg %p138
        %p849 = pneg %p135
        %p850 = pneg %p159
        %p851 = pneg %p156
        %s852 = sand.u32 %s42, 1
        %s853 = scalar_lea.sflag [#allocation9], %s852
        %s854 = sand.u32 %s172, 1
        %s855 = scalar_lea.vmem [#allocation8], %s854
        %p856 = pneg %p185
        %p857 = pneg %p182
        %s858 = sand.u32 %s42, 1
        %s859 = scalar_lea.sflag [#allocation9], %s858
        %s860 = sand.u32 %s198, 1
        %s861 = scalar_lea.vmem [#allocation10], %s860
        %p862 = pneg %p211
        %p863 = pneg %p208
        %p864 = scmp.lt.s32.totalorder %s47, 1
        %s865 = scalar_select %p864, %s47, 1
        %s866 = smul.addr %s865, 16
        %s867 = smul.addr %s866, 4
        %s868 = scalar_lea.vmem %s7, %s867
        %p869 = pneg %p237
        %p870 = pneg %p234
        %s871 = sand.u32 %s42, 1
        %s872 = scalar_lea.sflag [#allocation12], %s871
        %s873 = sand.u32 %s250, 1
        %s874 = scalar_lea.vmem [#allocation11], %s873
        %p875 = pneg %p263
        %p876 = pneg %p260
        %s877 = sand.u32 %s42, 1
        %s878 = scalar_lea.sflag [#allocation12], %s877
        %s879 = sand.u32 %s276, 1
        %s880 = smul.addr %s879, 16
        %s881 = scalar_lea.vmem [#allocation13], %s880
        %p882 = pneg %p289
        %p883 = pneg %p286
        %p884 = scmp.lt.s32.totalorder %s47, 1
        %s885 = scalar_select %p884, %s47, 1
        %s886 = scalar_lea.vmem %s10, %s885
        %p887 = pneg %p315
        %p888 = pneg %p312
        %p889 = scmp.lt.s32.totalorder %s47, 1
        %s890 = scalar_select %p889, %s47, 1
        %s891 = scalar_lea.vmem %s11, %s890
        %p892 = pneg %p341
        %p893 = pneg %p338
        %p894 = scmp.lt.s32.totalorder %s47, 1
        %s895 = scalar_select %p894, %s47, 1
        %s896 = scalar_lea.vmem %s12, %s895
        %p897 = pneg %p367
        %p898 = pneg %p364
        %p899 = scmp.lt.s32.totalorder %s47, 1
        %s900 = scalar_select %p899, %s47, 1
        %s901 = smul.addr %s900, 16
        %s902 = smul.addr %s901, 4
        %s903 = scalar_lea.vmem %s13, %s902
        %p904 = pneg %p393
        %p905 = pneg %p390
        %p906 = scmp.lt.s32.totalorder %s47, 1
        %s907 = scalar_select %p906, %s47, 1
        %s908 = scalar_lea.vmem %s14, %s907
        %p909 = pneg %p419
        %p910 = pneg %p416
        %s911 = sand.u32 %s432, 1
        %s912 = scalar_lea.sflag [#allocation15], %s911
        %s913 = sand.u32 %s432, 1
        %s914 = smul.addr %s913, 64
        %s915 = scalar_lea.vmem [#allocation14], %s914
        %p916 = pneg %p445
        %p917 = pneg %p442
        %p918 = scmp.lt.s32.totalorder %s47, 1
        %s919 = scalar_select %p918, %s47, 1
        %s920 = scalar_lea.vmem %s16, %s919
        %p921 = pneg %p471
        %p922 = pneg %p468
        %p923 = pneg %p492
        %p924 = pneg %p489
        %p925 = pneg %p513
        %p926 = pneg %p510
        %p927 = pneg %p534
        %p928 = pneg %p531
        %p929 = pneg %p560
        %p930 = pneg %p557
        %s931 = smul.u32 2, %s46
        %p932 = scmp.lt.s32.totalorder %s931, 1
        %s933 = scalar_select %p932, %s931, 1
        %s934 = smul.addr %s933, 3
        %s935 = smul.addr %s934, 8
        %s936 = scalar_lea.vmem %s20, %s935
        %s937 = smul.u32 2, %s46
        %p938 = scmp.lt.s32.totalorder %s937, 1
        %s939 = scalar_select %p938, %s937, 1
        %s940 = smul.addr %s939, 6
        %s941 = smul.addr %s940, 4
        %s942 = scalar_lea.vmem %s0, %s941
        %s943 = smul.u32 2, %s46
        %p944 = scmp.lt.s32.totalorder %s47, 1
        %s945 = scalar_select %p944, %s47, 1
        %s946 = smul.addr %s945, 16
        %s947 = smul.addr %s946, 4
        %s948 = scalar_lea.vmem %s7, %s947
        %p949 = scmp.lt.s32.totalorder %s47, 1
        %s950 = scalar_select %p949, %s47, 1
        %s951 = scalar_lea.vmem %s10, %s950
        %p952 = scmp.lt.s32.totalorder %s47, 1
        %s953 = scalar_select %p952, %s47, 1
        %s954 = scalar_lea.vmem %s11, %s953
        %p955 = scmp.lt.s32.totalorder %s47, 1
        %s956 = scalar_select %p955, %s47, 1
        %s957 = scalar_lea.vmem %s12, %s956
        %p958 = scmp.lt.s32.totalorder %s47, 1
        %s959 = scalar_select %p958, %s47, 1
        %s960 = smul.addr %s959, 16
        %s961 = smul.addr %s960, 4
        %s962 = scalar_lea.vmem %s13, %s961
        %p963 = scmp.lt.s32.totalorder %s47, 1
        %s964 = scalar_select %p963, %s47, 1
        %s965 = scalar_lea.vmem %s14, %s964
        %p966 = scmp.lt.s32.totalorder %s47, 1
        %s967 = scalar_select %p966, %s47, 1
        %s968 = scalar_lea.vmem %s16, %s967
        %s969 = smul.u32 2, %s46
        %p970 = scmp.lt.s32.totalorder %s969, 1
        %s971 = scalar_select %p970, %s969, 1
        %s972 = smul.addr %s971, 3
        %s973 = smul.addr %s972, 8
        %s974 = scalar_lea.vmem %s20, %s973
        %s975 = smul.u32 2, %s46
        %p977 = scmp.eq.s32.totalorder %s47, 0
        // Predicated region
        $region133: #{tpu_custom_call.1} parent=99 // pred_check
          %p978 = pneg %p977
        $region134: #{tpu_custom_call.1} parent=99 // pred_check_branch
          %980 = sbr.rel (%p978) target = $region136
        $region135: #{tpu_custom_call.1} parent=99 // pred_region
          %v981 = vld [vmem:[%s942] sm:$0xff]
          %v982 = vld [vmem:[%s942 + $0x8] sm:$0xff]
          %v983 = vld [vmem:[%s942 + $0x10] sm:$0x11]
          %v984 = vld [vmem:[%s942 + $0x18] sm:$0xff]
          %v985 = vld [vmem:[%s942 + $0x20] sm:$0xff]
          %v986 = vld [vmem:[%s942 + $0x28] sm:$0x11]
          %v994 = vunpack.c.l.s4 1966171168
          %v995 = vunpack.c.0.s8 %v994
          %v996 = vlaneseq
          %v997 = vshrl.u32 %v996, 7
          %v998 = vsub.s32 %v995, %v997
          %v999 = vrot.slane %v981, %v998
          %v1000 = vcombine.high %v999, %v999
          %v1002 = vunpack.c.l.s4 1966171168
          %v1003 = vunpack.c.0.s8 %v1002
          %v1004 = vlaneseq
          %v1005 = vshrl.u32 %v1004, 7
          %v1006 = vsub.s32 %v1003, %v1005
          %v1007 = vrot.slane %v999, %v1006
          %v1009 = vunpack.c.l.s4 1966171168
          %v1010 = vunpack.c.0.s8 %v1009
          %v1011 = vlaneseq
          %v1012 = vshrl.u32 %v1011, 7
          %v1013 = vsub.s32 %v1010, %v1012
          %v1014 = vrot.slane %v1000, %v1013
          %v1015 = vcombine.high %v1007, %v1007
          %v1016 = vcombine.high %v1014, %v1014
          %v1018 = vunpack.c.l.s4 1966171168
          %v1019 = vunpack.c.0.s8 %v1018
          %v1020 = vlaneseq
          %v1021 = vshrl.u32 %v1020, 7
          %v1022 = vsub.s32 %v1019, %v1021
          %v1023 = vrot.slane %v982, %v1022
          %v1024 = vcombine.high %v1023, %v1023
          %v1026 = vunpack.c.l.s4 1966171168
          %v1027 = vunpack.c.0.s8 %v1026
          %v1028 = vlaneseq
          %v1029 = vshrl.u32 %v1028, 7
          %v1030 = vsub.s32 %v1027, %v1029
          %v1031 = vrot.slane %v1023, %v1030
          %v1033 = vunpack.c.l.s4 1966171168
          %v1034 = vunpack.c.0.s8 %v1033
          %v1035 = vlaneseq
          %v1036 = vshrl.u32 %v1035, 7
          %v1037 = vsub.s32 %v1034, %v1036
          %v1038 = vrot.slane %v1024, %v1037
          %v1039 = vcombine.high %v1031, %v1031
          %v1040 = vcombine.high %v1038, %v1038
          %v1042 = vunpack.c.l.s4 1966171168
          %v1043 = vunpack.c.0.s8 %v1042
          %v1044 = vlaneseq
          %v1045 = vshrl.u32 %v1044, 7
          %v1046 = vsub.s32 %v1043, %v1045
          %v1047 = vrot.slane %v983, %v1046
          %v1049 = vunpack.c.l.s4 1966171168
          %v1050 = vunpack.c.0.s8 %v1049
          %v1051 = vlaneseq
          %v1052 = vshrl.u32 %v1051, 7
          %v1053 = vsub.s32 %v1050, %v1052
          %v1054 = vrot.slane %v1047, %v1053
          %v1056 = vunpack.c.l.s4 1966171168
          %v1057 = vunpack.c.0.s8 %v1056
          %v1058 = vlaneseq
          %v1059 = vshrl.u32 %v1058, 7
          %v1060 = vsub.s32 %v1057, %v1059
          %v1061 = vrot.slane %v984, %v1060
          %v1062 = vcombine.high %v1061, %v1061
          %v1064 = vunpack.c.l.s4 1966171168
          %v1065 = vunpack.c.0.s8 %v1064
          %v1066 = vlaneseq
          %v1067 = vshrl.u32 %v1066, 7
          %v1068 = vsub.s32 %v1065, %v1067
          %v1069 = vrot.slane %v1061, %v1068
          %v1071 = vunpack.c.l.s4 1966171168
          %v1072 = vunpack.c.0.s8 %v1071
          %v1073 = vlaneseq
          %v1074 = vshrl.u32 %v1073, 7
          %v1075 = vsub.s32 %v1072, %v1074
          %v1076 = vrot.slane %v1062, %v1075
          %v1077 = vcombine.high %v1069, %v1069
          %v1078 = vcombine.high %v1076, %v1076
          %v1080 = vunpack.c.l.s4 1966171168
          %v1081 = vunpack.c.0.s8 %v1080
          %v1082 = vlaneseq
          %v1083 = vshrl.u32 %v1082, 7
          %v1084 = vsub.s32 %v1081, %v1083
          %v1085 = vrot.slane %v985, %v1084
          %v1086 = vcombine.high %v1085, %v1085
          %v1088 = vunpack.c.l.s4 1966171168
          %v1089 = vunpack.c.0.s8 %v1088
          %v1090 = vlaneseq
          %v1091 = vshrl.u32 %v1090, 7
          %v1092 = vsub.s32 %v1089, %v1091
          %v1093 = vrot.slane %v1085, %v1092
          %v1095 = vunpack.c.l.s4 1966171168
          %v1096 = vunpack.c.0.s8 %v1095
          %v1097 = vlaneseq
          %v1098 = vshrl.u32 %v1097, 7
          %v1099 = vsub.s32 %v1096, %v1098
          %v1100 = vrot.slane %v1086, %v1099
          %v1101 = vcombine.high %v1093, %v1093
          %v1102 = vcombine.high %v1100, %v1100
          %v1104 = vunpack.c.l.s4 1966171168
          %v1105 = vunpack.c.0.s8 %v1104
          %v1106 = vlaneseq
          %v1107 = vshrl.u32 %v1106, 7
          %v1108 = vsub.s32 %v1105, %v1107
          %v1109 = vrot.slane %v986, %v1108
          %v1111 = vunpack.c.l.s4 1966171168
          %v1112 = vunpack.c.0.s8 %v1111
          %v1113 = vlaneseq
          %v1114 = vshrl.u32 %v1113, 7
          %v1115 = vsub.s32 %v1112, %v1114
          %v1116 = vrot.slane %v1109, %v1115
          %v1117 = vunpack.i.l.s16 %v1007
          %v1118 = vunpack.i.h.s16 %v1007
          %v1119 = vunpack.i.l.s16 %v1014
          %v1120 = vunpack.i.h.s16 %v1014
          %v1121 = vunpack.i.l.s16 %v1015
          %v1122 = vunpack.i.h.s16 %v1015
          %v1123 = vunpack.i.l.s16 %v1016
          %v1124 = vunpack.i.h.s16 %v1016
          %v1125 = vunpack.i.l.s16 %v1031
          %v1126 = vunpack.i.h.s16 %v1031
          %v1127 = vunpack.i.l.s16 %v1038
          %v1128 = vunpack.i.h.s16 %v1038
          %v1129 = vunpack.i.l.s16 %v1039
          %v1130 = vunpack.i.h.s16 %v1039
          %v1131 = vunpack.i.l.s16 %v1040
          %v1132 = vunpack.i.h.s16 %v1040
          %v1133 = vunpack.i.l.s16 %v1054
          %v1134 = vunpack.i.l.s16 %v1069
          %v1135 = vunpack.i.h.s16 %v1069
          %v1136 = vunpack.i.l.s16 %v1076
          %v1137 = vunpack.i.h.s16 %v1076
          %v1138 = vunpack.i.l.s16 %v1077
          %v1139 = vunpack.i.h.s16 %v1077
          %v1140 = vunpack.i.l.s16 %v1078
          %v1141 = vunpack.i.h.s16 %v1078
          %v1142 = vunpack.i.l.s16 %v1093
          %v1143 = vunpack.i.h.s16 %v1093
          %v1144 = vunpack.i.l.s16 %v1100
          %v1145 = vunpack.i.h.s16 %v1100
          %v1146 = vunpack.i.l.s16 %v1101
          %v1147 = vunpack.i.h.s16 %v1101
          %v1148 = vunpack.i.l.s16 %v1102
          %v1149 = vunpack.i.h.s16 %v1102
          %v1150 = vunpack.i.l.s16 %v1116
          %v1151 = vld [vmem:[%s1] sm:$0xf]
          %v1152 = vld [vmem:[%s1 + $0x4] sm:$0xf]
          %v1153 = vld [vmem:[%s1 + $0x8] sm:$0xf]
          %v1154 = vld [vmem:[%s1 + $0xc] sm:$0xf]
          %v1155 = vld [vmem:[%s1 + $0x10] sm:$0xf]
          %v1156 = vld [vmem:[%s1 + $0x14] sm:$0xf]
          %v1157 = vld [vmem:[%s1 + $0x18] sm:$0xf]
          %v1158 = vld [vmem:[%s1 + $0x1c] sm:$0xf]
          %v1159 = vld [vmem:[%s1 + $0x20] sm:$0xf]
          %v1160 = vld [vmem:[%s1 + $0x24] sm:$0xf]
          %v1161 = vld [vmem:[%s1 + $0x28] sm:$0xf]
          %v1162 = vld [vmem:[%s1 + $0x2c] sm:$0xf]
          %v1163 = vld [vmem:[%s1 + $0x30] sm:$0xf]
          %v1164 = vld [vmem:[%s1 + $0x34] sm:$0xf]
          %v1165 = vld [vmem:[%s1 + $0x38] sm:$0xf]
          %v1166 = vld [vmem:[%s1 + $0x3c] sm:$0xf]
          %v1167 = vld [vmem:[%s1 + $0x40] sm:$0xf]
          %v1168 = vld [vmem:[%s1 + $0x44] sm:$0xf]
          %v1169 = vld [vmem:[%s1 + $0x48] sm:$0xf]
          %v1170 = vld [vmem:[%s1 + $0x4c] sm:$0xf]
          %v1171 = vld [vmem:[%s1 + $0x50] sm:$0xf]
          %v1172 = vld [vmem:[%s1 + $0x54] sm:$0xf]
          %v1173 = vld [vmem:[%s1 + $0x58] sm:$0xf]
          %v1174 = vld [vmem:[%s1 + $0x5c] sm:$0xf]
          %v1175 = vld [vmem:[%s1 + $0x60] sm:$0xf]
          %v1176 = vld [vmem:[%s1 + $0x64] sm:$0xf]
          %v1177 = vld [vmem:[%s1 + $0x68] sm:$0xf]
          %v1178 = vld [vmem:[%s1 + $0x6c] sm:$0xf]
          %v1179 = vld [vmem:[%s1 + $0x70] sm:$0xf]
          %v1180 = vld [vmem:[%s1 + $0x74] sm:$0xf]
          %v1181 = vld [vmem:[%s1 + $0x78] sm:$0xf]
          %v1182 = vld [vmem:[%s1 + $0x7c] sm:$0xf]
          %v1183 = vpack.i.b16 %v1118, %v1117
          %v1184 = vpack.i.b16 %v1120, %v1119
          %v1185 = vpack.i.b16 %v1122, %v1121
          %v1186 = vpack.i.b16 %v1124, %v1123
          %v1187 = vpack.i.b16 %v1126, %v1125
          %v1188 = vpack.i.b16 %v1128, %v1127
          %v1189 = vpack.i.b16 %v1130, %v1129
          %v1190 = vpack.i.b16 %v1132, %v1131
          %v1191 = vpack.i.b16 %v1134, %v1133
          %v1192 = vpack.i.b16 %v1136, %v1135
          %v1193 = vpack.i.b16 %v1138, %v1137
          %v1194 = vpack.i.b16 %v1140, %v1139
          %v1195 = vpack.i.b16 %v1142, %v1141
          %v1196 = vpack.i.b16 %v1144, %v1143
          %v1197 = vpack.i.b16 %v1146, %v1145
          %v1198 = vpack.i.b16 %v1148, %v1147
          %v1199 = vpack.i.b16 %v1150, %v1149
          %v1200 = vcombine.low %v1183, %v1184
          %v1201 = vcombine.low %v1185, %v1186
          %v1202 = vcombine.low %v1187, %v1188
          %v1203 = vcombine.low %v1189, %v1190
          %v1205 = vunpack.c.l.s4 1966171168
          %v1206 = vunpack.c.0.s8 %v1205
          %v1207 = vlaneseq
          %v1208 = vshrl.u32 %v1207, 7
          %v1209 = vsub.s32 %v1206, %v1208
          %v1210 = vrot.slane %v1200, %v1209
          %v1212 = vunpack.c.l.s4 1966171168
          %v1213 = vunpack.c.0.s8 %v1212
          %v1214 = vlaneseq
          %v1215 = vshrl.u32 %v1214, 7
          %v1216 = vsub.s32 %v1213, %v1215
          %v1217 = vrot.slane %v1201, %v1216
          %v1219 = vunpack.c.l.s4 1966171168
          %v1220 = vunpack.c.0.s8 %v1219
          %v1221 = vlaneseq
          %v1222 = vshrl.u32 %v1221, 7
          %v1223 = vsub.s32 %v1220, %v1222
          %v1224 = vrot.slane %v1202, %v1223
          %v1226 = vunpack.c.l.s4 1966171168
          %v1227 = vunpack.c.0.s8 %v1226
          %v1228 = vlaneseq
          %v1229 = vshrl.u32 %v1228, 7
          %v1230 = vsub.s32 %v1227, %v1229
          %v1231 = vrot.slane %v1203, %v1230
          %v1232 = vcombine.low %v1210, %v1217
          %v1233 = vcombine.high %v1210, %v1217
          %v1234 = vcombine.low %v1224, %v1231
          %v1235 = vcombine.high %v1224, %v1231
          %v1237 = vunpack.c.l.s4 1966171168
          %v1238 = vunpack.c.0.s8 %v1237
          %v1239 = vlaneseq
          %v1240 = vshrl.u32 %v1239, 7
          %v1241 = vsub.s32 %v1238, %v1240
          %v1242 = vrot.slane %v1232, %v1241
          %v1244 = vunpack.c.l.s4 1966171168
          %v1245 = vunpack.c.0.s8 %v1244
          %v1246 = vlaneseq
          %v1247 = vshrl.u32 %v1246, 7
          %v1248 = vsub.s32 %v1245, %v1247
          %v1249 = vrot.slane %v1233, %v1248
          %v1251 = vunpack.c.l.s4 1966171168
          %v1252 = vunpack.c.0.s8 %v1251
          %v1253 = vlaneseq
          %v1254 = vshrl.u32 %v1253, 7
          %v1255 = vsub.s32 %v1252, %v1254
          %v1256 = vrot.slane %v1234, %v1255
          %v1258 = vunpack.c.l.s4 1966171168
          %v1259 = vunpack.c.0.s8 %v1258
          %v1260 = vlaneseq
          %v1261 = vshrl.u32 %v1260, 7
          %v1262 = vsub.s32 %v1259, %v1261
          %v1263 = vrot.slane %v1235, %v1262
          %v1264 = vcombine.low %v1242, %v1256
          %v1265 = vcombine.low %v1249, %v1263
          %v1266 = vcombine.low %v1191, %v1192
          %v1267 = vcombine.low %v1193, %v1194
          %v1268 = vcombine.low %v1195, %v1196
          %v1269 = vcombine.low %v1197, %v1198
          %v1271 = vunpack.c.l.s4 1966171168
          %v1272 = vunpack.c.0.s8 %v1271
          %v1273 = vlaneseq
          %v1274 = vshrl.u32 %v1273, 7
          %v1275 = vsub.s32 %v1272, %v1274
          %v1276 = vrot.slane %v1266, %v1275
          %v1278 = vunpack.c.l.s4 1966171168
          %v1279 = vunpack.c.0.s8 %v1278
          %v1280 = vlaneseq
          %v1281 = vshrl.u32 %v1280, 7
          %v1282 = vsub.s32 %v1279, %v1281
          %v1283 = vrot.slane %v1267, %v1282
          %v1285 = vunpack.c.l.s4 1966171168
          %v1286 = vunpack.c.0.s8 %v1285
          %v1287 = vlaneseq
          %v1288 = vshrl.u32 %v1287, 7
          %v1289 = vsub.s32 %v1286, %v1288
          %v1290 = vrot.slane %v1268, %v1289
          %v1292 = vunpack.c.l.s4 1966171168
          %v1293 = vunpack.c.0.s8 %v1292
          %v1294 = vlaneseq
          %v1295 = vshrl.u32 %v1294, 7
          %v1296 = vsub.s32 %v1293, %v1295
          %v1297 = vrot.slane %v1269, %v1296
          %v1298 = vcombine.low %v1276, %v1283
          %v1299 = vcombine.high %v1276, %v1283
          %v1300 = vcombine.low %v1290, %v1297
          %v1301 = vcombine.high %v1290, %v1297
          %v1303 = vunpack.c.l.s4 1966171168
          %v1304 = vunpack.c.0.s8 %v1303
          %v1305 = vlaneseq
          %v1306 = vshrl.u32 %v1305, 7
          %v1307 = vsub.s32 %v1304, %v1306
          %v1308 = vrot.slane %v1298, %v1307
          %v1310 = vunpack.c.l.s4 1966171168
          %v1311 = vunpack.c.0.s8 %v1310
          %v1312 = vlaneseq
          %v1313 = vshrl.u32 %v1312, 7
          %v1314 = vsub.s32 %v1311, %v1313
          %v1315 = vrot.slane %v1299, %v1314
          %v1317 = vunpack.c.l.s4 1966171168
          %v1318 = vunpack.c.0.s8 %v1317
          %v1319 = vlaneseq
          %v1320 = vshrl.u32 %v1319, 7
          %v1321 = vsub.s32 %v1318, %v1320
          %v1322 = vrot.slane %v1300, %v1321
          %v1324 = vunpack.c.l.s4 1966171168
          %v1325 = vunpack.c.0.s8 %v1324
          %v1326 = vlaneseq
          %v1327 = vshrl.u32 %v1326, 7
          %v1328 = vsub.s32 %v1325, %v1327
          %v1329 = vrot.slane %v1301, %v1328
          %v1330 = vcombine.low %v1308, %v1322
          %v1331 = vcombine.low %v1315, %v1329
          %v1333 = vunpack.c.l.s4 1966171168
          %v1334 = vunpack.c.0.s8 %v1333
          %v1335 = vlaneseq
          %v1336 = vshrl.u32 %v1335, 7
          %v1337 = vsub.s32 %v1334, %v1336
          %v1338 = vrot.slane %v1199, %v1337
          %v1339 = vcombine.high %v1338, %v1338
          %v1341 = vunpack.c.l.s4 1966171168
          %v1342 = vunpack.c.0.s8 %v1341
          %v1343 = vlaneseq
          %v1344 = vshrl.u32 %v1343, 7
          %v1345 = vsub.s32 %v1342, %v1344
          %v1346 = vrot.slane %v1338, %v1345
          %v1348 = vunpack.c.l.s4 1966171168
          %v1349 = vunpack.c.0.s8 %v1348
          %v1350 = vlaneseq
          %v1351 = vshrl.u32 %v1350, 7
          %v1352 = vsub.s32 %v1349, %v1351
          %v1353 = vrot.slane %v1339, %v1352
          %v1392 = vunpack.c.l.b16 %v1151
          %v1393 = vunpack.c.l.b16 %v1152
          %v1394 = vunpack.c.l.b16 %v1153
          %v1395 = vunpack.c.l.b16 %v1154
          %v1396 = vunpack.c.l.b16 %v1155
          %v1397 = vunpack.c.l.b16 %v1156
          %v1398 = vunpack.c.l.b16 %v1157
          %v1399 = vunpack.c.l.b16 %v1158
          %v1400 = vunpack.c.l.b16 %v1159
          %v1401 = vunpack.c.l.b16 %v1160
          %v1402 = vunpack.c.l.b16 %v1161
          %v1403 = vunpack.c.l.b16 %v1162
          %v1404 = vunpack.c.l.b16 %v1163
          %v1405 = vunpack.c.l.b16 %v1164
          %v1406 = vunpack.c.l.b16 %v1165
          %v1407 = vunpack.c.l.b16 %v1166
          %v1408 = vunpack.c.l.b16 %v1167
          %v1409 = vunpack.c.l.b16 %v1168
          %v1410 = vunpack.c.l.b16 %v1169
          %v1411 = vunpack.c.l.b16 %v1170
          %v1412 = vunpack.c.l.b16 %v1171
          %v1413 = vunpack.c.l.b16 %v1172
          %v1414 = vunpack.c.l.b16 %v1173
          %v1415 = vunpack.c.l.b16 %v1174
          %v1416 = vunpack.c.l.b16 %v1175
          %v1417 = vunpack.c.l.b16 %v1176
          %v1418 = vunpack.c.l.b16 %v1177
          %v1419 = vunpack.c.l.b16 %v1178
          %v1420 = vunpack.c.l.b16 %v1179
          %v1421 = vunpack.c.l.b16 %v1180
          %v1422 = vunpack.c.l.b16 %v1181
          %v1423 = vunpack.c.l.b16 %v1182
          %v1424 = vpack.c.b16 %v1393, %v1392
          %v1425 = vpack.c.b16 %v1395, %v1394
          %v1426 = vpack.c.b16 %v1397, %v1396
          %v1427 = vpack.c.b16 %v1399, %v1398
          %v1428 = vpack.c.b16 %v1401, %v1400
          %v1429 = vpack.c.b16 %v1403, %v1402
          %v1430 = vpack.c.b16 %v1405, %v1404
          %v1431 = vpack.c.b16 %v1407, %v1406
          %v1432 = vpack.c.b16 %v1409, %v1408
          %v1433 = vpack.c.b16 %v1411, %v1410
          %v1434 = vpack.c.b16 %v1413, %v1412
          %v1435 = vpack.c.b16 %v1415, %v1414
          %v1436 = vpack.c.b16 %v1417, %v1416
          %v1437 = vpack.c.b16 %v1419, %v1418
          %v1438 = vpack.c.b16 %v1421, %v1420
          %v1439 = vpack.c.b16 %v1423, %v1422
          %1456 = vmatprep.subr.bf16.mxu0 0
          %1457 = vmatpush1.bf16.msra.mxu0 %v1431
          %1458 = vmatprep.subr.bf16.mxu0 0
          %1459 = vmatpush1.bf16.msra.mxu0 %v1430
          %1460 = vmatprep.subr.bf16.mxu0 0
          %1461 = vmatpush1.bf16.msra.mxu0 %v1429
          %1462 = vmatprep.subr.bf16.mxu0 0
          %1463 = vmatpush1.bf16.msra.mxu0 %v1428
          %1464 = vmatprep.subr.bf16.mxu0 0
          %1465 = vmatpush1.bf16.msra.mxu0 %v1427
          %1466 = vmatprep.subr.bf16.mxu0 0
          %1467 = vmatpush1.bf16.msra.mxu0 %v1426
          %1468 = vmatprep.subr.bf16.mxu0 0
          %1469 = vmatpush1.bf16.msra.mxu0 %v1425
          %1470 = vmatprep.subr.bf16.mxu0 0
          %1471 = vmatpush1.bf16.msra.mxu0 %v1424
          %1472 = vmatprep.subr.bf16.mxu0 0
          %1473 = vmatpush2.bf16.msra.mxu0 %v1439
          %1474 = vmatprep.subr.bf16.mxu0 0
          %1475 = vmatpush2.bf16.msra.mxu0 %v1438
          %1476 = vmatprep.subr.bf16.mxu0 0
          %1477 = vmatpush2.bf16.msra.mxu0 %v1437
          %1478 = vmatprep.subr.bf16.mxu0 0
          %1479 = vmatpush2.bf16.msra.mxu0 %v1436
          %1480 = vmatprep.subr.bf16.mxu0 0
          %1481 = vmatpush2.bf16.msra.mxu0 %v1435
          %1482 = vmatprep.subr.bf16.mxu0 0
          %1483 = vmatpush2.bf16.msra.mxu0 %v1434
          %1484 = vmatprep.subr.bf16.mxu0 0
          %1485 = vmatpush2.bf16.msra.mxu0 %v1433
          %1486 = vmatprep.subr.bf16.mxu0 0
          %1487 = vmatpush2.bf16.msra.mxu0 %v1432
          %1488 = vmatprep.mubr.bf16.mxu0 %v1265
          %1489 = vmatmul.mubr.bf16.gmra.mxu0 %v1264
          %v1490 = vpop.f32.mrf.mxu0
          %v1491 = vadd.f32 0.0, %v1490
          %v1492 = vpop.f32.mrf.mxu0
          %v1493 = vpop.f32.mrf.mxu0
          %v1494 = vadd.f32 0.0, %v1493
          %v1495 = vpop.f32.mrf.mxu0
          %1496 = vmatprep.mubr.bf16.mxu0 %v1331
          %1497 = vmatmul.mubr.bf16.gmra.mxu0 %v1330
          %v1498 = vpop.f32.mrf.mxu0
          %v1499 = vadd.f32 0.0, %v1498
          %v1500 = vpop.f32.mrf.mxu0
          %v1501 = vpop.f32.mrf.mxu0
          %v1502 = vadd.f32 0.0, %v1501
          %v1503 = vpop.f32.mrf.mxu0
          %1504 = vmatprep.mubr.bf16.mxu0 %v1353
          %1505 = vmatmul.mubr.bf16.gmra.mxu0 %v1346
          %v1506 = vpop.f32.mrf.mxu0
          %v1507 = vadd.f32 0.0, %v1506
          %v1508 = vpop.f32.mrf.mxu0
          %v1509 = vpop.f32.mrf.mxu0
          %v1510 = vpop.f32.mrf.mxu0
          %1511 = vdwg.mxu0
          %v1517 = vcombine.high %v1491, %v1491
          %v1519 = vunpack.c.l.s4 1966171168
          %v1520 = vunpack.c.0.s8 %v1519
          %v1521 = vlaneseq
          %v1522 = vshrl.u32 %v1521, 7
          %v1523 = vsub.s32 %v1520, %v1522
          %v1524 = vrot.slane %v1491, %v1523
          %v1526 = vunpack.c.l.s4 1966171168
          %v1527 = vunpack.c.0.s8 %v1526
          %v1528 = vlaneseq
          %v1529 = vshrl.u32 %v1528, 7
          %v1530 = vsub.s32 %v1527, %v1529
          %v1531 = vrot.slane %v1517, %v1530
          %v1532 = vcombine.high %v1524, %v1524
          %v1533 = vcombine.high %v1531, %v1531
          %v1535 = vunpack.c.l.s4 1966171168
          %v1536 = vunpack.c.0.s8 %v1535
          %v1537 = vlaneseq
          %v1538 = vshrl.u32 %v1537, 7
          %v1539 = vsub.s32 %v1536, %v1538
          %v1540 = vrot.slane %v1524, %v1539
          %v1542 = vunpack.c.l.s4 1966171168
          %v1543 = vunpack.c.0.s8 %v1542
          %v1544 = vlaneseq
          %v1545 = vshrl.u32 %v1544, 7
          %v1546 = vsub.s32 %v1543, %v1545
          %v1547 = vrot.slane %v1531, %v1546
          %v1549 = vunpack.c.l.s4 1966171168
          %v1550 = vunpack.c.0.s8 %v1549
          %v1551 = vlaneseq
          %v1552 = vshrl.u32 %v1551, 7
          %v1553 = vsub.s32 %v1550, %v1552
          %v1554 = vrot.slane %v1532, %v1553
          %v1556 = vunpack.c.l.s4 1966171168
          %v1557 = vunpack.c.0.s8 %v1556
          %v1558 = vlaneseq
          %v1559 = vshrl.u32 %v1558, 7
          %v1560 = vsub.s32 %v1557, %v1559
          %v1561 = vrot.slane %v1533, %v1560
          %v1562 = vcombine.high %v1540, %v1540
          %v1563 = vcombine.high %v1547, %v1547
          %v1564 = vcombine.high %v1554, %v1554
          %v1565 = vcombine.high %v1561, %v1561
          %v1566 = vcombine.high %v1494, %v1494
          %v1568 = vunpack.c.l.s4 1966171168
          %v1569 = vunpack.c.0.s8 %v1568
          %v1570 = vlaneseq
          %v1571 = vshrl.u32 %v1570, 7
          %v1572 = vsub.s32 %v1569, %v1571
          %v1573 = vrot.slane %v1494, %v1572
          %v1575 = vunpack.c.l.s4 1966171168
          %v1576 = vunpack.c.0.s8 %v1575
          %v1577 = vlaneseq
          %v1578 = vshrl.u32 %v1577, 7
          %v1579 = vsub.s32 %v1576, %v1578
          %v1580 = vrot.slane %v1566, %v1579
          %v1581 = vcombine.high %v1573, %v1573
          %v1582 = vcombine.high %v1580, %v1580
          %v1584 = vunpack.c.l.s4 1966171168
          %v1585 = vunpack.c.0.s8 %v1584
          %v1586 = vlaneseq
          %v1587 = vshrl.u32 %v1586, 7
          %v1588 = vsub.s32 %v1585, %v1587
          %v1589 = vrot.slane %v1573, %v1588
          %v1591 = vunpack.c.l.s4 1966171168
          %v1592 = vunpack.c.0.s8 %v1591
          %v1593 = vlaneseq
          %v1594 = vshrl.u32 %v1593, 7
          %v1595 = vsub.s32 %v1592, %v1594
          %v1596 = vrot.slane %v1580, %v1595
          %v1598 = vunpack.c.l.s4 1966171168
          %v1599 = vunpack.c.0.s8 %v1598
          %v1600 = vlaneseq
          %v1601 = vshrl.u32 %v1600, 7
          %v1602 = vsub.s32 %v1599, %v1601
          %v1603 = vrot.slane %v1581, %v1602
          %v1605 = vunpack.c.l.s4 1966171168
          %v1606 = vunpack.c.0.s8 %v1605
          %v1607 = vlaneseq
          %v1608 = vshrl.u32 %v1607, 7
          %v1609 = vsub.s32 %v1606, %v1608
          %v1610 = vrot.slane %v1582, %v1609
          %v1611 = vcombine.high %v1589, %v1589
          %v1612 = vcombine.high %v1596, %v1596
          %v1613 = vcombine.high %v1603, %v1603
          %v1614 = vcombine.high %v1610, %v1610
          %v1615 = vcombine.high %v1499, %v1499
          %v1617 = vunpack.c.l.s4 1966171168
          %v1618 = vunpack.c.0.s8 %v1617
          %v1619 = vlaneseq
          %v1620 = vshrl.u32 %v1619, 7
          %v1621 = vsub.s32 %v1618, %v1620
          %v1622 = vrot.slane %v1499, %v1621
          %v1624 = vunpack.c.l.s4 1966171168
          %v1625 = vunpack.c.0.s8 %v1624
          %v1626 = vlaneseq
          %v1627 = vshrl.u32 %v1626, 7
          %v1628 = vsub.s32 %v1625, %v1627
          %v1629 = vrot.slane %v1615, %v1628
          %v1630 = vcombine.high %v1622, %v1622
          %v1631 = vcombine.high %v1629, %v1629
          %v1633 = vunpack.c.l.s4 1966171168
          %v1634 = vunpack.c.0.s8 %v1633
          %v1635 = vlaneseq
          %v1636 = vshrl.u32 %v1635, 7
          %v1637 = vsub.s32 %v1634, %v1636
          %v1638 = vrot.slane %v1622, %v1637
          %v1640 = vunpack.c.l.s4 1966171168
          %v1641 = vunpack.c.0.s8 %v1640
          %v1642 = vlaneseq
          %v1643 = vshrl.u32 %v1642, 7
          %v1644 = vsub.s32 %v1641, %v1643
          %v1645 = vrot.slane %v1629, %v1644
          %v1647 = vunpack.c.l.s4 1966171168
          %v1648 = vunpack.c.0.s8 %v1647
          %v1649 = vlaneseq
          %v1650 = vshrl.u32 %v1649, 7
          %v1651 = vsub.s32 %v1648, %v1650
          %v1652 = vrot.slane %v1630, %v1651
          %v1654 = vunpack.c.l.s4 1966171168
          %v1655 = vunpack.c.0.s8 %v1654
          %v1656 = vlaneseq
          %v1657 = vshrl.u32 %v1656, 7
          %v1658 = vsub.s32 %v1655, %v1657
          %v1659 = vrot.slane %v1631, %v1658
          %v1660 = vcombine.high %v1638, %v1638
          %v1661 = vcombine.high %v1645, %v1645
          %v1662 = vcombine.high %v1652, %v1652
          %v1663 = vcombine.high %v1659, %v1659
          %v1664 = vcombine.high %v1502, %v1502
          %v1666 = vunpack.c.l.s4 1966171168
          %v1667 = vunpack.c.0.s8 %v1666
          %v1668 = vlaneseq
          %v1669 = vshrl.u32 %v1668, 7
          %v1670 = vsub.s32 %v1667, %v1669
          %v1671 = vrot.slane %v1502, %v1670
          %v1673 = vunpack.c.l.s4 1966171168
          %v1674 = vunpack.c.0.s8 %v1673
          %v1675 = vlaneseq
          %v1676 = vshrl.u32 %v1675, 7
          %v1677 = vsub.s32 %v1674, %v1676
          %v1678 = vrot.slane %v1664, %v1677
          %v1679 = vcombine.high %v1671, %v1671
          %v1680 = vcombine.high %v1678, %v1678
          %v1682 = vunpack.c.l.s4 1966171168
          %v1683 = vunpack.c.0.s8 %v1682
          %v1684 = vlaneseq
          %v1685 = vshrl.u32 %v1684, 7
          %v1686 = vsub.s32 %v1683, %v1685
          %v1687 = vrot.slane %v1671, %v1686
          %v1689 = vunpack.c.l.s4 1966171168
          %v1690 = vunpack.c.0.s8 %v1689
          %v1691 = vlaneseq
          %v1692 = vshrl.u32 %v1691, 7
          %v1693 = vsub.s32 %v1690, %v1692
          %v1694 = vrot.slane %v1678, %v1693
          %v1696 = vunpack.c.l.s4 1966171168
          %v1697 = vunpack.c.0.s8 %v1696
          %v1698 = vlaneseq
          %v1699 = vshrl.u32 %v1698, 7
          %v1700 = vsub.s32 %v1697, %v1699
          %v1701 = vrot.slane %v1679, %v1700
          %v1703 = vunpack.c.l.s4 1966171168
          %v1704 = vunpack.c.0.s8 %v1703
          %v1705 = vlaneseq
          %v1706 = vshrl.u32 %v1705, 7
          %v1707 = vsub.s32 %v1704, %v1706
          %v1708 = vrot.slane %v1680, %v1707
          %v1709 = vcombine.high %v1687, %v1687
          %v1710 = vcombine.high %v1694, %v1694
          %v1711 = vcombine.high %v1701, %v1701
          %v1712 = vcombine.high %v1708, %v1708
          %v1714 = vunpack.c.l.s4 1966171168
          %v1715 = vunpack.c.0.s8 %v1714
          %v1716 = vlaneseq
          %v1717 = vshrl.u32 %v1716, 7
          %v1718 = vsub.s32 %v1715, %v1717
          %v1719 = vrot.slane %v1507, %v1718
          %v1720 = vcombine.high %v1719, %v1719
          %v1722 = vunpack.c.l.s4 1966171168
          %v1723 = vunpack.c.0.s8 %v1722
          %v1724 = vlaneseq
          %v1725 = vshrl.u32 %v1724, 7
          %v1726 = vsub.s32 %v1723, %v1725
          %v1727 = vrot.slane %v1719, %v1726
          %v1729 = vunpack.c.l.s4 1966171168
          %v1730 = vunpack.c.0.s8 %v1729
          %v1731 = vlaneseq
          %v1732 = vshrl.u32 %v1731, 7
          %v1733 = vsub.s32 %v1730, %v1732
          %v1734 = vrot.slane %v1720, %v1733
          %v1769 = vld [vmem:[#allocation3] sm:$0xff]
          %v1770 = vld [vmem:[#allocation3 + $0x8] sm:$0xff]
          %v1771 = vld [vmem:[#allocation3 + $0x10] sm:$0x1]
          %v1775 = vcombine.high %v1769, %v1769
          %v1777 = vunpack.c.l.s4 1966171168
          %v1778 = vunpack.c.0.s8 %v1777
          %v1779 = vlaneseq
          %v1780 = vshrl.u32 %v1779, 7
          %v1781 = vsub.s32 %v1778, %v1780
          %v1782 = vrot.slane %v1769, %v1781
          %v1784 = vunpack.c.l.s4 1966171168
          %v1785 = vunpack.c.0.s8 %v1784
          %v1786 = vlaneseq
          %v1787 = vshrl.u32 %v1786, 7
          %v1788 = vsub.s32 %v1785, %v1787
          %v1789 = vrot.slane %v1775, %v1788
          %v1790 = vcombine.high %v1782, %v1782
          %v1791 = vcombine.high %v1789, %v1789
          %v1793 = vunpack.c.l.s4 1966171168
          %v1794 = vunpack.c.0.s8 %v1793
          %v1795 = vlaneseq
          %v1796 = vshrl.u32 %v1795, 7
          %v1797 = vsub.s32 %v1794, %v1796
          %v1798 = vrot.slane %v1782, %v1797
          %v1800 = vunpack.c.l.s4 1966171168
          %v1801 = vunpack.c.0.s8 %v1800
          %v1802 = vlaneseq
          %v1803 = vshrl.u32 %v1802, 7
          %v1804 = vsub.s32 %v1801, %v1803
          %v1805 = vrot.slane %v1789, %v1804
          %v1807 = vunpack.c.l.s4 1966171168
          %v1808 = vunpack.c.0.s8 %v1807
          %v1809 = vlaneseq
          %v1810 = vshrl.u32 %v1809, 7
          %v1811 = vsub.s32 %v1808, %v1810
          %v1812 = vrot.slane %v1790, %v1811
          %v1814 = vunpack.c.l.s4 1966171168
          %v1815 = vunpack.c.0.s8 %v1814
          %v1816 = vlaneseq
          %v1817 = vshrl.u32 %v1816, 7
          %v1818 = vsub.s32 %v1815, %v1817
          %v1819 = vrot.slane %v1791, %v1818
          %v1820 = vcombine.high %v1798, %v1798
          %v1821 = vcombine.high %v1805, %v1805
          %v1822 = vcombine.high %v1812, %v1812
          %v1823 = vcombine.high %v1819, %v1819
          %v1824 = vcombine.high %v1770, %v1770
          %v1826 = vunpack.c.l.s4 1966171168
          %v1827 = vunpack.c.0.s8 %v1826
          %v1828 = vlaneseq
          %v1829 = vshrl.u32 %v1828, 7
          %v1830 = vsub.s32 %v1827, %v1829
          %v1831 = vrot.slane %v1770, %v1830
          %v1833 = vunpack.c.l.s4 1966171168
          %v1834 = vunpack.c.0.s8 %v1833
          %v1835 = vlaneseq
          %v1836 = vshrl.u32 %v1835, 7
          %v1837 = vsub.s32 %v1834, %v1836
          %v1838 = vrot.slane %v1824, %v1837
          %v1839 = vcombine.high %v1831, %v1831
          %v1840 = vcombine.high %v1838, %v1838
          %v1842 = vunpack.c.l.s4 1966171168
          %v1843 = vunpack.c.0.s8 %v1842
          %v1844 = vlaneseq
          %v1845 = vshrl.u32 %v1844, 7
          %v1846 = vsub.s32 %v1843, %v1845
          %v1847 = vrot.slane %v1831, %v1846
          %v1849 = vunpack.c.l.s4 1966171168
          %v1850 = vunpack.c.0.s8 %v1849
          %v1851 = vlaneseq
          %v1852 = vshrl.u32 %v1851, 7
          %v1853 = vsub.s32 %v1850, %v1852
          %v1854 = vrot.slane %v1838, %v1853
          %v1856 = vunpack.c.l.s4 1966171168
          %v1857 = vunpack.c.0.s8 %v1856
          %v1858 = vlaneseq
          %v1859 = vshrl.u32 %v1858, 7
          %v1860 = vsub.s32 %v1857, %v1859
          %v1861 = vrot.slane %v1839, %v1860
          %v1863 = vunpack.c.l.s4 1966171168
          %v1864 = vunpack.c.0.s8 %v1863
          %v1865 = vlaneseq
          %v1866 = vshrl.u32 %v1865, 7
          %v1867 = vsub.s32 %v1864, %v1866
          %v1868 = vrot.slane %v1840, %v1867
          %v1869 = vcombine.high %v1847, %v1847
          %v1870 = vcombine.high %v1854, %v1854
          %v1871 = vcombine.high %v1861, %v1861
          %v1872 = vcombine.high %v1868, %v1868
          %v1874 = vunpack.c.l.s4 1966171168
          %v1875 = vunpack.c.0.s8 %v1874
          %v1876 = vlaneseq
          %v1877 = vshrl.u32 %v1876, 7
          %v1878 = vsub.s32 %v1875, %v1877
          %v1879 = vrot.slane %v1771, %v1878
          %v1881 = vunpack.c.l.s4 1966171168
          %v1882 = vunpack.c.0.s8 %v1881
          %v1883 = vlaneseq
          %v1884 = vshrl.u32 %v1883, 7
          %v1885 = vsub.s32 %v1882, %v1884
          %v1886 = vrot.slane %v1879, %v1885
          %v1904 = vadd.f32 %v1540, %v1798
          %v1905 = vadd.f32 %v1554, %v1812
          %v1906 = vadd.f32 %v1562, %v1820
          %v1907 = vadd.f32 %v1564, %v1822
          %v1908 = vadd.f32 %v1547, %v1805
          %v1909 = vadd.f32 %v1561, %v1819
          %v1910 = vadd.f32 %v1563, %v1821
          %v1911 = vadd.f32 %v1565, %v1823
          %v1912 = vadd.f32 %v1589, %v1847
          %v1913 = vadd.f32 %v1603, %v1861
          %v1914 = vadd.f32 %v1611, %v1869
          %v1915 = vadd.f32 %v1613, %v1871
          %v1916 = vadd.f32 %v1596, %v1854
          %v1917 = vadd.f32 %v1610, %v1868
          %v1918 = vadd.f32 %v1612, %v1870
          %v1919 = vadd.f32 %v1614, %v1872
          %v1920 = vadd.f32 %v1638, %v1886
          %v1921 = vadd.f32 %v1652, %v1798
          %v1922 = vadd.f32 %v1660, %v1812
          %v1923 = vadd.f32 %v1662, %v1820
          %v1924 = vadd.f32 %v1645, %v1822
          %v1925 = vadd.f32 %v1659, %v1805
          %v1926 = vadd.f32 %v1661, %v1819
          %v1927 = vadd.f32 %v1663, %v1821
          %v1928 = vadd.f32 %v1687, %v1823
          %v1929 = vadd.f32 %v1701, %v1847
          %v1930 = vadd.f32 %v1709, %v1861
          %v1931 = vadd.f32 %v1711, %v1869
          %v1932 = vadd.f32 %v1694, %v1871
          %v1933 = vadd.f32 %v1708, %v1854
          %v1934 = vadd.f32 %v1710, %v1868
          %v1935 = vadd.f32 %v1712, %v1870
          %v1936 = vadd.f32 %v1727, %v1872
          %v1937 = vadd.f32 %v1734, %v1886
          %v1938 = vld [vmem:[#allocation5] sm:$0x1]
          %v1939 = vld [vmem:[#allocation7] sm:$0x1]
          %v1974 = vcombine.low %v1904, %v1905
          %v1975 = vcombine.low %v1906, %v1907
          %v1976 = vcombine.low %v1908, %v1909
          %v1977 = vcombine.low %v1910, %v1911
          %v1979 = vunpack.c.l.s4 1966171168
          %v1980 = vunpack.c.0.s8 %v1979
          %v1981 = vlaneseq
          %v1982 = vshrl.u32 %v1981, 7
          %v1983 = vsub.s32 %v1980, %v1982
          %v1984 = vrot.slane %v1974, %v1983
          %v1986 = vunpack.c.l.s4 1966171168
          %v1987 = vunpack.c.0.s8 %v1986
          %v1988 = vlaneseq
          %v1989 = vshrl.u32 %v1988, 7
          %v1990 = vsub.s32 %v1987, %v1989
          %v1991 = vrot.slane %v1975, %v1990
          %v1993 = vunpack.c.l.s4 1966171168
          %v1994 = vunpack.c.0.s8 %v1993
          %v1995 = vlaneseq
          %v1996 = vshrl.u32 %v1995, 7
          %v1997 = vsub.s32 %v1994, %v1996
          %v1998 = vrot.slane %v1976, %v1997
          %v2000 = vunpack.c.l.s4 1966171168
          %v2001 = vunpack.c.0.s8 %v2000
          %v2002 = vlaneseq
          %v2003 = vshrl.u32 %v2002, 7
          %v2004 = vsub.s32 %v2001, %v2003
          %v2005 = vrot.slane %v1977, %v2004
          %v2006 = vcombine.low %v1984, %v1991
          %v2007 = vcombine.low %v1998, %v2005
          %v2009 = vunpack.c.l.s4 1966171168
          %v2010 = vunpack.c.0.s8 %v2009
          %v2011 = vlaneseq
          %v2012 = vshrl.u32 %v2011, 7
          %v2013 = vsub.s32 %v2010, %v2012
          %v2014 = vrot.slane %v2006, %v2013
          %v2016 = vunpack.c.l.s4 1966171168
          %v2017 = vunpack.c.0.s8 %v2016
          %v2018 = vlaneseq
          %v2019 = vshrl.u32 %v2018, 7
          %v2020 = vsub.s32 %v2017, %v2019
          %v2021 = vrot.slane %v2007, %v2020
          %v2022 = vcombine.low %v2014, %v2021
          %v2023 = vcombine.low %v1912, %v1913
          %v2024 = vcombine.low %v1914, %v1915
          %v2025 = vcombine.low %v1916, %v1917
          %v2026 = vcombine.low %v1918, %v1919
          %v2028 = vunpack.c.l.s4 1966171168
          %v2029 = vunpack.c.0.s8 %v2028
          %v2030 = vlaneseq
          %v2031 = vshrl.u32 %v2030, 7
          %v2032 = vsub.s32 %v2029, %v2031
          %v2033 = vrot.slane %v2023, %v2032
          %v2035 = vunpack.c.l.s4 1966171168
          %v2036 = vunpack.c.0.s8 %v2035
          %v2037 = vlaneseq
          %v2038 = vshrl.u32 %v2037, 7
          %v2039 = vsub.s32 %v2036, %v2038
          %v2040 = vrot.slane %v2024, %v2039
          %v2042 = vunpack.c.l.s4 1966171168
          %v2043 = vunpack.c.0.s8 %v2042
          %v2044 = vlaneseq
          %v2045 = vshrl.u32 %v2044, 7
          %v2046 = vsub.s32 %v2043, %v2045
          %v2047 = vrot.slane %v2025, %v2046
          %v2049 = vunpack.c.l.s4 1966171168
          %v2050 = vunpack.c.0.s8 %v2049
          %v2051 = vlaneseq
          %v2052 = vshrl.u32 %v2051, 7
          %v2053 = vsub.s32 %v2050, %v2052
          %v2054 = vrot.slane %v2026, %v2053
          %v2055 = vcombine.low %v2033, %v2040
          %v2056 = vcombine.low %v2047, %v2054
          %v2058 = vunpack.c.l.s4 1966171168
          %v2059 = vunpack.c.0.s8 %v2058
          %v2060 = vlaneseq
          %v2061 = vshrl.u32 %v2060, 7
          %v2062 = vsub.s32 %v2059, %v2061
          %v2063 = vrot.slane %v2055, %v2062
          %v2065 = vunpack.c.l.s4 1966171168
          %v2066 = vunpack.c.0.s8 %v2065
          %v2067 = vlaneseq
          %v2068 = vshrl.u32 %v2067, 7
          %v2069 = vsub.s32 %v2066, %v2068
          %v2070 = vrot.slane %v2056, %v2069
          %v2071 = vcombine.low %v2063, %v2070
          %v2072 = vcombine.low %v1920, %v1921
          %v2073 = vcombine.low %v1922, %v1923
          %v2074 = vcombine.low %v1924, %v1925
          %v2075 = vcombine.low %v1926, %v1927
          %v2077 = vunpack.c.l.s4 1966171168
          %v2078 = vunpack.c.0.s8 %v2077
          %v2079 = vlaneseq
          %v2080 = vshrl.u32 %v2079, 7
          %v2081 = vsub.s32 %v2078, %v2080
          %v2082 = vrot.slane %v2072, %v2081
          %v2084 = vunpack.c.l.s4 1966171168
          %v2085 = vunpack.c.0.s8 %v2084
          %v2086 = vlaneseq
          %v2087 = vshrl.u32 %v2086, 7
          %v2088 = vsub.s32 %v2085, %v2087
          %v2089 = vrot.slane %v2073, %v2088
          %v2091 = vunpack.c.l.s4 1966171168
          %v2092 = vunpack.c.0.s8 %v2091
          %v2093 = vlaneseq
          %v2094 = vshrl.u32 %v2093, 7
          %v2095 = vsub.s32 %v2092, %v2094
          %v2096 = vrot.slane %v2074, %v2095
          %v2098 = vunpack.c.l.s4 1966171168
          %v2099 = vunpack.c.0.s8 %v2098
          %v2100 = vlaneseq
          %v2101 = vshrl.u32 %v2100, 7
          %v2102 = vsub.s32 %v2099, %v2101
          %v2103 = vrot.slane %v2075, %v2102
          %v2104 = vcombine.low %v2082, %v2089
          %v2105 = vcombine.low %v2096, %v2103
          %v2107 = vunpack.c.l.s4 1966171168
          %v2108 = vunpack.c.0.s8 %v2107
          %v2109 = vlaneseq
          %v2110 = vshrl.u32 %v2109, 7
          %v2111 = vsub.s32 %v2108, %v2110
          %v2112 = vrot.slane %v2104, %v2111
          %v2114 = vunpack.c.l.s4 1966171168
          %v2115 = vunpack.c.0.s8 %v2114
          %v2116 = vlaneseq
          %v2117 = vshrl.u32 %v2116, 7
          %v2118 = vsub.s32 %v2115, %v2117
          %v2119 = vrot.slane %v2105, %v2118
          %v2120 = vcombine.low %v2112, %v2119
          %v2121 = vcombine.low %v1928, %v1929
          %v2122 = vcombine.low %v1930, %v1931
          %v2123 = vcombine.low %v1932, %v1933
          %v2124 = vcombine.low %v1934, %v1935
          %v2126 = vunpack.c.l.s4 1966171168
          %v2127 = vunpack.c.0.s8 %v2126
          %v2128 = vlaneseq
          %v2129 = vshrl.u32 %v2128, 7
          %v2130 = vsub.s32 %v2127, %v2129
          %v2131 = vrot.slane %v2121, %v2130
          %v2133 = vunpack.c.l.s4 1966171168
          %v2134 = vunpack.c.0.s8 %v2133
          %v2135 = vlaneseq
          %v2136 = vshrl.u32 %v2135, 7
          %v2137 = vsub.s32 %v2134, %v2136
          %v2138 = vrot.slane %v2122, %v2137
          %v2140 = vunpack.c.l.s4 1966171168
          %v2141 = vunpack.c.0.s8 %v2140
          %v2142 = vlaneseq
          %v2143 = vshrl.u32 %v2142, 7
          %v2144 = vsub.s32 %v2141, %v2143
          %v2145 = vrot.slane %v2123, %v2144
          %v2147 = vunpack.c.l.s4 1966171168
          %v2148 = vunpack.c.0.s8 %v2147
          %v2149 = vlaneseq
          %v2150 = vshrl.u32 %v2149, 7
          %v2151 = vsub.s32 %v2148, %v2150
          %v2152 = vrot.slane %v2124, %v2151
          %v2153 = vcombine.low %v2131, %v2138
          %v2154 = vcombine.low %v2145, %v2152
          %v2156 = vunpack.c.l.s4 1966171168
          %v2157 = vunpack.c.0.s8 %v2156
          %v2158 = vlaneseq
          %v2159 = vshrl.u32 %v2158, 7
          %v2160 = vsub.s32 %v2157, %v2159
          %v2161 = vrot.slane %v2153, %v2160
          %v2163 = vunpack.c.l.s4 1966171168
          %v2164 = vunpack.c.0.s8 %v2163
          %v2165 = vlaneseq
          %v2166 = vshrl.u32 %v2165, 7
          %v2167 = vsub.s32 %v2164, %v2166
          %v2168 = vrot.slane %v2154, %v2167
          %v2169 = vcombine.low %v2161, %v2168
          %v2170 = vcombine.low %v1936, %v1937
          %v2172 = vunpack.c.l.s4 1966171168
          %v2173 = vunpack.c.0.s8 %v2172
          %v2174 = vlaneseq
          %v2175 = vshrl.u32 %v2174, 7
          %v2176 = vsub.s32 %v2173, %v2175
          %v2177 = vrot.slane %v2170, %v2176
          %v2179 = vunpack.c.l.s4 1966171168
          %v2180 = vunpack.c.0.s8 %v2179
          %v2181 = vlaneseq
          %v2182 = vshrl.u32 %v2181, 7
          %v2183 = vsub.s32 %v2180, %v2182
          %v2184 = vrot.slane %v2177, %v2183
          %2190 = vadd.xlane.f32.xlu0 %v2022
          %v2191 = vpop.xlane.xlu0 %2190
          %2192 = vadd.xlane.f32.xlu0 %v2071
          %v2193 = vpop.xlane.xlu0 %2192
          %2194 = vadd.xlane.f32.xlu0 %v2120
          %v2195 = vpop.xlane.xlu0 %2194
          %2196 = vadd.xlane.f32.xlu0 %v2169
          %v2197 = vpop.xlane.xlu0 %2196
          %vm2198 = vcmask 1041408
          %v2199 = vsel %vm2198, %v2184, 0.0
          %2200 = vadd.xlane.f32.xlu0 %v2199
          %v2201 = vpop.xlane.xlu0 %2200
          %v2202 = vmul.f32 %v2191, 0.03125
          %v2203 = vmul.f32 %v2193, 0.03125
          %v2204 = vmul.f32 %v2195, 0.03125
          %v2205 = vmul.f32 %v2197, 0.03125
          %v2206 = vmul.f32 %v2201, 0.03125
          %v2207 = vlaneseq
          %v2208 = vand.u32 %v2207, 127
          %vm2209 = vcmp.lt.s32.totalorder %v2208, 32
          %v2215 = vlaneseq
          %v2216 = vshrl.u32 %v2215, 7
          %v2217 = vsub.s32 0, %v2216
          %v2218 = vrot.slane %v2202, %v2217
          %v2219 = vlaneseq
          %v2220 = vshrl.u32 %v2219, 7
          %v2221 = vsub.s32 1, %v2220
          %v2222 = vrot.slane %v2202, %v2221
          %v2223 = vlaneseq
          %v2224 = vshrl.u32 %v2223, 7
          %v2225 = vsub.s32 2, %v2224
          %v2226 = vrot.slane %v2202, %v2225
          %v2227 = vlaneseq
          %v2228 = vshrl.u32 %v2227, 7
          %v2229 = vsub.s32 3, %v2228
          %v2230 = vrot.slane %v2202, %v2229
          %v2231 = vlaneseq
          %v2232 = vshrl.u32 %v2231, 7
          %v2233 = vsub.s32 4, %v2232
          %v2234 = vrot.slane %v2202, %v2233
          %v2235 = vlaneseq
          %v2236 = vshrl.u32 %v2235, 7
          %v2237 = vsub.s32 5, %v2236
          %v2238 = vrot.slane %v2202, %v2237
          %v2239 = vlaneseq
          %v2240 = vshrl.u32 %v2239, 7
          %v2241 = vsub.s32 6, %v2240
          %v2242 = vrot.slane %v2202, %v2241
          %v2243 = vlaneseq
          %v2244 = vshrl.u32 %v2243, 7
          %v2245 = vsub.s32 7, %v2244
          %v2246 = vrot.slane %v2202, %v2245
          %v2247 = vlaneseq
          %v2248 = vshrl.u32 %v2247, 7
          %v2249 = vsub.s32 0, %v2248
          %v2250 = vrot.slane %v2203, %v2249
          %v2251 = vlaneseq
          %v2252 = vshrl.u32 %v2251, 7
          %v2253 = vsub.s32 1, %v2252
          %v2254 = vrot.slane %v2203, %v2253
          %v2255 = vlaneseq
          %v2256 = vshrl.u32 %v2255, 7
          %v2257 = vsub.s32 2, %v2256
          %v2258 = vrot.slane %v2203, %v2257
          %v2259 = vlaneseq
          %v2260 = vshrl.u32 %v2259, 7
          %v2261 = vsub.s32 3, %v2260
          %v2262 = vrot.slane %v2203, %v2261
          %v2263 = vlaneseq
          %v2264 = vshrl.u32 %v2263, 7
          %v2265 = vsub.s32 4, %v2264
          %v2266 = vrot.slane %v2203, %v2265
          %v2267 = vlaneseq
          %v2268 = vshrl.u32 %v2267, 7
          %v2269 = vsub.s32 5, %v2268
          %v2270 = vrot.slane %v2203, %v2269
          %v2271 = vlaneseq
          %v2272 = vshrl.u32 %v2271, 7
          %v2273 = vsub.s32 6, %v2272
          %v2274 = vrot.slane %v2203, %v2273
          %v2275 = vlaneseq
          %v2276 = vshrl.u32 %v2275, 7
          %v2277 = vsub.s32 7, %v2276
          %v2278 = vrot.slane %v2203, %v2277
          %v2279 = vlaneseq
          %v2280 = vshrl.u32 %v2279, 7
          %v2281 = vsub.s32 0, %v2280
          %v2282 = vrot.slane %v2204, %v2281
          %v2283 = vlaneseq
          %v2284 = vshrl.u32 %v2283, 7
          %v2285 = vsub.s32 1, %v2284
          %v2286 = vrot.slane %v2204, %v2285
          %v2287 = vlaneseq
          %v2288 = vshrl.u32 %v2287, 7
          %v2289 = vsub.s32 2, %v2288
          %v2290 = vrot.slane %v2204, %v2289
          %v2291 = vlaneseq
          %v2292 = vshrl.u32 %v2291, 7
          %v2293 = vsub.s32 3, %v2292
          %v2294 = vrot.slane %v2204, %v2293
          %v2295 = vlaneseq
          %v2296 = vshrl.u32 %v2295, 7
          %v2297 = vsub.s32 4, %v2296
          %v2298 = vrot.slane %v2204, %v2297
          %v2299 = vlaneseq
          %v2300 = vshrl.u32 %v2299, 7
          %v2301 = vsub.s32 5, %v2300
          %v2302 = vrot.slane %v2204, %v2301
          %v2303 = vlaneseq
          %v2304 = vshrl.u32 %v2303, 7
          %v2305 = vsub.s32 6, %v2304
          %v2306 = vrot.slane %v2204, %v2305
          %v2307 = vlaneseq
          %v2308 = vshrl.u32 %v2307, 7
          %v2309 = vsub.s32 7, %v2308
          %v2310 = vrot.slane %v2204, %v2309
          %v2311 = vlaneseq
          %v2312 = vshrl.u32 %v2311, 7
          %v2313 = vsub.s32 0, %v2312
          %v2314 = vrot.slane %v2205, %v2313
          %v2315 = vlaneseq
          %v2316 = vshrl.u32 %v2315, 7
          %v2317 = vsub.s32 1, %v2316
          %v2318 = vrot.slane %v2205, %v2317
          %v2319 = vlaneseq
          %v2320 = vshrl.u32 %v2319, 7
          %v2321 = vsub.s32 2, %v2320
          %v2322 = vrot.slane %v2205, %v2321
          %v2323 = vlaneseq
          %v2324 = vshrl.u32 %v2323, 7
          %v2325 = vsub.s32 3, %v2324
          %v2326 = vrot.slane %v2205, %v2325
          %v2327 = vlaneseq
          %v2328 = vshrl.u32 %v2327, 7
          %v2329 = vsub.s32 4, %v2328
          %v2330 = vrot.slane %v2205, %v2329
          %v2331 = vlaneseq
          %v2332 = vshrl.u32 %v2331, 7
          %v2333 = vsub.s32 5, %v2332
          %v2334 = vrot.slane %v2205, %v2333
          %v2335 = vlaneseq
          %v2336 = vshrl.u32 %v2335, 7
          %v2337 = vsub.s32 6, %v2336
          %v2338 = vrot.slane %v2205, %v2337
          %v2339 = vlaneseq
          %v2340 = vshrl.u32 %v2339, 7
          %v2341 = vsub.s32 7, %v2340
          %v2342 = vrot.slane %v2205, %v2341
          %v2343 = vlaneseq
          %v2344 = vshrl.u32 %v2343, 7
          %v2345 = vsub.s32 0, %v2344
          %v2346 = vrot.slane %v2206, %v2345
          %v2347 = vlaneseq
          %v2348 = vshrl.u32 %v2347, 7
          %v2349 = vsub.s32 1, %v2348
          %v2350 = vrot.slane %v2206, %v2349
          %v2385 = vsub.f32 %v1904, %v2218
          %v2386 = vsub.f32 %v1905, %v2222
          %v2387 = vsub.f32 %v1906, %v2226
          %v2388 = vsub.f32 %v1907, %v2230
          %v2389 = vsub.f32 %v1908, %v2234
          %v2390 = vsub.f32 %v1909, %v2238
          %v2391 = vsub.f32 %v1910, %v2242
          %v2392 = vsub.f32 %v1911, %v2246
          %v2393 = vsub.f32 %v1912, %v2250
          %v2394 = vsub.f32 %v1913, %v2254
          %v2395 = vsub.f32 %v1914, %v2258
          %v2396 = vsub.f32 %v1915, %v2262
          %v2397 = vsub.f32 %v1916, %v2266
          %v2398 = vsub.f32 %v1917, %v2270
          %v2399 = vsub.f32 %v1918, %v2274
          %v2400 = vsub.f32 %v1919, %v2278
          %v2401 = vsub.f32 %v1920, %v2282
          %v2402 = vsub.f32 %v1921, %v2286
          %v2403 = vsub.f32 %v1922, %v2290
          %v2404 = vsub.f32 %v1923, %v2294
          %v2405 = vsub.f32 %v1924, %v2298
          %v2406 = vsub.f32 %v1925, %v2302
          %v2407 = vsub.f32 %v1926, %v2306
          %v2408 = vsub.f32 %v1927, %v2310
          %v2409 = vsub.f32 %v1928, %v2314
          %v2410 = vsub.f32 %v1929, %v2318
          %v2411 = vsub.f32 %v1930, %v2322
          %v2412 = vsub.f32 %v1931, %v2326
          %v2413 = vsub.f32 %v1932, %v2330
          %v2414 = vsub.f32 %v1933, %v2334
          %v2415 = vsub.f32 %v1934, %v2338
          %v2416 = vsub.f32 %v1935, %v2342
          %v2417 = vsub.f32 %v1936, %v2346
          %v2418 = vsub.f32 %v1937, %v2350
          %v2453 = vcombine.low %v2385, %v2386
          %v2454 = vcombine.low %v2387, %v2388
          %v2455 = vcombine.low %v2389, %v2390
          %v2456 = vcombine.low %v2391, %v2392
          %v2458 = vunpack.c.l.s4 1966171168
          %v2459 = vunpack.c.0.s8 %v2458
          %v2460 = vlaneseq
          %v2461 = vshrl.u32 %v2460, 7
          %v2462 = vsub.s32 %v2459, %v2461
          %v2463 = vrot.slane %v2453, %v2462
          %v2465 = vunpack.c.l.s4 1966171168
          %v2466 = vunpack.c.0.s8 %v2465
          %v2467 = vlaneseq
          %v2468 = vshrl.u32 %v2467, 7
          %v2469 = vsub.s32 %v2466, %v2468
          %v2470 = vrot.slane %v2454, %v2469
          %v2472 = vunpack.c.l.s4 1966171168
          %v2473 = vunpack.c.0.s8 %v2472
          %v2474 = vlaneseq
          %v2475 = vshrl.u32 %v2474, 7
          %v2476 = vsub.s32 %v2473, %v2475
          %v2477 = vrot.slane %v2455, %v2476
          %v2479 = vunpack.c.l.s4 1966171168
          %v2480 = vunpack.c.0.s8 %v2479
          %v2481 = vlaneseq
          %v2482 = vshrl.u32 %v2481, 7
          %v2483 = vsub.s32 %v2480, %v2482
          %v2484 = vrot.slane %v2456, %v2483
          %v2485 = vcombine.low %v2463, %v2470
          %v2486 = vcombine.low %v2477, %v2484
          %v2488 = vunpack.c.l.s4 1966171168
          %v2489 = vunpack.c.0.s8 %v2488
          %v2490 = vlaneseq
          %v2491 = vshrl.u32 %v2490, 7
          %v2492 = vsub.s32 %v2489, %v2491
          %v2493 = vrot.slane %v2485, %v2492
          %v2495 = vunpack.c.l.s4 1966171168
          %v2496 = vunpack.c.0.s8 %v2495
          %v2497 = vlaneseq
          %v2498 = vshrl.u32 %v2497, 7
          %v2499 = vsub.s32 %v2496, %v2498
          %v2500 = vrot.slane %v2486, %v2499
          %v2501 = vcombine.low %v2493, %v2500
          %v2502 = vcombine.low %v2393, %v2394
          %v2503 = vcombine.low %v2395, %v2396
          %v2504 = vcombine.low %v2397, %v2398
          %v2505 = vcombine.low %v2399, %v2400
          %v2507 = vunpack.c.l.s4 1966171168
          %v2508 = vunpack.c.0.s8 %v2507
          %v2509 = vlaneseq
          %v2510 = vshrl.u32 %v2509, 7
          %v2511 = vsub.s32 %v2508, %v2510
          %v2512 = vrot.slane %v2502, %v2511
          %v2514 = vunpack.c.l.s4 1966171168
          %v2515 = vunpack.c.0.s8 %v2514
          %v2516 = vlaneseq
          %v2517 = vshrl.u32 %v2516, 7
          %v2518 = vsub.s32 %v2515, %v2517
          %v2519 = vrot.slane %v2503, %v2518
          %v2521 = vunpack.c.l.s4 1966171168
          %v2522 = vunpack.c.0.s8 %v2521
          %v2523 = vlaneseq
          %v2524 = vshrl.u32 %v2523, 7
          %v2525 = vsub.s32 %v2522, %v2524
          %v2526 = vrot.slane %v2504, %v2525
          %v2528 = vunpack.c.l.s4 1966171168
          %v2529 = vunpack.c.0.s8 %v2528
          %v2530 = vlaneseq
          %v2531 = vshrl.u32 %v2530, 7
          %v2532 = vsub.s32 %v2529, %v2531
          %v2533 = vrot.slane %v2505, %v2532
          %v2534 = vcombine.low %v2512, %v2519
          %v2535 = vcombine.low %v2526, %v2533
          %v2537 = vunpack.c.l.s4 1966171168
          %v2538 = vunpack.c.0.s8 %v2537
          %v2539 = vlaneseq
          %v2540 = vshrl.u32 %v2539, 7
          %v2541 = vsub.s32 %v2538, %v2540
          %v2542 = vrot.slane %v2534, %v2541
          %v2544 = vunpack.c.l.s4 1966171168
          %v2545 = vunpack.c.0.s8 %v2544
          %v2546 = vlaneseq
          %v2547 = vshrl.u32 %v2546, 7
          %v2548 = vsub.s32 %v2545, %v2547
          %v2549 = vrot.slane %v2535, %v2548
          %v2550 = vcombine.low %v2542, %v2549
          %v2551 = vcombine.low %v2401, %v2402
          %v2552 = vcombine.low %v2403, %v2404
          %v2553 = vcombine.low %v2405, %v2406
          %v2554 = vcombine.low %v2407, %v2408
          %v2556 = vunpack.c.l.s4 1966171168
          %v2557 = vunpack.c.0.s8 %v2556
          %v2558 = vlaneseq
          %v2559 = vshrl.u32 %v2558, 7
          %v2560 = vsub.s32 %v2557, %v2559
          %v2561 = vrot.slane %v2551, %v2560
          %v2563 = vunpack.c.l.s4 1966171168
          %v2564 = vunpack.c.0.s8 %v2563
          %v2565 = vlaneseq
          %v2566 = vshrl.u32 %v2565, 7
          %v2567 = vsub.s32 %v2564, %v2566
          %v2568 = vrot.slane %v2552, %v2567
          %v2570 = vunpack.c.l.s4 1966171168
          %v2571 = vunpack.c.0.s8 %v2570
          %v2572 = vlaneseq
          %v2573 = vshrl.u32 %v2572, 7
          %v2574 = vsub.s32 %v2571, %v2573
          %v2575 = vrot.slane %v2553, %v2574
          %v2577 = vunpack.c.l.s4 1966171168
          %v2578 = vunpack.c.0.s8 %v2577
          %v2579 = vlaneseq
          %v2580 = vshrl.u32 %v2579, 7
          %v2581 = vsub.s32 %v2578, %v2580
          %v2582 = vrot.slane %v2554, %v2581
          %v2583 = vcombine.low %v2561, %v2568
          %v2584 = vcombine.low %v2575, %v2582
          %v2586 = vunpack.c.l.s4 1966171168
          %v2587 = vunpack.c.0.s8 %v2586
          %v2588 = vlaneseq
          %v2589 = vshrl.u32 %v2588, 7
          %v2590 = vsub.s32 %v2587, %v2589
          %v2591 = vrot.slane %v2583, %v2590
          %v2593 = vunpack.c.l.s4 1966171168
          %v2594 = vunpack.c.0.s8 %v2593
          %v2595 = vlaneseq
          %v2596 = vshrl.u32 %v2595, 7
          %v2597 = vsub.s32 %v2594, %v2596
          %v2598 = vrot.slane %v2584, %v2597
          %v2599 = vcombine.low %v2591, %v2598
          %v2600 = vcombine.low %v2409, %v2410
          %v2601 = vcombine.low %v2411, %v2412
          %v2602 = vcombine.low %v2413, %v2414
          %v2603 = vcombine.low %v2415, %v2416
          %v2605 = vunpack.c.l.s4 1966171168
          %v2606 = vunpack.c.0.s8 %v2605
          %v2607 = vlaneseq
          %v2608 = vshrl.u32 %v2607, 7
          %v2609 = vsub.s32 %v2606, %v2608
          %v2610 = vrot.slane %v2600, %v2609
          %v2612 = vunpack.c.l.s4 1966171168
          %v2613 = vunpack.c.0.s8 %v2612
          %v2614 = vlaneseq
          %v2615 = vshrl.u32 %v2614, 7
          %v2616 = vsub.s32 %v2613, %v2615
          %v2617 = vrot.slane %v2601, %v2616
          %v2619 = vunpack.c.l.s4 1966171168
          %v2620 = vunpack.c.0.s8 %v2619
          %v2621 = vlaneseq
          %v2622 = vshrl.u32 %v2621, 7
          %v2623 = vsub.s32 %v2620, %v2622
          %v2624 = vrot.slane %v2602, %v2623
          %v2626 = vunpack.c.l.s4 1966171168
          %v2627 = vunpack.c.0.s8 %v2626
          %v2628 = vlaneseq
          %v2629 = vshrl.u32 %v2628, 7
          %v2630 = vsub.s32 %v2627, %v2629
          %v2631 = vrot.slane %v2603, %v2630
          %v2632 = vcombine.low %v2610, %v2617
          %v2633 = vcombine.low %v2624, %v2631
          %v2635 = vunpack.c.l.s4 1966171168
          %v2636 = vunpack.c.0.s8 %v2635
          %v2637 = vlaneseq
          %v2638 = vshrl.u32 %v2637, 7
          %v2639 = vsub.s32 %v2636, %v2638
          %v2640 = vrot.slane %v2632, %v2639
          %v2642 = vunpack.c.l.s4 1966171168
          %v2643 = vunpack.c.0.s8 %v2642
          %v2644 = vlaneseq
          %v2645 = vshrl.u32 %v2644, 7
          %v2646 = vsub.s32 %v2643, %v2645
          %v2647 = vrot.slane %v2633, %v2646
          %v2648 = vcombine.low %v2640, %v2647
          %v2649 = vcombine.low %v2417, %v2418
          %v2651 = vunpack.c.l.s4 1966171168
          %v2652 = vunpack.c.0.s8 %v2651
          %v2653 = vlaneseq
          %v2654 = vshrl.u32 %v2653, 7
          %v2655 = vsub.s32 %v2652, %v2654
          %v2656 = vrot.slane %v2649, %v2655
          %v2658 = vunpack.c.l.s4 1966171168
          %v2659 = vunpack.c.0.s8 %v2658
          %v2660 = vlaneseq
          %v2661 = vshrl.u32 %v2660, 7
          %v2662 = vsub.s32 %v2659, %v2661
          %v2663 = vrot.slane %v2656, %v2662
          %v2669 = vsel %vm2209, %v2501, 0.0
          %v2670 = vsel %vm2209, %v2550, 0.0
          %v2671 = vsel %vm2209, %v2599, 0.0
          %v2672 = vsel %vm2209, %v2648, 0.0
          %v2673 = vsel %vm2209, %v2663, 0.0
          %v2674 = vmul.f32 %v2669, %v2669
          %v2675 = vmul.f32 %v2670, %v2670
          %v2676 = vmul.f32 %v2671, %v2671
          %v2677 = vmul.f32 %v2672, %v2672
          %v2678 = vmul.f32 %v2673, %v2673
          %2679 = vadd.xlane.f32.xlu0 %v2674
          %v2680 = vpop.xlane.xlu0 %2679
          %2681 = vadd.xlane.f32.xlu0 %v2675
          %v2682 = vpop.xlane.xlu0 %2681
          %2683 = vadd.xlane.f32.xlu0 %v2676
          %v2684 = vpop.xlane.xlu0 %2683
          %2685 = vadd.xlane.f32.xlu0 %v2677
          %v2686 = vpop.xlane.xlu0 %2685
          %v2687 = vsel %vm2198, %v2678, 0.0
          %2688 = vadd.xlane.f32.xlu0 %v2687
          %v2689 = vpop.xlane.xlu0 %2688
          %v2690 = vmul.f32 %v2680, 0.03125
          %v2691 = vmul.f32 %v2682, 0.03125
          %v2692 = vmul.f32 %v2684, 0.03125
          %v2693 = vmul.f32 %v2686, 0.03125
          %v2694 = vmul.f32 %v2689, 0.03125
          %v2695 = vadd.f32 %v2690, 1e-05
          %v2696 = vadd.f32 %v2691, 1e-05
          %v2697 = vadd.f32 %v2692, 1e-05
          %v2698 = vadd.f32 %v2693, 1e-05
          %v2699 = vadd.f32 %v2694, 1e-05
          %v2700 = vrsqrt.pop %v2695
          %v2701 = vrsqrt.pop %v2696
          %v2702 = vrsqrt.pop %v2697
          %v2703 = vrsqrt.pop %v2698
          %v2704 = vrsqrt.pop %v2699
          %v2705 = vmul.f32 %v2669, %v2700
          %v2706 = vmul.f32 %v2670, %v2701
          %v2707 = vmul.f32 %v2671, %v2702
          %v2708 = vmul.f32 %v2672, %v2703
          %v2709 = vmul.f32 %v2673, %v2704
          %v2711 = vlaneseq
          %v2712 = vshrl.u32 %v2711, 7
          %v2713 = vsub.s32 0, %v2712
          %v2714 = vrot.slane %v1938, %v2713
          %v2716 = vmul.f32 %v2705, %v2714
          %v2717 = vmul.f32 %v2706, %v2714
          %v2718 = vmul.f32 %v2707, %v2714
          %v2719 = vmul.f32 %v2708, %v2714
          %v2720 = vmul.f32 %v2709, %v2714
          %v2722 = vlaneseq
          %v2723 = vshrl.u32 %v2722, 7
          %v2724 = vsub.s32 0, %v2723
          %v2725 = vrot.slane %v1939, %v2724
          %v2727 = vadd.f32 %v2716, %v2725
          %v2728 = vadd.f32 %v2717, %v2725
          %v2729 = vadd.f32 %v2718, %v2725
          %v2730 = vadd.f32 %v2719, %v2725
          %v2731 = vadd.f32 %v2720, %v2725
          %2732 = vst [vmem:[#allocation2] sm:$0xff] %v2727
          %2733 = vst [vmem:[#allocation2 + $0x8] sm:$0xff] %v2728
          %2734 = vst [vmem:[#allocation2 + $0x10] sm:$0xff] %v2729
          %2735 = vst [vmem:[#allocation2 + $0x18] sm:$0xff] %v2730
          %2736 = vst [vmem:[#allocation2 + $0x20] sm:$0x3] %v2731
        $region136: #{tpu_custom_call.1} parent=99 // pred_fallthru
          _
        %v2737 = vld [vmem:[#allocation2] sm:$0xff]
        %v2738 = vld [vmem:[#allocation2 + $0x8] sm:$0xff]
        %v2739 = vld [vmem:[#allocation2 + $0x10] sm:$0xff]
        %v2740 = vld [vmem:[#allocation2 + $0x18] sm:$0xff]
        %v2741 = vld [vmem:[#allocation2 + $0x20] sm:$0x3]
        %v2742 = vld [vmem:[%s797] sm:$0x1]
        %v2743 = vld [vmem:[%s805] sm:$0x1]
        %2744 = vadd.xlane.f32.xlu0 %v2737
        %v2745 = vpop.xlane.xlu0 %2744
        %2746 = vadd.xlane.f32.xlu0 %v2738
        %v2747 = vpop.xlane.xlu0 %2746
        %2748 = vadd.xlane.f32.xlu0 %v2739
        %v2749 = vpop.xlane.xlu0 %2748
        %2750 = vadd.xlane.f32.xlu0 %v2740
        %v2751 = vpop.xlane.xlu0 %2750
        %vm2752 = vcmask 1041408
        %v2753 = vsel %vm2752, %v2741, 0.0
        %2754 = vadd.xlane.f32.xlu0 %v2753
        %v2755 = vpop.xlane.xlu0 %2754
        %v2756 = vmul.f32 %v2745, 0.03125
        %v2757 = vmul.f32 %v2747, 0.03125
        %v2758 = vmul.f32 %v2749, 0.03125
        %v2759 = vmul.f32 %v2751, 0.03125
        %v2760 = vmul.f32 %v2755, 0.03125
        %v2761 = vlaneseq
        %v2762 = vand.u32 %v2761, 127
        %vm2763 = vcmp.lt.s32.totalorder %v2762, 32
        %v2764 = vsub.f32 %v2737, %v2756
        %v2765 = vsub.f32 %v2738, %v2757
        %v2766 = vsub.f32 %v2739, %v2758
        %v2767 = vsub.f32 %v2740, %v2759
        %v2768 = vsub.f32 %v2741, %v2760
        %v2769 = vsel %vm2763, %v2764, 0.0
        %v2770 = vsel %vm2763, %v2765, 0.0
        %v2771 = vsel %vm2763, %v2766, 0.0
        %v2772 = vsel %vm2763, %v2767, 0.0
        %v2773 = vsel %vm2763, %v2768, 0.0
        %v2774 = vmul.f32 %v2769, %v2769
        %v2775 = vmul.f32 %v2770, %v2770
        %v2776 = vmul.f32 %v2771, %v2771
        %v2777 = vmul.f32 %v2772, %v2772
        %v2778 = vmul.f32 %v2773, %v2773
        %2779 = vadd.xlane.f32.xlu0 %v2774
        %v2780 = vpop.xlane.xlu0 %2779
        %2781 = vadd.xlane.f32.xlu0 %v2775
        %v2782 = vpop.xlane.xlu0 %2781
        %2783 = vadd.xlane.f32.xlu0 %v2776
        %v2784 = vpop.xlane.xlu0 %2783
        %2785 = vadd.xlane.f32.xlu0 %v2777
        %v2786 = vpop.xlane.xlu0 %2785
        %v2787 = vsel %vm2752, %v2778, 0.0
        %2788 = vadd.xlane.f32.xlu0 %v2787
        %v2789 = vpop.xlane.xlu0 %2788
        %v2790 = vmul.f32 %v2780, 0.03125
        %v2791 = vmul.f32 %v2782, 0.03125
        %v2792 = vmul.f32 %v2784, 0.03125
        %v2793 = vmul.f32 %v2786, 0.03125
        %v2794 = vmul.f32 %v2789, 0.03125
        %v2795 = vadd.f32 %v2790, 1e-05
        %v2796 = vadd.f32 %v2791, 1e-05
        %v2797 = vadd.f32 %v2792, 1e-05
        %v2798 = vadd.f32 %v2793, 1e-05
        %v2799 = vadd.f32 %v2794, 1e-05
        %v2800 = vrsqrt.pop %v2795
        %v2801 = vrsqrt.pop %v2796
        %v2802 = vrsqrt.pop %v2797
        %v2803 = vrsqrt.pop %v2798
        %v2804 = vrsqrt.pop %v2799
        %v2805 = vmul.f32 %v2769, %v2800
        %v2806 = vmul.f32 %v2770, %v2801
        %v2807 = vmul.f32 %v2771, %v2802
        %v2808 = vmul.f32 %v2772, %v2803
        %v2809 = vmul.f32 %v2773, %v2804
        %v2811 = vlaneseq
        %v2812 = vshrl.u32 %v2811, 7
        %v2813 = vsub.s32 0, %v2812
        %v2814 = vrot.slane %v2742, %v2813
        %v2816 = vmul.f32 %v2805, %v2814
        %v2817 = vmul.f32 %v2806, %v2814
        %v2818 = vmul.f32 %v2807, %v2814
        %v2819 = vmul.f32 %v2808, %v2814
        %v2820 = vmul.f32 %v2809, %v2814
        %v2822 = vlaneseq
        %v2823 = vshrl.u32 %v2822, 7
        %v2824 = vsub.s32 0, %v2823
        %v2825 = vrot.slane %v2743, %v2824
        %v2827 = vadd.f32 %v2816, %v2825
        %v2828 = vadd.f32 %v2817, %v2825
        %v2829 = vadd.f32 %v2818, %v2825
        %v2830 = vadd.f32 %v2819, %v2825
        %v2831 = vadd.f32 %v2820, %v2825
        %v2832 = vpack.c.bf16 %v2828, %v2827
        %v2833 = vpack.c.bf16 %v2830, %v2829
        %v2834 = vpack.c.bf16 %v2831, %v2831
        %v2835 = vld [vmem:[%s948] sm:$0xf]
        %v2836 = vld [vmem:[%s948 + $0x4] sm:$0xf]
        %v2837 = vld [vmem:[%s948 + $0x8] sm:$0xf]
        %v2838 = vld [vmem:[%s948 + $0xc] sm:$0xf]
        %v2839 = vld [vmem:[%s948 + $0x10] sm:$0xf]
        %v2840 = vld [vmem:[%s948 + $0x14] sm:$0xf]
        %v2841 = vld [vmem:[%s948 + $0x18] sm:$0xf]
        %v2842 = vld [vmem:[%s948 + $0x1c] sm:$0xf]
        %v2843 = vld [vmem:[%s948 + $0x20] sm:$0xf]
        %v2844 = vld [vmem:[%s948 + $0x24] sm:$0xf]
        %v2845 = vld [vmem:[%s948 + $0x28] sm:$0xf]
        %v2846 = vld [vmem:[%s948 + $0x2c] sm:$0xf]
        %v2847 = vld [vmem:[%s948 + $0x30] sm:$0xf]
        %v2848 = vld [vmem:[%s948 + $0x34] sm:$0xf]
        %v2849 = vld [vmem:[%s948 + $0x38] sm:$0xf]
        %v2850 = vld [vmem:[%s948 + $0x3c] sm:$0xf]
        %v2851 = vld [vmem:[%s813] sm:$0x1]
        %v2853 = vlaneseq
        %v2854 = vshrl.u32 %v2853, 7
        %v2855 = vsub.s32 0, %v2854
        %v2856 = vrot.slane %v2851, %v2855
        %v2874 = vunpack.c.l.b16 %v2835
        %v2875 = vunpack.c.l.b16 %v2836
        %v2876 = vunpack.c.l.b16 %v2837
        %v2877 = vunpack.c.l.b16 %v2838
        %v2878 = vunpack.c.l.b16 %v2839
        %v2879 = vunpack.c.l.b16 %v2840
        %v2880 = vunpack.c.l.b16 %v2841
        %v2881 = vunpack.c.l.b16 %v2842
        %v2882 = vunpack.c.l.b16 %v2843
        %v2883 = vunpack.c.l.b16 %v2844
        %v2884 = vunpack.c.l.b16 %v2845
        %v2885 = vunpack.c.l.b16 %v2846
        %v2886 = vunpack.c.l.b16 %v2847
        %v2887 = vunpack.c.l.b16 %v2848
        %v2888 = vunpack.c.l.b16 %v2849
        %v2889 = vunpack.c.l.b16 %v2850
        %v2890 = vpack.c.b16 %v2875, %v2874
        %v2891 = vpack.c.b16 %v2877, %v2876
        %v2892 = vpack.c.b16 %v2879, %v2878
        %v2893 = vpack.c.b16 %v2881, %v2880
        %v2894 = vpack.c.b16 %v2883, %v2882
        %v2895 = vpack.c.b16 %v2885, %v2884
        %v2896 = vpack.c.b16 %v2887, %v2886
        %v2897 = vpack.c.b16 %v2889, %v2888
        %2906 = vmatprep.subr.bf16.mxu0 0
        %2907 = vmatpush1.bf16.msra.mxu0 %v2897
        %2908 = vmatprep.subr.bf16.mxu0 0
        %2909 = vmatpush1.bf16.msra.mxu0 %v2896
        %2910 = vmatprep.subr.bf16.mxu0 0
        %2911 = vmatpush1.bf16.msra.mxu0 %v2895
        %2912 = vmatprep.subr.bf16.mxu0 0
        %2913 = vmatpush1.bf16.msra.mxu0 %v2894
        %2914 = vmatprep.subr.bf16.mxu0 0
        %2915 = vmatpush1.bf16.msra.mxu0 %v2893
        %2916 = vmatprep.subr.bf16.mxu0 0
        %2917 = vmatpush1.bf16.msra.mxu0 %v2892
        %2918 = vmatprep.subr.bf16.mxu0 0
        %2919 = vmatpush1.bf16.msra.mxu0 %v2891
        %2920 = vmatprep.subr.bf16.mxu0 0
        %2921 = vmatpush1.bf16.msra.mxu0 %v2890
        %2922 = vmatprep.subr.bf16.mxu0 0
        %2923 = vmatpush2.bf16.msra.mxu0 0
        %2924 = vmatprep.subr.bf16.mxu0 0
        %2925 = vmatpush2.bf16.msra.mxu0 0
        %2926 = vmatprep.subr.bf16.mxu0 0
        %2927 = vmatpush2.bf16.msra.mxu0 0
        %2928 = vmatprep.subr.bf16.mxu0 0
        %2929 = vmatpush2.bf16.msra.mxu0 0
        %2930 = vmatprep.subr.bf16.mxu0 0
        %2931 = vmatpush2.bf16.msra.mxu0 0
        %2932 = vmatprep.subr.bf16.mxu0 0
        %2933 = vmatpush2.bf16.msra.mxu0 0
        %2934 = vmatprep.subr.bf16.mxu0 0
        %2935 = vmatpush2.bf16.msra.mxu0 0
        %2936 = vmatprep.subr.bf16.mxu0 0
        %2937 = vmatpush2.bf16.msra.mxu0 0
        %2938 = vmatprep.mubr.bf16.mxu0 0
        %2939 = vmatmul.mubr.bf16.gmra.mxu0 %v2832
        %v2940 = vpop.f32.mrf.mxu0
        %v2941 = vadd.f32 %v2856, %v2940
        %v2942 = vpop.f32.mrf.mxu0
        %v2943 = vpop.f32.mrf.mxu0
        %v2944 = vadd.f32 %v2856, %v2943
        %v2945 = vpop.f32.mrf.mxu0
        %2946 = vmatprep.mubr.bf16.mxu0 0
        %2947 = vmatmul.mubr.bf16.gmra.mxu0 %v2833
        %v2948 = vpop.f32.mrf.mxu0
        %v2949 = vadd.f32 %v2856, %v2948
        %v2950 = vpop.f32.mrf.mxu0
        %v2951 = vpop.f32.mrf.mxu0
        %v2952 = vadd.f32 %v2856, %v2951
        %v2953 = vpop.f32.mrf.mxu0
        %2954 = vmatprep.mubr.bf16.mxu0 0
        %2955 = vmatmul.mubr.bf16.gmra.mxu0 %v2834
        %v2956 = vpop.f32.mrf.mxu0
        %v2957 = vadd.f32 %v2856, %v2956
        %v2958 = vpop.f32.mrf.mxu0
        %v2959 = vpop.f32.mrf.mxu0
        %v2960 = vpop.f32.mrf.mxu0
        %2961 = vdwg.mxu0
        %v2962 = vld [vmem:[%s822] sm:$0xf]
        %v2963 = vld [vmem:[%s822 + $0x4] sm:$0xf]
        %v2964 = vld [vmem:[%s822 + $0x8] sm:$0xf]
        %v2965 = vld [vmem:[%s822 + $0xc] sm:$0xf]
        %v2966 = vmul.f32 %v2941, 0.35355338
        %v2967 = vmul.f32 %v2944, 0.35355338
        %v2968 = vmul.f32 %v2949, 0.35355338
        %v2969 = vmul.f32 %v2952, 0.35355338
        %v2970 = vmul.f32 %v2957, 0.35355338
        %v2971 = vpack.c.bf16 %v2967, %v2966
        %v2972 = vpack.c.bf16 %v2969, %v2968
        %v2973 = vpack.c.bf16 %v2970, %v2970
        %v2977 = vcombine.high %v2971, %v2971
        %v2979 = vunpack.c.l.s4 1966171168
        %v2980 = vunpack.c.0.s8 %v2979
        %v2981 = vlaneseq
        %v2982 = vshrl.u32 %v2981, 7
        %v2983 = vsub.s32 %v2980, %v2982
        %v2984 = vrot.slane %v2971, %v2983
        %v2986 = vunpack.c.l.s4 1966171168
        %v2987 = vunpack.c.0.s8 %v2986
        %v2988 = vlaneseq
        %v2989 = vshrl.u32 %v2988, 7
        %v2990 = vsub.s32 %v2987, %v2989
        %v2991 = vrot.slane %v2977, %v2990
        %v2992 = vcombine.high %v2984, %v2984
        %v2993 = vcombine.high %v2991, %v2991
        %v2995 = vunpack.c.l.s4 1966171168
        %v2996 = vunpack.c.0.s8 %v2995
        %v2997 = vlaneseq
        %v2998 = vshrl.u32 %v2997, 7
        %v2999 = vsub.s32 %v2996, %v2998
        %v3000 = vrot.slane %v2984, %v2999
        %v3002 = vunpack.c.l.s4 1966171168
        %v3003 = vunpack.c.0.s8 %v3002
        %v3004 = vlaneseq
        %v3005 = vshrl.u32 %v3004, 7
        %v3006 = vsub.s32 %v3003, %v3005
        %v3007 = vrot.slane %v2991, %v3006
        %v3009 = vunpack.c.l.s4 1966171168
        %v3010 = vunpack.c.0.s8 %v3009
        %v3011 = vlaneseq
        %v3012 = vshrl.u32 %v3011, 7
        %v3013 = vsub.s32 %v3010, %v3012
        %v3014 = vrot.slane %v2992, %v3013
        %v3016 = vunpack.c.l.s4 1966171168
        %v3017 = vunpack.c.0.s8 %v3016
        %v3018 = vlaneseq
        %v3019 = vshrl.u32 %v3018, 7
        %v3020 = vsub.s32 %v3017, %v3019
        %v3021 = vrot.slane %v2993, %v3020
        %v3022 = vcombine.high %v3000, %v3000
        %v3023 = vcombine.high %v3007, %v3007
        %v3024 = vcombine.high %v3014, %v3014
        %v3025 = vcombine.high %v3021, %v3021
        %v3026 = vcombine.high %v2972, %v2972
        %v3028 = vunpack.c.l.s4 1966171168
        %v3029 = vunpack.c.0.s8 %v3028
        %v3030 = vlaneseq
        %v3031 = vshrl.u32 %v3030, 7
        %v3032 = vsub.s32 %v3029, %v3031
        %v3033 = vrot.slane %v2972, %v3032
        %v3035 = vunpack.c.l.s4 1966171168
        %v3036 = vunpack.c.0.s8 %v3035
        %v3037 = vlaneseq
        %v3038 = vshrl.u32 %v3037, 7
        %v3039 = vsub.s32 %v3036, %v3038
        %v3040 = vrot.slane %v3026, %v3039
        %v3041 = vcombine.high %v3033, %v3033
        %v3042 = vcombine.high %v3040, %v3040
        %v3044 = vunpack.c.l.s4 1966171168
        %v3045 = vunpack.c.0.s8 %v3044
        %v3046 = vlaneseq
        %v3047 = vshrl.u32 %v3046, 7
        %v3048 = vsub.s32 %v3045, %v3047
        %v3049 = vrot.slane %v3033, %v3048
        %v3051 = vunpack.c.l.s4 1966171168
        %v3052 = vunpack.c.0.s8 %v3051
        %v3053 = vlaneseq
        %v3054 = vshrl.u32 %v3053, 7
        %v3055 = vsub.s32 %v3052, %v3054
        %v3056 = vrot.slane %v3040, %v3055
        %v3058 = vunpack.c.l.s4 1966171168
        %v3059 = vunpack.c.0.s8 %v3058
        %v3060 = vlaneseq
        %v3061 = vshrl.u32 %v3060, 7
        %v3062 = vsub.s32 %v3059, %v3061
        %v3063 = vrot.slane %v3041, %v3062
        %v3065 = vunpack.c.l.s4 1966171168
        %v3066 = vunpack.c.0.s8 %v3065
        %v3067 = vlaneseq
        %v3068 = vshrl.u32 %v3067, 7
        %v3069 = vsub.s32 %v3066, %v3068
        %v3070 = vrot.slane %v3042, %v3069
        %v3071 = vcombine.high %v3049, %v3049
        %v3072 = vcombine.high %v3056, %v3056
        %v3073 = vcombine.high %v3063, %v3063
        %v3074 = vcombine.high %v3070, %v3070
        %v3076 = vunpack.c.l.s4 1966171168
        %v3077 = vunpack.c.0.s8 %v3076
        %v3078 = vlaneseq
        %v3079 = vshrl.u32 %v3078, 7
        %v3080 = vsub.s32 %v3077, %v3079
        %v3081 = vrot.slane %v2973, %v3080
        %v3083 = vunpack.c.l.s4 1966171168
        %v3084 = vunpack.c.0.s8 %v3083
        %v3085 = vlaneseq
        %v3086 = vshrl.u32 %v3085, 7
        %v3087 = vsub.s32 %v3084, %v3086
        %v3088 = vrot.slane %v3081, %v3087
        %v3089 = vunpack.i.l.s16 %v3000
        %v3090 = vunpack.i.h.s16 %v3000
        %v3091 = vunpack.i.l.s16 %v3014
        %v3092 = vunpack.i.h.s16 %v3014
        %v3093 = vunpack.i.l.s16 %v3022
        %v3094 = vunpack.i.h.s16 %v3022
        %v3095 = vunpack.i.l.s16 %v3024
        %v3096 = vunpack.i.h.s16 %v3024
        %v3097 = vunpack.i.l.s16 %v3007
        %v3098 = vunpack.i.h.s16 %v3007
        %v3099 = vunpack.i.l.s16 %v3021
        %v3100 = vunpack.i.h.s16 %v3021
        %v3101 = vunpack.i.l.s16 %v3023
        %v3102 = vunpack.i.h.s16 %v3023
        %v3103 = vunpack.i.l.s16 %v3025
        %v3104 = vunpack.i.h.s16 %v3025
        %v3105 = vunpack.i.l.s16 %v3049
        %v3106 = vunpack.i.h.s16 %v3049
        %v3107 = vunpack.i.l.s16 %v3063
        %v3108 = vunpack.i.h.s16 %v3063
        %v3109 = vunpack.i.l.s16 %v3071
        %v3110 = vunpack.i.h.s16 %v3071
        %v3111 = vunpack.i.l.s16 %v3073
        %v3112 = vunpack.i.h.s16 %v3073
        %v3113 = vunpack.i.l.s16 %v3056
        %v3114 = vunpack.i.h.s16 %v3056
        %v3115 = vunpack.i.l.s16 %v3070
        %v3116 = vunpack.i.h.s16 %v3070
        %v3117 = vunpack.i.l.s16 %v3072
        %v3118 = vunpack.i.h.s16 %v3072
        %v3119 = vunpack.i.l.s16 %v3074
        %v3120 = vunpack.i.h.s16 %v3074
        %v3121 = vunpack.i.l.s16 %v3088
        %v3122 = vunpack.i.h.s16 %v3088
        %v3123 = vpack.c.bf16 %v2944, %v2941
        %v3124 = vpack.c.bf16 %v2952, %v2949
        %v3125 = vpack.c.bf16 %v2957, %v2957
        %v3129 = vcombine.high %v3123, %v3123
        %v3131 = vunpack.c.l.s4 1966171168
        %v3132 = vunpack.c.0.s8 %v3131
        %v3133 = vlaneseq
        %v3134 = vshrl.u32 %v3133, 7
        %v3135 = vsub.s32 %v3132, %v3134
        %v3136 = vrot.slane %v3123, %v3135
        %v3138 = vunpack.c.l.s4 1966171168
        %v3139 = vunpack.c.0.s8 %v3138
        %v3140 = vlaneseq
        %v3141 = vshrl.u32 %v3140, 7
        %v3142 = vsub.s32 %v3139, %v3141
        %v3143 = vrot.slane %v3129, %v3142
        %v3144 = vcombine.high %v3136, %v3136
        %v3145 = vcombine.high %v3143, %v3143
        %v3147 = vunpack.c.l.s4 1966171168
        %v3148 = vunpack.c.0.s8 %v3147
        %v3149 = vlaneseq
        %v3150 = vshrl.u32 %v3149, 7
        %v3151 = vsub.s32 %v3148, %v3150
        %v3152 = vrot.slane %v3136, %v3151
        %v3154 = vunpack.c.l.s4 1966171168
        %v3155 = vunpack.c.0.s8 %v3154
        %v3156 = vlaneseq
        %v3157 = vshrl.u32 %v3156, 7
        %v3158 = vsub.s32 %v3155, %v3157
        %v3159 = vrot.slane %v3143, %v3158
        %v3161 = vunpack.c.l.s4 1966171168
        %v3162 = vunpack.c.0.s8 %v3161
        %v3163 = vlaneseq
        %v3164 = vshrl.u32 %v3163, 7
        %v3165 = vsub.s32 %v3162, %v3164
        %v3166 = vrot.slane %v3144, %v3165
        %v3168 = vunpack.c.l.s4 1966171168
        %v3169 = vunpack.c.0.s8 %v3168
        %v3170 = vlaneseq
        %v3171 = vshrl.u32 %v3170, 7
        %v3172 = vsub.s32 %v3169, %v3171
        %v3173 = vrot.slane %v3145, %v3172
        %v3174 = vcombine.high %v3152, %v3152
        %v3175 = vcombine.high %v3159, %v3159
        %v3176 = vcombine.high %v3166, %v3166
        %v3177 = vcombine.high %v3173, %v3173
        %v3178 = vcombine.high %v3124, %v3124
        %v3180 = vunpack.c.l.s4 1966171168
        %v3181 = vunpack.c.0.s8 %v3180
        %v3182 = vlaneseq
        %v3183 = vshrl.u32 %v3182, 7
        %v3184 = vsub.s32 %v3181, %v3183
        %v3185 = vrot.slane %v3124, %v3184
        %v3187 = vunpack.c.l.s4 1966171168
        %v3188 = vunpack.c.0.s8 %v3187
        %v3189 = vlaneseq
        %v3190 = vshrl.u32 %v3189, 7
        %v3191 = vsub.s32 %v3188, %v3190
        %v3192 = vrot.slane %v3178, %v3191
        %v3193 = vcombine.high %v3185, %v3185
        %v3194 = vcombine.high %v3192, %v3192
        %v3196 = vunpack.c.l.s4 1966171168
        %v3197 = vunpack.c.0.s8 %v3196
        %v3198 = vlaneseq
        %v3199 = vshrl.u32 %v3198, 7
        %v3200 = vsub.s32 %v3197, %v3199
        %v3201 = vrot.slane %v3185, %v3200
        %v3203 = vunpack.c.l.s4 1966171168
        %v3204 = vunpack.c.0.s8 %v3203
        %v3205 = vlaneseq
        %v3206 = vshrl.u32 %v3205, 7
        %v3207 = vsub.s32 %v3204, %v3206
        %v3208 = vrot.slane %v3192, %v3207
        %v3210 = vunpack.c.l.s4 1966171168
        %v3211 = vunpack.c.0.s8 %v3210
        %v3212 = vlaneseq
        %v3213 = vshrl.u32 %v3212, 7
        %v3214 = vsub.s32 %v3211, %v3213
        %v3215 = vrot.slane %v3193, %v3214
        %v3217 = vunpack.c.l.s4 1966171168
        %v3218 = vunpack.c.0.s8 %v3217
        %v3219 = vlaneseq
        %v3220 = vshrl.u32 %v3219, 7
        %v3221 = vsub.s32 %v3218, %v3220
        %v3222 = vrot.slane %v3194, %v3221
        %v3223 = vcombine.high %v3201, %v3201
        %v3224 = vcombine.high %v3208, %v3208
        %v3225 = vcombine.high %v3215, %v3215
        %v3226 = vcombine.high %v3222, %v3222
        %v3228 = vunpack.c.l.s4 1966171168
        %v3229 = vunpack.c.0.s8 %v3228
        %v3230 = vlaneseq
        %v3231 = vshrl.u32 %v3230, 7
        %v3232 = vsub.s32 %v3229, %v3231
        %v3233 = vrot.slane %v3125, %v3232
        %v3235 = vunpack.c.l.s4 1966171168
        %v3236 = vunpack.c.0.s8 %v3235
        %v3237 = vlaneseq
        %v3238 = vshrl.u32 %v3237, 7
        %v3239 = vsub.s32 %v3236, %v3238
        %v3240 = vrot.slane %v3233, %v3239
        %v3241 = vunpack.i.l.s16 %v3152
        %v3242 = vunpack.i.h.s16 %v3152
        %v3243 = vunpack.i.l.s16 %v3166
        %v3244 = vunpack.i.h.s16 %v3166
        %v3245 = vunpack.i.l.s16 %v3174
        %v3246 = vunpack.i.h.s16 %v3174
        %v3247 = vunpack.i.l.s16 %v3176
        %v3248 = vunpack.i.h.s16 %v3176
        %v3249 = vunpack.i.l.s16 %v3159
        %v3250 = vunpack.i.h.s16 %v3159
        %v3251 = vunpack.i.l.s16 %v3173
        %v3252 = vunpack.i.h.s16 %v3173
        %v3253 = vunpack.i.l.s16 %v3175
        %v3254 = vunpack.i.h.s16 %v3175
        %v3255 = vunpack.i.l.s16 %v3177
        %v3256 = vunpack.i.h.s16 %v3177
        %v3257 = vunpack.i.l.s16 %v3201
        %v3258 = vunpack.i.h.s16 %v3201
        %v3259 = vunpack.i.l.s16 %v3215
        %v3260 = vunpack.i.h.s16 %v3215
        %v3261 = vunpack.i.l.s16 %v3223
        %v3262 = vunpack.i.h.s16 %v3223
        %v3263 = vunpack.i.l.s16 %v3225
        %v3264 = vunpack.i.h.s16 %v3225
        %v3265 = vunpack.i.l.s16 %v3208
        %v3266 = vunpack.i.h.s16 %v3208
        %v3267 = vunpack.i.l.s16 %v3222
        %v3268 = vunpack.i.h.s16 %v3222
        %v3269 = vunpack.i.l.s16 %v3224
        %v3270 = vunpack.i.h.s16 %v3224
        %v3271 = vunpack.i.l.s16 %v3226
        %v3272 = vunpack.i.h.s16 %v3226
        %v3273 = vunpack.i.l.s16 %v3240
        %v3274 = vunpack.i.h.s16 %v3240
        %v3275 = vpack.i.b16 %v3090, %v3089
        %v3276 = vpack.i.b16 %v3092, %v3091
        %v3277 = vpack.i.b16 %v3094, %v3093
        %v3278 = vpack.i.b16 %v3096, %v3095
        %v3279 = vpack.i.b16 %v3098, %v3097
        %v3280 = vpack.i.b16 %v3100, %v3099
        %v3281 = vpack.i.b16 %v3102, %v3101
        %v3282 = vpack.i.b16 %v3104, %v3103
        %v3284 = vcombine.low %v3275, %v3276
        %v3285 = vcombine.low %v3277, %v3278
        %v3286 = vcombine.low %v3279, %v3280
        %v3287 = vcombine.low %v3281, %v3282
        %v3289 = vunpack.c.l.s4 1966171168
        %v3290 = vunpack.c.0.s8 %v3289
        %v3291 = vlaneseq
        %v3292 = vshrl.u32 %v3291, 7
        %v3293 = vsub.s32 %v3290, %v3292
        %v3294 = vrot.slane %v3284, %v3293
        %v3296 = vunpack.c.l.s4 1966171168
        %v3297 = vunpack.c.0.s8 %v3296
        %v3298 = vlaneseq
        %v3299 = vshrl.u32 %v3298, 7
        %v3300 = vsub.s32 %v3297, %v3299
        %v3301 = vrot.slane %v3285, %v3300
        %v3303 = vunpack.c.l.s4 1966171168
        %v3304 = vunpack.c.0.s8 %v3303
        %v3305 = vlaneseq
        %v3306 = vshrl.u32 %v3305, 7
        %v3307 = vsub.s32 %v3304, %v3306
        %v3308 = vrot.slane %v3286, %v3307
        %v3310 = vunpack.c.l.s4 1966171168
        %v3311 = vunpack.c.0.s8 %v3310
        %v3312 = vlaneseq
        %v3313 = vshrl.u32 %v3312, 7
        %v3314 = vsub.s32 %v3311, %v3313
        %v3315 = vrot.slane %v3287, %v3314
        %v3316 = vcombine.low %v3294, %v3301
        %v3317 = vcombine.low %v3308, %v3315
        %v3319 = vunpack.c.l.s4 1966171168
        %v3320 = vunpack.c.0.s8 %v3319
        %v3321 = vlaneseq
        %v3322 = vshrl.u32 %v3321, 7
        %v3323 = vsub.s32 %v3320, %v3322
        %v3324 = vrot.slane %v3316, %v3323
        %v3326 = vunpack.c.l.s4 1966171168
        %v3327 = vunpack.c.0.s8 %v3326
        %v3328 = vlaneseq
        %v3329 = vshrl.u32 %v3328, 7
        %v3330 = vsub.s32 %v3327, %v3329
        %v3331 = vrot.slane %v3317, %v3330
        %v3332 = vcombine.low %v3324, %v3331
        %v3334 = vunpack.c.l.s4 1966171168
        %v3335 = vunpack.c.0.s8 %v3334
        %v3336 = vlaneseq
        %v3337 = vshrl.u32 %v3336, 7
        %v3338 = vsub.s32 %v3335, %v3337
        %v3339 = vrot.slane %v3105, %v3338
        %v3341 = vunpack.c.l.s4 1966171168
        %v3342 = vunpack.c.0.s8 %v3341
        %v3343 = vlaneseq
        %v3344 = vshrl.u32 %v3343, 7
        %v3345 = vsub.s32 %v3342, %v3344
        %v3346 = vrot.slane %v3339, %v3345
        %v3347 = vpack.i.b16 %v3242, %v3241
        %v3348 = vpack.i.b16 %v3244, %v3243
        %v3349 = vpack.i.b16 %v3246, %v3245
        %v3350 = vpack.i.b16 %v3248, %v3247
        %v3351 = vpack.i.b16 %v3250, %v3249
        %v3352 = vpack.i.b16 %v3252, %v3251
        %v3353 = vpack.i.b16 %v3254, %v3253
        %v3354 = vpack.i.b16 %v3256, %v3255
        %v3356 = vcombine.low %v3347, %v3348
        %v3357 = vcombine.low %v3349, %v3350
        %v3358 = vcombine.low %v3351, %v3352
        %v3359 = vcombine.low %v3353, %v3354
        %v3361 = vunpack.c.l.s4 1966171168
        %v3362 = vunpack.c.0.s8 %v3361
        %v3363 = vlaneseq
        %v3364 = vshrl.u32 %v3363, 7
        %v3365 = vsub.s32 %v3362, %v3364
        %v3366 = vrot.slane %v3356, %v3365
        %v3368 = vunpack.c.l.s4 1966171168
        %v3369 = vunpack.c.0.s8 %v3368
        %v3370 = vlaneseq
        %v3371 = vshrl.u32 %v3370, 7
        %v3372 = vsub.s32 %v3369, %v3371
        %v3373 = vrot.slane %v3357, %v3372
        %v3375 = vunpack.c.l.s4 1966171168
        %v3376 = vunpack.c.0.s8 %v3375
        %v3377 = vlaneseq
        %v3378 = vshrl.u32 %v3377, 7
        %v3379 = vsub.s32 %v3376, %v3378
        %v3380 = vrot.slane %v3358, %v3379
        %v3382 = vunpack.c.l.s4 1966171168
        %v3383 = vunpack.c.0.s8 %v3382
        %v3384 = vlaneseq
        %v3385 = vshrl.u32 %v3384, 7
        %v3386 = vsub.s32 %v3383, %v3385
        %v3387 = vrot.slane %v3359, %v3386
        %v3388 = vcombine.low %v3366, %v3373
        %v3389 = vcombine.low %v3380, %v3387
        %v3391 = vunpack.c.l.s4 1966171168
        %v3392 = vunpack.c.0.s8 %v3391
        %v3393 = vlaneseq
        %v3394 = vshrl.u32 %v3393, 7
        %v3395 = vsub.s32 %v3392, %v3394
        %v3396 = vrot.slane %v3388, %v3395
        %v3398 = vunpack.c.l.s4 1966171168
        %v3399 = vunpack.c.0.s8 %v3398
        %v3400 = vlaneseq
        %v3401 = vshrl.u32 %v3400, 7
        %v3402 = vsub.s32 %v3399, %v3401
        %v3403 = vrot.slane %v3389, %v3402
        %v3404 = vcombine.low %v3396, %v3403
        %v3406 = vunpack.c.l.s4 1966171168
        %v3407 = vunpack.c.0.s8 %v3406
        %v3408 = vlaneseq
        %v3409 = vshrl.u32 %v3408, 7
        %v3410 = vsub.s32 %v3407, %v3409
        %v3411 = vrot.slane %v3257, %v3410
        %v3413 = vunpack.c.l.s4 1966171168
        %v3414 = vunpack.c.0.s8 %v3413
        %v3415 = vlaneseq
        %v3416 = vshrl.u32 %v3415, 7
        %v3417 = vsub.s32 %v3414, %v3416
        %v3418 = vrot.slane %v3411, %v3417
        %3419 = vrot.lane.b32.xlu0 %v3404, 96
        %v3420 = vpop.permute.xlu0 %3419
        %3421 = vrot.lane.b32.xlu0 %v3418, 96
        %v3422 = vpop.permute.xlu0 %3421
        %vm3423 = vcmask 64512
        %v3425 = vsel %vm3423, %v3332, 0
        %v3428 = vsel %vm3423, %v3346, 0
        %v3431 = vsel %vm3423, %v3420, 0
        %v3434 = vsel %vm3423, %v3422, 0
        %3436 = vmatprep.subr.bf16.mxu0 0
        %3437 = vmatpush1.bf16.xpose.msra.mxu0 0
        %3438 = vmatprep.subr.bf16.mxu0 0
        %3439 = vmatpush1.bf16.xpose.msra.mxu0 0
        %3440 = vmatprep.subr.bf16.mxu0 0
        %3441 = vmatpush1.bf16.xpose.msra.mxu0 0
        %3442 = vmatprep.subr.bf16.mxu0 0
        %3443 = vmatpush1.bf16.xpose.msra.mxu0 0
        %3444 = vmatprep.subr.bf16.mxu0 0
        %3445 = vmatpush1.bf16.xpose.msra.mxu0 0
        %3446 = vmatprep.subr.bf16.mxu0 0
        %3447 = vmatpush1.bf16.xpose.msra.mxu0 0
        %3448 = vmatprep.subr.bf16.mxu0 0
        %3449 = vmatpush1.bf16.xpose.msra.mxu0 %v3434
        %3450 = vmatprep.subr.bf16.mxu0 0
        %3451 = vmatpush1.bf16.xpose.msra.mxu0 %v3431
        %3452 = vmatprep.subr.bf16.mxu0 0
        %3453 = vmatpush2.bf16.xpose.msra.mxu0 0
        %3454 = vmatprep.subr.bf16.mxu0 0
        %3455 = vmatpush2.bf16.xpose.msra.mxu0 0
        %3456 = vmatprep.subr.bf16.mxu0 0
        %3457 = vmatpush2.bf16.xpose.msra.mxu0 0
        %3458 = vmatprep.subr.bf16.mxu0 0
        %3459 = vmatpush2.bf16.xpose.msra.mxu0 0
        %3460 = vmatprep.subr.bf16.mxu0 0
        %3461 = vmatpush2.bf16.xpose.msra.mxu0 0
        %3462 = vmatprep.subr.bf16.mxu0 0
        %3463 = vmatpush2.bf16.xpose.msra.mxu0 0
        %3464 = vmatprep.subr.bf16.mxu0 0
        %3465 = vmatpush2.bf16.xpose.msra.mxu0 0
        %3466 = vmatprep.subr.bf16.mxu0 0
        %3467 = vmatpush2.bf16.xpose.msra.mxu0 0
        %3468 = vmatprep.mubr.bf16.mxu0 0
        %3469 = vmatmul.mubr.bf16.gmra.mxu0 %v3425
        %v3470 = vpop.f32.mrf.mxu0
        %v3471 = vadd.f32 0.0, %v3470
        %v3472 = vpop.f32.mrf.mxu0
        %v3473 = vpop.f32.mrf.mxu0
        %v3474 = vadd.f32 0.0, %v3473
        %v3475 = vpop.f32.mrf.mxu0
        %3476 = vmatprep.mubr.bf16.mxu0 0
        %3477 = vmatmul.mubr.bf16.gmra.mxu0 %v3428
        %v3478 = vpop.f32.mrf.mxu0
        %v3479 = vadd.f32 0.0, %v3478
        %v3480 = vpop.f32.mrf.mxu0
        %v3481 = vpop.f32.mrf.mxu0
        %v3482 = vpop.f32.mrf.mxu0
        %3483 = vdwg.mxu0
        %v3484 = vpack.i.b16 %v3107, %v3106
        %v3485 = vpack.i.b16 %v3109, %v3108
        %v3486 = vpack.i.b16 %v3111, %v3110
        %v3487 = vpack.i.b16 %v3113, %v3112
        %v3488 = vpack.i.b16 %v3115, %v3114
        %v3489 = vpack.i.b16 %v3117, %v3116
        %v3490 = vpack.i.b16 %v3119, %v3118
        %v3491 = vpack.i.b16 %v3121, %v3120
        %v3493 = vcombine.low %v3484, %v3485
        %v3494 = vcombine.low %v3486, %v3487
        %v3495 = vcombine.low %v3488, %v3489
        %v3496 = vcombine.low %v3490, %v3491
        %v3498 = vunpack.c.l.s4 1966171168
        %v3499 = vunpack.c.0.s8 %v3498
        %v3500 = vlaneseq
        %v3501 = vshrl.u32 %v3500, 7
        %v3502 = vsub.s32 %v3499, %v3501
        %v3503 = vrot.slane %v3493, %v3502
        %v3505 = vunpack.c.l.s4 1966171168
        %v3506 = vunpack.c.0.s8 %v3505
        %v3507 = vlaneseq
        %v3508 = vshrl.u32 %v3507, 7
        %v3509 = vsub.s32 %v3506, %v3508
        %v3510 = vrot.slane %v3494, %v3509
        %v3512 = vunpack.c.l.s4 1966171168
        %v3513 = vunpack.c.0.s8 %v3512
        %v3514 = vlaneseq
        %v3515 = vshrl.u32 %v3514, 7
        %v3516 = vsub.s32 %v3513, %v3515
        %v3517 = vrot.slane %v3495, %v3516
        %v3519 = vunpack.c.l.s4 1966171168
        %v3520 = vunpack.c.0.s8 %v3519
        %v3521 = vlaneseq
        %v3522 = vshrl.u32 %v3521, 7
        %v3523 = vsub.s32 %v3520, %v3522
        %v3524 = vrot.slane %v3496, %v3523
        %v3525 = vcombine.low %v3503, %v3510
        %v3526 = vcombine.low %v3517, %v3524
        %v3528 = vunpack.c.l.s4 1966171168
        %v3529 = vunpack.c.0.s8 %v3528
        %v3530 = vlaneseq
        %v3531 = vshrl.u32 %v3530, 7
        %v3532 = vsub.s32 %v3529, %v3531
        %v3533 = vrot.slane %v3525, %v3532
        %v3535 = vunpack.c.l.s4 1966171168
        %v3536 = vunpack.c.0.s8 %v3535
        %v3537 = vlaneseq
        %v3538 = vshrl.u32 %v3537, 7
        %v3539 = vsub.s32 %v3536, %v3538
        %v3540 = vrot.slane %v3526, %v3539
        %v3541 = vcombine.low %v3533, %v3540
        %v3543 = vunpack.c.l.s4 1966171168
        %v3544 = vunpack.c.0.s8 %v3543
        %v3545 = vlaneseq
        %v3546 = vshrl.u32 %v3545, 7
        %v3547 = vsub.s32 %v3544, %v3546
        %v3548 = vrot.slane %v3122, %v3547
        %v3550 = vunpack.c.l.s4 1966171168
        %v3551 = vunpack.c.0.s8 %v3550
        %v3552 = vlaneseq
        %v3553 = vshrl.u32 %v3552, 7
        %v3554 = vsub.s32 %v3551, %v3553
        %v3555 = vrot.slane %v3548, %v3554
        %v3556 = vpack.i.b16 %v3259, %v3258
        %v3557 = vpack.i.b16 %v3261, %v3260
        %v3558 = vpack.i.b16 %v3263, %v3262
        %v3559 = vpack.i.b16 %v3265, %v3264
        %v3560 = vpack.i.b16 %v3267, %v3266
        %v3561 = vpack.i.b16 %v3269, %v3268
        %v3562 = vpack.i.b16 %v3271, %v3270
        %v3563 = vpack.i.b16 %v3273, %v3272
        %v3565 = vcombine.low %v3556, %v3557
        %v3566 = vcombine.low %v3558, %v3559
        %v3567 = vcombine.low %v3560, %v3561
        %v3568 = vcombine.low %v3562, %v3563
        %v3570 = vunpack.c.l.s4 1966171168
        %v3571 = vunpack.c.0.s8 %v3570
        %v3572 = vlaneseq
        %v3573 = vshrl.u32 %v3572, 7
        %v3574 = vsub.s32 %v3571, %v3573
        %v3575 = vrot.slane %v3565, %v3574
        %v3577 = vunpack.c.l.s4 1966171168
        %v3578 = vunpack.c.0.s8 %v3577
        %v3579 = vlaneseq
        %v3580 = vshrl.u32 %v3579, 7
        %v3581 = vsub.s32 %v3578, %v3580
        %v3582 = vrot.slane %v3566, %v3581
        %v3584 = vunpack.c.l.s4 1966171168
        %v3585 = vunpack.c.0.s8 %v3584
        %v3586 = vlaneseq
        %v3587 = vshrl.u32 %v3586, 7
        %v3588 = vsub.s32 %v3585, %v3587
        %v3589 = vrot.slane %v3567, %v3588
        %v3591 = vunpack.c.l.s4 1966171168
        %v3592 = vunpack.c.0.s8 %v3591
        %v3593 = vlaneseq
        %v3594 = vshrl.u32 %v3593, 7
        %v3595 = vsub.s32 %v3592, %v3594
        %v3596 = vrot.slane %v3568, %v3595
        %v3597 = vcombine.low %v3575, %v3582
        %v3598 = vcombine.low %v3589, %v3596
        %v3600 = vunpack.c.l.s4 1966171168
        %v3601 = vunpack.c.0.s8 %v3600
        %v3602 = vlaneseq
        %v3603 = vshrl.u32 %v3602, 7
        %v3604 = vsub.s32 %v3601, %v3603
        %v3605 = vrot.slane %v3597, %v3604
        %v3607 = vunpack.c.l.s4 1966171168
        %v3608 = vunpack.c.0.s8 %v3607
        %v3609 = vlaneseq
        %v3610 = vshrl.u32 %v3609, 7
        %v3611 = vsub.s32 %v3608, %v3610
        %v3612 = vrot.slane %v3598, %v3611
        %v3613 = vcombine.low %v3605, %v3612
        %v3615 = vunpack.c.l.s4 1966171168
        %v3616 = vunpack.c.0.s8 %v3615
        %v3617 = vlaneseq
        %v3618 = vshrl.u32 %v3617, 7
        %v3619 = vsub.s32 %v3616, %v3618
        %v3620 = vrot.slane %v3274, %v3619
        %v3622 = vunpack.c.l.s4 1966171168
        %v3623 = vunpack.c.0.s8 %v3622
        %v3624 = vlaneseq
        %v3625 = vshrl.u32 %v3624, 7
        %v3626 = vsub.s32 %v3623, %v3625
        %v3627 = vrot.slane %v3620, %v3626
        %3628 = vrot.lane.b32.xlu0 %v3613, 96
        %v3629 = vpop.permute.xlu0 %3628
        %3630 = vrot.lane.b32.xlu0 %v3627, 96
        %v3631 = vpop.permute.xlu0 %3630
        %v3633 = vsel %vm3423, %v3541, 0
        %v3636 = vsel %vm3423, %v3555, 0
        %v3639 = vsel %vm3423, %v3629, 0
        %v3642 = vsel %vm3423, %v3631, 0
        %3644 = vmatprep.subr.bf16.mxu0 0
        %3645 = vmatpush1.bf16.xpose.msra.mxu0 0
        %3646 = vmatprep.subr.bf16.mxu0 0
        %3647 = vmatpush1.bf16.xpose.msra.mxu0 0
        %3648 = vmatprep.subr.bf16.mxu0 0
        %3649 = vmatpush1.bf16.xpose.msra.mxu0 0
        %3650 = vmatprep.subr.bf16.mxu0 0
        %3651 = vmatpush1.bf16.xpose.msra.mxu0 0
        %3652 = vmatprep.subr.bf16.mxu0 0
        %3653 = vmatpush1.bf16.xpose.msra.mxu0 0
        %3654 = vmatprep.subr.bf16.mxu0 0
        %3655 = vmatpush1.bf16.xpose.msra.mxu0 0
        %3656 = vmatprep.subr.bf16.mxu0 0
        %3657 = vmatpush1.bf16.xpose.msra.mxu0 %v3642
        %3658 = vmatprep.subr.bf16.mxu0 0
        %3659 = vmatpush1.bf16.xpose.msra.mxu0 %v3639
        %3660 = vmatprep.subr.bf16.mxu0 0
        %3661 = vmatpush2.bf16.xpose.msra.mxu0 0
        %3662 = vmatprep.subr.bf16.mxu0 0
        %3663 = vmatpush2.bf16.xpose.msra.mxu0 0
        %3664 = vmatprep.subr.bf16.mxu0 0
        %3665 = vmatpush2.bf16.xpose.msra.mxu0 0
        %3666 = vmatprep.subr.bf16.mxu0 0
        %3667 = vmatpush2.bf16.xpose.msra.mxu0 0
        %3668 = vmatprep.subr.bf16.mxu0 0
        %3669 = vmatpush2.bf16.xpose.msra.mxu0 0
        %3670 = vmatprep.subr.bf16.mxu0 0
        %3671 = vmatpush2.bf16.xpose.msra.mxu0 0
        %3672 = vmatprep.subr.bf16.mxu0 0
        %3673 = vmatpush2.bf16.xpose.msra.mxu0 0
        %3674 = vmatprep.subr.bf16.mxu0 0
        %3675 = vmatpush2.bf16.xpose.msra.mxu0 0
        %3676 = vmatprep.mubr.bf16.mxu0 0
        %3677 = vmatmul.mubr.bf16.gmra.mxu0 %v3633
        %v3678 = vpop.f32.mrf.mxu0
        %v3679 = vadd.f32 0.0, %v3678
        %v3680 = vpop.f32.mrf.mxu0
        %v3681 = vpop.f32.mrf.mxu0
        %v3682 = vadd.f32 0.0, %v3681
        %v3683 = vpop.f32.mrf.mxu0
        %3684 = vmatprep.mubr.bf16.mxu0 0
        %3685 = vmatmul.mubr.bf16.gmra.mxu0 %v3636
        %v3686 = vpop.f32.mrf.mxu0
        %v3687 = vadd.f32 0.0, %v3686
        %v3688 = vpop.f32.mrf.mxu0
        %v3689 = vpop.f32.mrf.mxu0
        %v3690 = vpop.f32.mrf.mxu0
        %3691 = vdwg.mxu0
        %vm3692 = vcmask 138240
        %v3693 = vsel %vm3692, %v3471, -inf
        %3694 = vmax.xlane.f32.xlu0 %v3693
        %v3695 = vpop.xlane.xlu0 %3694
        %v3696 = vsel %vm3692, %v3474, -inf
        %3697 = vmax.xlane.f32.xlu0 %v3696
        %v3698 = vpop.xlane.xlu0 %3697
        %vm3699 = vcmask 131072
        %v3700 = vsel %vm3699, %v3479, -inf
        %3701 = vmax.xlane.f32.xlu0 %v3700
        %v3702 = vpop.xlane.xlu0 %3701
        %v3703 = vsel %vm3692, %v3679, -inf
        %3704 = vmax.xlane.f32.xlu0 %v3703
        %v3705 = vpop.xlane.xlu0 %3704
        %v3706 = vsel %vm3692, %v3682, -inf
        %3707 = vmax.xlane.f32.xlu0 %v3706
        %v3708 = vpop.xlane.xlu0 %3707
        %v3709 = vsel %vm3699, %v3687, -inf
        %3710 = vmax.xlane.f32.xlu0 %v3709
        %v3711 = vpop.xlane.xlu0 %3710
        %v3712 = vsub.f32 %v3471, %v3695
        %v3713 = vsub.f32 %v3474, %v3698
        %v3714 = vsub.f32 %v3479, %v3702
        %v3715 = vsub.f32 %v3679, %v3705
        %v3716 = vsub.f32 %v3682, %v3708
        %v3717 = vsub.f32 %v3687, %v3711
        %v3718 = vmul.f32 %v3712, 1.442695
        %v3719 = vpow.pop %v3718
        %v3720 = vmul.f32 %v3713, 1.442695
        %v3721 = vpow.pop %v3720
        %v3722 = vmul.f32 %v3714, 1.442695
        %v3723 = vpow.pop %v3722
        %v3724 = vmul.f32 %v3715, 1.442695
        %v3725 = vpow.pop %v3724
        %v3726 = vmul.f32 %v3716, 1.442695
        %v3727 = vpow.pop %v3726
        %v3728 = vmul.f32 %v3717, 1.442695
        %v3729 = vpow.pop %v3728
        %v3730 = vsel %vm3692, %v3719, 0.0
        %3731 = vadd.xlane.f32.xlu0 %v3730
        %v3732 = vpop.xlane.xlu0 %3731
        %v3733 = vsel %vm3692, %v3721, 0.0
        %3734 = vadd.xlane.f32.xlu0 %v3733
        %v3735 = vpop.xlane.xlu0 %3734
        %v3736 = vsel %vm3699, %v3723, 0.0
        %3737 = vadd.xlane.f32.xlu0 %v3736
        %v3738 = vpop.xlane.xlu0 %3737
        %v3739 = vsel %vm3692, %v3725, 0.0
        %3740 = vadd.xlane.f32.xlu0 %v3739
        %v3741 = vpop.xlane.xlu0 %3740
        %v3742 = vsel %vm3692, %v3727, 0.0
        %3743 = vadd.xlane.f32.xlu0 %v3742
        %v3744 = vpop.xlane.xlu0 %3743
        %v3745 = vsel %vm3699, %v3729, 0.0
        %3746 = vadd.xlane.f32.xlu0 %v3745
        %v3747 = vpop.xlane.xlu0 %3746
        %v3748 = vpack.c.bf16 %v3721, %v3719
        %v3749 = vpack.c.bf16 %v3723, %v3723
        %v3750 = vpack.c.bf16 %v3727, %v3725
        %v3751 = vpack.c.bf16 %v3729, %v3729
        %3752 = vrot.lane.b32.xlu0 %v3404, 64
        %v3753 = vpop.permute.xlu0 %3752
        %3754 = vrot.lane.b32.xlu0 %v3418, 64
        %v3755 = vpop.permute.xlu0 %3754
        %v3758 = vsel %vm3692, %v3748, 0
        %v3761 = vsel %vm3692, %v3749, 0
        %vm3763 = vcmask 1040384
        %v3764 = vsel 0, 4294967295, 65535
        %v3765 = vsel %vm3763, %v3764, 0
        %v3767 = vand.u32 %v3755, %v3765
        %3769 = vmatprep.subr.bf16.mxu0 0
        %3770 = vmatpush1.bf16.msra.mxu0 0
        %3771 = vmatprep.subr.bf16.mxu0 0
        %3772 = vmatpush1.bf16.msra.mxu0 0
        %3773 = vmatprep.subr.bf16.mxu0 0
        %3774 = vmatpush1.bf16.msra.mxu0 0
        %3775 = vmatprep.subr.bf16.mxu0 0
        %3776 = vmatpush1.bf16.msra.mxu0 0
        %3777 = vmatprep.subr.bf16.mxu0 0
        %3778 = vmatpush1.bf16.msra.mxu0 0
        %3779 = vmatprep.subr.bf16.mxu0 0
        %3780 = vmatpush1.bf16.msra.mxu0 0
        %3781 = vmatprep.subr.bf16.mxu0 0
        %3782 = vmatpush1.bf16.msra.mxu0 %v3767
        %3783 = vmatprep.subr.bf16.mxu0 0
        %3784 = vmatpush1.bf16.msra.mxu0 %v3753
        %3785 = vmatprep.subr.bf16.mxu0 0
        %3786 = vmatpush2.bf16.msra.mxu0 0
        %3787 = vmatprep.subr.bf16.mxu0 0
        %3788 = vmatpush2.bf16.msra.mxu0 0
        %3789 = vmatprep.subr.bf16.mxu0 0
        %3790 = vmatpush2.bf16.msra.mxu0 0
        %3791 = vmatprep.subr.bf16.mxu0 0
        %3792 = vmatpush2.bf16.msra.mxu0 0
        %3793 = vmatprep.subr.bf16.mxu0 0
        %3794 = vmatpush2.bf16.msra.mxu0 0
        %3795 = vmatprep.subr.bf16.mxu0 0
        %3796 = vmatpush2.bf16.msra.mxu0 0
        %3797 = vmatprep.subr.bf16.mxu0 0
        %3798 = vmatpush2.bf16.msra.mxu0 0
        %3799 = vmatprep.subr.bf16.mxu0 0
        %3800 = vmatpush2.bf16.msra.mxu0 0
        %3801 = vmatprep.mubr.bf16.mxu0 0
        %3802 = vmatmul.mubr.bf16.gmra.mxu0 %v3758
        %v3803 = vpop.f32.mrf.mxu0
        %v3804 = vadd.f32 0.0, %v3803
        %v3805 = vpop.f32.mrf.mxu0
        %v3806 = vpop.f32.mrf.mxu0
        %v3807 = vadd.f32 0.0, %v3806
        %v3808 = vpop.f32.mrf.mxu0
        %3809 = vmatprep.mubr.bf16.mxu0 0
        %3810 = vmatmul.mubr.bf16.gmra.mxu0 %v3761
        %v3811 = vpop.f32.mrf.mxu0
        %v3812 = vadd.f32 0.0, %v3811
        %v3813 = vpop.f32.mrf.mxu0
        %v3814 = vpop.f32.mrf.mxu0
        %v3815 = vpop.f32.mrf.mxu0
        %3816 = vdwg.mxu0
        %3817 = vrot.lane.b32.xlu0 %v3613, 64
        %v3818 = vpop.permute.xlu0 %3817
        %3819 = vrot.lane.b32.xlu0 %v3627, 64
        %v3820 = vpop.permute.xlu0 %3819
        %v3823 = vsel %vm3692, %v3750, 0
        %v3826 = vsel %vm3692, %v3751, 0
        %v3829 = vand.u32 %v3820, %v3765
        %3831 = vmatprep.subr.bf16.mxu0 0
        %3832 = vmatpush1.bf16.msra.mxu0 0
        %3833 = vmatprep.subr.bf16.mxu0 0
        %3834 = vmatpush1.bf16.msra.mxu0 0
        %3835 = vmatprep.subr.bf16.mxu0 0
        %3836 = vmatpush1.bf16.msra.mxu0 0
        %3837 = vmatprep.subr.bf16.mxu0 0
        %3838 = vmatpush1.bf16.msra.mxu0 0
        %3839 = vmatprep.subr.bf16.mxu0 0
        %3840 = vmatpush1.bf16.msra.mxu0 0
        %3841 = vmatprep.subr.bf16.mxu0 0
        %3842 = vmatpush1.bf16.msra.mxu0 0
        %3843 = vmatprep.subr.bf16.mxu0 0
        %3844 = vmatpush1.bf16.msra.mxu0 %v3829
        %3845 = vmatprep.subr.bf16.mxu0 0
        %3846 = vmatpush1.bf16.msra.mxu0 %v3818
        %3847 = vmatprep.subr.bf16.mxu0 0
        %3848 = vmatpush2.bf16.msra.mxu0 0
        %3849 = vmatprep.subr.bf16.mxu0 0
        %3850 = vmatpush2.bf16.msra.mxu0 0
        %3851 = vmatprep.subr.bf16.mxu0 0
        %3852 = vmatpush2.bf16.msra.mxu0 0
        %3853 = vmatprep.subr.bf16.mxu0 0
        %3854 = vmatpush2.bf16.msra.mxu0 0
        %3855 = vmatprep.subr.bf16.mxu0 0
        %3856 = vmatpush2.bf16.msra.mxu0 0
        %3857 = vmatprep.subr.bf16.mxu0 0
        %3858 = vmatpush2.bf16.msra.mxu0 0
        %3859 = vmatprep.subr.bf16.mxu0 0
        %3860 = vmatpush2.bf16.msra.mxu0 0
        %3861 = vmatprep.subr.bf16.mxu0 0
        %3862 = vmatpush2.bf16.msra.mxu0 0
        %3863 = vmatprep.mubr.bf16.mxu0 0
        %3864 = vmatmul.mubr.bf16.gmra.mxu0 %v3823
        %v3865 = vpop.f32.mrf.mxu0
        %v3866 = vadd.f32 0.0, %v3865
        %v3867 = vpop.f32.mrf.mxu0
        %v3868 = vpop.f32.mrf.mxu0
        %v3869 = vadd.f32 0.0, %v3868
        %v3870 = vpop.f32.mrf.mxu0
        %3871 = vmatprep.mubr.bf16.mxu0 0
        %3872 = vmatmul.mubr.bf16.gmra.mxu0 %v3826
        %v3873 = vpop.f32.mrf.mxu0
        %v3874 = vadd.f32 0.0, %v3873
        %v3875 = vpop.f32.mrf.mxu0
        %v3876 = vpop.f32.mrf.mxu0
        %v3877 = vpop.f32.mrf.mxu0
        %3878 = vdwg.mxu0
        %v3879 = vrcp.pop %v3732
        %v3880 = vrcp.pop %v3735
        %v3881 = vrcp.pop %v3738
        %v3882 = vrcp.pop %v3741
        %v3883 = vrcp.pop %v3744
        %v3884 = vrcp.pop %v3747
        %v3885 = vmul.f32 %v3804, %v3879
        %v3886 = vmul.f32 %v3807, %v3880
        %v3887 = vmul.f32 %v3812, %v3881
        %v3888 = vmul.f32 %v3866, %v3882
        %v3889 = vmul.f32 %v3869, %v3883
        %v3890 = vmul.f32 %v3874, %v3884
        %v3891 = vpack.c.bf16 %v3886, %v3885
        %v3892 = vpack.c.bf16 %v3887, %v3887
        %v3893 = vpack.c.bf16 %v3889, %v3888
        %v3894 = vpack.c.bf16 %v3890, %v3890
        %v3899 = vcombine.high %v3891, %v3891
        %v3901 = vunpack.c.l.s4 1966171168
        %v3902 = vunpack.c.0.s8 %v3901
        %v3903 = vlaneseq
        %v3904 = vshrl.u32 %v3903, 7
        %v3905 = vsub.s32 %v3902, %v3904
        %v3906 = vrot.slane %v3891, %v3905
        %v3908 = vunpack.c.l.s4 1966171168
        %v3909 = vunpack.c.0.s8 %v3908
        %v3910 = vlaneseq
        %v3911 = vshrl.u32 %v3910, 7
        %v3912 = vsub.s32 %v3909, %v3911
        %v3913 = vrot.slane %v3899, %v3912
        %v3914 = vcombine.high %v3906, %v3906
        %v3915 = vcombine.high %v3913, %v3913
        %v3917 = vunpack.c.l.s4 1966171168
        %v3918 = vunpack.c.0.s8 %v3917
        %v3919 = vlaneseq
        %v3920 = vshrl.u32 %v3919, 7
        %v3921 = vsub.s32 %v3918, %v3920
        %v3922 = vrot.slane %v3906, %v3921
        %v3924 = vunpack.c.l.s4 1966171168
        %v3925 = vunpack.c.0.s8 %v3924
        %v3926 = vlaneseq
        %v3927 = vshrl.u32 %v3926, 7
        %v3928 = vsub.s32 %v3925, %v3927
        %v3929 = vrot.slane %v3913, %v3928
        %v3931 = vunpack.c.l.s4 1966171168
        %v3932 = vunpack.c.0.s8 %v3931
        %v3933 = vlaneseq
        %v3934 = vshrl.u32 %v3933, 7
        %v3935 = vsub.s32 %v3932, %v3934
        %v3936 = vrot.slane %v3914, %v3935
        %v3938 = vunpack.c.l.s4 1966171168
        %v3939 = vunpack.c.0.s8 %v3938
        %v3940 = vlaneseq
        %v3941 = vshrl.u32 %v3940, 7
        %v3942 = vsub.s32 %v3939, %v3941
        %v3943 = vrot.slane %v3915, %v3942
        %v3944 = vcombine.high %v3922, %v3922
        %v3945 = vcombine.high %v3929, %v3929
        %v3946 = vcombine.high %v3936, %v3936
        %v3947 = vcombine.high %v3943, %v3943
        %v3949 = vunpack.c.l.s4 1966171168
        %v3950 = vunpack.c.0.s8 %v3949
        %v3951 = vlaneseq
        %v3952 = vshrl.u32 %v3951, 7
        %v3953 = vsub.s32 %v3950, %v3952
        %v3954 = vrot.slane %v3892, %v3953
        %v3956 = vunpack.c.l.s4 1966171168
        %v3957 = vunpack.c.0.s8 %v3956
        %v3958 = vlaneseq
        %v3959 = vshrl.u32 %v3958, 7
        %v3960 = vsub.s32 %v3957, %v3959
        %v3961 = vrot.slane %v3954, %v3960
        %v3962 = vcombine.high %v3893, %v3893
        %v3964 = vunpack.c.l.s4 1966171168
        %v3965 = vunpack.c.0.s8 %v3964
        %v3966 = vlaneseq
        %v3967 = vshrl.u32 %v3966, 7
        %v3968 = vsub.s32 %v3965, %v3967
        %v3969 = vrot.slane %v3893, %v3968
        %v3971 = vunpack.c.l.s4 1966171168
        %v3972 = vunpack.c.0.s8 %v3971
        %v3973 = vlaneseq
        %v3974 = vshrl.u32 %v3973, 7
        %v3975 = vsub.s32 %v3972, %v3974
        %v3976 = vrot.slane %v3962, %v3975
        %v3977 = vcombine.high %v3969, %v3969
        %v3978 = vcombine.high %v3976, %v3976
        %v3980 = vunpack.c.l.s4 1966171168
        %v3981 = vunpack.c.0.s8 %v3980
        %v3982 = vlaneseq
        %v3983 = vshrl.u32 %v3982, 7
        %v3984 = vsub.s32 %v3981, %v3983
        %v3985 = vrot.slane %v3969, %v3984
        %v3987 = vunpack.c.l.s4 1966171168
        %v3988 = vunpack.c.0.s8 %v3987
        %v3989 = vlaneseq
        %v3990 = vshrl.u32 %v3989, 7
        %v3991 = vsub.s32 %v3988, %v3990
        %v3992 = vrot.slane %v3976, %v3991
        %v3994 = vunpack.c.l.s4 1966171168
        %v3995 = vunpack.c.0.s8 %v3994
        %v3996 = vlaneseq
        %v3997 = vshrl.u32 %v3996, 7
        %v3998 = vsub.s32 %v3995, %v3997
        %v3999 = vrot.slane %v3977, %v3998
        %v4001 = vunpack.c.l.s4 1966171168
        %v4002 = vunpack.c.0.s8 %v4001
        %v4003 = vlaneseq
        %v4004 = vshrl.u32 %v4003, 7
        %v4005 = vsub.s32 %v4002, %v4004
        %v4006 = vrot.slane %v3978, %v4005
        %v4007 = vcombine.high %v3985, %v3985
        %v4008 = vcombine.high %v3992, %v3992
        %v4009 = vcombine.high %v3999, %v3999
        %v4010 = vcombine.high %v4006, %v4006
        %v4012 = vunpack.c.l.s4 1966171168
        %v4013 = vunpack.c.0.s8 %v4012
        %v4014 = vlaneseq
        %v4015 = vshrl.u32 %v4014, 7
        %v4016 = vsub.s32 %v4013, %v4015
        %v4017 = vrot.slane %v3894, %v4016
        %v4019 = vunpack.c.l.s4 1966171168
        %v4020 = vunpack.c.0.s8 %v4019
        %v4021 = vlaneseq
        %v4022 = vshrl.u32 %v4021, 7
        %v4023 = vsub.s32 %v4020, %v4022
        %v4024 = vrot.slane %v4017, %v4023
        %v4025 = vunpack.i.l.s16 %v3922
        %v4026 = vunpack.i.h.s16 %v3922
        %v4027 = vunpack.i.l.s16 %v3936
        %v4028 = vunpack.i.h.s16 %v3936
        %v4029 = vunpack.i.l.s16 %v3944
        %v4030 = vunpack.i.h.s16 %v3944
        %v4031 = vunpack.i.l.s16 %v3946
        %v4032 = vunpack.i.h.s16 %v3946
        %v4033 = vunpack.i.l.s16 %v3929
        %v4034 = vunpack.i.h.s16 %v3929
        %v4035 = vunpack.i.l.s16 %v3943
        %v4036 = vunpack.i.h.s16 %v3943
        %v4037 = vunpack.i.l.s16 %v3945
        %v4038 = vunpack.i.h.s16 %v3945
        %v4039 = vunpack.i.l.s16 %v3947
        %v4040 = vunpack.i.h.s16 %v3947
        %v4041 = vunpack.i.l.s16 %v3961
        %v4042 = vunpack.i.l.s16 %v3985
        %v4043 = vunpack.i.h.s16 %v3985
        %v4044 = vunpack.i.l.s16 %v3999
        %v4045 = vunpack.i.h.s16 %v3999
        %v4046 = vunpack.i.l.s16 %v4007
        %v4047 = vunpack.i.h.s16 %v4007
        %v4048 = vunpack.i.l.s16 %v4009
        %v4049 = vunpack.i.h.s16 %v4009
        %v4050 = vunpack.i.l.s16 %v3992
        %v4051 = vunpack.i.h.s16 %v3992
        %v4052 = vunpack.i.l.s16 %v4006
        %v4053 = vunpack.i.h.s16 %v4006
        %v4054 = vunpack.i.l.s16 %v4008
        %v4055 = vunpack.i.h.s16 %v4008
        %v4056 = vunpack.i.l.s16 %v4010
        %v4057 = vunpack.i.h.s16 %v4010
        %v4058 = vunpack.i.l.s16 %v4024
        %4059 = vrot.lane.b32.xlu0 %v3332, 120
        %v4060 = vpop.permute.xlu0 %4059
        %4061 = vrot.lane.b32.xlu0 %v3346, 120
        %v4062 = vpop.permute.xlu0 %4061
        %4063 = vrot.lane.b32.xlu0 %v3404, 88
        %v4064 = vpop.permute.xlu0 %4063
        %4065 = vrot.lane.b32.xlu0 %v3418, 88
        %v4066 = vpop.permute.xlu0 %4065
        %v4068 = vsel %vm3423, %v4060, 0
        %v4071 = vsel %vm3423, %v4062, 0
        %v4074 = vsel %vm3423, %v4064, 0
        %v4077 = vsel %vm3423, %v4066, 0
        %4079 = vmatprep.subr.bf16.mxu0 0
        %4080 = vmatpush1.bf16.xpose.msra.mxu0 0
        %4081 = vmatprep.subr.bf16.mxu0 0
        %4082 = vmatpush1.bf16.xpose.msra.mxu0 0
        %4083 = vmatprep.subr.bf16.mxu0 0
        %4084 = vmatpush1.bf16.xpose.msra.mxu0 0
        %4085 = vmatprep.subr.bf16.mxu0 0
        %4086 = vmatpush1.bf16.xpose.msra.mxu0 0
        %4087 = vmatprep.subr.bf16.mxu0 0
        %4088 = vmatpush1.bf16.xpose.msra.mxu0 0
        %4089 = vmatprep.subr.bf16.mxu0 0
        %4090 = vmatpush1.bf16.xpose.msra.mxu0 0
        %4091 = vmatprep.subr.bf16.mxu0 0
        %4092 = vmatpush1.bf16.xpose.msra.mxu0 %v4077
        %4093 = vmatprep.subr.bf16.mxu0 0
        %4094 = vmatpush1.bf16.xpose.msra.mxu0 %v4074
        %4095 = vmatprep.subr.bf16.mxu0 0
        %4096 = vmatpush2.bf16.xpose.msra.mxu0 0
        %4097 = vmatprep.subr.bf16.mxu0 0
        %4098 = vmatpush2.bf16.xpose.msra.mxu0 0
        %4099 = vmatprep.subr.bf16.mxu0 0
        %4100 = vmatpush2.bf16.xpose.msra.mxu0 0
        %4101 = vmatprep.subr.bf16.mxu0 0
        %4102 = vmatpush2.bf16.xpose.msra.mxu0 0
        %4103 = vmatprep.subr.bf16.mxu0 0
        %4104 = vmatpush2.bf16.xpose.msra.mxu0 0
        %4105 = vmatprep.subr.bf16.mxu0 0
        %4106 = vmatpush2.bf16.xpose.msra.mxu0 0
        %4107 = vmatprep.subr.bf16.mxu0 0
        %4108 = vmatpush2.bf16.xpose.msra.mxu0 0
        %4109 = vmatprep.subr.bf16.mxu0 0
        %4110 = vmatpush2.bf16.xpose.msra.mxu0 0
        %4111 = vmatprep.mubr.bf16.mxu0 0
        %4112 = vmatmul.mubr.bf16.gmra.mxu0 %v4068
        %v4113 = vpop.f32.mrf.mxu0
        %v4114 = vadd.f32 0.0, %v4113
        %v4115 = vpop.f32.mrf.mxu0
        %v4116 = vpop.f32.mrf.mxu0
        %v4117 = vadd.f32 0.0, %v4116
        %v4118 = vpop.f32.mrf.mxu0
        %4119 = vmatprep.mubr.bf16.mxu0 0
        %4120 = vmatmul.mubr.bf16.gmra.mxu0 %v4071
        %v4121 = vpop.f32.mrf.mxu0
        %v4122 = vadd.f32 0.0, %v4121
        %v4123 = vpop.f32.mrf.mxu0
        %v4124 = vpop.f32.mrf.mxu0
        %v4125 = vpop.f32.mrf.mxu0
        %4126 = vdwg.mxu0
        %4127 = vrot.lane.b32.xlu0 %v3541, 120
        %v4128 = vpop.permute.xlu0 %4127
        %4129 = vrot.lane.b32.xlu0 %v3555, 120
        %v4130 = vpop.permute.xlu0 %4129
        %4131 = vrot.lane.b32.xlu0 %v3613, 88
        %v4132 = vpop.permute.xlu0 %4131
        %4133 = vrot.lane.b32.xlu0 %v3627, 88
        %v4134 = vpop.permute.xlu0 %4133
        %v4136 = vsel %vm3423, %v4128, 0
        %v4139 = vsel %vm3423, %v4130, 0
        %v4142 = vsel %vm3423, %v4132, 0
        %v4145 = vsel %vm3423, %v4134, 0
        %4147 = vmatprep.subr.bf16.mxu0 0
        %4148 = vmatpush1.bf16.xpose.msra.mxu0 0
        %4149 = vmatprep.subr.bf16.mxu0 0
        %4150 = vmatpush1.bf16.xpose.msra.mxu0 0
        %4151 = vmatprep.subr.bf16.mxu0 0
        %4152 = vmatpush1.bf16.xpose.msra.mxu0 0
        %4153 = vmatprep.subr.bf16.mxu0 0
        %4154 = vmatpush1.bf16.xpose.msra.mxu0 0
        %4155 = vmatprep.subr.bf16.mxu0 0
        %4156 = vmatpush1.bf16.xpose.msra.mxu0 0
        %4157 = vmatprep.subr.bf16.mxu0 0
        %4158 = vmatpush1.bf16.xpose.msra.mxu0 0
        %4159 = vmatprep.subr.bf16.mxu0 0
        %4160 = vmatpush1.bf16.xpose.msra.mxu0 %v4145
        %4161 = vmatprep.subr.bf16.mxu0 0
        %4162 = vmatpush1.bf16.xpose.msra.mxu0 %v4142
        %4163 = vmatprep.subr.bf16.mxu0 0
        %4164 = vmatpush2.bf16.xpose.msra.mxu0 0
        %4165 = vmatprep.subr.bf16.mxu0 0
        %4166 = vmatpush2.bf16.xpose.msra.mxu0 0
        %4167 = vmatprep.subr.bf16.mxu0 0
        %4168 = vmatpush2.bf16.xpose.msra.mxu0 0
        %4169 = vmatprep.subr.bf16.mxu0 0
        %4170 = vmatpush2.bf16.xpose.msra.mxu0 0
        %4171 = vmatprep.subr.bf16.mxu0 0
        %4172 = vmatpush2.bf16.xpose.msra.mxu0 0
        %4173 = vmatprep.subr.bf16.mxu0 0
        %4174 = vmatpush2.bf16.xpose.msra.mxu0 0
        %4175 = vmatprep.subr.bf16.mxu0 0
        %4176 = vmatpush2.bf16.xpose.msra.mxu0 0
        %4177 = vmatprep.subr.bf16.mxu0 0
        %4178 = vmatpush2.bf16.xpose.msra.mxu0 0
        %4179 = vmatprep.mubr.bf16.mxu0 0
        %4180 = vmatmul.mubr.bf16.gmra.mxu0 %v4136
        %v4181 = vpop.f32.mrf.mxu0
        %v4182 = vadd.f32 0.0, %v4181
        %v4183 = vpop.f32.mrf.mxu0
        %v4184 = vpop.f32.mrf.mxu0
        %v4185 = vadd.f32 0.0, %v4184
        %v4186 = vpop.f32.mrf.mxu0
        %4187 = vmatprep.mubr.bf16.mxu0 0
        %4188 = vmatmul.mubr.bf16.gmra.mxu0 %v4139
        %v4189 = vpop.f32.mrf.mxu0
        %v4190 = vadd.f32 0.0, %v4189
        %v4191 = vpop.f32.mrf.mxu0
        %v4192 = vpop.f32.mrf.mxu0
        %v4193 = vpop.f32.mrf.mxu0
        %4194 = vdwg.mxu0
        %v4195 = vsel %vm3692, %v4114, -inf
        %4196 = vmax.xlane.f32.xlu0 %v4195
        %v4197 = vpop.xlane.xlu0 %4196
        %v4198 = vsel %vm3692, %v4117, -inf
        %4199 = vmax.xlane.f32.xlu0 %v4198
        %v4200 = vpop.xlane.xlu0 %4199
        %v4201 = vsel %vm3699, %v4122, -inf
        %4202 = vmax.xlane.f32.xlu0 %v4201
        %v4203 = vpop.xlane.xlu0 %4202
        %v4204 = vsel %vm3692, %v4182, -inf
        %4205 = vmax.xlane.f32.xlu0 %v4204
        %v4206 = vpop.xlane.xlu0 %4205
        %v4207 = vsel %vm3692, %v4185, -inf
        %4208 = vmax.xlane.f32.xlu0 %v4207
        %v4209 = vpop.xlane.xlu0 %4208
        %v4210 = vsel %vm3699, %v4190, -inf
        %4211 = vmax.xlane.f32.xlu0 %v4210
        %v4212 = vpop.xlane.xlu0 %4211
        %v4213 = vsub.f32 %v4114, %v4197
        %v4214 = vsub.f32 %v4117, %v4200
        %v4215 = vsub.f32 %v4122, %v4203
        %v4216 = vsub.f32 %v4182, %v4206
        %v4217 = vsub.f32 %v4185, %v4209
        %v4218 = vsub.f32 %v4190, %v4212
        %v4219 = vmul.f32 %v4213, 1.442695
        %v4220 = vpow.pop %v4219
        %v4221 = vmul.f32 %v4214, 1.442695
        %v4222 = vpow.pop %v4221
        %v4223 = vmul.f32 %v4215, 1.442695
        %v4224 = vpow.pop %v4223
        %v4225 = vmul.f32 %v4216, 1.442695
        %v4226 = vpow.pop %v4225
        %v4227 = vmul.f32 %v4217, 1.442695
        %v4228 = vpow.pop %v4227
        %v4229 = vmul.f32 %v4218, 1.442695
        %v4230 = vpow.pop %v4229
        %v4231 = vsel %vm3692, %v4220, 0.0
        %4232 = vadd.xlane.f32.xlu0 %v4231
        %v4233 = vpop.xlane.xlu0 %4232
        %v4234 = vsel %vm3692, %v4222, 0.0
        %4235 = vadd.xlane.f32.xlu0 %v4234
        %v4236 = vpop.xlane.xlu0 %4235
        %v4237 = vsel %vm3699, %v4224, 0.0
        %4238 = vadd.xlane.f32.xlu0 %v4237
        %v4239 = vpop.xlane.xlu0 %4238
        %v4240 = vsel %vm3692, %v4226, 0.0
        %4241 = vadd.xlane.f32.xlu0 %v4240
        %v4242 = vpop.xlane.xlu0 %4241
        %v4243 = vsel %vm3692, %v4228, 0.0
        %4244 = vadd.xlane.f32.xlu0 %v4243
        %v4245 = vpop.xlane.xlu0 %4244
        %v4246 = vsel %vm3699, %v4230, 0.0
        %4247 = vadd.xlane.f32.xlu0 %v4246
        %v4248 = vpop.xlane.xlu0 %4247
        %v4249 = vpack.c.bf16 %v4222, %v4220
        %v4250 = vpack.c.bf16 %v4224, %v4224
        %v4251 = vpack.c.bf16 %v4228, %v4226
        %v4252 = vpack.c.bf16 %v4230, %v4230
        %4253 = vrot.lane.b32.xlu0 %v3404, 56
        %v4254 = vpop.permute.xlu0 %4253
        %4255 = vrot.lane.b32.xlu0 %v3418, 56
        %v4256 = vpop.permute.xlu0 %4255
        %v4259 = vsel %vm3692, %v4249, 0
        %v4262 = vsel %vm3692, %v4250, 0
        %v4265 = vand.u32 %v4256, %v3765
        %4267 = vmatprep.subr.bf16.mxu0 0
        %4268 = vmatpush1.bf16.msra.mxu0 0
        %4269 = vmatprep.subr.bf16.mxu0 0
        %4270 = vmatpush1.bf16.msra.mxu0 0
        %4271 = vmatprep.subr.bf16.mxu0 0
        %4272 = vmatpush1.bf16.msra.mxu0 0
        %4273 = vmatprep.subr.bf16.mxu0 0
        %4274 = vmatpush1.bf16.msra.mxu0 0
        %4275 = vmatprep.subr.bf16.mxu0 0
        %4276 = vmatpush1.bf16.msra.mxu0 0
        %4277 = vmatprep.subr.bf16.mxu0 0
        %4278 = vmatpush1.bf16.msra.mxu0 0
        %4279 = vmatprep.subr.bf16.mxu0 0
        %4280 = vmatpush1.bf16.msra.mxu0 %v4265
        %4281 = vmatprep.subr.bf16.mxu0 0
        %4282 = vmatpush1.bf16.msra.mxu0 %v4254
        %4283 = vmatprep.subr.bf16.mxu0 0
        %4284 = vmatpush2.bf16.msra.mxu0 0
        %4285 = vmatprep.subr.bf16.mxu0 0
        %4286 = vmatpush2.bf16.msra.mxu0 0
        %4287 = vmatprep.subr.bf16.mxu0 0
        %4288 = vmatpush2.bf16.msra.mxu0 0
        %4289 = vmatprep.subr.bf16.mxu0 0
        %4290 = vmatpush2.bf16.msra.mxu0 0
        %4291 = vmatprep.subr.bf16.mxu0 0
        %4292 = vmatpush2.bf16.msra.mxu0 0
        %4293 = vmatprep.subr.bf16.mxu0 0
        %4294 = vmatpush2.bf16.msra.mxu0 0
        %4295 = vmatprep.subr.bf16.mxu0 0
        %4296 = vmatpush2.bf16.msra.mxu0 0
        %4297 = vmatprep.subr.bf16.mxu0 0
        %4298 = vmatpush2.bf16.msra.mxu0 0
        %4299 = vmatprep.mubr.bf16.mxu0 0
        %4300 = vmatmul.mubr.bf16.gmra.mxu0 %v4259
        %v4301 = vpop.f32.mrf.mxu0
        %v4302 = vadd.f32 0.0, %v4301
        %v4303 = vpop.f32.mrf.mxu0
        %v4304 = vpop.f32.mrf.mxu0
        %v4305 = vadd.f32 0.0, %v4304
        %v4306 = vpop.f32.mrf.mxu0
        %4307 = vmatprep.mubr.bf16.mxu0 0
        %4308 = vmatmul.mubr.bf16.gmra.mxu0 %v4262
        %v4309 = vpop.f32.mrf.mxu0
        %v4310 = vadd.f32 0.0, %v4309
        %v4311 = vpop.f32.mrf.mxu0
        %v4312 = vpop.f32.mrf.mxu0
        %v4313 = vpop.f32.mrf.mxu0
        %4314 = vdwg.mxu0
        %4315 = vrot.lane.b32.xlu0 %v3613, 56
        %v4316 = vpop.permute.xlu0 %4315
        %4317 = vrot.lane.b32.xlu0 %v3627, 56
        %v4318 = vpop.permute.xlu0 %4317
        %v4321 = vsel %vm3692, %v4251, 0
        %v4324 = vsel %vm3692, %v4252, 0
        %v4327 = vand.u32 %v4318, %v3765
        %4329 = vmatprep.subr.bf16.mxu0 0
        %4330 = vmatpush1.bf16.msra.mxu0 0
        %4331 = vmatprep.subr.bf16.mxu0 0
        %4332 = vmatpush1.bf16.msra.mxu0 0
        %4333 = vmatprep.subr.bf16.mxu0 0
        %4334 = vmatpush1.bf16.msra.mxu0 0
        %4335 = vmatprep.subr.bf16.mxu0 0
        %4336 = vmatpush1.bf16.msra.mxu0 0
        %4337 = vmatprep.subr.bf16.mxu0 0
        %4338 = vmatpush1.bf16.msra.mxu0 0
        %4339 = vmatprep.subr.bf16.mxu0 0
        %4340 = vmatpush1.bf16.msra.mxu0 0
        %4341 = vmatprep.subr.bf16.mxu0 0
        %4342 = vmatpush1.bf16.msra.mxu0 %v4327
        %4343 = vmatprep.subr.bf16.mxu0 0
        %4344 = vmatpush1.bf16.msra.mxu0 %v4316
        %4345 = vmatprep.subr.bf16.mxu0 0
        %4346 = vmatpush2.bf16.msra.mxu0 0
        %4347 = vmatprep.subr.bf16.mxu0 0
        %4348 = vmatpush2.bf16.msra.mxu0 0
        %4349 = vmatprep.subr.bf16.mxu0 0
        %4350 = vmatpush2.bf16.msra.mxu0 0
        %4351 = vmatprep.subr.bf16.mxu0 0
        %4352 = vmatpush2.bf16.msra.mxu0 0
        %4353 = vmatprep.subr.bf16.mxu0 0
        %4354 = vmatpush2.bf16.msra.mxu0 0
        %4355 = vmatprep.subr.bf16.mxu0 0
        %4356 = vmatpush2.bf16.msra.mxu0 0
        %4357 = vmatprep.subr.bf16.mxu0 0
        %4358 = vmatpush2.bf16.msra.mxu0 0
        %4359 = vmatprep.subr.bf16.mxu0 0
        %4360 = vmatpush2.bf16.msra.mxu0 0
        %4361 = vmatprep.mubr.bf16.mxu0 0
        %4362 = vmatmul.mubr.bf16.gmra.mxu0 %v4321
        %v4363 = vpop.f32.mrf.mxu0
        %v4364 = vadd.f32 0.0, %v4363
        %v4365 = vpop.f32.mrf.mxu0
        %v4366 = vpop.f32.mrf.mxu0
        %v4367 = vadd.f32 0.0, %v4366
        %v4368 = vpop.f32.mrf.mxu0
        %4369 = vmatprep.mubr.bf16.mxu0 0
        %4370 = vmatmul.mubr.bf16.gmra.mxu0 %v4324
        %v4371 = vpop.f32.mrf.mxu0
        %v4372 = vadd.f32 0.0, %v4371
        %v4373 = vpop.f32.mrf.mxu0
        %v4374 = vpop.f32.mrf.mxu0
        %v4375 = vpop.f32.mrf.mxu0
        %4376 = vdwg.mxu0
        %v4377 = vrcp.pop %v4233
        %v4378 = vrcp.pop %v4236
        %v4379 = vrcp.pop %v4239
        %v4380 = vrcp.pop %v4242
        %v4381 = vrcp.pop %v4245
        %v4382 = vrcp.pop %v4248
        %v4383 = vmul.f32 %v4302, %v4377
        %v4384 = vmul.f32 %v4305, %v4378
        %v4385 = vmul.f32 %v4310, %v4379
        %v4386 = vmul.f32 %v4364, %v4380
        %v4387 = vmul.f32 %v4367, %v4381
        %v4388 = vmul.f32 %v4372, %v4382
        %v4389 = vpack.c.bf16 %v4384, %v4383
        %v4390 = vpack.c.bf16 %v4385, %v4385
        %v4391 = vpack.c.bf16 %v4387, %v4386
        %v4392 = vpack.c.bf16 %v4388, %v4388
        %v4397 = vcombine.high %v4389, %v4389
        %v4399 = vunpack.c.l.s4 1966171168
        %v4400 = vunpack.c.0.s8 %v4399
        %v4401 = vlaneseq
        %v4402 = vshrl.u32 %v4401, 7
        %v4403 = vsub.s32 %v4400, %v4402
        %v4404 = vrot.slane %v4389, %v4403
        %v4406 = vunpack.c.l.s4 1966171168
        %v4407 = vunpack.c.0.s8 %v4406
        %v4408 = vlaneseq
        %v4409 = vshrl.u32 %v4408, 7
        %v4410 = vsub.s32 %v4407, %v4409
        %v4411 = vrot.slane %v4397, %v4410
        %v4412 = vcombine.high %v4404, %v4404
        %v4413 = vcombine.high %v4411, %v4411
        %v4415 = vunpack.c.l.s4 1966171168
        %v4416 = vunpack.c.0.s8 %v4415
        %v4417 = vlaneseq
        %v4418 = vshrl.u32 %v4417, 7
        %v4419 = vsub.s32 %v4416, %v4418
        %v4420 = vrot.slane %v4404, %v4419
        %v4422 = vunpack.c.l.s4 1966171168
        %v4423 = vunpack.c.0.s8 %v4422
        %v4424 = vlaneseq
        %v4425 = vshrl.u32 %v4424, 7
        %v4426 = vsub.s32 %v4423, %v4425
        %v4427 = vrot.slane %v4411, %v4426
        %v4429 = vunpack.c.l.s4 1966171168
        %v4430 = vunpack.c.0.s8 %v4429
        %v4431 = vlaneseq
        %v4432 = vshrl.u32 %v4431, 7
        %v4433 = vsub.s32 %v4430, %v4432
        %v4434 = vrot.slane %v4412, %v4433
        %v4436 = vunpack.c.l.s4 1966171168
        %v4437 = vunpack.c.0.s8 %v4436
        %v4438 = vlaneseq
        %v4439 = vshrl.u32 %v4438, 7
        %v4440 = vsub.s32 %v4437, %v4439
        %v4441 = vrot.slane %v4413, %v4440
        %v4442 = vcombine.high %v4420, %v4420
        %v4443 = vcombine.high %v4427, %v4427
        %v4444 = vcombine.high %v4434, %v4434
        %v4445 = vcombine.high %v4441, %v4441
        %v4447 = vunpack.c.l.s4 1966171168
        %v4448 = vunpack.c.0.s8 %v4447
        %v4449 = vlaneseq
        %v4450 = vshrl.u32 %v4449, 7
        %v4451 = vsub.s32 %v4448, %v4450
        %v4452 = vrot.slane %v4390, %v4451
        %v4454 = vunpack.c.l.s4 1966171168
        %v4455 = vunpack.c.0.s8 %v4454
        %v4456 = vlaneseq
        %v4457 = vshrl.u32 %v4456, 7
        %v4458 = vsub.s32 %v4455, %v4457
        %v4459 = vrot.slane %v4452, %v4458
        %v4460 = vcombine.high %v4391, %v4391
        %v4462 = vunpack.c.l.s4 1966171168
        %v4463 = vunpack.c.0.s8 %v4462
        %v4464 = vlaneseq
        %v4465 = vshrl.u32 %v4464, 7
        %v4466 = vsub.s32 %v4463, %v4465
        %v4467 = vrot.slane %v4391, %v4466
        %v4469 = vunpack.c.l.s4 1966171168
        %v4470 = vunpack.c.0.s8 %v4469
        %v4471 = vlaneseq
        %v4472 = vshrl.u32 %v4471, 7
        %v4473 = vsub.s32 %v4470, %v4472
        %v4474 = vrot.slane %v4460, %v4473
        %v4475 = vcombine.high %v4467, %v4467
        %v4476 = vcombine.high %v4474, %v4474
        %v4478 = vunpack.c.l.s4 1966171168
        %v4479 = vunpack.c.0.s8 %v4478
        %v4480 = vlaneseq
        %v4481 = vshrl.u32 %v4480, 7
        %v4482 = vsub.s32 %v4479, %v4481
        %v4483 = vrot.slane %v4467, %v4482
        %v4485 = vunpack.c.l.s4 1966171168
        %v4486 = vunpack.c.0.s8 %v4485
        %v4487 = vlaneseq
        %v4488 = vshrl.u32 %v4487, 7
        %v4489 = vsub.s32 %v4486, %v4488
        %v4490 = vrot.slane %v4474, %v4489
        %v4492 = vunpack.c.l.s4 1966171168
        %v4493 = vunpack.c.0.s8 %v4492
        %v4494 = vlaneseq
        %v4495 = vshrl.u32 %v4494, 7
        %v4496 = vsub.s32 %v4493, %v4495
        %v4497 = vrot.slane %v4475, %v4496
        %v4499 = vunpack.c.l.s4 1966171168
        %v4500 = vunpack.c.0.s8 %v4499
        %v4501 = vlaneseq
        %v4502 = vshrl.u32 %v4501, 7
        %v4503 = vsub.s32 %v4500, %v4502
        %v4504 = vrot.slane %v4476, %v4503
        %v4505 = vcombine.high %v4483, %v4483
        %v4506 = vcombine.high %v4490, %v4490
        %v4507 = vcombine.high %v4497, %v4497
        %v4508 = vcombine.high %v4504, %v4504
        %v4510 = vunpack.c.l.s4 1966171168
        %v4511 = vunpack.c.0.s8 %v4510
        %v4512 = vlaneseq
        %v4513 = vshrl.u32 %v4512, 7
        %v4514 = vsub.s32 %v4511, %v4513
        %v4515 = vrot.slane %v4392, %v4514
        %v4517 = vunpack.c.l.s4 1966171168
        %v4518 = vunpack.c.0.s8 %v4517
        %v4519 = vlaneseq
        %v4520 = vshrl.u32 %v4519, 7
        %v4521 = vsub.s32 %v4518, %v4520
        %v4522 = vrot.slane %v4515, %v4521
        %v4523 = vunpack.i.l.s16 %v4420
        %v4524 = vunpack.i.h.s16 %v4420
        %v4525 = vunpack.i.l.s16 %v4434
        %v4526 = vunpack.i.h.s16 %v4434
        %v4527 = vunpack.i.l.s16 %v4442
        %v4528 = vunpack.i.h.s16 %v4442
        %v4529 = vunpack.i.l.s16 %v4444
        %v4530 = vunpack.i.h.s16 %v4444
        %v4531 = vunpack.i.l.s16 %v4427
        %v4532 = vunpack.i.h.s16 %v4427
        %v4533 = vunpack.i.l.s16 %v4441
        %v4534 = vunpack.i.h.s16 %v4441
        %v4535 = vunpack.i.l.s16 %v4443
        %v4536 = vunpack.i.h.s16 %v4443
        %v4537 = vunpack.i.l.s16 %v4445
        %v4538 = vunpack.i.h.s16 %v4445
        %v4539 = vunpack.i.l.s16 %v4459
        %v4540 = vunpack.i.l.s16 %v4483
        %v4541 = vunpack.i.h.s16 %v4483
        %v4542 = vunpack.i.l.s16 %v4497
        %v4543 = vunpack.i.h.s16 %v4497
        %v4544 = vunpack.i.l.s16 %v4505
        %v4545 = vunpack.i.h.s16 %v4505
        %v4546 = vunpack.i.l.s16 %v4507
        %v4547 = vunpack.i.h.s16 %v4507
        %v4548 = vunpack.i.l.s16 %v4490
        %v4549 = vunpack.i.h.s16 %v4490
        %v4550 = vunpack.i.l.s16 %v4504
        %v4551 = vunpack.i.h.s16 %v4504
        %v4552 = vunpack.i.l.s16 %v4506
        %v4553 = vunpack.i.h.s16 %v4506
        %v4554 = vunpack.i.l.s16 %v4508
        %v4555 = vunpack.i.h.s16 %v4508
        %v4556 = vunpack.i.l.s16 %v4522
        %v4557 = vpack.i.b16 %v4524, %v4523
        %v4558 = vpack.i.b16 %v4526, %v4525
        %v4559 = vpack.i.b16 %v4528, %v4527
        %v4560 = vpack.i.b16 %v4530, %v4529
        %v4561 = vpack.i.b16 %v4532, %v4531
        %v4562 = vpack.i.b16 %v4534, %v4533
        %v4563 = vpack.i.b16 %v4536, %v4535
        %v4564 = vpack.i.b16 %v4538, %v4537
        %v4565 = vpack.i.b16 %v4540, %v4539
        %v4566 = vpack.i.b16 %v4542, %v4541
        %v4567 = vpack.i.b16 %v4544, %v4543
        %v4568 = vpack.i.b16 %v4546, %v4545
        %v4569 = vpack.i.b16 %v4548, %v4547
        %v4570 = vpack.i.b16 %v4550, %v4549
        %v4571 = vpack.i.b16 %v4552, %v4551
        %v4572 = vpack.i.b16 %v4554, %v4553
        %v4573 = vpack.i.b16 %v4556, %v4555
        %v4574 = vcombine.low %v4557, %v4558
        %v4575 = vcombine.low %v4559, %v4560
        %v4576 = vcombine.low %v4561, %v4562
        %v4577 = vcombine.low %v4563, %v4564
        %v4579 = vunpack.c.l.s4 1966171168
        %v4580 = vunpack.c.0.s8 %v4579
        %v4581 = vlaneseq
        %v4582 = vshrl.u32 %v4581, 7
        %v4583 = vsub.s32 %v4580, %v4582
        %v4584 = vrot.slane %v4574, %v4583
        %v4586 = vunpack.c.l.s4 1966171168
        %v4587 = vunpack.c.0.s8 %v4586
        %v4588 = vlaneseq
        %v4589 = vshrl.u32 %v4588, 7
        %v4590 = vsub.s32 %v4587, %v4589
        %v4591 = vrot.slane %v4575, %v4590
        %v4593 = vunpack.c.l.s4 1966171168
        %v4594 = vunpack.c.0.s8 %v4593
        %v4595 = vlaneseq
        %v4596 = vshrl.u32 %v4595, 7
        %v4597 = vsub.s32 %v4594, %v4596
        %v4598 = vrot.slane %v4576, %v4597
        %v4600 = vunpack.c.l.s4 1966171168
        %v4601 = vunpack.c.0.s8 %v4600
        %v4602 = vlaneseq
        %v4603 = vshrl.u32 %v4602, 7
        %v4604 = vsub.s32 %v4601, %v4603
        %v4605 = vrot.slane %v4577, %v4604
        %v4606 = vcombine.low %v4584, %v4591
        %v4607 = vcombine.low %v4598, %v4605
        %v4609 = vunpack.c.l.s4 1966171168
        %v4610 = vunpack.c.0.s8 %v4609
        %v4611 = vlaneseq
        %v4612 = vshrl.u32 %v4611, 7
        %v4613 = vsub.s32 %v4610, %v4612
        %v4614 = vrot.slane %v4606, %v4613
        %v4616 = vunpack.c.l.s4 1966171168
        %v4617 = vunpack.c.0.s8 %v4616
        %v4618 = vlaneseq
        %v4619 = vshrl.u32 %v4618, 7
        %v4620 = vsub.s32 %v4617, %v4619
        %v4621 = vrot.slane %v4607, %v4620
        %v4622 = vcombine.low %v4614, %v4621
        %v4623 = vcombine.low %v4565, %v4566
        %v4624 = vcombine.low %v4567, %v4568
        %v4625 = vcombine.low %v4569, %v4570
        %v4626 = vcombine.low %v4571, %v4572
        %v4628 = vunpack.c.l.s4 1966171168
        %v4629 = vunpack.c.0.s8 %v4628
        %v4630 = vlaneseq
        %v4631 = vshrl.u32 %v4630, 7
        %v4632 = vsub.s32 %v4629, %v4631
        %v4633 = vrot.slane %v4623, %v4632
        %v4635 = vunpack.c.l.s4 1966171168
        %v4636 = vunpack.c.0.s8 %v4635
        %v4637 = vlaneseq
        %v4638 = vshrl.u32 %v4637, 7
        %v4639 = vsub.s32 %v4636, %v4638
        %v4640 = vrot.slane %v4624, %v4639
        %v4642 = vunpack.c.l.s4 1966171168
        %v4643 = vunpack.c.0.s8 %v4642
        %v4644 = vlaneseq
        %v4645 = vshrl.u32 %v4644, 7
        %v4646 = vsub.s32 %v4643, %v4645
        %v4647 = vrot.slane %v4625, %v4646
        %v4649 = vunpack.c.l.s4 1966171168
        %v4650 = vunpack.c.0.s8 %v4649
        %v4651 = vlaneseq
        %v4652 = vshrl.u32 %v4651, 7
        %v4653 = vsub.s32 %v4650, %v4652
        %v4654 = vrot.slane %v4626, %v4653
        %v4655 = vcombine.low %v4633, %v4640
        %v4656 = vcombine.low %v4647, %v4654
        %v4658 = vunpack.c.l.s4 1966171168
        %v4659 = vunpack.c.0.s8 %v4658
        %v4660 = vlaneseq
        %v4661 = vshrl.u32 %v4660, 7
        %v4662 = vsub.s32 %v4659, %v4661
        %v4663 = vrot.slane %v4655, %v4662
        %v4665 = vunpack.c.l.s4 1966171168
        %v4666 = vunpack.c.0.s8 %v4665
        %v4667 = vlaneseq
        %v4668 = vshrl.u32 %v4667, 7
        %v4669 = vsub.s32 %v4666, %v4668
        %v4670 = vrot.slane %v4656, %v4669
        %v4671 = vcombine.low %v4663, %v4670
        %v4673 = vunpack.c.l.s4 1966171168
        %v4674 = vunpack.c.0.s8 %v4673
        %v4675 = vlaneseq
        %v4676 = vshrl.u32 %v4675, 7
        %v4677 = vsub.s32 %v4674, %v4676
        %v4678 = vrot.slane %v4573, %v4677
        %v4680 = vunpack.c.l.s4 1966171168
        %v4681 = vunpack.c.0.s8 %v4680
        %v4682 = vlaneseq
        %v4683 = vshrl.u32 %v4682, 7
        %v4684 = vsub.s32 %v4681, %v4683
        %v4685 = vrot.slane %v4678, %v4684
        %v4687 = vsel %vm3423, %v4622, 0
        %v4690 = vsel %vm3423, %v4671, 0
        %v4693 = vsel %vm3423, %v4685, 0
        %vm4695 = vcmask 1043456
        %v4697 = vsel %vm4695, %v2963, 0
        %4699 = vmatprep.subr.bf16.mxu0 0
        %4700 = vmatpush1.bf16.msra.mxu0 0
        %4701 = vmatprep.subr.bf16.mxu0 0
        %4702 = vmatpush1.bf16.msra.mxu0 0
        %4703 = vmatprep.subr.bf16.mxu0 0
        %4704 = vmatpush1.bf16.msra.mxu0 0
        %4705 = vmatprep.subr.bf16.mxu0 0
        %4706 = vmatpush1.bf16.msra.mxu0 0
        %4707 = vmatprep.subr.bf16.mxu0 0
        %4708 = vmatpush1.bf16.msra.mxu0 0
        %4709 = vmatprep.subr.bf16.mxu0 0
        %4710 = vmatpush1.bf16.msra.mxu0 0
        %4711 = vmatprep.subr.bf16.mxu0 0
        %4712 = vmatpush1.bf16.msra.mxu0 0
        %4713 = vmatprep.subr.bf16.mxu0 0
        %4714 = vmatpush1.bf16.msra.mxu0 %v4697
        %4715 = vmatprep.subr.bf16.mxu0 0
        %4716 = vmatpush2.bf16.msra.mxu0 0
        %4717 = vmatprep.subr.bf16.mxu0 0
        %4718 = vmatpush2.bf16.msra.mxu0 0
        %4719 = vmatprep.subr.bf16.mxu0 0
        %4720 = vmatpush2.bf16.msra.mxu0 0
        %4721 = vmatprep.subr.bf16.mxu0 0
        %4722 = vmatpush2.bf16.msra.mxu0 0
        %4723 = vmatprep.subr.bf16.mxu0 0
        %4724 = vmatpush2.bf16.msra.mxu0 0
        %4725 = vmatprep.subr.bf16.mxu0 0
        %4726 = vmatpush2.bf16.msra.mxu0 0
        %4727 = vmatprep.subr.bf16.mxu0 0
        %4728 = vmatpush2.bf16.msra.mxu0 0
        %4729 = vmatprep.subr.bf16.mxu0 0
        %4730 = vmatpush2.bf16.msra.mxu0 0
        %4731 = vmatprep.mubr.bf16.mxu0 0
        %4732 = vmatmul.mubr.bf16.gmra.mxu0 %v4687
        %v4733 = vpop.f32.mrf.mxu0
        %v4734 = vadd.f32 0.0, %v4733
        %v4735 = vpop.f32.mrf.mxu0
        %v4736 = vpop.f32.mrf.mxu0
        %v4737 = vadd.f32 0.0, %v4736
        %v4738 = vpop.f32.mrf.mxu0
        %4739 = vmatprep.mubr.bf16.mxu0 0
        %4740 = vmatmul.mubr.bf16.gmra.mxu0 %v4690
        %v4741 = vpop.f32.mrf.mxu0
        %v4742 = vadd.f32 0.0, %v4741
        %v4743 = vpop.f32.mrf.mxu0
        %v4744 = vpop.f32.mrf.mxu0
        %v4745 = vadd.f32 0.0, %v4744
        %v4746 = vpop.f32.mrf.mxu0
        %4747 = vmatprep.mubr.bf16.mxu0 0
        %4748 = vmatmul.mubr.bf16.gmra.mxu0 %v4693
        %v4749 = vpop.f32.mrf.mxu0
        %v4750 = vadd.f32 0.0, %v4749
        %v4751 = vpop.f32.mrf.mxu0
        %v4752 = vpop.f32.mrf.mxu0
        %v4753 = vpop.f32.mrf.mxu0
        %4754 = vdwg.mxu0
        %v4755 = vpack.i.b16 %v4026, %v4025
        %v4756 = vpack.i.b16 %v4028, %v4027
        %v4757 = vpack.i.b16 %v4030, %v4029
        %v4758 = vpack.i.b16 %v4032, %v4031
        %v4759 = vpack.i.b16 %v4034, %v4033
        %v4760 = vpack.i.b16 %v4036, %v4035
        %v4761 = vpack.i.b16 %v4038, %v4037
        %v4762 = vpack.i.b16 %v4040, %v4039
        %v4763 = vpack.i.b16 %v4042, %v4041
        %v4764 = vpack.i.b16 %v4044, %v4043
        %v4765 = vpack.i.b16 %v4046, %v4045
        %v4766 = vpack.i.b16 %v4048, %v4047
        %v4767 = vpack.i.b16 %v4050, %v4049
        %v4768 = vpack.i.b16 %v4052, %v4051
        %v4769 = vpack.i.b16 %v4054, %v4053
        %v4770 = vpack.i.b16 %v4056, %v4055
        %v4771 = vpack.i.b16 %v4058, %v4057
        %v4772 = vcombine.low %v4755, %v4756
        %v4773 = vcombine.low %v4757, %v4758
        %v4774 = vcombine.low %v4759, %v4760
        %v4775 = vcombine.low %v4761, %v4762
        %v4777 = vunpack.c.l.s4 1966171168
        %v4778 = vunpack.c.0.s8 %v4777
        %v4779 = vlaneseq
        %v4780 = vshrl.u32 %v4779, 7
        %v4781 = vsub.s32 %v4778, %v4780
        %v4782 = vrot.slane %v4772, %v4781
        %v4784 = vunpack.c.l.s4 1966171168
        %v4785 = vunpack.c.0.s8 %v4784
        %v4786 = vlaneseq
        %v4787 = vshrl.u32 %v4786, 7
        %v4788 = vsub.s32 %v4785, %v4787
        %v4789 = vrot.slane %v4773, %v4788
        %v4791 = vunpack.c.l.s4 1966171168
        %v4792 = vunpack.c.0.s8 %v4791
        %v4793 = vlaneseq
        %v4794 = vshrl.u32 %v4793, 7
        %v4795 = vsub.s32 %v4792, %v4794
        %v4796 = vrot.slane %v4774, %v4795
        %v4798 = vunpack.c.l.s4 1966171168
        %v4799 = vunpack.c.0.s8 %v4798
        %v4800 = vlaneseq
        %v4801 = vshrl.u32 %v4800, 7
        %v4802 = vsub.s32 %v4799, %v4801
        %v4803 = vrot.slane %v4775, %v4802
        %v4804 = vcombine.low %v4782, %v4789
        %v4805 = vcombine.low %v4796, %v4803
        %v4807 = vunpack.c.l.s4 1966171168
        %v4808 = vunpack.c.0.s8 %v4807
        %v4809 = vlaneseq
        %v4810 = vshrl.u32 %v4809, 7
        %v4811 = vsub.s32 %v4808, %v4810
        %v4812 = vrot.slane %v4804, %v4811
        %v4814 = vunpack.c.l.s4 1966171168
        %v4815 = vunpack.c.0.s8 %v4814
        %v4816 = vlaneseq
        %v4817 = vshrl.u32 %v4816, 7
        %v4818 = vsub.s32 %v4815, %v4817
        %v4819 = vrot.slane %v4805, %v4818
        %v4820 = vcombine.low %v4812, %v4819
        %v4821 = vcombine.low %v4763, %v4764
        %v4822 = vcombine.low %v4765, %v4766
        %v4823 = vcombine.low %v4767, %v4768
        %v4824 = vcombine.low %v4769, %v4770
        %v4826 = vunpack.c.l.s4 1966171168
        %v4827 = vunpack.c.0.s8 %v4826
        %v4828 = vlaneseq
        %v4829 = vshrl.u32 %v4828, 7
        %v4830 = vsub.s32 %v4827, %v4829
        %v4831 = vrot.slane %v4821, %v4830
        %v4833 = vunpack.c.l.s4 1966171168
        %v4834 = vunpack.c.0.s8 %v4833
        %v4835 = vlaneseq
        %v4836 = vshrl.u32 %v4835, 7
        %v4837 = vsub.s32 %v4834, %v4836
        %v4838 = vrot.slane %v4822, %v4837
        %v4840 = vunpack.c.l.s4 1966171168
        %v4841 = vunpack.c.0.s8 %v4840
        %v4842 = vlaneseq
        %v4843 = vshrl.u32 %v4842, 7
        %v4844 = vsub.s32 %v4841, %v4843
        %v4845 = vrot.slane %v4823, %v4844
        %v4847 = vunpack.c.l.s4 1966171168
        %v4848 = vunpack.c.0.s8 %v4847
        %v4849 = vlaneseq
        %v4850 = vshrl.u32 %v4849, 7
        %v4851 = vsub.s32 %v4848, %v4850
        %v4852 = vrot.slane %v4824, %v4851
        %v4853 = vcombine.low %v4831, %v4838
        %v4854 = vcombine.low %v4845, %v4852
        %v4856 = vunpack.c.l.s4 1966171168
        %v4857 = vunpack.c.0.s8 %v4856
        %v4858 = vlaneseq
        %v4859 = vshrl.u32 %v4858, 7
        %v4860 = vsub.s32 %v4857, %v4859
        %v4861 = vrot.slane %v4853, %v4860
        %v4863 = vunpack.c.l.s4 1966171168
        %v4864 = vunpack.c.0.s8 %v4863
        %v4865 = vlaneseq
        %v4866 = vshrl.u32 %v4865, 7
        %v4867 = vsub.s32 %v4864, %v4866
        %v4868 = vrot.slane %v4854, %v4867
        %v4869 = vcombine.low %v4861, %v4868
        %v4871 = vunpack.c.l.s4 1966171168
        %v4872 = vunpack.c.0.s8 %v4871
        %v4873 = vlaneseq
        %v4874 = vshrl.u32 %v4873, 7
        %v4875 = vsub.s32 %v4872, %v4874
        %v4876 = vrot.slane %v4771, %v4875
        %v4878 = vunpack.c.l.s4 1966171168
        %v4879 = vunpack.c.0.s8 %v4878
        %v4880 = vlaneseq
        %v4881 = vshrl.u32 %v4880, 7
        %v4882 = vsub.s32 %v4879, %v4881
        %v4883 = vrot.slane %v4876, %v4882
        %v4885 = vsel %vm3423, %v4820, 0
        %v4888 = vsel %vm3423, %v4869, 0
        %v4891 = vsel %vm3423, %v4883, 0
        %v4894 = vsel %vm4695, %v2962, 0
        %4896 = vmatprep.subr.bf16.mxu0 0
        %4897 = vmatpush1.bf16.msra.mxu0 0
        %4898 = vmatprep.subr.bf16.mxu0 0
        %4899 = vmatpush1.bf16.msra.mxu0 0
        %4900 = vmatprep.subr.bf16.mxu0 0
        %4901 = vmatpush1.bf16.msra.mxu0 0
        %4902 = vmatprep.subr.bf16.mxu0 0
        %4903 = vmatpush1.bf16.msra.mxu0 0
        %4904 = vmatprep.subr.bf16.mxu0 0
        %4905 = vmatpush1.bf16.msra.mxu0 0
        %4906 = vmatprep.subr.bf16.mxu0 0
        %4907 = vmatpush1.bf16.msra.mxu0 0
        %4908 = vmatprep.subr.bf16.mxu0 0
        %4909 = vmatpush1.bf16.msra.mxu0 0
        %4910 = vmatprep.subr.bf16.mxu0 0
        %4911 = vmatpush1.bf16.msra.mxu0 %v4894
        %4912 = vmatprep.subr.bf16.mxu0 0
        %4913 = vmatpush2.bf16.msra.mxu0 0
        %4914 = vmatprep.subr.bf16.mxu0 0
        %4915 = vmatpush2.bf16.msra.mxu0 0
        %4916 = vmatprep.subr.bf16.mxu0 0
        %4917 = vmatpush2.bf16.msra.mxu0 0
        %4918 = vmatprep.subr.bf16.mxu0 0
        %4919 = vmatpush2.bf16.msra.mxu0 0
        %4920 = vmatprep.subr.bf16.mxu0 0
        %4921 = vmatpush2.bf16.msra.mxu0 0
        %4922 = vmatprep.subr.bf16.mxu0 0
        %4923 = vmatpush2.bf16.msra.mxu0 0
        %4924 = vmatprep.subr.bf16.mxu0 0
        %4925 = vmatpush2.bf16.msra.mxu0 0
        %4926 = vmatprep.subr.bf16.mxu0 0
        %4927 = vmatpush2.bf16.msra.mxu0 0
        %4928 = vmatprep.mubr.bf16.mxu0 0
        %4929 = vmatmul.mubr.bf16.gmra.mxu0 %v4885
        %v4930 = vpop.f32.mrf.mxu0
        %v4931 = vadd.f32 %v4734, %v4930
        %v4932 = vpop.f32.mrf.mxu0
        %v4933 = vpop.f32.mrf.mxu0
        %v4934 = vadd.f32 %v4737, %v4933
        %v4935 = vpop.f32.mrf.mxu0
        %4936 = vmatprep.mubr.bf16.mxu0 0
        %4937 = vmatmul.mubr.bf16.gmra.mxu0 %v4888
        %v4938 = vpop.f32.mrf.mxu0
        %v4939 = vadd.f32 %v4742, %v4938
        %v4940 = vpop.f32.mrf.mxu0
        %v4941 = vpop.f32.mrf.mxu0
        %v4942 = vadd.f32 %v4745, %v4941
        %v4943 = vpop.f32.mrf.mxu0
        %4944 = vmatprep.mubr.bf16.mxu0 0
        %4945 = vmatmul.mubr.bf16.gmra.mxu0 %v4891
        %v4946 = vpop.f32.mrf.mxu0
        %v4947 = vadd.f32 %v4750, %v4946
        %v4948 = vpop.f32.mrf.mxu0
        %v4949 = vpop.f32.mrf.mxu0
        %v4950 = vpop.f32.mrf.mxu0
        %4951 = vdwg.mxu0
        %4952 = vrot.lane.b32.xlu0 %v3332, 112
        %v4953 = vpop.permute.xlu0 %4952
        %4954 = vrot.lane.b32.xlu0 %v3346, 112
        %v4955 = vpop.permute.xlu0 %4954
        %4956 = vrot.lane.b32.xlu0 %v3404, 80
        %v4957 = vpop.permute.xlu0 %4956
        %4958 = vrot.lane.b32.xlu0 %v3418, 80
        %v4959 = vpop.permute.xlu0 %4958
        %v4961 = vsel %vm3423, %v4953, 0
        %v4964 = vsel %vm3423, %v4955, 0
        %v4967 = vsel %vm3423, %v4957, 0
        %v4970 = vsel %vm3423, %v4959, 0
        %4972 = vmatprep.subr.bf16.mxu0 0
        %4973 = vmatpush1.bf16.xpose.msra.mxu0 0
        %4974 = vmatprep.subr.bf16.mxu0 0
        %4975 = vmatpush1.bf16.xpose.msra.mxu0 0
        %4976 = vmatprep.subr.bf16.mxu0 0
        %4977 = vmatpush1.bf16.xpose.msra.mxu0 0
        %4978 = vmatprep.subr.bf16.mxu0 0
        %4979 = vmatpush1.bf16.xpose.msra.mxu0 0
        %4980 = vmatprep.subr.bf16.mxu0 0
        %4981 = vmatpush1.bf16.xpose.msra.mxu0 0
        %4982 = vmatprep.subr.bf16.mxu0 0
        %4983 = vmatpush1.bf16.xpose.msra.mxu0 0
        %4984 = vmatprep.subr.bf16.mxu0 0
        %4985 = vmatpush1.bf16.xpose.msra.mxu0 %v4970
        %4986 = vmatprep.subr.bf16.mxu0 0
        %4987 = vmatpush1.bf16.xpose.msra.mxu0 %v4967
        %4988 = vmatprep.subr.bf16.mxu0 0
        %4989 = vmatpush2.bf16.xpose.msra.mxu0 0
        %4990 = vmatprep.subr.bf16.mxu0 0
        %4991 = vmatpush2.bf16.xpose.msra.mxu0 0
        %4992 = vmatprep.subr.bf16.mxu0 0
        %4993 = vmatpush2.bf16.xpose.msra.mxu0 0
        %4994 = vmatprep.subr.bf16.mxu0 0
        %4995 = vmatpush2.bf16.xpose.msra.mxu0 0
        %4996 = vmatprep.subr.bf16.mxu0 0
        %4997 = vmatpush2.bf16.xpose.msra.mxu0 0
        %4998 = vmatprep.subr.bf16.mxu0 0
        %4999 = vmatpush2.bf16.xpose.msra.mxu0 0
        %5000 = vmatprep.subr.bf16.mxu0 0
        %5001 = vmatpush2.bf16.xpose.msra.mxu0 0
        %5002 = vmatprep.subr.bf16.mxu0 0
        %5003 = vmatpush2.bf16.xpose.msra.mxu0 0
        %5004 = vmatprep.mubr.bf16.mxu0 0
        %5005 = vmatmul.mubr.bf16.gmra.mxu0 %v4961
        %v5006 = vpop.f32.mrf.mxu0
        %v5007 = vadd.f32 0.0, %v5006
        %v5008 = vpop.f32.mrf.mxu0
        %v5009 = vpop.f32.mrf.mxu0
        %v5010 = vadd.f32 0.0, %v5009
        %v5011 = vpop.f32.mrf.mxu0
        %5012 = vmatprep.mubr.bf16.mxu0 0
        %5013 = vmatmul.mubr.bf16.gmra.mxu0 %v4964
        %v5014 = vpop.f32.mrf.mxu0
        %v5015 = vadd.f32 0.0, %v5014
        %v5016 = vpop.f32.mrf.mxu0
        %v5017 = vpop.f32.mrf.mxu0
        %v5018 = vpop.f32.mrf.mxu0
        %5019 = vdwg.mxu0
        %5020 = vrot.lane.b32.xlu0 %v3541, 112
        %v5021 = vpop.permute.xlu0 %5020
        %5022 = vrot.lane.b32.xlu0 %v3555, 112
        %v5023 = vpop.permute.xlu0 %5022
        %5024 = vrot.lane.b32.xlu0 %v3613, 80
        %v5025 = vpop.permute.xlu0 %5024
        %5026 = vrot.lane.b32.xlu0 %v3627, 80
        %v5027 = vpop.permute.xlu0 %5026
        %v5029 = vsel %vm3423, %v5021, 0
        %v5032 = vsel %vm3423, %v5023, 0
        %v5035 = vsel %vm3423, %v5025, 0
        %v5038 = vsel %vm3423, %v5027, 0
        %5040 = vmatprep.subr.bf16.mxu0 0
        %5041 = vmatpush1.bf16.xpose.msra.mxu0 0
        %5042 = vmatprep.subr.bf16.mxu0 0
        %5043 = vmatpush1.bf16.xpose.msra.mxu0 0
        %5044 = vmatprep.subr.bf16.mxu0 0
        %5045 = vmatpush1.bf16.xpose.msra.mxu0 0
        %5046 = vmatprep.subr.bf16.mxu0 0
        %5047 = vmatpush1.bf16.xpose.msra.mxu0 0
        %5048 = vmatprep.subr.bf16.mxu0 0
        %5049 = vmatpush1.bf16.xpose.msra.mxu0 0
        %5050 = vmatprep.subr.bf16.mxu0 0
        %5051 = vmatpush1.bf16.xpose.msra.mxu0 0
        %5052 = vmatprep.subr.bf16.mxu0 0
        %5053 = vmatpush1.bf16.xpose.msra.mxu0 %v5038
        %5054 = vmatprep.subr.bf16.mxu0 0
        %5055 = vmatpush1.bf16.xpose.msra.mxu0 %v5035
        %5056 = vmatprep.subr.bf16.mxu0 0
        %5057 = vmatpush2.bf16.xpose.msra.mxu0 0
        %5058 = vmatprep.subr.bf16.mxu0 0
        %5059 = vmatpush2.bf16.xpose.msra.mxu0 0
        %5060 = vmatprep.subr.bf16.mxu0 0
        %5061 = vmatpush2.bf16.xpose.msra.mxu0 0
        %5062 = vmatprep.subr.bf16.mxu0 0
        %5063 = vmatpush2.bf16.xpose.msra.mxu0 0
        %5064 = vmatprep.subr.bf16.mxu0 0
        %5065 = vmatpush2.bf16.xpose.msra.mxu0 0
        %5066 = vmatprep.subr.bf16.mxu0 0
        %5067 = vmatpush2.bf16.xpose.msra.mxu0 0
        %5068 = vmatprep.subr.bf16.mxu0 0
        %5069 = vmatpush2.bf16.xpose.msra.mxu0 0
        %5070 = vmatprep.subr.bf16.mxu0 0
        %5071 = vmatpush2.bf16.xpose.msra.mxu0 0
        %5072 = vmatprep.mubr.bf16.mxu0 0
        %5073 = vmatmul.mubr.bf16.gmra.mxu0 %v5029
        %v5074 = vpop.f32.mrf.mxu0
        %v5075 = vadd.f32 0.0, %v5074
        %v5076 = vpop.f32.mrf.mxu0
        %v5077 = vpop.f32.mrf.mxu0
        %v5078 = vadd.f32 0.0, %v5077
        %v5079 = vpop.f32.mrf.mxu0
        %5080 = vmatprep.mubr.bf16.mxu0 0
        %5081 = vmatmul.mubr.bf16.gmra.mxu0 %v5032
        %v5082 = vpop.f32.mrf.mxu0
        %v5083 = vadd.f32 0.0, %v5082
        %v5084 = vpop.f32.mrf.mxu0
        %v5085 = vpop.f32.mrf.mxu0
        %v5086 = vpop.f32.mrf.mxu0
        %5087 = vdwg.mxu0
        %v5088 = vsel %vm3692, %v5007, -inf
        %5089 = vmax.xlane.f32.xlu0 %v5088
        %v5090 = vpop.xlane.xlu0 %5089
        %v5091 = vsel %vm3692, %v5010, -inf
        %5092 = vmax.xlane.f32.xlu0 %v5091
        %v5093 = vpop.xlane.xlu0 %5092
        %v5094 = vsel %vm3699, %v5015, -inf
        %5095 = vmax.xlane.f32.xlu0 %v5094
        %v5096 = vpop.xlane.xlu0 %5095
        %v5097 = vsel %vm3692, %v5075, -inf
        %5098 = vmax.xlane.f32.xlu0 %v5097
        %v5099 = vpop.xlane.xlu0 %5098
        %v5100 = vsel %vm3692, %v5078, -inf
        %5101 = vmax.xlane.f32.xlu0 %v5100
        %v5102 = vpop.xlane.xlu0 %5101
        %v5103 = vsel %vm3699, %v5083, -inf
        %5104 = vmax.xlane.f32.xlu0 %v5103
        %v5105 = vpop.xlane.xlu0 %5104
        %v5106 = vsub.f32 %v5007, %v5090
        %v5107 = vsub.f32 %v5010, %v5093
        %v5108 = vsub.f32 %v5015, %v5096
        %v5109 = vsub.f32 %v5075, %v5099
        %v5110 = vsub.f32 %v5078, %v5102
        %v5111 = vsub.f32 %v5083, %v5105
        %v5112 = vmul.f32 %v5106, 1.442695
        %v5113 = vpow.pop %v5112
        %v5114 = vmul.f32 %v5107, 1.442695
        %v5115 = vpow.pop %v5114
        %v5116 = vmul.f32 %v5108, 1.442695
        %v5117 = vpow.pop %v5116
        %v5118 = vmul.f32 %v5109, 1.442695
        %v5119 = vpow.pop %v5118
        %v5120 = vmul.f32 %v5110, 1.442695
        %v5121 = vpow.pop %v5120
        %v5122 = vmul.f32 %v5111, 1.442695
        %v5123 = vpow.pop %v5122
        %v5124 = vsel %vm3692, %v5113, 0.0
        %5125 = vadd.xlane.f32.xlu0 %v5124
        %v5126 = vpop.xlane.xlu0 %5125
        %v5127 = vsel %vm3692, %v5115, 0.0
        %5128 = vadd.xlane.f32.xlu0 %v5127
        %v5129 = vpop.xlane.xlu0 %5128
        %v5130 = vsel %vm3699, %v5117, 0.0
        %5131 = vadd.xlane.f32.xlu0 %v5130
        %v5132 = vpop.xlane.xlu0 %5131
        %v5133 = vsel %vm3692, %v5119, 0.0
        %5134 = vadd.xlane.f32.xlu0 %v5133
        %v5135 = vpop.xlane.xlu0 %5134
        %v5136 = vsel %vm3692, %v5121, 0.0
        %5137 = vadd.xlane.f32.xlu0 %v5136
        %v5138 = vpop.xlane.xlu0 %5137
        %v5139 = vsel %vm3699, %v5123, 0.0
        %5140 = vadd.xlane.f32.xlu0 %v5139
        %v5141 = vpop.xlane.xlu0 %5140
        %v5142 = vpack.c.bf16 %v5115, %v5113
        %v5143 = vpack.c.bf16 %v5117, %v5117
        %v5144 = vpack.c.bf16 %v5121, %v5119
        %v5145 = vpack.c.bf16 %v5123, %v5123
        %5146 = vrot.lane.b32.xlu0 %v3404, 48
        %v5147 = vpop.permute.xlu0 %5146
        %5148 = vrot.lane.b32.xlu0 %v3418, 48
        %v5149 = vpop.permute.xlu0 %5148
        %v5152 = vsel %vm3692, %v5142, 0
        %v5155 = vsel %vm3692, %v5143, 0
        %v5158 = vand.u32 %v5149, %v3765
        %5160 = vmatprep.subr.bf16.mxu0 0
        %5161 = vmatpush1.bf16.msra.mxu0 0
        %5162 = vmatprep.subr.bf16.mxu0 0
        %5163 = vmatpush1.bf16.msra.mxu0 0
        %5164 = vmatprep.subr.bf16.mxu0 0
        %5165 = vmatpush1.bf16.msra.mxu0 0
        %5166 = vmatprep.subr.bf16.mxu0 0
        %5167 = vmatpush1.bf16.msra.mxu0 0
        %5168 = vmatprep.subr.bf16.mxu0 0
        %5169 = vmatpush1.bf16.msra.mxu0 0
        %5170 = vmatprep.subr.bf16.mxu0 0
        %5171 = vmatpush1.bf16.msra.mxu0 0
        %5172 = vmatprep.subr.bf16.mxu0 0
        %5173 = vmatpush1.bf16.msra.mxu0 %v5158
        %5174 = vmatprep.subr.bf16.mxu0 0
        %5175 = vmatpush1.bf16.msra.mxu0 %v5147
        %5176 = vmatprep.subr.bf16.mxu0 0
        %5177 = vmatpush2.bf16.msra.mxu0 0
        %5178 = vmatprep.subr.bf16.mxu0 0
        %5179 = vmatpush2.bf16.msra.mxu0 0
        %5180 = vmatprep.subr.bf16.mxu0 0
        %5181 = vmatpush2.bf16.msra.mxu0 0
        %5182 = vmatprep.subr.bf16.mxu0 0
        %5183 = vmatpush2.bf16.msra.mxu0 0
        %5184 = vmatprep.subr.bf16.mxu0 0
        %5185 = vmatpush2.bf16.msra.mxu0 0
        %5186 = vmatprep.subr.bf16.mxu0 0
        %5187 = vmatpush2.bf16.msra.mxu0 0
        %5188 = vmatprep.subr.bf16.mxu0 0
        %5189 = vmatpush2.bf16.msra.mxu0 0
        %5190 = vmatprep.subr.bf16.mxu0 0
        %5191 = vmatpush2.bf16.msra.mxu0 0
        %5192 = vmatprep.mubr.bf16.mxu0 0
        %5193 = vmatmul.mubr.bf16.gmra.mxu0 %v5152
        %v5194 = vpop.f32.mrf.mxu0
        %v5195 = vadd.f32 0.0, %v5194
        %v5196 = vpop.f32.mrf.mxu0
        %v5197 = vpop.f32.mrf.mxu0
        %v5198 = vadd.f32 0.0, %v5197
        %v5199 = vpop.f32.mrf.mxu0
        %5200 = vmatprep.mubr.bf16.mxu0 0
        %5201 = vmatmul.mubr.bf16.gmra.mxu0 %v5155
        %v5202 = vpop.f32.mrf.mxu0
        %v5203 = vadd.f32 0.0, %v5202
        %v5204 = vpop.f32.mrf.mxu0
        %v5205 = vpop.f32.mrf.mxu0
        %v5206 = vpop.f32.mrf.mxu0
        %5207 = vdwg.mxu0
        %5208 = vrot.lane.b32.xlu0 %v3613, 48
        %v5209 = vpop.permute.xlu0 %5208
        %5210 = vrot.lane.b32.xlu0 %v3627, 48
        %v5211 = vpop.permute.xlu0 %5210
        %v5214 = vsel %vm3692, %v5144, 0
        %v5217 = vsel %vm3692, %v5145, 0
        %v5220 = vand.u32 %v5211, %v3765
        %5222 = vmatprep.subr.bf16.mxu0 0
        %5223 = vmatpush1.bf16.msra.mxu0 0
        %5224 = vmatprep.subr.bf16.mxu0 0
        %5225 = vmatpush1.bf16.msra.mxu0 0
        %5226 = vmatprep.subr.bf16.mxu0 0
        %5227 = vmatpush1.bf16.msra.mxu0 0
        %5228 = vmatprep.subr.bf16.mxu0 0
        %5229 = vmatpush1.bf16.msra.mxu0 0
        %5230 = vmatprep.subr.bf16.mxu0 0
        %5231 = vmatpush1.bf16.msra.mxu0 0
        %5232 = vmatprep.subr.bf16.mxu0 0
        %5233 = vmatpush1.bf16.msra.mxu0 0
        %5234 = vmatprep.subr.bf16.mxu0 0
        %5235 = vmatpush1.bf16.msra.mxu0 %v5220
        %5236 = vmatprep.subr.bf16.mxu0 0
        %5237 = vmatpush1.bf16.msra.mxu0 %v5209
        %5238 = vmatprep.subr.bf16.mxu0 0
        %5239 = vmatpush2.bf16.msra.mxu0 0
        %5240 = vmatprep.subr.bf16.mxu0 0
        %5241 = vmatpush2.bf16.msra.mxu0 0
        %5242 = vmatprep.subr.bf16.mxu0 0
        %5243 = vmatpush2.bf16.msra.mxu0 0
        %5244 = vmatprep.subr.bf16.mxu0 0
        %5245 = vmatpush2.bf16.msra.mxu0 0
        %5246 = vmatprep.subr.bf16.mxu0 0
        %5247 = vmatpush2.bf16.msra.mxu0 0
        %5248 = vmatprep.subr.bf16.mxu0 0
        %5249 = vmatpush2.bf16.msra.mxu0 0
        %5250 = vmatprep.subr.bf16.mxu0 0
        %5251 = vmatpush2.bf16.msra.mxu0 0
        %5252 = vmatprep.subr.bf16.mxu0 0
        %5253 = vmatpush2.bf16.msra.mxu0 0
        %5254 = vmatprep.mubr.bf16.mxu0 0
        %5255 = vmatmul.mubr.bf16.gmra.mxu0 %v5214
        %v5256 = vpop.f32.mrf.mxu0
        %v5257 = vadd.f32 0.0, %v5256
        %v5258 = vpop.f32.mrf.mxu0
        %v5259 = vpop.f32.mrf.mxu0
        %v5260 = vadd.f32 0.0, %v5259
        %v5261 = vpop.f32.mrf.mxu0
        %5262 = vmatprep.mubr.bf16.mxu0 0
        %5263 = vmatmul.mubr.bf16.gmra.mxu0 %v5217
        %v5264 = vpop.f32.mrf.mxu0
        %v5265 = vadd.f32 0.0, %v5264
        %v5266 = vpop.f32.mrf.mxu0
        %v5267 = vpop.f32.mrf.mxu0
        %v5268 = vpop.f32.mrf.mxu0
        %5269 = vdwg.mxu0
        %v5270 = vrcp.pop %v5126
        %v5271 = vrcp.pop %v5129
        %v5272 = vrcp.pop %v5132
        %v5273 = vrcp.pop %v5135
        %v5274 = vrcp.pop %v5138
        %v5275 = vrcp.pop %v5141
        %v5276 = vmul.f32 %v5195, %v5270
        %v5277 = vmul.f32 %v5198, %v5271
        %v5278 = vmul.f32 %v5203, %v5272
        %v5279 = vmul.f32 %v5257, %v5273
        %v5280 = vmul.f32 %v5260, %v5274
        %v5281 = vmul.f32 %v5265, %v5275
        %v5282 = vpack.c.bf16 %v5277, %v5276
        %v5283 = vpack.c.bf16 %v5278, %v5278
        %v5284 = vpack.c.bf16 %v5280, %v5279
        %v5285 = vpack.c.bf16 %v5281, %v5281
        %v5290 = vcombine.high %v5282, %v5282
        %v5292 = vunpack.c.l.s4 1966171168
        %v5293 = vunpack.c.0.s8 %v5292
        %v5294 = vlaneseq
        %v5295 = vshrl.u32 %v5294, 7
        %v5296 = vsub.s32 %v5293, %v5295
        %v5297 = vrot.slane %v5282, %v5296
        %v5299 = vunpack.c.l.s4 1966171168
        %v5300 = vunpack.c.0.s8 %v5299
        %v5301 = vlaneseq
        %v5302 = vshrl.u32 %v5301, 7
        %v5303 = vsub.s32 %v5300, %v5302
        %v5304 = vrot.slane %v5290, %v5303
        %v5305 = vcombine.high %v5297, %v5297
        %v5306 = vcombine.high %v5304, %v5304
        %v5308 = vunpack.c.l.s4 1966171168
        %v5309 = vunpack.c.0.s8 %v5308
        %v5310 = vlaneseq
        %v5311 = vshrl.u32 %v5310, 7
        %v5312 = vsub.s32 %v5309, %v5311
        %v5313 = vrot.slane %v5297, %v5312
        %v5315 = vunpack.c.l.s4 1966171168
        %v5316 = vunpack.c.0.s8 %v5315
        %v5317 = vlaneseq
        %v5318 = vshrl.u32 %v5317, 7
        %v5319 = vsub.s32 %v5316, %v5318
        %v5320 = vrot.slane %v5304, %v5319
        %v5322 = vunpack.c.l.s4 1966171168
        %v5323 = vunpack.c.0.s8 %v5322
        %v5324 = vlaneseq
        %v5325 = vshrl.u32 %v5324, 7
        %v5326 = vsub.s32 %v5323, %v5325
        %v5327 = vrot.slane %v5305, %v5326
        %v5329 = vunpack.c.l.s4 1966171168
        %v5330 = vunpack.c.0.s8 %v5329
        %v5331 = vlaneseq
        %v5332 = vshrl.u32 %v5331, 7
        %v5333 = vsub.s32 %v5330, %v5332
        %v5334 = vrot.slane %v5306, %v5333
        %v5335 = vcombine.high %v5313, %v5313
        %v5336 = vcombine.high %v5320, %v5320
        %v5337 = vcombine.high %v5327, %v5327
        %v5338 = vcombine.high %v5334, %v5334
        %v5340 = vunpack.c.l.s4 1966171168
        %v5341 = vunpack.c.0.s8 %v5340
        %v5342 = vlaneseq
        %v5343 = vshrl.u32 %v5342, 7
        %v5344 = vsub.s32 %v5341, %v5343
        %v5345 = vrot.slane %v5283, %v5344
        %v5347 = vunpack.c.l.s4 1966171168
        %v5348 = vunpack.c.0.s8 %v5347
        %v5349 = vlaneseq
        %v5350 = vshrl.u32 %v5349, 7
        %v5351 = vsub.s32 %v5348, %v5350
        %v5352 = vrot.slane %v5345, %v5351
        %v5353 = vcombine.high %v5284, %v5284
        %v5355 = vunpack.c.l.s4 1966171168
        %v5356 = vunpack.c.0.s8 %v5355
        %v5357 = vlaneseq
        %v5358 = vshrl.u32 %v5357, 7
        %v5359 = vsub.s32 %v5356, %v5358
        %v5360 = vrot.slane %v5284, %v5359
        %v5362 = vunpack.c.l.s4 1966171168
        %v5363 = vunpack.c.0.s8 %v5362
        %v5364 = vlaneseq
        %v5365 = vshrl.u32 %v5364, 7
        %v5366 = vsub.s32 %v5363, %v5365
        %v5367 = vrot.slane %v5353, %v5366
        %v5368 = vcombine.high %v5360, %v5360
        %v5369 = vcombine.high %v5367, %v5367
        %v5371 = vunpack.c.l.s4 1966171168
        %v5372 = vunpack.c.0.s8 %v5371
        %v5373 = vlaneseq
        %v5374 = vshrl.u32 %v5373, 7
        %v5375 = vsub.s32 %v5372, %v5374
        %v5376 = vrot.slane %v5360, %v5375
        %v5378 = vunpack.c.l.s4 1966171168
        %v5379 = vunpack.c.0.s8 %v5378
        %v5380 = vlaneseq
        %v5381 = vshrl.u32 %v5380, 7
        %v5382 = vsub.s32 %v5379, %v5381
        %v5383 = vrot.slane %v5367, %v5382
        %v5385 = vunpack.c.l.s4 1966171168
        %v5386 = vunpack.c.0.s8 %v5385
        %v5387 = vlaneseq
        %v5388 = vshrl.u32 %v5387, 7
        %v5389 = vsub.s32 %v5386, %v5388
        %v5390 = vrot.slane %v5368, %v5389
        %v5392 = vunpack.c.l.s4 1966171168
        %v5393 = vunpack.c.0.s8 %v5392
        %v5394 = vlaneseq
        %v5395 = vshrl.u32 %v5394, 7
        %v5396 = vsub.s32 %v5393, %v5395
        %v5397 = vrot.slane %v5369, %v5396
        %v5398 = vcombine.high %v5376, %v5376
        %v5399 = vcombine.high %v5383, %v5383
        %v5400 = vcombine.high %v5390, %v5390
        %v5401 = vcombine.high %v5397, %v5397
        %v5403 = vunpack.c.l.s4 1966171168
        %v5404 = vunpack.c.0.s8 %v5403
        %v5405 = vlaneseq
        %v5406 = vshrl.u32 %v5405, 7
        %v5407 = vsub.s32 %v5404, %v5406
        %v5408 = vrot.slane %v5285, %v5407
        %v5410 = vunpack.c.l.s4 1966171168
        %v5411 = vunpack.c.0.s8 %v5410
        %v5412 = vlaneseq
        %v5413 = vshrl.u32 %v5412, 7
        %v5414 = vsub.s32 %v5411, %v5413
        %v5415 = vrot.slane %v5408, %v5414
        %v5416 = vunpack.i.l.s16 %v5313
        %v5417 = vunpack.i.h.s16 %v5313
        %v5418 = vunpack.i.l.s16 %v5327
        %v5419 = vunpack.i.h.s16 %v5327
        %v5420 = vunpack.i.l.s16 %v5335
        %v5421 = vunpack.i.h.s16 %v5335
        %v5422 = vunpack.i.l.s16 %v5337
        %v5423 = vunpack.i.h.s16 %v5337
        %v5424 = vunpack.i.l.s16 %v5320
        %v5425 = vunpack.i.h.s16 %v5320
        %v5426 = vunpack.i.l.s16 %v5334
        %v5427 = vunpack.i.h.s16 %v5334
        %v5428 = vunpack.i.l.s16 %v5336
        %v5429 = vunpack.i.h.s16 %v5336
        %v5430 = vunpack.i.l.s16 %v5338
        %v5431 = vunpack.i.h.s16 %v5338
        %v5432 = vunpack.i.l.s16 %v5352
        %v5433 = vunpack.i.l.s16 %v5376
        %v5434 = vunpack.i.h.s16 %v5376
        %v5435 = vunpack.i.l.s16 %v5390
        %v5436 = vunpack.i.h.s16 %v5390
        %v5437 = vunpack.i.l.s16 %v5398
        %v5438 = vunpack.i.h.s16 %v5398
        %v5439 = vunpack.i.l.s16 %v5400
        %v5440 = vunpack.i.h.s16 %v5400
        %v5441 = vunpack.i.l.s16 %v5383
        %v5442 = vunpack.i.h.s16 %v5383
        %v5443 = vunpack.i.l.s16 %v5397
        %v5444 = vunpack.i.h.s16 %v5397
        %v5445 = vunpack.i.l.s16 %v5399
        %v5446 = vunpack.i.h.s16 %v5399
        %v5447 = vunpack.i.l.s16 %v5401
        %v5448 = vunpack.i.h.s16 %v5401
        %v5449 = vunpack.i.l.s16 %v5415
        %v5450 = vpack.i.b16 %v5417, %v5416
        %v5451 = vpack.i.b16 %v5419, %v5418
        %v5452 = vpack.i.b16 %v5421, %v5420
        %v5453 = vpack.i.b16 %v5423, %v5422
        %v5454 = vpack.i.b16 %v5425, %v5424
        %v5455 = vpack.i.b16 %v5427, %v5426
        %v5456 = vpack.i.b16 %v5429, %v5428
        %v5457 = vpack.i.b16 %v5431, %v5430
        %v5458 = vpack.i.b16 %v5433, %v5432
        %v5459 = vpack.i.b16 %v5435, %v5434
        %v5460 = vpack.i.b16 %v5437, %v5436
        %v5461 = vpack.i.b16 %v5439, %v5438
        %v5462 = vpack.i.b16 %v5441, %v5440
        %v5463 = vpack.i.b16 %v5443, %v5442
        %v5464 = vpack.i.b16 %v5445, %v5444
        %v5465 = vpack.i.b16 %v5447, %v5446
        %v5466 = vpack.i.b16 %v5449, %v5448
        %v5467 = vcombine.low %v5450, %v5451
        %v5468 = vcombine.low %v5452, %v5453
        %v5469 = vcombine.low %v5454, %v5455
        %v5470 = vcombine.low %v5456, %v5457
        %v5472 = vunpack.c.l.s4 1966171168
        %v5473 = vunpack.c.0.s8 %v5472
        %v5474 = vlaneseq
        %v5475 = vshrl.u32 %v5474, 7
        %v5476 = vsub.s32 %v5473, %v5475
        %v5477 = vrot.slane %v5467, %v5476
        %v5479 = vunpack.c.l.s4 1966171168
        %v5480 = vunpack.c.0.s8 %v5479
        %v5481 = vlaneseq
        %v5482 = vshrl.u32 %v5481, 7
        %v5483 = vsub.s32 %v5480, %v5482
        %v5484 = vrot.slane %v5468, %v5483
        %v5486 = vunpack.c.l.s4 1966171168
        %v5487 = vunpack.c.0.s8 %v5486
        %v5488 = vlaneseq
        %v5489 = vshrl.u32 %v5488, 7
        %v5490 = vsub.s32 %v5487, %v5489
        %v5491 = vrot.slane %v5469, %v5490
        %v5493 = vunpack.c.l.s4 1966171168
        %v5494 = vunpack.c.0.s8 %v5493
        %v5495 = vlaneseq
        %v5496 = vshrl.u32 %v5495, 7
        %v5497 = vsub.s32 %v5494, %v5496
        %v5498 = vrot.slane %v5470, %v5497
        %v5499 = vcombine.low %v5477, %v5484
        %v5500 = vcombine.low %v5491, %v5498
        %v5502 = vunpack.c.l.s4 1966171168
        %v5503 = vunpack.c.0.s8 %v5502
        %v5504 = vlaneseq
        %v5505 = vshrl.u32 %v5504, 7
        %v5506 = vsub.s32 %v5503, %v5505
        %v5507 = vrot.slane %v5499, %v5506
        %v5509 = vunpack.c.l.s4 1966171168
        %v5510 = vunpack.c.0.s8 %v5509
        %v5511 = vlaneseq
        %v5512 = vshrl.u32 %v5511, 7
        %v5513 = vsub.s32 %v5510, %v5512
        %v5514 = vrot.slane %v5500, %v5513
        %v5515 = vcombine.low %v5507, %v5514
        %v5516 = vcombine.low %v5458, %v5459
        %v5517 = vcombine.low %v5460, %v5461
        %v5518 = vcombine.low %v5462, %v5463
        %v5519 = vcombine.low %v5464, %v5465
        %v5521 = vunpack.c.l.s4 1966171168
        %v5522 = vunpack.c.0.s8 %v5521
        %v5523 = vlaneseq
        %v5524 = vshrl.u32 %v5523, 7
        %v5525 = vsub.s32 %v5522, %v5524
        %v5526 = vrot.slane %v5516, %v5525
        %v5528 = vunpack.c.l.s4 1966171168
        %v5529 = vunpack.c.0.s8 %v5528
        %v5530 = vlaneseq
        %v5531 = vshrl.u32 %v5530, 7
        %v5532 = vsub.s32 %v5529, %v5531
        %v5533 = vrot.slane %v5517, %v5532
        %v5535 = vunpack.c.l.s4 1966171168
        %v5536 = vunpack.c.0.s8 %v5535
        %v5537 = vlaneseq
        %v5538 = vshrl.u32 %v5537, 7
        %v5539 = vsub.s32 %v5536, %v5538
        %v5540 = vrot.slane %v5518, %v5539
        %v5542 = vunpack.c.l.s4 1966171168
        %v5543 = vunpack.c.0.s8 %v5542
        %v5544 = vlaneseq
        %v5545 = vshrl.u32 %v5544, 7
        %v5546 = vsub.s32 %v5543, %v5545
        %v5547 = vrot.slane %v5519, %v5546
        %v5548 = vcombine.low %v5526, %v5533
        %v5549 = vcombine.low %v5540, %v5547
        %v5551 = vunpack.c.l.s4 1966171168
        %v5552 = vunpack.c.0.s8 %v5551
        %v5553 = vlaneseq
        %v5554 = vshrl.u32 %v5553, 7
        %v5555 = vsub.s32 %v5552, %v5554
        %v5556 = vrot.slane %v5548, %v5555
        %v5558 = vunpack.c.l.s4 1966171168
        %v5559 = vunpack.c.0.s8 %v5558
        %v5560 = vlaneseq
        %v5561 = vshrl.u32 %v5560, 7
        %v5562 = vsub.s32 %v5559, %v5561
        %v5563 = vrot.slane %v5549, %v5562
        %v5564 = vcombine.low %v5556, %v5563
        %v5566 = vunpack.c.l.s4 1966171168
        %v5567 = vunpack.c.0.s8 %v5566
        %v5568 = vlaneseq
        %v5569 = vshrl.u32 %v5568, 7
        %v5570 = vsub.s32 %v5567, %v5569
        %v5571 = vrot.slane %v5466, %v5570
        %v5573 = vunpack.c.l.s4 1966171168
        %v5574 = vunpack.c.0.s8 %v5573
        %v5575 = vlaneseq
        %v5576 = vshrl.u32 %v5575, 7
        %v5577 = vsub.s32 %v5574, %v5576
        %v5578 = vrot.slane %v5571, %v5577
        %v5580 = vsel %vm3423, %v5515, 0
        %v5583 = vsel %vm3423, %v5564, 0
        %v5586 = vsel %vm3423, %v5578, 0
        %v5589 = vsel %vm4695, %v2964, 0
        %5591 = vmatprep.subr.bf16.mxu0 0
        %5592 = vmatpush1.bf16.msra.mxu0 0
        %5593 = vmatprep.subr.bf16.mxu0 0
        %5594 = vmatpush1.bf16.msra.mxu0 0
        %5595 = vmatprep.subr.bf16.mxu0 0
        %5596 = vmatpush1.bf16.msra.mxu0 0
        %5597 = vmatprep.subr.bf16.mxu0 0
        %5598 = vmatpush1.bf16.msra.mxu0 0
        %5599 = vmatprep.subr.bf16.mxu0 0
        %5600 = vmatpush1.bf16.msra.mxu0 0
        %5601 = vmatprep.subr.bf16.mxu0 0
        %5602 = vmatpush1.bf16.msra.mxu0 0
        %5603 = vmatprep.subr.bf16.mxu0 0
        %5604 = vmatpush1.bf16.msra.mxu0 0
        %5605 = vmatprep.subr.bf16.mxu0 0
        %5606 = vmatpush1.bf16.msra.mxu0 %v5589
        %5607 = vmatprep.subr.bf16.mxu0 0
        %5608 = vmatpush2.bf16.msra.mxu0 0
        %5609 = vmatprep.subr.bf16.mxu0 0
        %5610 = vmatpush2.bf16.msra.mxu0 0
        %5611 = vmatprep.subr.bf16.mxu0 0
        %5612 = vmatpush2.bf16.msra.mxu0 0
        %5613 = vmatprep.subr.bf16.mxu0 0
        %5614 = vmatpush2.bf16.msra.mxu0 0
        %5615 = vmatprep.subr.bf16.mxu0 0
        %5616 = vmatpush2.bf16.msra.mxu0 0
        %5617 = vmatprep.subr.bf16.mxu0 0
        %5618 = vmatpush2.bf16.msra.mxu0 0
        %5619 = vmatprep.subr.bf16.mxu0 0
        %5620 = vmatpush2.bf16.msra.mxu0 0
        %5621 = vmatprep.subr.bf16.mxu0 0
        %5622 = vmatpush2.bf16.msra.mxu0 0
        %5623 = vmatprep.mubr.bf16.mxu0 0
        %5624 = vmatmul.mubr.bf16.gmra.mxu0 %v5580
        %v5625 = vpop.f32.mrf.mxu0
        %v5626 = vadd.f32 0.0, %v5625
        %v5627 = vpop.f32.mrf.mxu0
        %v5628 = vpop.f32.mrf.mxu0
        %v5629 = vadd.f32 0.0, %v5628
        %v5630 = vpop.f32.mrf.mxu0
        %5631 = vmatprep.mubr.bf16.mxu0 0
        %5632 = vmatmul.mubr.bf16.gmra.mxu0 %v5583
        %v5633 = vpop.f32.mrf.mxu0
        %v5634 = vadd.f32 0.0, %v5633
        %v5635 = vpop.f32.mrf.mxu0
        %v5636 = vpop.f32.mrf.mxu0
        %v5637 = vadd.f32 0.0, %v5636
        %v5638 = vpop.f32.mrf.mxu0
        %5639 = vmatprep.mubr.bf16.mxu0 0
        %5640 = vmatmul.mubr.bf16.gmra.mxu0 %v5586
        %v5641 = vpop.f32.mrf.mxu0
        %v5642 = vadd.f32 0.0, %v5641
        %v5643 = vpop.f32.mrf.mxu0
        %v5644 = vpop.f32.mrf.mxu0
        %v5645 = vpop.f32.mrf.mxu0
        %5646 = vdwg.mxu0
        %v5647 = vadd.f32 %v4931, %v5626
        %v5648 = vadd.f32 %v4934, %v5629
        %v5649 = vadd.f32 %v4939, %v5634
        %v5650 = vadd.f32 %v4942, %v5637
        %v5651 = vadd.f32 %v4947, %v5642
        %5652 = vrot.lane.b32.xlu0 %v3332, 104
        %v5653 = vpop.permute.xlu0 %5652
        %5654 = vrot.lane.b32.xlu0 %v3346, 104
        %v5655 = vpop.permute.xlu0 %5654
        %5656 = vrot.lane.b32.xlu0 %v3404, 72
        %v5657 = vpop.permute.xlu0 %5656
        %5658 = vrot.lane.b32.xlu0 %v3418, 72
        %v5659 = vpop.permute.xlu0 %5658
        %v5661 = vsel %vm3423, %v5653, 0
        %v5664 = vsel %vm3423, %v5655, 0
        %v5667 = vsel %vm3423, %v5657, 0
        %v5670 = vsel %vm3423, %v5659, 0
        %5672 = vmatprep.subr.bf16.mxu0 0
        %5673 = vmatpush1.bf16.xpose.msra.mxu0 0
        %5674 = vmatprep.subr.bf16.mxu0 0
        %5675 = vmatpush1.bf16.xpose.msra.mxu0 0
        %5676 = vmatprep.subr.bf16.mxu0 0
        %5677 = vmatpush1.bf16.xpose.msra.mxu0 0
        %5678 = vmatprep.subr.bf16.mxu0 0
        %5679 = vmatpush1.bf16.xpose.msra.mxu0 0
        %5680 = vmatprep.subr.bf16.mxu0 0
        %5681 = vmatpush1.bf16.xpose.msra.mxu0 0
        %5682 = vmatprep.subr.bf16.mxu0 0
        %5683 = vmatpush1.bf16.xpose.msra.mxu0 0
        %5684 = vmatprep.subr.bf16.mxu0 0
        %5685 = vmatpush1.bf16.xpose.msra.mxu0 %v5670
        %5686 = vmatprep.subr.bf16.mxu0 0
        %5687 = vmatpush1.bf16.xpose.msra.mxu0 %v5667
        %5688 = vmatprep.subr.bf16.mxu0 0
        %5689 = vmatpush2.bf16.xpose.msra.mxu0 0
        %5690 = vmatprep.subr.bf16.mxu0 0
        %5691 = vmatpush2.bf16.xpose.msra.mxu0 0
        %5692 = vmatprep.subr.bf16.mxu0 0
        %5693 = vmatpush2.bf16.xpose.msra.mxu0 0
        %5694 = vmatprep.subr.bf16.mxu0 0
        %5695 = vmatpush2.bf16.xpose.msra.mxu0 0
        %5696 = vmatprep.subr.bf16.mxu0 0
        %5697 = vmatpush2.bf16.xpose.msra.mxu0 0
        %5698 = vmatprep.subr.bf16.mxu0 0
        %5699 = vmatpush2.bf16.xpose.msra.mxu0 0
        %5700 = vmatprep.subr.bf16.mxu0 0
        %5701 = vmatpush2.bf16.xpose.msra.mxu0 0
        %5702 = vmatprep.subr.bf16.mxu0 0
        %5703 = vmatpush2.bf16.xpose.msra.mxu0 0
        %5704 = vmatprep.mubr.bf16.mxu0 0
        %5705 = vmatmul.mubr.bf16.gmra.mxu0 %v5661
        %v5706 = vpop.f32.mrf.mxu0
        %v5707 = vadd.f32 0.0, %v5706
        %v5708 = vpop.f32.mrf.mxu0
        %v5709 = vpop.f32.mrf.mxu0
        %v5710 = vadd.f32 0.0, %v5709
        %v5711 = vpop.f32.mrf.mxu0
        %5712 = vmatprep.mubr.bf16.mxu0 0
        %5713 = vmatmul.mubr.bf16.gmra.mxu0 %v5664
        %v5714 = vpop.f32.mrf.mxu0
        %v5715 = vadd.f32 0.0, %v5714
        %v5716 = vpop.f32.mrf.mxu0
        %v5717 = vpop.f32.mrf.mxu0
        %v5718 = vpop.f32.mrf.mxu0
        %5719 = vdwg.mxu0
        %5720 = vrot.lane.b32.xlu0 %v3541, 104
        %v5721 = vpop.permute.xlu0 %5720
        %5722 = vrot.lane.b32.xlu0 %v3555, 104
        %v5723 = vpop.permute.xlu0 %5722
        %5724 = vrot.lane.b32.xlu0 %v3613, 72
        %v5725 = vpop.permute.xlu0 %5724
        %5726 = vrot.lane.b32.xlu0 %v3627, 72
        %v5727 = vpop.permute.xlu0 %5726
        %v5729 = vsel %vm3423, %v5721, 0
        %v5732 = vsel %vm3423, %v5723, 0
        %v5735 = vsel %vm3423, %v5725, 0
        %v5738 = vsel %vm3423, %v5727, 0
        %5740 = vmatprep.subr.bf16.mxu0 0
        %5741 = vmatpush1.bf16.xpose.msra.mxu0 0
        %5742 = vmatprep.subr.bf16.mxu0 0
        %5743 = vmatpush1.bf16.xpose.msra.mxu0 0
        %5744 = vmatprep.subr.bf16.mxu0 0
        %5745 = vmatpush1.bf16.xpose.msra.mxu0 0
        %5746 = vmatprep.subr.bf16.mxu0 0
        %5747 = vmatpush1.bf16.xpose.msra.mxu0 0
        %5748 = vmatprep.subr.bf16.mxu0 0
        %5749 = vmatpush1.bf16.xpose.msra.mxu0 0
        %5750 = vmatprep.subr.bf16.mxu0 0
        %5751 = vmatpush1.bf16.xpose.msra.mxu0 0
        %5752 = vmatprep.subr.bf16.mxu0 0
        %5753 = vmatpush1.bf16.xpose.msra.mxu0 %v5738
        %5754 = vmatprep.subr.bf16.mxu0 0
        %5755 = vmatpush1.bf16.xpose.msra.mxu0 %v5735
        %5756 = vmatprep.subr.bf16.mxu0 0
        %5757 = vmatpush2.bf16.xpose.msra.mxu0 0
        %5758 = vmatprep.subr.bf16.mxu0 0
        %5759 = vmatpush2.bf16.xpose.msra.mxu0 0
        %5760 = vmatprep.subr.bf16.mxu0 0
        %5761 = vmatpush2.bf16.xpose.msra.mxu0 0
        %5762 = vmatprep.subr.bf16.mxu0 0
        %5763 = vmatpush2.bf16.xpose.msra.mxu0 0
        %5764 = vmatprep.subr.bf16.mxu0 0
        %5765 = vmatpush2.bf16.xpose.msra.mxu0 0
        %5766 = vmatprep.subr.bf16.mxu0 0
        %5767 = vmatpush2.bf16.xpose.msra.mxu0 0
        %5768 = vmatprep.subr.bf16.mxu0 0
        %5769 = vmatpush2.bf16.xpose.msra.mxu0 0
        %5770 = vmatprep.subr.bf16.mxu0 0
        %5771 = vmatpush2.bf16.xpose.msra.mxu0 0
        %5772 = vmatprep.mubr.bf16.mxu0 0
        %5773 = vmatmul.mubr.bf16.gmra.mxu0 %v5729
        %v5774 = vpop.f32.mrf.mxu0
        %v5775 = vadd.f32 0.0, %v5774
        %v5776 = vpop.f32.mrf.mxu0
        %v5777 = vpop.f32.mrf.mxu0
        %v5778 = vadd.f32 0.0, %v5777
        %v5779 = vpop.f32.mrf.mxu0
        %5780 = vmatprep.mubr.bf16.mxu0 0
        %5781 = vmatmul.mubr.bf16.gmra.mxu0 %v5732
        %v5782 = vpop.f32.mrf.mxu0
        %v5783 = vadd.f32 0.0, %v5782
        %v5784 = vpop.f32.mrf.mxu0
        %v5785 = vpop.f32.mrf.mxu0
        %v5786 = vpop.f32.mrf.mxu0
        %5787 = vdwg.mxu0
        %v5788 = vsel %vm3692, %v5707, -inf
        %5789 = vmax.xlane.f32.xlu0 %v5788
        %v5790 = vpop.xlane.xlu0 %5789
        %v5791 = vsel %vm3692, %v5710, -inf
        %5792 = vmax.xlane.f32.xlu0 %v5791
        %v5793 = vpop.xlane.xlu0 %5792
        %v5794 = vsel %vm3699, %v5715, -inf
        %5795 = vmax.xlane.f32.xlu0 %v5794
        %v5796 = vpop.xlane.xlu0 %5795
        %v5797 = vsel %vm3692, %v5775, -inf
        %5798 = vmax.xlane.f32.xlu0 %v5797
        %v5799 = vpop.xlane.xlu0 %5798
        %v5800 = vsel %vm3692, %v5778, -inf
        %5801 = vmax.xlane.f32.xlu0 %v5800
        %v5802 = vpop.xlane.xlu0 %5801
        %v5803 = vsel %vm3699, %v5783, -inf
        %5804 = vmax.xlane.f32.xlu0 %v5803
        %v5805 = vpop.xlane.xlu0 %5804
        %v5806 = vsub.f32 %v5707, %v5790
        %v5807 = vsub.f32 %v5710, %v5793
        %v5808 = vsub.f32 %v5715, %v5796
        %v5809 = vsub.f32 %v5775, %v5799
        %v5810 = vsub.f32 %v5778, %v5802
        %v5811 = vsub.f32 %v5783, %v5805
        %v5812 = vmul.f32 %v5806, 1.442695
        %v5813 = vpow.pop %v5812
        %v5814 = vmul.f32 %v5807, 1.442695
        %v5815 = vpow.pop %v5814
        %v5816 = vmul.f32 %v5808, 1.442695
        %v5817 = vpow.pop %v5816
        %v5818 = vmul.f32 %v5809, 1.442695
        %v5819 = vpow.pop %v5818
        %v5820 = vmul.f32 %v5810, 1.442695
        %v5821 = vpow.pop %v5820
        %v5822 = vmul.f32 %v5811, 1.442695
        %v5823 = vpow.pop %v5822
        %v5824 = vsel %vm3692, %v5813, 0.0
        %5825 = vadd.xlane.f32.xlu0 %v5824
        %v5826 = vpop.xlane.xlu0 %5825
        %v5827 = vsel %vm3692, %v5815, 0.0
        %5828 = vadd.xlane.f32.xlu0 %v5827
        %v5829 = vpop.xlane.xlu0 %5828
        %v5830 = vsel %vm3699, %v5817, 0.0
        %5831 = vadd.xlane.f32.xlu0 %v5830
        %v5832 = vpop.xlane.xlu0 %5831
        %v5833 = vsel %vm3692, %v5819, 0.0
        %5834 = vadd.xlane.f32.xlu0 %v5833
        %v5835 = vpop.xlane.xlu0 %5834
        %v5836 = vsel %vm3692, %v5821, 0.0
        %5837 = vadd.xlane.f32.xlu0 %v5836
        %v5838 = vpop.xlane.xlu0 %5837
        %v5839 = vsel %vm3699, %v5823, 0.0
        %5840 = vadd.xlane.f32.xlu0 %v5839
        %v5841 = vpop.xlane.xlu0 %5840
        %v5842 = vpack.c.bf16 %v5815, %v5813
        %v5843 = vpack.c.bf16 %v5817, %v5817
        %v5844 = vpack.c.bf16 %v5821, %v5819
        %v5845 = vpack.c.bf16 %v5823, %v5823
        %5846 = vrot.lane.b32.xlu0 %v3404, 40
        %v5847 = vpop.permute.xlu0 %5846
        %5848 = vrot.lane.b32.xlu0 %v3418, 40
        %v5849 = vpop.permute.xlu0 %5848
        %v5852 = vsel %vm3692, %v5842, 0
        %v5855 = vsel %vm3692, %v5843, 0
        %v5858 = vand.u32 %v5849, %v3765
        %5860 = vmatprep.subr.bf16.mxu0 0
        %5861 = vmatpush1.bf16.msra.mxu0 0
        %5862 = vmatprep.subr.bf16.mxu0 0
        %5863 = vmatpush1.bf16.msra.mxu0 0
        %5864 = vmatprep.subr.bf16.mxu0 0
        %5865 = vmatpush1.bf16.msra.mxu0 0
        %5866 = vmatprep.subr.bf16.mxu0 0
        %5867 = vmatpush1.bf16.msra.mxu0 0
        %5868 = vmatprep.subr.bf16.mxu0 0
        %5869 = vmatpush1.bf16.msra.mxu0 0
        %5870 = vmatprep.subr.bf16.mxu0 0
        %5871 = vmatpush1.bf16.msra.mxu0 0
        %5872 = vmatprep.subr.bf16.mxu0 0
        %5873 = vmatpush1.bf16.msra.mxu0 %v5858
        %5874 = vmatprep.subr.bf16.mxu0 0
        %5875 = vmatpush1.bf16.msra.mxu0 %v5847
        %5876 = vmatprep.subr.bf16.mxu0 0
        %5877 = vmatpush2.bf16.msra.mxu0 0
        %5878 = vmatprep.subr.bf16.mxu0 0
        %5879 = vmatpush2.bf16.msra.mxu0 0
        %5880 = vmatprep.subr.bf16.mxu0 0
        %5881 = vmatpush2.bf16.msra.mxu0 0
        %5882 = vmatprep.subr.bf16.mxu0 0
        %5883 = vmatpush2.bf16.msra.mxu0 0
        %5884 = vmatprep.subr.bf16.mxu0 0
        %5885 = vmatpush2.bf16.msra.mxu0 0
        %5886 = vmatprep.subr.bf16.mxu0 0
        %5887 = vmatpush2.bf16.msra.mxu0 0
        %5888 = vmatprep.subr.bf16.mxu0 0
        %5889 = vmatpush2.bf16.msra.mxu0 0
        %5890 = vmatprep.subr.bf16.mxu0 0
        %5891 = vmatpush2.bf16.msra.mxu0 0
        %5892 = vmatprep.mubr.bf16.mxu0 0
        %5893 = vmatmul.mubr.bf16.gmra.mxu0 %v5852
        %v5894 = vpop.f32.mrf.mxu0
        %v5895 = vadd.f32 0.0, %v5894
        %v5896 = vpop.f32.mrf.mxu0
        %v5897 = vpop.f32.mrf.mxu0
        %v5898 = vadd.f32 0.0, %v5897
        %v5899 = vpop.f32.mrf.mxu0
        %5900 = vmatprep.mubr.bf16.mxu0 0
        %5901 = vmatmul.mubr.bf16.gmra.mxu0 %v5855
        %v5902 = vpop.f32.mrf.mxu0
        %v5903 = vadd.f32 0.0, %v5902
        %v5904 = vpop.f32.mrf.mxu0
        %v5905 = vpop.f32.mrf.mxu0
        %v5906 = vpop.f32.mrf.mxu0
        %5907 = vdwg.mxu0
        %5908 = vrot.lane.b32.xlu0 %v3613, 40
        %v5909 = vpop.permute.xlu0 %5908
        %5910 = vrot.lane.b32.xlu0 %v3627, 40
        %v5911 = vpop.permute.xlu0 %5910
        %v5914 = vsel %vm3692, %v5844, 0
        %v5917 = vsel %vm3692, %v5845, 0
        %v5920 = vand.u32 %v5911, %v3765
        %5922 = vmatprep.subr.bf16.mxu0 0
        %5923 = vmatpush1.bf16.msra.mxu0 0
        %5924 = vmatprep.subr.bf16.mxu0 0
        %5925 = vmatpush1.bf16.msra.mxu0 0
        %5926 = vmatprep.subr.bf16.mxu0 0
        %5927 = vmatpush1.bf16.msra.mxu0 0
        %5928 = vmatprep.subr.bf16.mxu0 0
        %5929 = vmatpush1.bf16.msra.mxu0 0
        %5930 = vmatprep.subr.bf16.mxu0 0
        %5931 = vmatpush1.bf16.msra.mxu0 0
        %5932 = vmatprep.subr.bf16.mxu0 0
        %5933 = vmatpush1.bf16.msra.mxu0 0
        %5934 = vmatprep.subr.bf16.mxu0 0
        %5935 = vmatpush1.bf16.msra.mxu0 %v5920
        %5936 = vmatprep.subr.bf16.mxu0 0
        %5937 = vmatpush1.bf16.msra.mxu0 %v5909
        %5938 = vmatprep.subr.bf16.mxu0 0
        %5939 = vmatpush2.bf16.msra.mxu0 0
        %5940 = vmatprep.subr.bf16.mxu0 0
        %5941 = vmatpush2.bf16.msra.mxu0 0
        %5942 = vmatprep.subr.bf16.mxu0 0
        %5943 = vmatpush2.bf16.msra.mxu0 0
        %5944 = vmatprep.subr.bf16.mxu0 0
        %5945 = vmatpush2.bf16.msra.mxu0 0
        %5946 = vmatprep.subr.bf16.mxu0 0
        %5947 = vmatpush2.bf16.msra.mxu0 0
        %5948 = vmatprep.subr.bf16.mxu0 0
        %5949 = vmatpush2.bf16.msra.mxu0 0
        %5950 = vmatprep.subr.bf16.mxu0 0
        %5951 = vmatpush2.bf16.msra.mxu0 0
        %5952 = vmatprep.subr.bf16.mxu0 0
        %5953 = vmatpush2.bf16.msra.mxu0 0
        %5954 = vmatprep.mubr.bf16.mxu0 0
        %5955 = vmatmul.mubr.bf16.gmra.mxu0 %v5914
        %v5956 = vpop.f32.mrf.mxu0
        %v5957 = vadd.f32 0.0, %v5956
        %v5958 = vpop.f32.mrf.mxu0
        %v5959 = vpop.f32.mrf.mxu0
        %v5960 = vadd.f32 0.0, %v5959
        %v5961 = vpop.f32.mrf.mxu0
        %5962 = vmatprep.mubr.bf16.mxu0 0
        %5963 = vmatmul.mubr.bf16.gmra.mxu0 %v5917
        %v5964 = vpop.f32.mrf.mxu0
        %v5965 = vadd.f32 0.0, %v5964
        %v5966 = vpop.f32.mrf.mxu0
        %v5967 = vpop.f32.mrf.mxu0
        %v5968 = vpop.f32.mrf.mxu0
        %5969 = vdwg.mxu0
        %v5970 = vrcp.pop %v5826
        %v5971 = vrcp.pop %v5829
        %v5972 = vrcp.pop %v5832
        %v5973 = vrcp.pop %v5835
        %v5974 = vrcp.pop %v5838
        %v5975 = vrcp.pop %v5841
        %v5976 = vmul.f32 %v5895, %v5970
        %v5977 = vmul.f32 %v5898, %v5971
        %v5978 = vmul.f32 %v5903, %v5972
        %v5979 = vmul.f32 %v5957, %v5973
        %v5980 = vmul.f32 %v5960, %v5974
        %v5981 = vmul.f32 %v5965, %v5975
        %v5982 = vpack.c.bf16 %v5977, %v5976
        %v5983 = vpack.c.bf16 %v5978, %v5978
        %v5984 = vpack.c.bf16 %v5980, %v5979
        %v5985 = vpack.c.bf16 %v5981, %v5981
        %v5990 = vcombine.high %v5982, %v5982
        %v5992 = vunpack.c.l.s4 1966171168
        %v5993 = vunpack.c.0.s8 %v5992
        %v5994 = vlaneseq
        %v5995 = vshrl.u32 %v5994, 7
        %v5996 = vsub.s32 %v5993, %v5995
        %v5997 = vrot.slane %v5982, %v5996
        %v5999 = vunpack.c.l.s4 1966171168
        %v6000 = vunpack.c.0.s8 %v5999
        %v6001 = vlaneseq
        %v6002 = vshrl.u32 %v6001, 7
        %v6003 = vsub.s32 %v6000, %v6002
        %v6004 = vrot.slane %v5990, %v6003
        %v6005 = vcombine.high %v5997, %v5997
        %v6006 = vcombine.high %v6004, %v6004
        %v6008 = vunpack.c.l.s4 1966171168
        %v6009 = vunpack.c.0.s8 %v6008
        %v6010 = vlaneseq
        %v6011 = vshrl.u32 %v6010, 7
        %v6012 = vsub.s32 %v6009, %v6011
        %v6013 = vrot.slane %v5997, %v6012
        %v6015 = vunpack.c.l.s4 1966171168
        %v6016 = vunpack.c.0.s8 %v6015
        %v6017 = vlaneseq
        %v6018 = vshrl.u32 %v6017, 7
        %v6019 = vsub.s32 %v6016, %v6018
        %v6020 = vrot.slane %v6004, %v6019
        %v6022 = vunpack.c.l.s4 1966171168
        %v6023 = vunpack.c.0.s8 %v6022
        %v6024 = vlaneseq
        %v6025 = vshrl.u32 %v6024, 7
        %v6026 = vsub.s32 %v6023, %v6025
        %v6027 = vrot.slane %v6005, %v6026
        %v6029 = vunpack.c.l.s4 1966171168
        %v6030 = vunpack.c.0.s8 %v6029
        %v6031 = vlaneseq
        %v6032 = vshrl.u32 %v6031, 7
        %v6033 = vsub.s32 %v6030, %v6032
        %v6034 = vrot.slane %v6006, %v6033
        %v6035 = vcombine.high %v6013, %v6013
        %v6036 = vcombine.high %v6020, %v6020
        %v6037 = vcombine.high %v6027, %v6027
        %v6038 = vcombine.high %v6034, %v6034
        %v6040 = vunpack.c.l.s4 1966171168
        %v6041 = vunpack.c.0.s8 %v6040
        %v6042 = vlaneseq
        %v6043 = vshrl.u32 %v6042, 7
        %v6044 = vsub.s32 %v6041, %v6043
        %v6045 = vrot.slane %v5983, %v6044
        %v6047 = vunpack.c.l.s4 1966171168
        %v6048 = vunpack.c.0.s8 %v6047
        %v6049 = vlaneseq
        %v6050 = vshrl.u32 %v6049, 7
        %v6051 = vsub.s32 %v6048, %v6050
        %v6052 = vrot.slane %v6045, %v6051
        %v6053 = vcombine.high %v5984, %v5984
        %v6055 = vunpack.c.l.s4 1966171168
        %v6056 = vunpack.c.0.s8 %v6055
        %v6057 = vlaneseq
        %v6058 = vshrl.u32 %v6057, 7
        %v6059 = vsub.s32 %v6056, %v6058
        %v6060 = vrot.slane %v5984, %v6059
        %v6062 = vunpack.c.l.s4 1966171168
        %v6063 = vunpack.c.0.s8 %v6062
        %v6064 = vlaneseq
        %v6065 = vshrl.u32 %v6064, 7
        %v6066 = vsub.s32 %v6063, %v6065
        %v6067 = vrot.slane %v6053, %v6066
        %v6068 = vcombine.high %v6060, %v6060
        %v6069 = vcombine.high %v6067, %v6067
        %v6071 = vunpack.c.l.s4 1966171168
        %v6072 = vunpack.c.0.s8 %v6071
        %v6073 = vlaneseq
        %v6074 = vshrl.u32 %v6073, 7
        %v6075 = vsub.s32 %v6072, %v6074
        %v6076 = vrot.slane %v6060, %v6075
        %v6078 = vunpack.c.l.s4 1966171168
        %v6079 = vunpack.c.0.s8 %v6078
        %v6080 = vlaneseq
        %v6081 = vshrl.u32 %v6080, 7
        %v6082 = vsub.s32 %v6079, %v6081
        %v6083 = vrot.slane %v6067, %v6082
        %v6085 = vunpack.c.l.s4 1966171168
        %v6086 = vunpack.c.0.s8 %v6085
        %v6087 = vlaneseq
        %v6088 = vshrl.u32 %v6087, 7
        %v6089 = vsub.s32 %v6086, %v6088
        %v6090 = vrot.slane %v6068, %v6089
        %v6092 = vunpack.c.l.s4 1966171168
        %v6093 = vunpack.c.0.s8 %v6092
        %v6094 = vlaneseq
        %v6095 = vshrl.u32 %v6094, 7
        %v6096 = vsub.s32 %v6093, %v6095
        %v6097 = vrot.slane %v6069, %v6096
        %v6098 = vcombine.high %v6076, %v6076
        %v6099 = vcombine.high %v6083, %v6083
        %v6100 = vcombine.high %v6090, %v6090
        %v6101 = vcombine.high %v6097, %v6097
        %v6103 = vunpack.c.l.s4 1966171168
        %v6104 = vunpack.c.0.s8 %v6103
        %v6105 = vlaneseq
        %v6106 = vshrl.u32 %v6105, 7
        %v6107 = vsub.s32 %v6104, %v6106
        %v6108 = vrot.slane %v5985, %v6107
        %v6110 = vunpack.c.l.s4 1966171168
        %v6111 = vunpack.c.0.s8 %v6110
        %v6112 = vlaneseq
        %v6113 = vshrl.u32 %v6112, 7
        %v6114 = vsub.s32 %v6111, %v6113
        %v6115 = vrot.slane %v6108, %v6114
        %v6116 = vunpack.i.l.s16 %v6013
        %v6117 = vunpack.i.h.s16 %v6013
        %v6118 = vunpack.i.l.s16 %v6027
        %v6119 = vunpack.i.h.s16 %v6027
        %v6120 = vunpack.i.l.s16 %v6035
        %v6121 = vunpack.i.h.s16 %v6035
        %v6122 = vunpack.i.l.s16 %v6037
        %v6123 = vunpack.i.h.s16 %v6037
        %v6124 = vunpack.i.l.s16 %v6020
        %v6125 = vunpack.i.h.s16 %v6020
        %v6126 = vunpack.i.l.s16 %v6034
        %v6127 = vunpack.i.h.s16 %v6034
        %v6128 = vunpack.i.l.s16 %v6036
        %v6129 = vunpack.i.h.s16 %v6036
        %v6130 = vunpack.i.l.s16 %v6038
        %v6131 = vunpack.i.h.s16 %v6038
        %v6132 = vunpack.i.l.s16 %v6052
        %v6133 = vunpack.i.l.s16 %v6076
        %v6134 = vunpack.i.h.s16 %v6076
        %v6135 = vunpack.i.l.s16 %v6090
        %v6136 = vunpack.i.h.s16 %v6090
        %v6137 = vunpack.i.l.s16 %v6098
        %v6138 = vunpack.i.h.s16 %v6098
        %v6139 = vunpack.i.l.s16 %v6100
        %v6140 = vunpack.i.h.s16 %v6100
        %v6141 = vunpack.i.l.s16 %v6083
        %v6142 = vunpack.i.h.s16 %v6083
        %v6143 = vunpack.i.l.s16 %v6097
        %v6144 = vunpack.i.h.s16 %v6097
        %v6145 = vunpack.i.l.s16 %v6099
        %v6146 = vunpack.i.h.s16 %v6099
        %v6147 = vunpack.i.l.s16 %v6101
        %v6148 = vunpack.i.h.s16 %v6101
        %v6149 = vunpack.i.l.s16 %v6115
        %v6150 = vpack.i.b16 %v6117, %v6116
        %v6151 = vpack.i.b16 %v6119, %v6118
        %v6152 = vpack.i.b16 %v6121, %v6120
        %v6153 = vpack.i.b16 %v6123, %v6122
        %v6154 = vpack.i.b16 %v6125, %v6124
        %v6155 = vpack.i.b16 %v6127, %v6126
        %v6156 = vpack.i.b16 %v6129, %v6128
        %v6157 = vpack.i.b16 %v6131, %v6130
        %v6158 = vpack.i.b16 %v6133, %v6132
        %v6159 = vpack.i.b16 %v6135, %v6134
        %v6160 = vpack.i.b16 %v6137, %v6136
        %v6161 = vpack.i.b16 %v6139, %v6138
        %v6162 = vpack.i.b16 %v6141, %v6140
        %v6163 = vpack.i.b16 %v6143, %v6142
        %v6164 = vpack.i.b16 %v6145, %v6144
        %v6165 = vpack.i.b16 %v6147, %v6146
        %v6166 = vpack.i.b16 %v6149, %v6148
        %v6167 = vcombine.low %v6150, %v6151
        %v6168 = vcombine.low %v6152, %v6153
        %v6169 = vcombine.low %v6154, %v6155
        %v6170 = vcombine.low %v6156, %v6157
        %v6172 = vunpack.c.l.s4 1966171168
        %v6173 = vunpack.c.0.s8 %v6172
        %v6174 = vlaneseq
        %v6175 = vshrl.u32 %v6174, 7
        %v6176 = vsub.s32 %v6173, %v6175
        %v6177 = vrot.slane %v6167, %v6176
        %v6179 = vunpack.c.l.s4 1966171168
        %v6180 = vunpack.c.0.s8 %v6179
        %v6181 = vlaneseq
        %v6182 = vshrl.u32 %v6181, 7
        %v6183 = vsub.s32 %v6180, %v6182
        %v6184 = vrot.slane %v6168, %v6183
        %v6186 = vunpack.c.l.s4 1966171168
        %v6187 = vunpack.c.0.s8 %v6186
        %v6188 = vlaneseq
        %v6189 = vshrl.u32 %v6188, 7
        %v6190 = vsub.s32 %v6187, %v6189
        %v6191 = vrot.slane %v6169, %v6190
        %v6193 = vunpack.c.l.s4 1966171168
        %v6194 = vunpack.c.0.s8 %v6193
        %v6195 = vlaneseq
        %v6196 = vshrl.u32 %v6195, 7
        %v6197 = vsub.s32 %v6194, %v6196
        %v6198 = vrot.slane %v6170, %v6197
        %v6199 = vcombine.low %v6177, %v6184
        %v6200 = vcombine.low %v6191, %v6198
        %v6202 = vunpack.c.l.s4 1966171168
        %v6203 = vunpack.c.0.s8 %v6202
        %v6204 = vlaneseq
        %v6205 = vshrl.u32 %v6204, 7
        %v6206 = vsub.s32 %v6203, %v6205
        %v6207 = vrot.slane %v6199, %v6206
        %v6209 = vunpack.c.l.s4 1966171168
        %v6210 = vunpack.c.0.s8 %v6209
        %v6211 = vlaneseq
        %v6212 = vshrl.u32 %v6211, 7
        %v6213 = vsub.s32 %v6210, %v6212
        %v6214 = vrot.slane %v6200, %v6213
        %v6215 = vcombine.low %v6207, %v6214
        %v6216 = vcombine.low %v6158, %v6159
        %v6217 = vcombine.low %v6160, %v6161
        %v6218 = vcombine.low %v6162, %v6163
        %v6219 = vcombine.low %v6164, %v6165
        %v6221 = vunpack.c.l.s4 1966171168
        %v6222 = vunpack.c.0.s8 %v6221
        %v6223 = vlaneseq
        %v6224 = vshrl.u32 %v6223, 7
        %v6225 = vsub.s32 %v6222, %v6224
        %v6226 = vrot.slane %v6216, %v6225
        %v6228 = vunpack.c.l.s4 1966171168
        %v6229 = vunpack.c.0.s8 %v6228
        %v6230 = vlaneseq
        %v6231 = vshrl.u32 %v6230, 7
        %v6232 = vsub.s32 %v6229, %v6231
        %v6233 = vrot.slane %v6217, %v6232
        %v6235 = vunpack.c.l.s4 1966171168
        %v6236 = vunpack.c.0.s8 %v6235
        %v6237 = vlaneseq
        %v6238 = vshrl.u32 %v6237, 7
        %v6239 = vsub.s32 %v6236, %v6238
        %v6240 = vrot.slane %v6218, %v6239
        %v6242 = vunpack.c.l.s4 1966171168
        %v6243 = vunpack.c.0.s8 %v6242
        %v6244 = vlaneseq
        %v6245 = vshrl.u32 %v6244, 7
        %v6246 = vsub.s32 %v6243, %v6245
        %v6247 = vrot.slane %v6219, %v6246
        %v6248 = vcombine.low %v6226, %v6233
        %v6249 = vcombine.low %v6240, %v6247
        %v6251 = vunpack.c.l.s4 1966171168
        %v6252 = vunpack.c.0.s8 %v6251
        %v6253 = vlaneseq
        %v6254 = vshrl.u32 %v6253, 7
        %v6255 = vsub.s32 %v6252, %v6254
        %v6256 = vrot.slane %v6248, %v6255
        %v6258 = vunpack.c.l.s4 1966171168
        %v6259 = vunpack.c.0.s8 %v6258
        %v6260 = vlaneseq
        %v6261 = vshrl.u32 %v6260, 7
        %v6262 = vsub.s32 %v6259, %v6261
        %v6263 = vrot.slane %v6249, %v6262
        %v6264 = vcombine.low %v6256, %v6263
        %v6266 = vunpack.c.l.s4 1966171168
        %v6267 = vunpack.c.0.s8 %v6266
        %v6268 = vlaneseq
        %v6269 = vshrl.u32 %v6268, 7
        %v6270 = vsub.s32 %v6267, %v6269
        %v6271 = vrot.slane %v6166, %v6270
        %v6273 = vunpack.c.l.s4 1966171168
        %v6274 = vunpack.c.0.s8 %v6273
        %v6275 = vlaneseq
        %v6276 = vshrl.u32 %v6275, 7
        %v6277 = vsub.s32 %v6274, %v6276
        %v6278 = vrot.slane %v6271, %v6277
        %v6280 = vsel %vm3423, %v6215, 0
        %v6283 = vsel %vm3423, %v6264, 0
        %v6286 = vsel %vm3423, %v6278, 0
        %v6289 = vsel %vm4695, %v2965, 0
        %6291 = vmatprep.subr.bf16.mxu0 0
        %6292 = vmatpush1.bf16.msra.mxu0 0
        %6293 = vmatprep.subr.bf16.mxu0 0
        %6294 = vmatpush1.bf16.msra.mxu0 0
        %6295 = vmatprep.subr.bf16.mxu0 0
        %6296 = vmatpush1.bf16.msra.mxu0 0
        %6297 = vmatprep.subr.bf16.mxu0 0
        %6298 = vmatpush1.bf16.msra.mxu0 0
        %6299 = vmatprep.subr.bf16.mxu0 0
        %6300 = vmatpush1.bf16.msra.mxu0 0
        %6301 = vmatprep.subr.bf16.mxu0 0
        %6302 = vmatpush1.bf16.msra.mxu0 0
        %6303 = vmatprep.subr.bf16.mxu0 0
        %6304 = vmatpush1.bf16.msra.mxu0 0
        %6305 = vmatprep.subr.bf16.mxu0 0
        %6306 = vmatpush1.bf16.msra.mxu0 %v6289
        %6307 = vmatprep.subr.bf16.mxu0 0
        %6308 = vmatpush2.bf16.msra.mxu0 0
        %6309 = vmatprep.subr.bf16.mxu0 0
        %6310 = vmatpush2.bf16.msra.mxu0 0
        %6311 = vmatprep.subr.bf16.mxu0 0
        %6312 = vmatpush2.bf16.msra.mxu0 0
        %6313 = vmatprep.subr.bf16.mxu0 0
        %6314 = vmatpush2.bf16.msra.mxu0 0
        %6315 = vmatprep.subr.bf16.mxu0 0
        %6316 = vmatpush2.bf16.msra.mxu0 0
        %6317 = vmatprep.subr.bf16.mxu0 0
        %6318 = vmatpush2.bf16.msra.mxu0 0
        %6319 = vmatprep.subr.bf16.mxu0 0
        %6320 = vmatpush2.bf16.msra.mxu0 0
        %6321 = vmatprep.subr.bf16.mxu0 0
        %6322 = vmatpush2.bf16.msra.mxu0 0
        %6323 = vmatprep.mubr.bf16.mxu0 0
        %6324 = vmatmul.mubr.bf16.gmra.mxu0 %v6280
        %v6325 = vpop.f32.mrf.mxu0
        %v6326 = vadd.f32 0.0, %v6325
        %v6327 = vpop.f32.mrf.mxu0
        %v6328 = vpop.f32.mrf.mxu0
        %v6329 = vadd.f32 0.0, %v6328
        %v6330 = vpop.f32.mrf.mxu0
        %6331 = vmatprep.mubr.bf16.mxu0 0
        %6332 = vmatmul.mubr.bf16.gmra.mxu0 %v6283
        %v6333 = vpop.f32.mrf.mxu0
        %v6334 = vadd.f32 0.0, %v6333
        %v6335 = vpop.f32.mrf.mxu0
        %v6336 = vpop.f32.mrf.mxu0
        %v6337 = vadd.f32 0.0, %v6336
        %v6338 = vpop.f32.mrf.mxu0
        %6339 = vmatprep.mubr.bf16.mxu0 0
        %6340 = vmatmul.mubr.bf16.gmra.mxu0 %v6286
        %v6341 = vpop.f32.mrf.mxu0
        %v6342 = vadd.f32 0.0, %v6341
        %v6343 = vpop.f32.mrf.mxu0
        %v6344 = vpop.f32.mrf.mxu0
        %v6345 = vpop.f32.mrf.mxu0
        %6346 = vdwg.mxu0
        %v6347 = vadd.f32 %v5647, %v6326
        %v6348 = vadd.f32 %v5648, %v6329
        %v6349 = vadd.f32 %v5649, %v6334
        %v6350 = vadd.f32 %v5650, %v6337
        %v6351 = vadd.f32 %v5651, %v6342
        %v6352 = vadd.f32 %v2737, %v6347
        %v6353 = vadd.f32 %v2738, %v6348
        %v6354 = vadd.f32 %v2739, %v6349
        %v6355 = vadd.f32 %v2740, %v6350
        %v6356 = vadd.f32 %v2741, %v6351
        %v6357 = vld [vmem:[%s951] sm:$0x1]
        %v6359 = vlaneseq
        %v6360 = vshrl.u32 %v6359, 7
        %v6361 = vsub.s32 0, %v6360
        %v6362 = vrot.slane %v6357, %v6361
        %v6364 = vadd.f32 %v6352, %v6362
        %v6365 = vadd.f32 %v6353, %v6362
        %v6366 = vadd.f32 %v6354, %v6362
        %v6367 = vadd.f32 %v6355, %v6362
        %v6368 = vadd.f32 %v6356, %v6362
        %v6369 = vld [vmem:[%s954] sm:$0x1]
        %v6370 = vld [vmem:[%s957] sm:$0x1]
        %6371 = vadd.xlane.f32.xlu0 %v6364
        %v6372 = vpop.xlane.xlu0 %6371
        %6373 = vadd.xlane.f32.xlu0 %v6365
        %v6374 = vpop.xlane.xlu0 %6373
        %6375 = vadd.xlane.f32.xlu0 %v6366
        %v6376 = vpop.xlane.xlu0 %6375
        %6377 = vadd.xlane.f32.xlu0 %v6367
        %v6378 = vpop.xlane.xlu0 %6377
        %v6379 = vsel %vm2752, %v6368, 0.0
        %6380 = vadd.xlane.f32.xlu0 %v6379
        %v6381 = vpop.xlane.xlu0 %6380
        %v6382 = vmul.f32 %v6372, 0.03125
        %v6383 = vmul.f32 %v6374, 0.03125
        %v6384 = vmul.f32 %v6376, 0.03125
        %v6385 = vmul.f32 %v6378, 0.03125
        %v6386 = vmul.f32 %v6381, 0.03125
        %v6387 = vsub.f32 %v6364, %v6382
        %v6388 = vsub.f32 %v6365, %v6383
        %v6389 = vsub.f32 %v6366, %v6384
        %v6390 = vsub.f32 %v6367, %v6385
        %v6391 = vsub.f32 %v6368, %v6386
        %v6392 = vsel %vm2763, %v6387, 0.0
        %v6393 = vsel %vm2763, %v6388, 0.0
        %v6394 = vsel %vm2763, %v6389, 0.0
        %v6395 = vsel %vm2763, %v6390, 0.0
        %v6396 = vsel %vm2763, %v6391, 0.0
        %v6397 = vmul.f32 %v6392, %v6392
        %v6398 = vmul.f32 %v6393, %v6393
        %v6399 = vmul.f32 %v6394, %v6394
        %v6400 = vmul.f32 %v6395, %v6395
        %v6401 = vmul.f32 %v6396, %v6396
        %6402 = vadd.xlane.f32.xlu0 %v6397
        %v6403 = vpop.xlane.xlu0 %6402
        %6404 = vadd.xlane.f32.xlu0 %v6398
        %v6405 = vpop.xlane.xlu0 %6404
        %6406 = vadd.xlane.f32.xlu0 %v6399
        %v6407 = vpop.xlane.xlu0 %6406
        %6408 = vadd.xlane.f32.xlu0 %v6400
        %v6409 = vpop.xlane.xlu0 %6408
        %v6410 = vsel %vm2752, %v6401, 0.0
        %6411 = vadd.xlane.f32.xlu0 %v6410
        %v6412 = vpop.xlane.xlu0 %6411
        %v6413 = vmul.f32 %v6403, 0.03125
        %v6414 = vmul.f32 %v6405, 0.03125
        %v6415 = vmul.f32 %v6407, 0.03125
        %v6416 = vmul.f32 %v6409, 0.03125
        %v6417 = vmul.f32 %v6412, 0.03125
        %v6418 = vadd.f32 %v6413, 1e-05
        %v6419 = vadd.f32 %v6414, 1e-05
        %v6420 = vadd.f32 %v6415, 1e-05
        %v6421 = vadd.f32 %v6416, 1e-05
        %v6422 = vadd.f32 %v6417, 1e-05
        %v6423 = vrsqrt.pop %v6418
        %v6424 = vrsqrt.pop %v6419
        %v6425 = vrsqrt.pop %v6420
        %v6426 = vrsqrt.pop %v6421
        %v6427 = vrsqrt.pop %v6422
        %v6428 = vmul.f32 %v6392, %v6423
        %v6429 = vmul.f32 %v6393, %v6424
        %v6430 = vmul.f32 %v6394, %v6425
        %v6431 = vmul.f32 %v6395, %v6426
        %v6432 = vmul.f32 %v6396, %v6427
        %v6434 = vlaneseq
        %v6435 = vshrl.u32 %v6434, 7
        %v6436 = vsub.s32 0, %v6435
        %v6437 = vrot.slane %v6369, %v6436
        %v6439 = vmul.f32 %v6428, %v6437
        %v6440 = vmul.f32 %v6429, %v6437
        %v6441 = vmul.f32 %v6430, %v6437
        %v6442 = vmul.f32 %v6431, %v6437
        %v6443 = vmul.f32 %v6432, %v6437
        %v6445 = vlaneseq
        %v6446 = vshrl.u32 %v6445, 7
        %v6447 = vsub.s32 0, %v6446
        %v6448 = vrot.slane %v6370, %v6447
        %v6450 = vadd.f32 %v6439, %v6448
        %v6451 = vadd.f32 %v6440, %v6448
        %v6452 = vadd.f32 %v6441, %v6448
        %v6453 = vadd.f32 %v6442, %v6448
        %v6454 = vadd.f32 %v6443, %v6448
        %v6455 = vpack.c.bf16 %v6451, %v6450
        %v6456 = vpack.c.bf16 %v6453, %v6452
        %v6457 = vpack.c.bf16 %v6454, %v6454
        %v6458 = vld [vmem:[%s962] sm:$0xf]
        %v6459 = vld [vmem:[%s962 + $0x4] sm:$0xf]
        %v6460 = vld [vmem:[%s962 + $0x8] sm:$0xf]
        %v6461 = vld [vmem:[%s962 + $0xc] sm:$0xf]
        %v6462 = vld [vmem:[%s962 + $0x10] sm:$0xf]
        %v6463 = vld [vmem:[%s962 + $0x14] sm:$0xf]
        %v6464 = vld [vmem:[%s962 + $0x18] sm:$0xf]
        %v6465 = vld [vmem:[%s962 + $0x1c] sm:$0xf]
        %v6466 = vld [vmem:[%s962 + $0x20] sm:$0xf]
        %v6467 = vld [vmem:[%s962 + $0x24] sm:$0xf]
        %v6468 = vld [vmem:[%s962 + $0x28] sm:$0xf]
        %v6469 = vld [vmem:[%s962 + $0x2c] sm:$0xf]
        %v6470 = vld [vmem:[%s962 + $0x30] sm:$0xf]
        %v6471 = vld [vmem:[%s962 + $0x34] sm:$0xf]
        %v6472 = vld [vmem:[%s962 + $0x38] sm:$0xf]
        %v6473 = vld [vmem:[%s962 + $0x3c] sm:$0xf]
        %v6474 = vld [vmem:[%s965] sm:$0x1]
        %v6476 = vlaneseq
        %v6477 = vshrl.u32 %v6476, 7
        %v6478 = vsub.s32 0, %v6477
        %v6479 = vrot.slane %v6474, %v6478
        %v6497 = vunpack.c.l.b16 %v6458
        %v6498 = vunpack.c.l.b16 %v6459
        %v6499 = vunpack.c.l.b16 %v6460
        %v6500 = vunpack.c.l.b16 %v6461
        %v6501 = vunpack.c.l.b16 %v6462
        %v6502 = vunpack.c.l.b16 %v6463
        %v6503 = vunpack.c.l.b16 %v6464
        %v6504 = vunpack.c.l.b16 %v6465
        %v6505 = vunpack.c.l.b16 %v6466
        %v6506 = vunpack.c.l.b16 %v6467
        %v6507 = vunpack.c.l.b16 %v6468
        %v6508 = vunpack.c.l.b16 %v6469
        %v6509 = vunpack.c.l.b16 %v6470
        %v6510 = vunpack.c.l.b16 %v6471
        %v6511 = vunpack.c.l.b16 %v6472
        %v6512 = vunpack.c.l.b16 %v6473
        %v6513 = vpack.c.b16 %v6498, %v6497
        %v6514 = vpack.c.b16 %v6500, %v6499
        %v6515 = vpack.c.b16 %v6502, %v6501
        %v6516 = vpack.c.b16 %v6504, %v6503
        %v6517 = vpack.c.b16 %v6506, %v6505
        %v6518 = vpack.c.b16 %v6508, %v6507
        %v6519 = vpack.c.b16 %v6510, %v6509
        %v6520 = vpack.c.b16 %v6512, %v6511
        %6529 = vmatprep.subr.bf16.mxu0 0
        %6530 = vmatpush1.bf16.msra.mxu0 %v6520
        %6531 = vmatprep.subr.bf16.mxu0 0
        %6532 = vmatpush1.bf16.msra.mxu0 %v6519
        %6533 = vmatprep.subr.bf16.mxu0 0
        %6534 = vmatpush1.bf16.msra.mxu0 %v6518
        %6535 = vmatprep.subr.bf16.mxu0 0
        %6536 = vmatpush1.bf16.msra.mxu0 %v6517
        %6537 = vmatprep.subr.bf16.mxu0 0
        %6538 = vmatpush1.bf16.msra.mxu0 %v6516
        %6539 = vmatprep.subr.bf16.mxu0 0
        %6540 = vmatpush1.bf16.msra.mxu0 %v6515
        %6541 = vmatprep.subr.bf16.mxu0 0
        %6542 = vmatpush1.bf16.msra.mxu0 %v6514
        %6543 = vmatprep.subr.bf16.mxu0 0
        %6544 = vmatpush1.bf16.msra.mxu0 %v6513
        %6545 = vmatprep.subr.bf16.mxu0 0
        %6546 = vmatpush2.bf16.msra.mxu0 0
        %6547 = vmatprep.subr.bf16.mxu0 0
        %6548 = vmatpush2.bf16.msra.mxu0 0
        %6549 = vmatprep.subr.bf16.mxu0 0
        %6550 = vmatpush2.bf16.msra.mxu0 0
        %6551 = vmatprep.subr.bf16.mxu0 0
        %6552 = vmatpush2.bf16.msra.mxu0 0
        %6553 = vmatprep.subr.bf16.mxu0 0
        %6554 = vmatpush2.bf16.msra.mxu0 0
        %6555 = vmatprep.subr.bf16.mxu0 0
        %6556 = vmatpush2.bf16.msra.mxu0 0
        %6557 = vmatprep.subr.bf16.mxu0 0
        %6558 = vmatpush2.bf16.msra.mxu0 0
        %6559 = vmatprep.subr.bf16.mxu0 0
        %6560 = vmatpush2.bf16.msra.mxu0 0
        %6561 = vmatprep.mubr.bf16.mxu0 0
        %6562 = vmatmul.mubr.bf16.gmra.mxu0 %v6455
        %v6563 = vpop.f32.mrf.mxu0
        %v6564 = vadd.f32 %v6479, %v6563
        %v6565 = vpop.f32.mrf.mxu0
        %v6566 = vpop.f32.mrf.mxu0
        %v6567 = vadd.f32 %v6479, %v6566
        %v6568 = vpop.f32.mrf.mxu0
        %6569 = vmatprep.mubr.bf16.mxu0 0
        %6570 = vmatmul.mubr.bf16.gmra.mxu0 %v6456
        %v6571 = vpop.f32.mrf.mxu0
        %v6572 = vadd.f32 %v6479, %v6571
        %v6573 = vpop.f32.mrf.mxu0
        %v6574 = vpop.f32.mrf.mxu0
        %v6575 = vadd.f32 %v6479, %v6574
        %v6576 = vpop.f32.mrf.mxu0
        %6577 = vmatprep.mubr.bf16.mxu0 0
        %6578 = vmatmul.mubr.bf16.gmra.mxu0 %v6457
        %v6579 = vpop.f32.mrf.mxu0
        %v6580 = vadd.f32 %v6479, %v6579
        %v6581 = vpop.f32.mrf.mxu0
        %v6582 = vpop.f32.mrf.mxu0
        %v6583 = vpop.f32.mrf.mxu0
        %6584 = vdwg.mxu0
        %v6585 = vmul.f32 %v6564, 1.702
        %v6586 = vmul.f32 %v6567, 1.702
        %v6587 = vmul.f32 %v6572, 1.702
        %v6588 = vmul.f32 %v6575, 1.702
        %v6589 = vmul.f32 %v6580, 1.702
        %v6590 = vxor.u32 %v6585, 2147483648
        %v6591 = vxor.u32 %v6586, 2147483648
        %v6592 = vxor.u32 %v6587, 2147483648
        %v6593 = vxor.u32 %v6588, 2147483648
        %v6594 = vxor.u32 %v6589, 2147483648
        %v6595 = vmul.f32 %v6590, 1.442695
        %v6596 = vpow.pop %v6595
        %v6597 = vmul.f32 %v6591, 1.442695
        %v6598 = vpow.pop %v6597
        %v6599 = vmul.f32 %v6592, 1.442695
        %v6600 = vpow.pop %v6599
        %v6601 = vmul.f32 %v6593, 1.442695
        %v6602 = vpow.pop %v6601
        %v6603 = vmul.f32 %v6594, 1.442695
        %v6604 = vpow.pop %v6603
        %v6605 = vadd.f32 %v6596, 1.0
        %v6606 = vadd.f32 %v6598, 1.0
        %v6607 = vadd.f32 %v6600, 1.0
        %v6608 = vadd.f32 %v6602, 1.0
        %v6609 = vadd.f32 %v6604, 1.0
        %v6610 = vrcp.pop %v6605
        %v6611 = vmul.f32 1.0, %v6610
        %v6612 = vrcp.pop %v6606
        %v6613 = vmul.f32 1.0, %v6612
        %v6614 = vrcp.pop %v6607
        %v6615 = vmul.f32 1.0, %v6614
        %v6616 = vrcp.pop %v6608
        %v6617 = vmul.f32 1.0, %v6616
        %v6618 = vrcp.pop %v6609
        %v6619 = vmul.f32 1.0, %v6618
        %v6620 = vmul.f32 %v6564, %v6611
        %v6621 = vmul.f32 %v6567, %v6613
        %v6622 = vmul.f32 %v6572, %v6615
        %v6623 = vmul.f32 %v6575, %v6617
        %v6624 = vmul.f32 %v6580, %v6619
        %v6625 = vpack.c.bf16 %v6621, %v6620
        %v6626 = vpack.c.bf16 %v6623, %v6622
        %v6627 = vpack.c.bf16 %v6624, %v6624
        %v6628 = vld [vmem:[%s831] sm:$0xf]
        %v6629 = vld [vmem:[%s831 + $0x4] sm:$0xf]
        %v6630 = vld [vmem:[%s831 + $0x8] sm:$0xf]
        %v6631 = vld [vmem:[%s831 + $0xc] sm:$0xf]
        %v6632 = vld [vmem:[%s831 + $0x10] sm:$0xf]
        %v6633 = vld [vmem:[%s831 + $0x14] sm:$0xf]
        %v6634 = vld [vmem:[%s831 + $0x18] sm:$0xf]
        %v6635 = vld [vmem:[%s831 + $0x1c] sm:$0xf]
        %v6636 = vld [vmem:[%s831 + $0x20] sm:$0xf]
        %v6637 = vld [vmem:[%s831 + $0x24] sm:$0xf]
        %v6638 = vld [vmem:[%s831 + $0x28] sm:$0xf]
        %v6639 = vld [vmem:[%s831 + $0x2c] sm:$0xf]
        %v6640 = vld [vmem:[%s831 + $0x30] sm:$0xf]
        %v6641 = vld [vmem:[%s831 + $0x34] sm:$0xf]
        %v6642 = vld [vmem:[%s831 + $0x38] sm:$0xf]
        %v6643 = vld [vmem:[%s831 + $0x3c] sm:$0xf]
        %v6660 = vunpack.c.l.b16 %v6628
        %v6661 = vunpack.c.l.b16 %v6629
        %v6662 = vunpack.c.l.b16 %v6630
        %v6663 = vunpack.c.l.b16 %v6631
        %v6664 = vunpack.c.l.b16 %v6632
        %v6665 = vunpack.c.l.b16 %v6633
        %v6666 = vunpack.c.l.b16 %v6634
        %v6667 = vunpack.c.l.b16 %v6635
        %v6668 = vunpack.c.l.b16 %v6636
        %v6669 = vunpack.c.l.b16 %v6637
        %v6670 = vunpack.c.l.b16 %v6638
        %v6671 = vunpack.c.l.b16 %v6639
        %v6672 = vunpack.c.l.b16 %v6640
        %v6673 = vunpack.c.l.b16 %v6641
        %v6674 = vunpack.c.l.b16 %v6642
        %v6675 = vunpack.c.l.b16 %v6643
        %v6676 = vpack.c.b16 %v6661, %v6660
        %v6677 = vpack.c.b16 %v6663, %v6662
        %v6678 = vpack.c.b16 %v6665, %v6664
        %v6679 = vpack.c.b16 %v6667, %v6666
        %v6680 = vpack.c.b16 %v6669, %v6668
        %v6681 = vpack.c.b16 %v6671, %v6670
        %v6682 = vpack.c.b16 %v6673, %v6672
        %v6683 = vpack.c.b16 %v6675, %v6674
        %6692 = vmatprep.subr.bf16.mxu0 0
        %6693 = vmatpush1.bf16.msra.mxu0 %v6683
        %6694 = vmatprep.subr.bf16.mxu0 0
        %6695 = vmatpush1.bf16.msra.mxu0 %v6682
        %6696 = vmatprep.subr.bf16.mxu0 0
        %6697 = vmatpush1.bf16.msra.mxu0 %v6681
        %6698 = vmatprep.subr.bf16.mxu0 0
        %6699 = vmatpush1.bf16.msra.mxu0 %v6680
        %6700 = vmatprep.subr.bf16.mxu0 0
        %6701 = vmatpush1.bf16.msra.mxu0 %v6679
        %6702 = vmatprep.subr.bf16.mxu0 0
        %6703 = vmatpush1.bf16.msra.mxu0 %v6678
        %6704 = vmatprep.subr.bf16.mxu0 0
        %6705 = vmatpush1.bf16.msra.mxu0 %v6677
        %6706 = vmatprep.subr.bf16.mxu0 0
        %6707 = vmatpush1.bf16.msra.mxu0 %v6676
        %6708 = vmatprep.subr.bf16.mxu0 0
        %6709 = vmatpush2.bf16.msra.mxu0 0
        %6710 = vmatprep.subr.bf16.mxu0 0
        %6711 = vmatpush2.bf16.msra.mxu0 0
        %6712 = vmatprep.subr.bf16.mxu0 0
        %6713 = vmatpush2.bf16.msra.mxu0 0
        %6714 = vmatprep.subr.bf16.mxu0 0
        %6715 = vmatpush2.bf16.msra.mxu0 0
        %6716 = vmatprep.subr.bf16.mxu0 0
        %6717 = vmatpush2.bf16.msra.mxu0 0
        %6718 = vmatprep.subr.bf16.mxu0 0
        %6719 = vmatpush2.bf16.msra.mxu0 0
        %6720 = vmatprep.subr.bf16.mxu0 0
        %6721 = vmatpush2.bf16.msra.mxu0 0
        %6722 = vmatprep.subr.bf16.mxu0 0
        %6723 = vmatpush2.bf16.msra.mxu0 0
        %6724 = vmatprep.mubr.bf16.mxu0 0
        %6725 = vmatmul.mubr.bf16.gmra.mxu0 %v6625
        %v6726 = vpop.f32.mrf.mxu0
        %v6727 = vadd.f32 0.0, %v6726
        %v6728 = vpop.f32.mrf.mxu0
        %v6729 = vpop.f32.mrf.mxu0
        %v6730 = vadd.f32 0.0, %v6729
        %v6731 = vpop.f32.mrf.mxu0
        %6732 = vmatprep.mubr.bf16.mxu0 0
        %6733 = vmatmul.mubr.bf16.gmra.mxu0 %v6626
        %v6734 = vpop.f32.mrf.mxu0
        %v6735 = vadd.f32 0.0, %v6734
        %v6736 = vpop.f32.mrf.mxu0
        %v6737 = vpop.f32.mrf.mxu0
        %v6738 = vadd.f32 0.0, %v6737
        %v6739 = vpop.f32.mrf.mxu0
        %6740 = vmatprep.mubr.bf16.mxu0 0
        %6741 = vmatmul.mubr.bf16.gmra.mxu0 %v6627
        %v6742 = vpop.f32.mrf.mxu0
        %v6743 = vadd.f32 0.0, %v6742
        %v6744 = vpop.f32.mrf.mxu0
        %v6745 = vpop.f32.mrf.mxu0
        %v6746 = vpop.f32.mrf.mxu0
        %6747 = vdwg.mxu0
        %v6748 = vadd.f32 %v6364, %v6727
        %v6749 = vadd.f32 %v6365, %v6730
        %v6750 = vadd.f32 %v6366, %v6735
        %v6751 = vadd.f32 %v6367, %v6738
        %v6752 = vadd.f32 %v6368, %v6743
        %v6753 = vld [vmem:[%s968] sm:$0x1]
        %v6755 = vlaneseq
        %v6756 = vshrl.u32 %v6755, 7
        %v6757 = vsub.s32 0, %v6756
        %v6758 = vrot.slane %v6753, %v6757
        %v6760 = vadd.f32 %v6748, %v6758
        %v6761 = vadd.f32 %v6749, %v6758
        %v6762 = vadd.f32 %v6750, %v6758
        %v6763 = vadd.f32 %v6751, %v6758
        %v6764 = vadd.f32 %v6752, %v6758
        %6765 = vst [vmem:[#allocation2] sm:$0xff] %v6760
        %6766 = vst [vmem:[#allocation2 + $0x8] sm:$0xff] %v6761
        %6767 = vst [vmem:[#allocation2 + $0x10] sm:$0xff] %v6762
        %6768 = vst [vmem:[#allocation2 + $0x18] sm:$0xff] %v6763
        %6769 = vst [vmem:[#allocation2 + $0x20] sm:$0x3] %v6764
        %p6770 = scmp.eq.s32.totalorder %s47, 1
        // Predicated region
        $region137: #{tpu_custom_call.1} parent=99 // pred_check
          %p6771 = pneg %p6770
        $region138: #{tpu_custom_call.1} parent=99 // pred_check_branch
          %6773 = sbr.rel (%p6771) target = $region140
        $region139: #{tpu_custom_call.1} parent=99 // pred_region
          %v6774 = vld [vmem:[%s17] sm:$0x1]
          %v6775 = vld [vmem:[%s18] sm:$0x1]
          %6776 = vadd.xlane.f32.xlu0 %v6760
          %v6777 = vpop.xlane.xlu0 %6776
          %6778 = vadd.xlane.f32.xlu0 %v6761
          %v6779 = vpop.xlane.xlu0 %6778
          %6780 = vadd.xlane.f32.xlu0 %v6762
          %v6781 = vpop.xlane.xlu0 %6780
          %6782 = vadd.xlane.f32.xlu0 %v6763
          %v6783 = vpop.xlane.xlu0 %6782
          %v6784 = vsel %vm2752, %v6764, 0.0
          %6785 = vadd.xlane.f32.xlu0 %v6784
          %v6786 = vpop.xlane.xlu0 %6785
          %v6787 = vmul.f32 %v6777, 0.03125
          %v6788 = vmul.f32 %v6779, 0.03125
          %v6789 = vmul.f32 %v6781, 0.03125
          %v6790 = vmul.f32 %v6783, 0.03125
          %v6791 = vmul.f32 %v6786, 0.03125
          %v6792 = vsub.f32 %v6760, %v6787
          %v6793 = vsub.f32 %v6761, %v6788
          %v6794 = vsub.f32 %v6762, %v6789
          %v6795 = vsub.f32 %v6763, %v6790
          %v6796 = vsub.f32 %v6764, %v6791
          %v6797 = vsel %vm2763, %v6792, 0.0
          %v6798 = vsel %vm2763, %v6793, 0.0
          %v6799 = vsel %vm2763, %v6794, 0.0
          %v6800 = vsel %vm2763, %v6795, 0.0
          %v6801 = vsel %vm2763, %v6796, 0.0
          %v6802 = vmul.f32 %v6797, %v6797
          %v6803 = vmul.f32 %v6798, %v6798
          %v6804 = vmul.f32 %v6799, %v6799
          %v6805 = vmul.f32 %v6800, %v6800
          %v6806 = vmul.f32 %v6801, %v6801
          %6807 = vadd.xlane.f32.xlu0 %v6802
          %v6808 = vpop.xlane.xlu0 %6807
          %6809 = vadd.xlane.f32.xlu0 %v6803
          %v6810 = vpop.xlane.xlu0 %6809
          %6811 = vadd.xlane.f32.xlu0 %v6804
          %v6812 = vpop.xlane.xlu0 %6811
          %6813 = vadd.xlane.f32.xlu0 %v6805
          %v6814 = vpop.xlane.xlu0 %6813
          %v6815 = vsel %vm2752, %v6806, 0.0
          %6816 = vadd.xlane.f32.xlu0 %v6815
          %v6817 = vpop.xlane.xlu0 %6816
          %v6818 = vmul.f32 %v6808, 0.03125
          %v6819 = vmul.f32 %v6810, 0.03125
          %v6820 = vmul.f32 %v6812, 0.03125
          %v6821 = vmul.f32 %v6814, 0.03125
          %v6822 = vmul.f32 %v6817, 0.03125
          %v6823 = vadd.f32 %v6818, 1e-05
          %v6824 = vadd.f32 %v6819, 1e-05
          %v6825 = vadd.f32 %v6820, 1e-05
          %v6826 = vadd.f32 %v6821, 1e-05
          %v6827 = vadd.f32 %v6822, 1e-05
          %v6828 = vrsqrt.pop %v6823
          %v6829 = vrsqrt.pop %v6824
          %v6830 = vrsqrt.pop %v6825
          %v6831 = vrsqrt.pop %v6826
          %v6832 = vrsqrt.pop %v6827
          %v6833 = vmul.f32 %v6797, %v6828
          %v6834 = vmul.f32 %v6798, %v6829
          %v6835 = vmul.f32 %v6799, %v6830
          %v6836 = vmul.f32 %v6800, %v6831
          %v6837 = vmul.f32 %v6801, %v6832
          %v6839 = vlaneseq
          %v6840 = vshrl.u32 %v6839, 7
          %v6841 = vsub.s32 0, %v6840
          %v6842 = vrot.slane %v6774, %v6841
          %v6844 = vmul.f32 %v6833, %v6842
          %v6845 = vmul.f32 %v6834, %v6842
          %v6846 = vmul.f32 %v6835, %v6842
          %v6847 = vmul.f32 %v6836, %v6842
          %v6848 = vmul.f32 %v6837, %v6842
          %v6850 = vlaneseq
          %v6851 = vshrl.u32 %v6850, 7
          %v6852 = vsub.s32 0, %v6851
          %v6853 = vrot.slane %v6775, %v6852
          %v6855 = vadd.f32 %v6844, %v6853
          %v6856 = vadd.f32 %v6845, %v6853
          %v6857 = vadd.f32 %v6846, %v6853
          %v6858 = vadd.f32 %v6847, %v6853
          %v6859 = vadd.f32 %v6848, %v6853
          %v6860 = vpack.c.bf16 %v6856, %v6855
          %v6861 = vpack.c.bf16 %v6858, %v6857
          %v6862 = vpack.c.bf16 %v6859, %v6859
          %v6863 = vld [vmem:[%s19] sm:$0xf]
          %v6864 = vld [vmem:[%s19 + $0x4] sm:$0xf]
          %v6865 = vld [vmem:[%s19 + $0x8] sm:$0xf]
          %v6866 = vld [vmem:[%s19 + $0xc] sm:$0xf]
          %v6867 = vld [vmem:[%s19 + $0x10] sm:$0xf]
          %v6868 = vld [vmem:[%s19 + $0x14] sm:$0xf]
          %v6869 = vld [vmem:[%s19 + $0x18] sm:$0xf]
          %v6870 = vld [vmem:[%s19 + $0x1c] sm:$0xf]
          %v6871 = vld [vmem:[%s19 + $0x20] sm:$0xf]
          %v6872 = vld [vmem:[%s19 + $0x24] sm:$0xf]
          %v6873 = vld [vmem:[%s19 + $0x28] sm:$0xf]
          %v6874 = vld [vmem:[%s19 + $0x2c] sm:$0xf]
          %v6875 = vld [vmem:[%s19 + $0x30] sm:$0xf]
          %v6876 = vld [vmem:[%s19 + $0x34] sm:$0xf]
          %v6877 = vld [vmem:[%s19 + $0x38] sm:$0xf]
          %v6878 = vld [vmem:[%s19 + $0x3c] sm:$0xf]
          %v6895 = vunpack.c.l.b16 %v6863
          %v6896 = vunpack.c.l.b16 %v6864
          %v6897 = vunpack.c.l.b16 %v6865
          %v6898 = vunpack.c.l.b16 %v6866
          %v6899 = vunpack.c.l.b16 %v6867
          %v6900 = vunpack.c.l.b16 %v6868
          %v6901 = vunpack.c.l.b16 %v6869
          %v6902 = vunpack.c.l.b16 %v6870
          %v6903 = vunpack.c.l.b16 %v6871
          %v6904 = vunpack.c.l.b16 %v6872
          %v6905 = vunpack.c.l.b16 %v6873
          %v6906 = vunpack.c.l.b16 %v6874
          %v6907 = vunpack.c.l.b16 %v6875
          %v6908 = vunpack.c.l.b16 %v6876
          %v6909 = vunpack.c.l.b16 %v6877
          %v6910 = vunpack.c.l.b16 %v6878
          %v6911 = vpack.c.b16 %v6896, %v6895
          %v6912 = vpack.c.b16 %v6898, %v6897
          %v6913 = vpack.c.b16 %v6900, %v6899
          %v6914 = vpack.c.b16 %v6902, %v6901
          %v6915 = vpack.c.b16 %v6904, %v6903
          %v6916 = vpack.c.b16 %v6906, %v6905
          %v6917 = vpack.c.b16 %v6908, %v6907
          %v6918 = vpack.c.b16 %v6910, %v6909
          %6927 = vmatprep.subr.bf16.mxu0 0
          %6928 = vmatpush1.bf16.msra.mxu0 %v6918
          %6929 = vmatprep.subr.bf16.mxu0 0
          %6930 = vmatpush1.bf16.msra.mxu0 %v6917
          %6931 = vmatprep.subr.bf16.mxu0 0
          %6932 = vmatpush1.bf16.msra.mxu0 %v6916
          %6933 = vmatprep.subr.bf16.mxu0 0
          %6934 = vmatpush1.bf16.msra.mxu0 %v6915
          %6935 = vmatprep.subr.bf16.mxu0 0
          %6936 = vmatpush1.bf16.msra.mxu0 %v6914
          %6937 = vmatprep.subr.bf16.mxu0 0
          %6938 = vmatpush1.bf16.msra.mxu0 %v6913
          %6939 = vmatprep.subr.bf16.mxu0 0
          %6940 = vmatpush1.bf16.msra.mxu0 %v6912
          %6941 = vmatprep.subr.bf16.mxu0 0
          %6942 = vmatpush1.bf16.msra.mxu0 %v6911
          %6943 = vmatprep.subr.bf16.mxu0 0
          %6944 = vmatpush2.bf16.msra.mxu0 0
          %6945 = vmatprep.subr.bf16.mxu0 0
          %6946 = vmatpush2.bf16.msra.mxu0 0
          %6947 = vmatprep.subr.bf16.mxu0 0
          %6948 = vmatpush2.bf16.msra.mxu0 0
          %6949 = vmatprep.subr.bf16.mxu0 0
          %6950 = vmatpush2.bf16.msra.mxu0 0
          %6951 = vmatprep.subr.bf16.mxu0 0
          %6952 = vmatpush2.bf16.msra.mxu0 0
          %6953 = vmatprep.subr.bf16.mxu0 0
          %6954 = vmatpush2.bf16.msra.mxu0 0
          %6955 = vmatprep.subr.bf16.mxu0 0
          %6956 = vmatpush2.bf16.msra.mxu0 0
          %6957 = vmatprep.subr.bf16.mxu0 0
          %6958 = vmatpush2.bf16.msra.mxu0 0
          %6959 = vmatprep.mubr.bf16.mxu0 0
          %6960 = vmatmul.mubr.bf16.gmra.mxu0 %v6860
          %v6961 = vpop.f32.mrf.mxu0
          %v6962 = vadd.f32 0.0, %v6961
          %v6963 = vpop.f32.mrf.mxu0
          %v6964 = vpop.f32.mrf.mxu0
          %v6965 = vadd.f32 0.0, %v6964
          %v6966 = vpop.f32.mrf.mxu0
          %6967 = vmatprep.mubr.bf16.mxu0 0
          %6968 = vmatmul.mubr.bf16.gmra.mxu0 %v6861
          %v6969 = vpop.f32.mrf.mxu0
          %v6970 = vadd.f32 0.0, %v6969
          %v6971 = vpop.f32.mrf.mxu0
          %v6972 = vpop.f32.mrf.mxu0
          %v6973 = vadd.f32 0.0, %v6972
          %v6974 = vpop.f32.mrf.mxu0
          %6975 = vmatprep.mubr.bf16.mxu0 0
          %6976 = vmatmul.mubr.bf16.gmra.mxu0 %v6862
          %v6977 = vpop.f32.mrf.mxu0
          %v6978 = vadd.f32 0.0, %v6977
          %v6979 = vpop.f32.mrf.mxu0
          %v6980 = vpop.f32.mrf.mxu0
          %v6981 = vpop.f32.mrf.mxu0
          %6982 = vdwg.mxu0
          %v6988 = vcombine.high %v6962, %v6962
          %v6990 = vunpack.c.l.s4 1966171168
          %v6991 = vunpack.c.0.s8 %v6990
          %v6992 = vlaneseq
          %v6993 = vshrl.u32 %v6992, 7
          %v6994 = vsub.s32 %v6991, %v6993
          %v6995 = vrot.slane %v6962, %v6994
          %v6997 = vunpack.c.l.s4 1966171168
          %v6998 = vunpack.c.0.s8 %v6997
          %v6999 = vlaneseq
          %v7000 = vshrl.u32 %v6999, 7
          %v7001 = vsub.s32 %v6998, %v7000
          %v7002 = vrot.slane %v6988, %v7001
          %v7003 = vcombine.high %v6995, %v6995
          %v7004 = vcombine.high %v7002, %v7002
          %v7006 = vunpack.c.l.s4 1966171168
          %v7007 = vunpack.c.0.s8 %v7006
          %v7008 = vlaneseq
          %v7009 = vshrl.u32 %v7008, 7
          %v7010 = vsub.s32 %v7007, %v7009
          %v7011 = vrot.slane %v6995, %v7010
          %v7013 = vunpack.c.l.s4 1966171168
          %v7014 = vunpack.c.0.s8 %v7013
          %v7015 = vlaneseq
          %v7016 = vshrl.u32 %v7015, 7
          %v7017 = vsub.s32 %v7014, %v7016
          %v7018 = vrot.slane %v7002, %v7017
          %v7020 = vunpack.c.l.s4 1966171168
          %v7021 = vunpack.c.0.s8 %v7020
          %v7022 = vlaneseq
          %v7023 = vshrl.u32 %v7022, 7
          %v7024 = vsub.s32 %v7021, %v7023
          %v7025 = vrot.slane %v7003, %v7024
          %v7027 = vunpack.c.l.s4 1966171168
          %v7028 = vunpack.c.0.s8 %v7027
          %v7029 = vlaneseq
          %v7030 = vshrl.u32 %v7029, 7
          %v7031 = vsub.s32 %v7028, %v7030
          %v7032 = vrot.slane %v7004, %v7031
          %v7033 = vcombine.high %v7011, %v7011
          %v7034 = vcombine.high %v7018, %v7018
          %v7035 = vcombine.high %v7025, %v7025
          %v7036 = vcombine.high %v7032, %v7032
          %v7037 = vcombine.high %v6965, %v6965
          %v7039 = vunpack.c.l.s4 1966171168
          %v7040 = vunpack.c.0.s8 %v7039
          %v7041 = vlaneseq
          %v7042 = vshrl.u32 %v7041, 7
          %v7043 = vsub.s32 %v7040, %v7042
          %v7044 = vrot.slane %v6965, %v7043
          %v7046 = vunpack.c.l.s4 1966171168
          %v7047 = vunpack.c.0.s8 %v7046
          %v7048 = vlaneseq
          %v7049 = vshrl.u32 %v7048, 7
          %v7050 = vsub.s32 %v7047, %v7049
          %v7051 = vrot.slane %v7037, %v7050
          %v7052 = vcombine.high %v7044, %v7044
          %v7053 = vcombine.high %v7051, %v7051
          %v7055 = vunpack.c.l.s4 1966171168
          %v7056 = vunpack.c.0.s8 %v7055
          %v7057 = vlaneseq
          %v7058 = vshrl.u32 %v7057, 7
          %v7059 = vsub.s32 %v7056, %v7058
          %v7060 = vrot.slane %v7044, %v7059
          %v7062 = vunpack.c.l.s4 1966171168
          %v7063 = vunpack.c.0.s8 %v7062
          %v7064 = vlaneseq
          %v7065 = vshrl.u32 %v7064, 7
          %v7066 = vsub.s32 %v7063, %v7065
          %v7067 = vrot.slane %v7051, %v7066
          %v7069 = vunpack.c.l.s4 1966171168
          %v7070 = vunpack.c.0.s8 %v7069
          %v7071 = vlaneseq
          %v7072 = vshrl.u32 %v7071, 7
          %v7073 = vsub.s32 %v7070, %v7072
          %v7074 = vrot.slane %v7052, %v7073
          %v7076 = vunpack.c.l.s4 1966171168
          %v7077 = vunpack.c.0.s8 %v7076
          %v7078 = vlaneseq
          %v7079 = vshrl.u32 %v7078, 7
          %v7080 = vsub.s32 %v7077, %v7079
          %v7081 = vrot.slane %v7053, %v7080
          %v7082 = vcombine.high %v7060, %v7060
          %v7083 = vcombine.high %v7067, %v7067
          %v7084 = vcombine.high %v7074, %v7074
          %v7085 = vcombine.high %v7081, %v7081
          %v7086 = vcombine.high %v6970, %v6970
          %v7088 = vunpack.c.l.s4 1966171168
          %v7089 = vunpack.c.0.s8 %v7088
          %v7090 = vlaneseq
          %v7091 = vshrl.u32 %v7090, 7
          %v7092 = vsub.s32 %v7089, %v7091
          %v7093 = vrot.slane %v6970, %v7092
          %v7095 = vunpack.c.l.s4 1966171168
          %v7096 = vunpack.c.0.s8 %v7095
          %v7097 = vlaneseq
          %v7098 = vshrl.u32 %v7097, 7
          %v7099 = vsub.s32 %v7096, %v7098
          %v7100 = vrot.slane %v7086, %v7099
          %v7101 = vcombine.high %v7093, %v7093
          %v7102 = vcombine.high %v7100, %v7100
          %v7104 = vunpack.c.l.s4 1966171168
          %v7105 = vunpack.c.0.s8 %v7104
          %v7106 = vlaneseq
          %v7107 = vshrl.u32 %v7106, 7
          %v7108 = vsub.s32 %v7105, %v7107
          %v7109 = vrot.slane %v7093, %v7108
          %v7111 = vunpack.c.l.s4 1966171168
          %v7112 = vunpack.c.0.s8 %v7111
          %v7113 = vlaneseq
          %v7114 = vshrl.u32 %v7113, 7
          %v7115 = vsub.s32 %v7112, %v7114
          %v7116 = vrot.slane %v7100, %v7115
          %v7118 = vunpack.c.l.s4 1966171168
          %v7119 = vunpack.c.0.s8 %v7118
          %v7120 = vlaneseq
          %v7121 = vshrl.u32 %v7120, 7
          %v7122 = vsub.s32 %v7119, %v7121
          %v7123 = vrot.slane %v7101, %v7122
          %v7125 = vunpack.c.l.s4 1966171168
          %v7126 = vunpack.c.0.s8 %v7125
          %v7127 = vlaneseq
          %v7128 = vshrl.u32 %v7127, 7
          %v7129 = vsub.s32 %v7126, %v7128
          %v7130 = vrot.slane %v7102, %v7129
          %v7131 = vcombine.high %v7109, %v7109
          %v7132 = vcombine.high %v7116, %v7116
          %v7133 = vcombine.high %v7123, %v7123
          %v7134 = vcombine.high %v7130, %v7130
          %v7135 = vcombine.high %v6973, %v6973
          %v7137 = vunpack.c.l.s4 1966171168
          %v7138 = vunpack.c.0.s8 %v7137
          %v7139 = vlaneseq
          %v7140 = vshrl.u32 %v7139, 7
          %v7141 = vsub.s32 %v7138, %v7140
          %v7142 = vrot.slane %v6973, %v7141
          %v7144 = vunpack.c.l.s4 1966171168
          %v7145 = vunpack.c.0.s8 %v7144
          %v7146 = vlaneseq
          %v7147 = vshrl.u32 %v7146, 7
          %v7148 = vsub.s32 %v7145, %v7147
          %v7149 = vrot.slane %v7135, %v7148
          %v7150 = vcombine.high %v7142, %v7142
          %v7151 = vcombine.high %v7149, %v7149
          %v7153 = vunpack.c.l.s4 1966171168
          %v7154 = vunpack.c.0.s8 %v7153
          %v7155 = vlaneseq
          %v7156 = vshrl.u32 %v7155, 7
          %v7157 = vsub.s32 %v7154, %v7156
          %v7158 = vrot.slane %v7142, %v7157
          %v7160 = vunpack.c.l.s4 1966171168
          %v7161 = vunpack.c.0.s8 %v7160
          %v7162 = vlaneseq
          %v7163 = vshrl.u32 %v7162, 7
          %v7164 = vsub.s32 %v7161, %v7163
          %v7165 = vrot.slane %v7149, %v7164
          %v7167 = vunpack.c.l.s4 1966171168
          %v7168 = vunpack.c.0.s8 %v7167
          %v7169 = vlaneseq
          %v7170 = vshrl.u32 %v7169, 7
          %v7171 = vsub.s32 %v7168, %v7170
          %v7172 = vrot.slane %v7150, %v7171
          %v7174 = vunpack.c.l.s4 1966171168
          %v7175 = vunpack.c.0.s8 %v7174
          %v7176 = vlaneseq
          %v7177 = vshrl.u32 %v7176, 7
          %v7178 = vsub.s32 %v7175, %v7177
          %v7179 = vrot.slane %v7151, %v7178
          %v7180 = vcombine.high %v7158, %v7158
          %v7181 = vcombine.high %v7165, %v7165
          %v7182 = vcombine.high %v7172, %v7172
          %v7183 = vcombine.high %v7179, %v7179
          %v7185 = vunpack.c.l.s4 1966171168
          %v7186 = vunpack.c.0.s8 %v7185
          %v7187 = vlaneseq
          %v7188 = vshrl.u32 %v7187, 7
          %v7189 = vsub.s32 %v7186, %v7188
          %v7190 = vrot.slane %v6978, %v7189
          %v7191 = vcombine.high %v7190, %v7190
          %v7193 = vunpack.c.l.s4 1966171168
          %v7194 = vunpack.c.0.s8 %v7193
          %v7195 = vlaneseq
          %v7196 = vshrl.u32 %v7195, 7
          %v7197 = vsub.s32 %v7194, %v7196
          %v7198 = vrot.slane %v7190, %v7197
          %v7200 = vunpack.c.l.s4 1966171168
          %v7201 = vunpack.c.0.s8 %v7200
          %v7202 = vlaneseq
          %v7203 = vshrl.u32 %v7202, 7
          %v7204 = vsub.s32 %v7201, %v7203
          %v7205 = vrot.slane %v7191, %v7204
          %v7206 = vcombine.low %v7011, %v7025
          %v7207 = vcombine.low %v7033, %v7035
          %v7208 = vcombine.low %v7018, %v7032
          %v7209 = vcombine.low %v7034, %v7036
          %v7211 = vunpack.c.l.s4 1966171168
          %v7212 = vunpack.c.0.s8 %v7211
          %v7213 = vlaneseq
          %v7214 = vshrl.u32 %v7213, 7
          %v7215 = vsub.s32 %v7212, %v7214
          %v7216 = vrot.slane %v7206, %v7215
          %v7218 = vunpack.c.l.s4 1966171168
          %v7219 = vunpack.c.0.s8 %v7218
          %v7220 = vlaneseq
          %v7221 = vshrl.u32 %v7220, 7
          %v7222 = vsub.s32 %v7219, %v7221
          %v7223 = vrot.slane %v7207, %v7222
          %v7225 = vunpack.c.l.s4 1966171168
          %v7226 = vunpack.c.0.s8 %v7225
          %v7227 = vlaneseq
          %v7228 = vshrl.u32 %v7227, 7
          %v7229 = vsub.s32 %v7226, %v7228
          %v7230 = vrot.slane %v7208, %v7229
          %v7232 = vunpack.c.l.s4 1966171168
          %v7233 = vunpack.c.0.s8 %v7232
          %v7234 = vlaneseq
          %v7235 = vshrl.u32 %v7234, 7
          %v7236 = vsub.s32 %v7233, %v7235
          %v7237 = vrot.slane %v7209, %v7236
          %v7238 = vcombine.low %v7216, %v7223
          %v7239 = vcombine.low %v7230, %v7237
          %v7241 = vunpack.c.l.s4 1966171168
          %v7242 = vunpack.c.0.s8 %v7241
          %v7243 = vlaneseq
          %v7244 = vshrl.u32 %v7243, 7
          %v7245 = vsub.s32 %v7242, %v7244
          %v7246 = vrot.slane %v7238, %v7245
          %v7248 = vunpack.c.l.s4 1966171168
          %v7249 = vunpack.c.0.s8 %v7248
          %v7250 = vlaneseq
          %v7251 = vshrl.u32 %v7250, 7
          %v7252 = vsub.s32 %v7249, %v7251
          %v7253 = vrot.slane %v7239, %v7252
          %v7254 = vcombine.low %v7246, %v7253
          %v7255 = vcombine.low %v7060, %v7074
          %v7256 = vcombine.low %v7082, %v7084
          %v7257 = vcombine.low %v7067, %v7081
          %v7258 = vcombine.low %v7083, %v7085
          %v7260 = vunpack.c.l.s4 1966171168
          %v7261 = vunpack.c.0.s8 %v7260
          %v7262 = vlaneseq
          %v7263 = vshrl.u32 %v7262, 7
          %v7264 = vsub.s32 %v7261, %v7263
          %v7265 = vrot.slane %v7255, %v7264
          %v7267 = vunpack.c.l.s4 1966171168
          %v7268 = vunpack.c.0.s8 %v7267
          %v7269 = vlaneseq
          %v7270 = vshrl.u32 %v7269, 7
          %v7271 = vsub.s32 %v7268, %v7270
          %v7272 = vrot.slane %v7256, %v7271
          %v7274 = vunpack.c.l.s4 1966171168
          %v7275 = vunpack.c.0.s8 %v7274
          %v7276 = vlaneseq
          %v7277 = vshrl.u32 %v7276, 7
          %v7278 = vsub.s32 %v7275, %v7277
          %v7279 = vrot.slane %v7257, %v7278
          %v7281 = vunpack.c.l.s4 1966171168
          %v7282 = vunpack.c.0.s8 %v7281
          %v7283 = vlaneseq
          %v7284 = vshrl.u32 %v7283, 7
          %v7285 = vsub.s32 %v7282, %v7284
          %v7286 = vrot.slane %v7258, %v7285
          %v7287 = vcombine.low %v7265, %v7272
          %v7288 = vcombine.low %v7279, %v7286
          %v7290 = vunpack.c.l.s4 1966171168
          %v7291 = vunpack.c.0.s8 %v7290
          %v7292 = vlaneseq
          %v7293 = vshrl.u32 %v7292, 7
          %v7294 = vsub.s32 %v7291, %v7293
          %v7295 = vrot.slane %v7287, %v7294
          %v7297 = vunpack.c.l.s4 1966171168
          %v7298 = vunpack.c.0.s8 %v7297
          %v7299 = vlaneseq
          %v7300 = vshrl.u32 %v7299, 7
          %v7301 = vsub.s32 %v7298, %v7300
          %v7302 = vrot.slane %v7288, %v7301
          %v7303 = vcombine.low %v7295, %v7302
          %v7305 = vunpack.c.l.s4 1966171168
          %v7306 = vunpack.c.0.s8 %v7305
          %v7307 = vlaneseq
          %v7308 = vshrl.u32 %v7307, 7
          %v7309 = vsub.s32 %v7306, %v7308
          %v7310 = vrot.slane %v7109, %v7309
          %v7312 = vunpack.c.l.s4 1966171168
          %v7313 = vunpack.c.0.s8 %v7312
          %v7314 = vlaneseq
          %v7315 = vshrl.u32 %v7314, 7
          %v7316 = vsub.s32 %v7313, %v7315
          %v7317 = vrot.slane %v7310, %v7316
          %v7318 = vcombine.low %v7123, %v7131
          %v7319 = vcombine.low %v7133, %v7116
          %v7320 = vcombine.low %v7130, %v7132
          %v7321 = vcombine.low %v7134, %v7158
          %v7323 = vunpack.c.l.s4 1966171168
          %v7324 = vunpack.c.0.s8 %v7323
          %v7325 = vlaneseq
          %v7326 = vshrl.u32 %v7325, 7
          %v7327 = vsub.s32 %v7324, %v7326
          %v7328 = vrot.slane %v7318, %v7327
          %v7330 = vunpack.c.l.s4 1966171168
          %v7331 = vunpack.c.0.s8 %v7330
          %v7332 = vlaneseq
          %v7333 = vshrl.u32 %v7332, 7
          %v7334 = vsub.s32 %v7331, %v7333
          %v7335 = vrot.slane %v7319, %v7334
          %v7337 = vunpack.c.l.s4 1966171168
          %v7338 = vunpack.c.0.s8 %v7337
          %v7339 = vlaneseq
          %v7340 = vshrl.u32 %v7339, 7
          %v7341 = vsub.s32 %v7338, %v7340
          %v7342 = vrot.slane %v7320, %v7341
          %v7344 = vunpack.c.l.s4 1966171168
          %v7345 = vunpack.c.0.s8 %v7344
          %v7346 = vlaneseq
          %v7347 = vshrl.u32 %v7346, 7
          %v7348 = vsub.s32 %v7345, %v7347
          %v7349 = vrot.slane %v7321, %v7348
          %v7350 = vcombine.low %v7328, %v7335
          %v7351 = vcombine.low %v7342, %v7349
          %v7353 = vunpack.c.l.s4 1966171168
          %v7354 = vunpack.c.0.s8 %v7353
          %v7355 = vlaneseq
          %v7356 = vshrl.u32 %v7355, 7
          %v7357 = vsub.s32 %v7354, %v7356
          %v7358 = vrot.slane %v7350, %v7357
          %v7360 = vunpack.c.l.s4 1966171168
          %v7361 = vunpack.c.0.s8 %v7360
          %v7362 = vlaneseq
          %v7363 = vshrl.u32 %v7362, 7
          %v7364 = vsub.s32 %v7361, %v7363
          %v7365 = vrot.slane %v7351, %v7364
          %v7366 = vcombine.low %v7358, %v7365
          %v7367 = vcombine.low %v7172, %v7180
          %v7368 = vcombine.low %v7182, %v7165
          %v7369 = vcombine.low %v7179, %v7181
          %v7370 = vcombine.low %v7183, %v7198
          %v7372 = vunpack.c.l.s4 1966171168
          %v7373 = vunpack.c.0.s8 %v7372
          %v7374 = vlaneseq
          %v7375 = vshrl.u32 %v7374, 7
          %v7376 = vsub.s32 %v7373, %v7375
          %v7377 = vrot.slane %v7367, %v7376
          %v7379 = vunpack.c.l.s4 1966171168
          %v7380 = vunpack.c.0.s8 %v7379
          %v7381 = vlaneseq
          %v7382 = vshrl.u32 %v7381, 7
          %v7383 = vsub.s32 %v7380, %v7382
          %v7384 = vrot.slane %v7368, %v7383
          %v7386 = vunpack.c.l.s4 1966171168
          %v7387 = vunpack.c.0.s8 %v7386
          %v7388 = vlaneseq
          %v7389 = vshrl.u32 %v7388, 7
          %v7390 = vsub.s32 %v7387, %v7389
          %v7391 = vrot.slane %v7369, %v7390
          %v7393 = vunpack.c.l.s4 1966171168
          %v7394 = vunpack.c.0.s8 %v7393
          %v7395 = vlaneseq
          %v7396 = vshrl.u32 %v7395, 7
          %v7397 = vsub.s32 %v7394, %v7396
          %v7398 = vrot.slane %v7370, %v7397
          %v7399 = vcombine.low %v7377, %v7384
          %v7400 = vcombine.low %v7391, %v7398
          %v7402 = vunpack.c.l.s4 1966171168
          %v7403 = vunpack.c.0.s8 %v7402
          %v7404 = vlaneseq
          %v7405 = vshrl.u32 %v7404, 7
          %v7406 = vsub.s32 %v7403, %v7405
          %v7407 = vrot.slane %v7399, %v7406
          %v7409 = vunpack.c.l.s4 1966171168
          %v7410 = vunpack.c.0.s8 %v7409
          %v7411 = vlaneseq
          %v7412 = vshrl.u32 %v7411, 7
          %v7413 = vsub.s32 %v7410, %v7412
          %v7414 = vrot.slane %v7400, %v7413
          %v7415 = vcombine.low %v7407, %v7414
          %v7417 = vunpack.c.l.s4 1966171168
          %v7418 = vunpack.c.0.s8 %v7417
          %v7419 = vlaneseq
          %v7420 = vshrl.u32 %v7419, 7
          %v7421 = vsub.s32 %v7418, %v7420
          %v7422 = vrot.slane %v7205, %v7421
          %v7424 = vunpack.c.l.s4 1966171168
          %v7425 = vunpack.c.0.s8 %v7424
          %v7426 = vlaneseq
          %v7427 = vshrl.u32 %v7426, 7
          %v7428 = vsub.s32 %v7425, %v7427
          %v7429 = vrot.slane %v7422, %v7428
          %7436 = vst [vmem:[%s974] sm:$0xff] %v7254
          %7437 = vst [vmem:[%s974 + $0x8] sm:$0xff] %v7303
          %7438 = vst [vmem:[%s974 + $0x10] sm:$0x1] %v7317
          %7439 = vst [vmem:[%s974 + $0x18] sm:$0xff] %v7366
          %7440 = vst [vmem:[%s974 + $0x20] sm:$0xff] %v7415
          %7441 = vst [vmem:[%s974 + $0x28] sm:$0x1] %v7429
        $region140: #{tpu_custom_call.1} parent=99 // pred_fallthru
          _
        %s7442 = smul.u32 2, %s46
        %p7443 = scmp.lt.s32.totalorder %s7442, 1
        %s7444 = scalar_select %p7443, %s7442, 1
        %s7445 = smul.addr %s7444, 3
        %s7446 = smul.addr %s7445, 8
        %s7447 = scalar_lea.vmem %s20, %s7446
        // Predicated region
        $region141: #{tpu_custom_call.1} parent=99 // pred_check
          %p7448 = pneg %p557
        $region142: #{tpu_custom_call.1} parent=99 // pred_check_branch
          %7450 = sbr.rel (%p7448) target = $region144
        $region143: #{tpu_custom_call.1} parent=99 // pred_region
          %s7451 = smul.u32 2, %s46
        $region144: #{tpu_custom_call.1} parent=99 // pred_fallthru
          _
        // Predicated region
        $region145: #{tpu_custom_call.1} parent=99 // pred_check
          %p7452 = pneg %p557
        $region146: #{tpu_custom_call.1} parent=99 // pred_check_branch
          %7454 = sbr.rel (%p7452) target = $region148
        $region147: #{tpu_custom_call.1} parent=99 // pred_region
          %s7455 = smul.u32 2, %s46
          %p7456 = scmp.lt.s32.totalorder %s7455, 1
          %s7457 = scalar_select %p7456, %s7455, 1
          %s7458 = smul.addr %s7457, 3
          %s7459 = smul.addr %s7458, 8
          %s7460 = scalar_lea.vmem %s20, %s7459
        $region148: #{tpu_custom_call.1} parent=99 // pred_fallthru
          _
      $region100: #{tpu_custom_call.1} parent=5 // pred_fallthru
        _
      %p7461 = scmp.le.s32.totalorder 2, %s37
      // Predicated region
      $region149: #{tpu_custom_call.1} parent=5 // pred_check
        %p7462 = pneg %p7461
      $region150: #{tpu_custom_call.1} parent=5 // pred_check_branch
        %7464 = sbr.rel (%p7462) target = $region152
      $region151: #{tpu_custom_call.1} parent=5 // pred_region
        %s7465 = ssub.s32 %s37, 2
      $region152: #{tpu_custom_call.1} parent=5 // pred_fallthru
        _
    $region6: #{tpu_custom_call.1} parent=1 // loop_footer
      %s41 = sadd.s32 1, %s37
    $region7: #{tpu_custom_call.1} parent=1 // loop_footer_branch
      %36 = sbr.rel target = $region3
    $region8: #{tpu_custom_call.1} parent=1 // loop_exit
      _
    %7466 = vsyncpa [#allocation4], 1
    %s7467 = scalar_lea.sflag [#allocation4], 1
    %7468 = vsyncpa %s7467, 1
    %7469 = vsyncpa [#allocation6], 1
    %7470 = vsyncpa [#allocation9], 1
    %s7471 = scalar_lea.sflag [#allocation9], 1
    %7472 = vsyncpa %s7471, 1
    %7473 = vsyncpa [#allocation12], 1
    %s7474 = scalar_lea.sflag [#allocation12], 1
    %7475 = vsyncpa %s7474, 1
    %7476 = vsyncpa [#allocation15], 1
    %s7477 = scalar_lea.sflag [#allocation15], 1
    %7478 = vsyncpa %s7477, 1

</llo_original>
